<compile_context>
chip_gen: v7x
topology: tpu7x:2x2x1
jax: 0.10.0
libtpu: 0.0.40
codegen_flags: <defaults>
</compile_context>

<pallas_src>
import functools

import jax
import jax.numpy as jnp
from jax import lax
from jax.experimental import pallas as pl
from jax.experimental.pallas import tpu as pltpu


# ----------------------------- Pallas kernel --------------------------------
def made_kernel(idx_ref,
                w1_ref, b1_ref,
                w2_ref, b2_ref,
                w3_ref, b3_ref,
                w4_ref, b4_ref,
                w5_ref, b5_ref,
                o_ref):
    """Fused 5-layer masked MLP (one-hot input built in-kernel) + ReLU + log_softmax.

    idx_ref: (TB, 2)   int32 coordinates in [0, d)
    w*_ref:  (F, F)    bf16 pre-masked, pre-transposed weights (in, out), F = 2*d
    b*_ref:  (1, F)    f32 biases
    o_ref:   (TB, F)   f32 log-probabilities; halves [:, :d] and [:, d:] each normalized
    """
    tb = o_ref.shape[0]
    F = o_ref.shape[1]
    d = F // 2

    # ---- build the full (tb, F) one-hot in one shot (exact in bf16) ----
    idx = idx_ref[...]                                            # (tb, 2) int32
    lane = lax.broadcasted_iota(jnp.int32, (tb, F), 1)            # (tb, F)
    oh = ((lane == idx[:, 0:1]) | (lane == (idx[:, 1:2] + d))).astype(jnp.bfloat16)

    def layer(h_bf16, w_ref, b_ref):
        # bf16 operands into the MXU, f32 accumulation; bias add in f32.
        return (jnp.dot(h_bf16, w_ref[...], preferred_element_type=jnp.float32)
                + b_ref[...])

    def relu_bf16(h_f32):
        # ReLU in f32 then cast: activation lives as bf16 between layers (16 vregs).
        return jnp.maximum(h_f32, 0.0).astype(jnp.bfloat16)

    # ---- layer 1 (TypeA masked linear): single K=F dot fully fills the MXU ----
    h = relu_bf16(layer(oh, w1_ref, b1_ref))
    # ---- 3x (TypeB masked linear + ReLU) ----
    h = relu_bf16(layer(h, w2_ref, b2_ref))
    h = relu_bf16(layer(h, w3_ref, b3_ref))
    h = relu_bf16(layer(h, w4_ref, b4_ref))
    # ---- final TypeB masked linear (logits, f32) ----
    h = layer(h, w5_ref, b5_ref)                                  # (tb, F) f32

    # ---- log_softmax on the two lane-aligned halves; lane-dense unmasked stores ----
    def log_softmax_half(z):
        m = jnp.max(z, axis=-1, keepdims=True)
        z = z - m
        return z - jnp.log(jnp.sum(jnp.exp(z), axis=-1, keepdims=True))

    o_ref[:, :d] = log_softmax_half(h[:, :d]).astype(o_ref.dtype)
    o_ref[:, d:] = log_softmax_half(h[:, d:]).astype(o_ref.dtype)


# ------------------------------ host wrapper ---------------------------------
def simple_made_forward(batch, params, *, cardinality, tile_b=512):
    """batch: (B, 2) int32 coordinates.  Returns (B, 2, cardinality) f32 log-probs."""
    d = cardinality
    F = 2 * d
    B = batch.shape[0]
    assert tile_b % 8 == 0

    ws, bs = params  # 5 pre-masked transposed bf16 weights (F,F) and f32 biases (1,F)

    # Pad batch up to a multiple of tile_b (padded rows use index 0; sliced off below).
    Bp = ((B + tile_b - 1) // tile_b) * tile_b
    batch = batch.astype(jnp.int32)
    if Bp != B:
        batch = jnp.pad(batch, ((0, Bp - B), (0, 0)))

    # Grid-invariant weights/biases: DMA'd once. At d=128 they total ~0.33 MiB bf16,
    # so explicit single-buffering (pl.Buffered(1)) / vmem_limit_bytes is unnecessary.
    w_spec = pl.BlockSpec((F, F), lambda i: (0, 0))
    b_spec = pl.BlockSpec((1, F), lambda i: (0, 0))
    in_specs = [pl.BlockSpec((tile_b, 2), lambda i: (i, 0))]
    for _ in range(5):
        in_specs += [w_spec, b_spec]

    out2d = pl.pallas_call(
        made_kernel,
        out_shape=jax.ShapeDtypeStruct((Bp, F), jnp.float32),
        grid_spec=pltpu.PrefetchScalarGridSpec(
            num_scalar_prefetch=0,
            grid=(Bp // tile_b,),
            in_specs=in_specs,
            # lane-dense (tile_b, 2*d) output block -> unmasked vector stores
            out_specs=pl.BlockSpec((tile_b, F), lambda i: (i, 0)),
        ),
        compiler_params=pltpu.CompilerParams(
            dimension_semantics=("parallel",)),
    )(batch, ws[0], bs[0], ws[1], bs[1], ws[2], bs[2], ws[3], bs[3], ws[4], bs[4])

    # Reshape to (B, 2, d) outside the kernel (pure metadata on a lane-aligned slab).
    return out2d[:B].reshape(B, 2, d)


# --------------------------- parameter construction --------------------------
def make_block_mask(d, diag):
    """(2d, 2d) mask: repeat_interleave(tril(ones(2,2), diag), d, 0/1)."""
    base = jnp.tril(jnp.ones((2, 2), jnp.float32), k=diag)
    return jnp.repeat(jnp.repeat(base, d, axis=0), d, axis=1)


def init_params(key, d):
    """Deterministic init of the 5 masked linear layers (features = 2d).

    Weights are masked in f32, transposed to (in, out), then cast to bf16 (masking before
    the cast preserves the autoregressive structure exactly). Biases stay f32.
    """
    F = 2 * d
    mask_a = make_block_mask(d, -1)   # TypeA: strictly lower block-triangular
    mask_b = make_block_mask(d, 0)    # TypeB: lower block-triangular incl. diag
    masks = [mask_a, mask_b, mask_b, mask_b, mask_b]

    ws, bs = [], []
    for mask in masks:
        kw, kb, key = jax.random.split(key, 3)
        w = jax.random.normal(kw, (F, F), jnp.float32) * 0.05     # (out, in)
        b = jax.random.normal(kb, (F,), jnp.float32) * 0.01
        ws.append((w * mask).T.astype(jnp.bfloat16))              # (in, out) bf16
        bs.append(b.reshape(1, F))                                # (1, F) f32
    return ws, bs


def reference_forward(batch, params, *, cardinality):
    """Plain-JAX reference of SimpleMADE.forward with matching bf16-in / f32-acc numerics."""
    d = cardinality
    F = 2 * d
    ws, bs = params
    B = batch.shape[0]
    h = jax.nn.one_hot(batch, d, dtype=jnp.bfloat16).reshape(B, F)
    for li in range(5):
        h = jnp.dot(h, ws[li], preferred_element_type=jnp.float32) + bs[li]
        if li < 4:
            h = jnp.maximum(h, 0.0).astype(jnp.bfloat16)
    logits = h.reshape(B, 2, d)
    return jax.nn.log_softmax(logits, axis=-1)


# ---------------------------------- main --------------------------------------
if __name__ == "__main__":
    CARDINALITY = 128    # d  (F = 2*d = 256)
    BATCH = 1024         # 2 tiles of 512 -> grid=2 (even): both v7x TCs busy, fat steps on v5e/v6e
    TILE_B = 512

    key = jax.random.PRNGKey(0)
    k_params, k_data = jax.random.split(key)

    params = init_params(k_params, CARDINALITY)
    batch = jax.random.randint(k_data, (BATCH, 2), 0, CARDINALITY, dtype=jnp.int32)

    fwd = functools.partial(simple_made_forward, cardinality=CARDINALITY, tile_b=TILE_B)
    out = fwd(batch, params)
    out = jax.block_until_ready(out)

    ref = reference_forward(batch, params, cardinality=CARDINALITY)
    assert out.shape == (BATCH, 2, CARDINALITY)
    assert jnp.allclose(out, ref, atol=5e-3, rtol=5e-3), "mismatch vs JAX reference"
    # log_softmax rows must normalize to 1 in prob space
    assert jnp.allclose(jnp.sum(jnp.exp(out), axis=-1), 1.0, atol=1e-3)

    print("KERNEL_OK")
</pallas_src>

<mosaic_0001>
module attributes {stable_mosaic.version = 11 : i64} {
  func.func @made_kernel(%arg0: i32, %arg1: memref<512x2xi32, #tpu.memory_space<vmem>>, %arg2: memref<256x256xbf16, #tpu.memory_space<vmem>>, %arg3: memref<1x256xf32, #tpu.memory_space<vmem>>, %arg4: memref<256x256xbf16, #tpu.memory_space<vmem>>, %arg5: memref<1x256xf32, #tpu.memory_space<vmem>>, %arg6: memref<256x256xbf16, #tpu.memory_space<vmem>>, %arg7: memref<1x256xf32, #tpu.memory_space<vmem>>, %arg8: memref<256x256xbf16, #tpu.memory_space<vmem>>, %arg9: memref<1x256xf32, #tpu.memory_space<vmem>>, %arg10: memref<256x256xbf16, #tpu.memory_space<vmem>>, %arg11: memref<1x256xf32, #tpu.memory_space<vmem>>, %arg12: memref<512x256xf32, #tpu.memory_space<vmem>>) attributes {dimension_semantics = [#tpu.dimension_semantics<parallel>], iteration_bounds = array<i64: 2>, scalar_prefetch = 0 : i64, scratch_operands = 0 : i64, tpu.core_type = #tpu.core_type<tc>, window_params = [{transform_indices = @transform_0, window_bounds = array<i64: 512, 2>}, {pipeline_mode = #tpu.pipeline_mode<synchronous>, transform_indices = @transform_1, window_bounds = array<i64: 256, 256>}, {pipeline_mode = #tpu.pipeline_mode<synchronous>, transform_indices = @transform_2, window_bounds = array<i64: 1, 256>}, {pipeline_mode = #tpu.pipeline_mode<synchronous>, transform_indices = @transform_3, window_bounds = array<i64: 256, 256>}, {pipeline_mode = #tpu.pipeline_mode<synchronous>, transform_indices = @transform_4, window_bounds = array<i64: 1, 256>}, {pipeline_mode = #tpu.pipeline_mode<synchronous>, transform_indices = @transform_5, window_bounds = array<i64: 256, 256>}, {pipeline_mode = #tpu.pipeline_mode<synchronous>, transform_indices = @transform_6, window_bounds = array<i64: 1, 256>}, {pipeline_mode = #tpu.pipeline_mode<synchronous>, transform_indices = @transform_7, window_bounds = array<i64: 256, 256>}, {pipeline_mode = #tpu.pipeline_mode<synchronous>, transform_indices = @transform_8, window_bounds = array<i64: 1, 256>}, {pipeline_mode = #tpu.pipeline_mode<synchronous>, transform_indices = @transform_9, window_bounds = array<i64: 256, 256>}, {pipeline_mode = #tpu.pipeline_mode<synchronous>, transform_indices = @transform_10, window_bounds = array<i64: 1, 256>}, {transform_indices = @transform_11, window_bounds = array<i64: 512, 256>}]} {
    %c0 = arith.constant 0 : index
    %c0_0 = arith.constant 0 : index
    %0 = vector.load %arg1[%c0, %c0_0] : memref<512x2xi32, #tpu.memory_space<vmem>>, vector<512x2xi32>
    %1 = tpu.iota {dimensions = array<i32: 1>} : vector<512x256xi32>
    %2 = vector.extract_strided_slice %0 {offsets = [0, 0], sizes = [512, 1], strides = [1, 1]} : vector<512x2xi32> to vector<512x1xi32>
    %3 = vector.broadcast %2 : vector<512x1xi32> to vector<512x256xi32>
    %4 = arith.cmpi eq, %1, %3 : vector<512x256xi32>
    %5 = vector.extract_strided_slice %0 {offsets = [0, 1], sizes = [512, 1], strides = [1, 1]} : vector<512x2xi32> to vector<512x1xi32>
    %c128_i32 = arith.constant 128 : i32
    %6 = vector.broadcast %c128_i32 : i32 to vector<512x1xi32>
    %7 = arith.addi %5, %6 : vector<512x1xi32>
    %8 = vector.broadcast %7 : vector<512x1xi32> to vector<512x256xi32>
    %9 = arith.cmpi eq, %1, %8 : vector<512x256xi32>
    %10 = arith.ori %4, %9 : vector<512x256xi1>
    %11 = arith.extui %10 : vector<512x256xi1> to vector<512x256xi32>
    %12 = arith.sitofp %11 : vector<512x256xi32> to vector<512x256xf32>
    %13 = arith.truncf %12 : vector<512x256xf32> to vector<512x256xbf16>
    %c0_1 = arith.constant 0 : index
    %c0_2 = arith.constant 0 : index
    %14 = vector.load %arg2[%c0_1, %c0_2] : memref<256x256xbf16, #tpu.memory_space<vmem>>, vector<256x256xbf16>
    %cst = arith.constant dense<0.000000e+00> : vector<512x256xf32>
    %15 = tpu.matmul %13, %14, %cst {dimension_numbers = #tpu.dot_dimension_numbers<[1], [0], [0], [1], [0, 0, 1, 1], [], []>} : vector<512x256xbf16>, vector<256x256xbf16>, vector<512x256xf32> -> vector<512x256xf32>
    %c0_3 = arith.constant 0 : index
    %c0_4 = arith.constant 0 : index
    %16 = vector.load %arg3[%c0_3, %c0_4] : memref<1x256xf32, #tpu.memory_space<vmem>>, vector<1x256xf32>
    %17 = vector.broadcast %16 : vector<1x256xf32> to vector<512x256xf32>
    %18 = arith.addf %15, %17 : vector<512x256xf32>
    %cst_5 = arith.constant 0.000000e+00 : f32
    %19 = vector.broadcast %cst_5 : f32 to vector<512x256xf32>
    %20 = arith.maximumf %18, %19 : vector<512x256xf32>
    %21 = arith.truncf %20 : vector<512x256xf32> to vector<512x256xbf16>
    %c0_6 = arith.constant 0 : index
    %c0_7 = arith.constant 0 : index
    %22 = vector.load %arg4[%c0_6, %c0_7] : memref<256x256xbf16, #tpu.memory_space<vmem>>, vector<256x256xbf16>
    %cst_8 = arith.constant dense<0.000000e+00> : vector<512x256xf32>
    %23 = tpu.matmul %21, %22, %cst_8 {dimension_numbers = #tpu.dot_dimension_numbers<[1], [0], [0], [1], [0, 0, 1, 1], [], []>} : vector<512x256xbf16>, vector<256x256xbf16>, vector<512x256xf32> -> vector<512x256xf32>
    %c0_9 = arith.constant 0 : index
    %c0_10 = arith.constant 0 : index
    %24 = vector.load %arg5[%c0_9, %c0_10] : memref<1x256xf32, #tpu.memory_space<vmem>>, vector<1x256xf32>
    %25 = vector.broadcast %24 : vector<1x256xf32> to vector<512x256xf32>
    %26 = arith.addf %23, %25 : vector<512x256xf32>
    %cst_11 = arith.constant 0.000000e+00 : f32
    %27 = vector.broadcast %cst_11 : f32 to vector<512x256xf32>
    %28 = arith.maximumf %26, %27 : vector<512x256xf32>
    %29 = arith.truncf %28 : vector<512x256xf32> to vector<512x256xbf16>
    %c0_12 = arith.constant 0 : index
    %c0_13 = arith.constant 0 : index
    %30 = vector.load %arg6[%c0_12, %c0_13] : memref<256x256xbf16, #tpu.memory_space<vmem>>, vector<256x256xbf16>
    %cst_14 = arith.constant dense<0.000000e+00> : vector<512x256xf32>
    %31 = tpu.matmul %29, %30, %cst_14 {dimension_numbers = #tpu.dot_dimension_numbers<[1], [0], [0], [1], [0, 0, 1, 1], [], []>} : vector<512x256xbf16>, vector<256x256xbf16>, vector<512x256xf32> -> vector<512x256xf32>
    %c0_15 = arith.constant 0 : index
    %c0_16 = arith.constant 0 : index
    %32 = vector.load %arg7[%c0_15, %c0_16] : memref<1x256xf32, #tpu.memory_space<vmem>>, vector<1x256xf32>
    %33 = vector.broadcast %32 : vector<1x256xf32> to vector<512x256xf32>
    %34 = arith.addf %31, %33 : vector<512x256xf32>
    %cst_17 = arith.constant 0.000000e+00 : f32
    %35 = vector.broadcast %cst_17 : f32 to vector<512x256xf32>
    %36 = arith.maximumf %34, %35 : vector<512x256xf32>
    %37 = arith.truncf %36 : vector<512x256xf32> to vector<512x256xbf16>
    %c0_18 = arith.constant 0 : index
    %c0_19 = arith.constant 0 : index
    %38 = vector.load %arg8[%c0_18, %c0_19] : memref<256x256xbf16, #tpu.memory_space<vmem>>, vector<256x256xbf16>
    %cst_20 = arith.constant dense<0.000000e+00> : vector<512x256xf32>
    %39 = tpu.matmul %37, %38, %cst_20 {dimension_numbers = #tpu.dot_dimension_numbers<[1], [0], [0], [1], [0, 0, 1, 1], [], []>} : vector<512x256xbf16>, vector<256x256xbf16>, vector<512x256xf32> -> vector<512x256xf32>
    %c0_21 = arith.constant 0 : index
    %c0_22 = arith.constant 0 : index
    %40 = vector.load %arg9[%c0_21, %c0_22] : memref<1x256xf32, #tpu.memory_space<vmem>>, vector<1x256xf32>
    %41 = vector.broadcast %40 : vector<1x256xf32> to vector<512x256xf32>
    %42 = arith.addf %39, %41 : vector<512x256xf32>
    %cst_23 = arith.constant 0.000000e+00 : f32
    %43 = vector.broadcast %cst_23 : f32 to vector<512x256xf32>
    %44 = arith.maximumf %42, %43 : vector<512x256xf32>
    %45 = arith.truncf %44 : vector<512x256xf32> to vector<512x256xbf16>
    %c0_24 = arith.constant 0 : index
    %c0_25 = arith.constant 0 : index
    %46 = vector.load %arg10[%c0_24, %c0_25] : memref<256x256xbf16, #tpu.memory_space<vmem>>, vector<256x256xbf16>
    %cst_26 = arith.constant dense<0.000000e+00> : vector<512x256xf32>
    %47 = tpu.matmul %45, %46, %cst_26 {dimension_numbers = #tpu.dot_dimension_numbers<[1], [0], [0], [1], [0, 0, 1, 1], [], []>} : vector<512x256xbf16>, vector<256x256xbf16>, vector<512x256xf32> -> vector<512x256xf32>
    %c0_27 = arith.constant 0 : index
    %c0_28 = arith.constant 0 : index
    %48 = vector.load %arg11[%c0_27, %c0_28] : memref<1x256xf32, #tpu.memory_space<vmem>>, vector<1x256xf32>
    %49 = vector.broadcast %48 : vector<1x256xf32> to vector<512x256xf32>
    %50 = arith.addf %47, %49 : vector<512x256xf32>
    %51 = vector.extract_strided_slice %50 {offsets = [0, 0], sizes = [512, 128], strides = [1, 1]} : vector<512x256xf32> to vector<512x128xf32>
    %cst_29 = arith.constant dense<0xFF800000> : vector<512xf32>
    %52 = vector.multi_reduction <maximumf>, %51, %cst_29 [1] : vector<512x128xf32> to vector<512xf32>
    %53 = vector.shape_cast %52 : vector<512xf32> to vector<512x1xf32>
    %54 = vector.broadcast %53 : vector<512x1xf32> to vector<512x128xf32>
    %55 = arith.subf %51, %54 : vector<512x128xf32>
    %56 = math.exp %55 : vector<512x128xf32>
    %cst_30 = arith.constant dense<0.000000e+00> : vector<512xf32>
    %57 = vector.multi_reduction <add>, %56, %cst_30 [1] : vector<512x128xf32> to vector<512xf32>
    %58 = vector.shape_cast %57 : vector<512xf32> to vector<512x1xf32>
    %59 = math.log %58 : vector<512x1xf32>
    %60 = vector.broadcast %59 : vector<512x1xf32> to vector<512x128xf32>
    %61 = arith.subf %55, %60 : vector<512x128xf32>
    %c0_31 = arith.constant 0 : index
    %c0_32 = arith.constant 0 : index
    %62 = vector.load %arg12[%c0_31, %c0_32] : memref<512x256xf32, #tpu.memory_space<vmem>>, vector<512x128xf32>
    tpu.vector_store %arg12[%c0_31, %c0_32], %61 {strides = array<i32>} : memref<512x256xf32, #tpu.memory_space<vmem>>, vector<512x128xf32>,
    %63 = vector.extract_strided_slice %50 {offsets = [0, 128], sizes = [512, 128], strides = [1, 1]} : vector<512x256xf32> to vector<512x128xf32>
    %cst_33 = arith.constant dense<0xFF800000> : vector<512xf32>
    %64 = vector.multi_reduction <maximumf>, %63, %cst_33 [1] : vector<512x128xf32> to vector<512xf32>
    %65 = vector.shape_cast %64 : vector<512xf32> to vector<512x1xf32>
    %66 = vector.broadcast %65 : vector<512x1xf32> to vector<512x128xf32>
    %67 = arith.subf %63, %66 : vector<512x128xf32>
    %68 = math.exp %67 : vector<512x128xf32>
    %cst_34 = arith.constant dense<0.000000e+00> : vector<512xf32>
    %69 = vector.multi_reduction <add>, %68, %cst_34 [1] : vector<512x128xf32> to vector<512xf32>
    %70 = vector.shape_cast %69 : vector<512xf32> to vector<512x1xf32>
    %71 = math.log %70 : vector<512x1xf32>
    %72 = vector.broadcast %71 : vector<512x1xf32> to vector<512x128xf32>
    %73 = arith.subf %67, %72 : vector<512x128xf32>
    %c0_35 = arith.constant 0 : index
    %c128 = arith.constant 128 : index
    %74 = vector.load %arg12[%c0_35, %c128] : memref<512x256xf32, #tpu.memory_space<vmem>>, vector<512x128xf32>
    tpu.vector_store %arg12[%c0_35, %c128], %73 {strides = array<i32>} : memref<512x256xf32, #tpu.memory_space<vmem>>, vector<512x128xf32>,
    return
  }
  func.func @transform_0(%arg0: i32) -> (i32, i32) {
    %c0_i32 = arith.constant 0 : i32
    %c0_i32_0 = arith.constant 0 : i32
    return %arg0, %c0_i32 : i32, i32
  }
  func.func @transform_1(%arg0: i32) -> (i32, i32) {
    %c0_i32 = arith.constant 0 : i32
    %c0_i32_0 = arith.constant 0 : i32
    %c0_i32_1 = arith.constant 0 : i32
    return %c0_i32, %c0_i32_0 : i32, i32
  }
  func.func @transform_2(%arg0: i32) -> (i32, i32) {
    %c0_i32 = arith.constant 0 : i32
    %c0_i32_0 = arith.constant 0 : i32
    %c0_i32_1 = arith.constant 0 : i32
    return %c0_i32, %c0_i32_0 : i32, i32
  }
  func.func @transform_3(%arg0: i32) -> (i32, i32) {
    %c0_i32 = arith.constant 0 : i32
    %c0_i32_0 = arith.constant 0 : i32
    %c0_i32_1 = arith.constant 0 : i32
    return %c0_i32, %c0_i32_0 : i32, i32
  }
  func.func @transform_4(%arg0: i32) -> (i32, i32) {
    %c0_i32 = arith.constant 0 : i32
    %c0_i32_0 = arith.constant 0 : i32
    %c0_i32_1 = arith.constant 0 : i32
    return %c0_i32, %c0_i32_0 : i32, i32
  }
  func.func @transform_5(%arg0: i32) -> (i32, i32) {
    %c0_i32 = arith.constant 0 : i32
    %c0_i32_0 = arith.constant 0 : i32
    %c0_i32_1 = arith.constant 0 : i32
    return %c0_i32, %c0_i32_0 : i32, i32
  }
  func.func @transform_6(%arg0: i32) -> (i32, i32) {
    %c0_i32 = arith.constant 0 : i32
    %c0_i32_0 = arith.constant 0 : i32
    %c0_i32_1 = arith.constant 0 : i32
    return %c0_i32, %c0_i32_0 : i32, i32
  }
  func.func @transform_7(%arg0: i32) -> (i32, i32) {
    %c0_i32 = arith.constant 0 : i32
    %c0_i32_0 = arith.constant 0 : i32
    %c0_i32_1 = arith.constant 0 : i32
    return %c0_i32, %c0_i32_0 : i32, i32
  }
  func.func @transform_8(%arg0: i32) -> (i32, i32) {
    %c0_i32 = arith.constant 0 : i32
    %c0_i32_0 = arith.constant 0 : i32
    %c0_i32_1 = arith.constant 0 : i32
    return %c0_i32, %c0_i32_0 : i32, i32
  }
  func.func @transform_9(%arg0: i32) -> (i32, i32) {
    %c0_i32 = arith.constant 0 : i32
    %c0_i32_0 = arith.constant 0 : i32
    %c0_i32_1 = arith.constant 0 : i32
    return %c0_i32, %c0_i32_0 : i32, i32
  }
  func.func @transform_10(%arg0: i32) -> (i32, i32) {
    %c0_i32 = arith.constant 0 : i32
    %c0_i32_0 = arith.constant 0 : i32
    %c0_i32_1 = arith.constant 0 : i32
    return %c0_i32, %c0_i32_0 : i32, i32
  }
  func.func @transform_11(%arg0: i32) -> (i32, i32) {
    %c0_i32 = arith.constant 0 : i32
    %c0_i32_0 = arith.constant 0 : i32
    return %arg0, %c0_i32 : i32, i32
  }
}

</mosaic_0001>

<llo_original>
// kernel: tpu_custom_call.1
$region0: #{tpu_custom_call.1}
  #allocation0 [shape = 'u32[]', space=smem, size = 0x4, offset = 0x4, fixed_abs, tag = 'smem constant byte address 0x4 - core index']
  #allocation1 [shape = 'u32[144,128]{1,0:T(1,128)}', space=vmem, size = 0x12000, scoped, tag = 'internal scratch']
  %s0 = inlined_call_operand.vmem [shape: s32[1024,2], index: 0, kind: input, shape index: {}]
  %s1 = inlined_call_operand.vmem [shape: bf16[256,256], index: 1, kind: input, shape index: {}]
  %s2 = inlined_call_operand.vmem [shape: f32[1,256], index: 2, kind: input, shape index: {}]
  %s3 = inlined_call_operand.vmem [shape: bf16[256,256], index: 3, kind: input, shape index: {}]
  %s4 = inlined_call_operand.vmem [shape: f32[1,256], index: 4, kind: input, shape index: {}]
  %s5 = inlined_call_operand.vmem [shape: bf16[256,256], index: 5, kind: input, shape index: {}]
  %s6 = inlined_call_operand.vmem [shape: f32[1,256], index: 6, kind: input, shape index: {}]
  %s7 = inlined_call_operand.vmem [shape: bf16[256,256], index: 7, kind: input, shape index: {}]
  %s8 = inlined_call_operand.vmem [shape: f32[1,256], index: 8, kind: input, shape index: {}]
  %s9 = inlined_call_operand.hbm [shape: bf16[256,256], index: 9, kind: input, shape index: {}]
  %s10 = inlined_call_operand.vmem [shape: f32[1,256], index: 10, kind: input, shape index: {}]
  %s11 = inlined_call_operand.hbm [shape: f32[1024,256], index: 11, kind: output, shape index: {}]
  %s12 = sld [smem:[#allocation0]]
  $region81: #{tpu_custom_call.1} parent=0
    _
  %s14 = ssub.s32 1, %s12
  %s15 = scalar_select 0, %s14, %s12
  $region1: #{tpu_custom_call.1} parent=0
    #allocation2 [shape = 'u8[131072]{0}', space=vmem, size = 0x20000, scoped, tag = 'input window, operand 9, single buffered']
    #allocation3 [shape = 's32[2]{0}', space=sflag, size = 0x8, scoped, tag = 'scoped memory for tpu_custom_call.1']
    #allocation4 [shape = 's32[2]{0}', space=sflag, size = 0x8, scoped, tag = 'scoped memory for tpu_custom_call.1']
    #allocation5 [shape = 'u8[1048576]{0}', space=vmem, size = 0x100000, scoped, tag = 'output window, operand 0']
    %16 = vsyncpa [#allocation3], 0
    %17 = vsyncpa [#allocation4], 0
    %s18 = scalar_lea.sflag [#allocation4], 1
    %19 = vsyncpa %s18, 0
    loop: start=0, step=1, limit=4
    $region2: #{tpu_custom_call.1} parent=1 // loop_pre_header
      _
    $region3: #{tpu_custom_call.1} parent=1 // loop_header
      %s21 = sphi 0, %s25
      %p22 = scmp.ge.s32.totalorder %s21, 4
      %s31 = sphi 0, %s33
      %s34 = sphi 0, %s31
      %s35 = sphi 0, %s34
      %s51 = sphi 0, %s35
      %s55 = sphi 0, %s55
      %s57 = sphi 0, %s55
      %s58 = sphi 0, %s57
      %s72 = sphi 0, %s58
      %s76 = sphi 0, %s76
      %s78 = sphi 0, %s76
      %s79 = sphi 0, %s78
      %s93 = sphi 0, %s79
      %s97 = sphi 0, %s97
      %s99 = sphi 0, %s97
      %s100 = sphi 0, %s99
      %s114 = sphi 0, %s100
      %s118 = sphi 0, %s118
      %s120 = sphi 0, %s118
      %s121 = sphi 0, %s120
      %s135 = sphi 0, %s121
      %s139 = sphi 0, %s139
      %s141 = sphi 0, %s139
      %s142 = sphi 0, %s141
      %s156 = sphi 0, %s142
      %s160 = sphi 0, %s160
      %s162 = sphi 0, %s160
      %s163 = sphi 0, %s162
      %s177 = sphi 0, %s163
      %s181 = sphi 0, %s181
      %s183 = sphi 0, %s181
      %s184 = sphi 0, %s183
      %s198 = sphi 0, %s184
      %s202 = sphi 0, %s202
      %s204 = sphi 0, %s202
      %s205 = sphi 0, %s204
      %s219 = sphi 0, %s205
      %s223 = sphi 0, %s223
      %s225 = sphi 0, %s223
      %s226 = sphi 0, %s225
      %s240 = sphi 0, %s226
      %s244 = sphi 0, %s244
      %s246 = sphi 0, %s244
      %s247 = sphi 0, %s246
      %s261 = sphi 0, %s247
      %s267 = sphi 0, %s269
      %s270 = sphi 0, %s267
      %s271 = sphi 0, %s270
      %s287 = sphi 0, %s271
    $region4: #{tpu_custom_call.1} parent=1 // loop_header_branch
      %24 = sbr.rel (%p22) target = $region8
    $region5: #{tpu_custom_call.1} parent=1 // loop_body
      %s26 = ssub.s32 %s21, 1
      %s27 = ssub.s32 %s21, 2
      %s28 = sadd.s32 %s21, 1
      %s29 = ssub.s32 %s21, %s28
      %p30 = scmp.eq.s32.totalorder %s29, 0
      %s32 = sadd.s32 %s31, 1
      %s33 = scalar_select %p30, %s31, %s32
      %p36 = pneg %p30
      %p37 = scmp.eq.s32.totalorder %s21, 1
      %p38 = por %p36, %p37
      %p39 = scmp.ne.s32.totalorder %s31, %s34
      %p40 = scmp.eq.s32.totalorder %s21, 0
      %p41 = por %p39, %p40
      %p42 = scmp.ne.s32.totalorder %s31, %s34
      %p43 = scmp.eq.s32.totalorder %s26, 1
      %p44 = por %p42, %p43
      %p45 = scmp.ne.s32.totalorder %s34, %s35
      %p46 = scmp.eq.s32.totalorder %s26, 0
      %p47 = por %p45, %p46
      %p48 = scmp.ne.s32.totalorder %s34, %s35
      %p49 = scmp.eq.s32.totalorder %s27, 1
      %p50 = por %p48, %p49
      %p52 = scmp.ne.s32.totalorder %s35, %s51
      %p53 = scmp.eq.s32.totalorder %s27, 0
      %p54 = por %p52, %p53
      %s56 = sadd.s32 %s55, 1
      %p59 = scmp.eq.s32.totalorder %s21, 1
      %p60 = scmp.ne.s32.totalorder %s55, %s57
      %p61 = scmp.eq.s32.totalorder %s21, 0
      %p62 = por %p60, %p61
      %p63 = scmp.ne.s32.totalorder %s55, %s57
      %p64 = scmp.eq.s32.totalorder %s26, 1
      %p65 = por %p63, %p64
      %p66 = scmp.ne.s32.totalorder %s57, %s58
      %p67 = scmp.eq.s32.totalorder %s26, 0
      %p68 = por %p66, %p67
      %p69 = scmp.ne.s32.totalorder %s57, %s58
      %p70 = scmp.eq.s32.totalorder %s27, 1
      %p71 = por %p69, %p70
      %p73 = scmp.ne.s32.totalorder %s58, %s72
      %p74 = scmp.eq.s32.totalorder %s27, 0
      %p75 = por %p73, %p74
      %s77 = sadd.s32 %s76, 1
      %p80 = scmp.eq.s32.totalorder %s21, 1
      %p81 = scmp.ne.s32.totalorder %s76, %s78
      %p82 = scmp.eq.s32.totalorder %s21, 0
      %p83 = por %p81, %p82
      %p84 = scmp.ne.s32.totalorder %s76, %s78
      %p85 = scmp.eq.s32.totalorder %s26, 1
      %p86 = por %p84, %p85
      %p87 = scmp.ne.s32.totalorder %s78, %s79
      %p88 = scmp.eq.s32.totalorder %s26, 0
      %p89 = por %p87, %p88
      %p90 = scmp.ne.s32.totalorder %s78, %s79
      %p91 = scmp.eq.s32.totalorder %s27, 1
      %p92 = por %p90, %p91
      %p94 = scmp.ne.s32.totalorder %s79, %s93
      %p95 = scmp.eq.s32.totalorder %s27, 0
      %p96 = por %p94, %p95
      %s98 = sadd.s32 %s97, 1
      %p101 = scmp.eq.s32.totalorder %s21, 1
      %p102 = scmp.ne.s32.totalorder %s97, %s99
      %p103 = scmp.eq.s32.totalorder %s21, 0
      %p104 = por %p102, %p103
      %p105 = scmp.ne.s32.totalorder %s97, %s99
      %p106 = scmp.eq.s32.totalorder %s26, 1
      %p107 = por %p105, %p106
      %p108 = scmp.ne.s32.totalorder %s99, %s100
      %p109 = scmp.eq.s32.totalorder %s26, 0
      %p110 = por %p108, %p109
      %p111 = scmp.ne.s32.totalorder %s99, %s100
      %p112 = scmp.eq.s32.totalorder %s27, 1
      %p113 = por %p111, %p112
      %p115 = scmp.ne.s32.totalorder %s100, %s114
      %p116 = scmp.eq.s32.totalorder %s27, 0
      %p117 = por %p115, %p116
      %s119 = sadd.s32 %s118, 1
      %p122 = scmp.eq.s32.totalorder %s21, 1
      %p123 = scmp.ne.s32.totalorder %s118, %s120
      %p124 = scmp.eq.s32.totalorder %s21, 0
      %p125 = por %p123, %p124
      %p126 = scmp.ne.s32.totalorder %s118, %s120
      %p127 = scmp.eq.s32.totalorder %s26, 1
      %p128 = por %p126, %p127
      %p129 = scmp.ne.s32.totalorder %s120, %s121
      %p130 = scmp.eq.s32.totalorder %s26, 0
      %p131 = por %p129, %p130
      %p132 = scmp.ne.s32.totalorder %s120, %s121
      %p133 = scmp.eq.s32.totalorder %s27, 1
      %p134 = por %p132, %p133
      %p136 = scmp.ne.s32.totalorder %s121, %s135
      %p137 = scmp.eq.s32.totalorder %s27, 0
      %p138 = por %p136, %p137
      %s140 = sadd.s32 %s139, 1
      %p143 = scmp.eq.s32.totalorder %s21, 1
      %p144 = scmp.ne.s32.totalorder %s139, %s141
      %p145 = scmp.eq.s32.totalorder %s21, 0
      %p146 = por %p144, %p145
      %p147 = scmp.ne.s32.totalorder %s139, %s141
      %p148 = scmp.eq.s32.totalorder %s26, 1
      %p149 = por %p147, %p148
      %p150 = scmp.ne.s32.totalorder %s141, %s142
      %p151 = scmp.eq.s32.totalorder %s26, 0
      %p152 = por %p150, %p151
      %p153 = scmp.ne.s32.totalorder %s141, %s142
      %p154 = scmp.eq.s32.totalorder %s27, 1
      %p155 = por %p153, %p154
      %p157 = scmp.ne.s32.totalorder %s142, %s156
      %p158 = scmp.eq.s32.totalorder %s27, 0
      %p159 = por %p157, %p158
      %s161 = sadd.s32 %s160, 1
      %p164 = scmp.eq.s32.totalorder %s21, 1
      %p165 = scmp.ne.s32.totalorder %s160, %s162
      %p166 = scmp.eq.s32.totalorder %s21, 0
      %p167 = por %p165, %p166
      %p168 = scmp.ne.s32.totalorder %s160, %s162
      %p169 = scmp.eq.s32.totalorder %s26, 1
      %p170 = por %p168, %p169
      %p171 = scmp.ne.s32.totalorder %s162, %s163
      %p172 = scmp.eq.s32.totalorder %s26, 0
      %p173 = por %p171, %p172
      %p174 = scmp.ne.s32.totalorder %s162, %s163
      %p175 = scmp.eq.s32.totalorder %s27, 1
      %p176 = por %p174, %p175
      %p178 = scmp.ne.s32.totalorder %s163, %s177
      %p179 = scmp.eq.s32.totalorder %s27, 0
      %p180 = por %p178, %p179
      %s182 = sadd.s32 %s181, 1
      %p185 = scmp.eq.s32.totalorder %s21, 1
      %p186 = scmp.ne.s32.totalorder %s181, %s183
      %p187 = scmp.eq.s32.totalorder %s21, 0
      %p188 = por %p186, %p187
      %p189 = scmp.ne.s32.totalorder %s181, %s183
      %p190 = scmp.eq.s32.totalorder %s26, 1
      %p191 = por %p189, %p190
      %p192 = scmp.ne.s32.totalorder %s183, %s184
      %p193 = scmp.eq.s32.totalorder %s26, 0
      %p194 = por %p192, %p193
      %p195 = scmp.ne.s32.totalorder %s183, %s184
      %p196 = scmp.eq.s32.totalorder %s27, 1
      %p197 = por %p195, %p196
      %p199 = scmp.ne.s32.totalorder %s184, %s198
      %p200 = scmp.eq.s32.totalorder %s27, 0
      %p201 = por %p199, %p200
      %s203 = sadd.s32 %s202, 1
      %p206 = scmp.eq.s32.totalorder %s21, 1
      %p207 = scmp.ne.s32.totalorder %s202, %s204
      %p208 = scmp.eq.s32.totalorder %s21, 0
      %p209 = por %p207, %p208
      %p210 = scmp.ne.s32.totalorder %s202, %s204
      %p211 = scmp.eq.s32.totalorder %s26, 1
      %p212 = por %p210, %p211
      %p213 = scmp.ne.s32.totalorder %s204, %s205
      %p214 = scmp.eq.s32.totalorder %s26, 0
      %p215 = por %p213, %p214
      %p216 = scmp.ne.s32.totalorder %s204, %s205
      %p217 = scmp.eq.s32.totalorder %s27, 1
      %p218 = por %p216, %p217
      %p220 = scmp.ne.s32.totalorder %s205, %s219
      %p221 = scmp.eq.s32.totalorder %s27, 0
      %p222 = por %p220, %p221
      %s224 = sadd.s32 %s223, 1
      %p227 = scmp.eq.s32.totalorder %s21, 1
      %p228 = scmp.ne.s32.totalorder %s223, %s225
      %p229 = scmp.eq.s32.totalorder %s21, 0
      %p230 = por %p228, %p229
      %p231 = scmp.ne.s32.totalorder %s223, %s225
      %p232 = scmp.eq.s32.totalorder %s26, 1
      %p233 = por %p231, %p232
      %p234 = scmp.ne.s32.totalorder %s225, %s226
      %p235 = scmp.eq.s32.totalorder %s26, 0
      %p236 = por %p234, %p235
      %p237 = scmp.ne.s32.totalorder %s225, %s226
      %p238 = scmp.eq.s32.totalorder %s27, 1
      %p239 = por %p237, %p238
      %p241 = scmp.ne.s32.totalorder %s226, %s240
      %p242 = scmp.eq.s32.totalorder %s27, 0
      %p243 = por %p241, %p242
      %s245 = sadd.s32 %s244, 1
      %p248 = scmp.eq.s32.totalorder %s21, 1
      %p249 = scmp.ne.s32.totalorder %s244, %s246
      %p250 = scmp.eq.s32.totalorder %s21, 0
      %p251 = por %p249, %p250
      %p252 = scmp.ne.s32.totalorder %s244, %s246
      %p253 = scmp.eq.s32.totalorder %s26, 1
      %p254 = por %p252, %p253
      %p255 = scmp.ne.s32.totalorder %s246, %s247
      %p256 = scmp.eq.s32.totalorder %s26, 0
      %p257 = por %p255, %p256
      %p258 = scmp.ne.s32.totalorder %s246, %s247
      %p259 = scmp.eq.s32.totalorder %s27, 1
      %p260 = por %p258, %p259
      %p262 = scmp.ne.s32.totalorder %s247, %s261
      %p263 = scmp.eq.s32.totalorder %s27, 0
      %p264 = por %p262, %p263
      %s265 = ssub.s32 %s21, %s28
      %p266 = scmp.eq.s32.totalorder %s265, 0
      %s268 = sadd.s32 %s267, 1
      %s269 = scalar_select %p266, %s267, %s268
      %p272 = pneg %p266
      %p273 = scmp.eq.s32.totalorder %s21, 1
      %p274 = por %p272, %p273
      %p275 = scmp.ne.s32.totalorder %s267, %s270
      %p276 = scmp.eq.s32.totalorder %s21, 0
      %p277 = por %p275, %p276
      %p278 = scmp.ne.s32.totalorder %s267, %s270
      %p279 = scmp.eq.s32.totalorder %s26, 1
      %p280 = por %p278, %p279
      %p281 = scmp.ne.s32.totalorder %s270, %s271
      %p282 = scmp.eq.s32.totalorder %s26, 0
      %p283 = por %p281, %p282
      %p284 = scmp.ne.s32.totalorder %s270, %s271
      %p285 = scmp.eq.s32.totalorder %s27, 1
      %p286 = por %p284, %p285
      %p288 = scmp.ne.s32.totalorder %s271, %s287
      %p289 = scmp.eq.s32.totalorder %s27, 0
      %p290 = por %p288, %p289
      %p291 = scmp.le.s32.totalorder 1, %s21
      %p292 = scmp.lt.s32.totalorder %s21, 3
      %p293 = pnand %p291, %p292
      %p294 = pneg %p293
      // Predicated region
      $region9: #{tpu_custom_call.1} parent=5 // pred_check
        _
      $region10: #{tpu_custom_call.1} parent=5 // pred_check_branch
        %296 = sbr.rel (%p293) target = $region12
      $region11: #{tpu_custom_call.1} parent=5 // pred_region
        %s297 = ssub.s32 %s21, 1
        // Predicated region
        $region13: #{tpu_custom_call.1} parent=11 // pred_check
          %p298 = pneg %p68
        $region14: #{tpu_custom_call.1} parent=11 // pred_check_branch
          %300 = sbr.rel (%p298) target = $region16
        $region15: #{tpu_custom_call.1} parent=11 // pred_region
          _
        $region16: #{tpu_custom_call.1} parent=11 // pred_fallthru
          _
        // Predicated region
        $region17: #{tpu_custom_call.1} parent=11 // pred_check
          %p301 = pneg %p89
        $region18: #{tpu_custom_call.1} parent=11 // pred_check_branch
          %303 = sbr.rel (%p301) target = $region20
        $region19: #{tpu_custom_call.1} parent=11 // pred_region
          _
        $region20: #{tpu_custom_call.1} parent=11 // pred_fallthru
          _
        // Predicated region
        $region21: #{tpu_custom_call.1} parent=11 // pred_check
          %p304 = pneg %p110
        $region22: #{tpu_custom_call.1} parent=11 // pred_check_branch
          %306 = sbr.rel (%p304) target = $region24
        $region23: #{tpu_custom_call.1} parent=11 // pred_region
          _
        $region24: #{tpu_custom_call.1} parent=11 // pred_fallthru
          _
        // Predicated region
        $region25: #{tpu_custom_call.1} parent=11 // pred_check
          %p307 = pneg %p131
        $region26: #{tpu_custom_call.1} parent=11 // pred_check_branch
          %309 = sbr.rel (%p307) target = $region28
        $region27: #{tpu_custom_call.1} parent=11 // pred_region
          _
        $region28: #{tpu_custom_call.1} parent=11 // pred_fallthru
          _
        // Predicated region
        $region29: #{tpu_custom_call.1} parent=11 // pred_check
          %p310 = pneg %p152
        $region30: #{tpu_custom_call.1} parent=11 // pred_check_branch
          %312 = sbr.rel (%p310) target = $region32
        $region31: #{tpu_custom_call.1} parent=11 // pred_region
          _
        $region32: #{tpu_custom_call.1} parent=11 // pred_fallthru
          _
        // Predicated region
        $region33: #{tpu_custom_call.1} parent=11 // pred_check
          %p313 = pneg %p173
        $region34: #{tpu_custom_call.1} parent=11 // pred_check_branch
          %315 = sbr.rel (%p313) target = $region36
        $region35: #{tpu_custom_call.1} parent=11 // pred_region
          _
        $region36: #{tpu_custom_call.1} parent=11 // pred_fallthru
          _
        // Predicated region
        $region37: #{tpu_custom_call.1} parent=11 // pred_check
          %p316 = pneg %p194
        $region38: #{tpu_custom_call.1} parent=11 // pred_check_branch
          %318 = sbr.rel (%p316) target = $region40
        $region39: #{tpu_custom_call.1} parent=11 // pred_region
          _
        $region40: #{tpu_custom_call.1} parent=11 // pred_fallthru
          _
        // Predicated region
        $region41: #{tpu_custom_call.1} parent=11 // pred_check
          %p319 = pneg %p215
        $region42: #{tpu_custom_call.1} parent=11 // pred_check_branch
          %321 = sbr.rel (%p319) target = $region44
        $region43: #{tpu_custom_call.1} parent=11 // pred_region
          _
        $region44: #{tpu_custom_call.1} parent=11 // pred_fallthru
          _
        // Predicated region
        $region45: #{tpu_custom_call.1} parent=11 // pred_check
          %p322 = pneg %p236
        $region46: #{tpu_custom_call.1} parent=11 // pred_check_branch
          %324 = sbr.rel (%p322) target = $region48
        $region47: #{tpu_custom_call.1} parent=11 // pred_region
          %s326 = ssub.s32 4096, 4096
          %327 = vsyncadd [#allocation3], %s326
          %s328 = sshll.u32 [#allocation2], 4
          %s329 = int_to_ptr.vmem [resolvable:$true] %s328
          %334 = dma.hbm_to_vmem [thread:$0]  %s9, 4096, %s329, [#allocation3], 128, 128, 8
        $region48: #{tpu_custom_call.1} parent=11 // pred_fallthru
          _
        // Predicated region
        $region49: #{tpu_custom_call.1} parent=11 // pred_check
          %p335 = pneg %p257
        $region50: #{tpu_custom_call.1} parent=11 // pred_check_branch
          %337 = sbr.rel (%p335) target = $region52
        $region51: #{tpu_custom_call.1} parent=11 // pred_region
          _
        $region52: #{tpu_custom_call.1} parent=11 // pred_fallthru
          _
      $region12: #{tpu_custom_call.1} parent=5 // pred_fallthru
        _
      %p338 = scmp.lt.s32.totalorder %s21, 2
      // Predicated region
      $region53: #{tpu_custom_call.1} parent=5 // pred_check
        %p339 = pneg %p338
      $region54: #{tpu_custom_call.1} parent=5 // pred_check_branch
        %341 = sbr.rel (%p339) target = $region56
      $region55: #{tpu_custom_call.1} parent=5 // pred_region
        // Predicated region
        $region57: #{tpu_custom_call.1} parent=55 // pred_check
          %p342 = pneg %p41
        $region58: #{tpu_custom_call.1} parent=55 // pred_check_branch
          %344 = sbr.rel (%p342) target = $region60
        $region59: #{tpu_custom_call.1} parent=55 // pred_region
          %s345 = smul.u32 64, %s21
          %p346 = scmp.lt.s32.totalorder %s345, 127
          %s347 = scalar_select %p346, %s345, 127
          %s348 = smul.addr %s347, 8
          %s349 = scalar_lea.vmem %s0, %s348
          %s350 = smul.u32 64, %s21
        $region60: #{tpu_custom_call.1} parent=55 // pred_fallthru
          _
      $region56: #{tpu_custom_call.1} parent=5 // pred_fallthru
        _
      %p351 = scmp.le.s32.totalorder 1, %s21
      %p352 = scmp.lt.s32.totalorder %s21, 3
      %p353 = pnand %p351, %p352
      %p354 = pneg %p353
      // Predicated region
      $region61: #{tpu_custom_call.1} parent=5 // pred_check
        _
      $region62: #{tpu_custom_call.1} parent=5 // pred_check_branch
        %356 = sbr.rel (%p353) target = $region64
      $region63: #{tpu_custom_call.1} parent=5 // pred_region
        %s357 = ssub.s32 %s21, 1
        // Predicated region
        $region65: #{tpu_custom_call.1} parent=63 // pred_check
          %p358 = pneg %p236
        $region66: #{tpu_custom_call.1} parent=63 // pred_check_branch
          %360 = sbr.rel (%p358) target = $region68
        $region67: #{tpu_custom_call.1} parent=63 // pred_region
          %361 = dma.done [#allocation3], 4096
        $region68: #{tpu_custom_call.1} parent=63 // pred_fallthru
          _
        %s362 = smul.u32 64, %s26
        %p363 = scmp.lt.s32.totalorder %s362, 127
        %s364 = scalar_select %p363, %s362, 127
        %s365 = smul.addr %s364, 8
        %s366 = scalar_lea.vmem %s0, %s365
        %p367 = pneg %p47
        %p368 = pneg %p44
        %p369 = pneg %p68
        %p370 = pneg %p65
        %p371 = pneg %p89
        %p372 = pneg %p86
        %p373 = pneg %p110
        %p374 = pneg %p107
        %p375 = pneg %p131
        %p376 = pneg %p128
        %p377 = pneg %p152
        %p378 = pneg %p149
        %p379 = pneg %p173
        %p380 = pneg %p170
        %p381 = pneg %p194
        %p382 = pneg %p191
        %p383 = pneg %p215
        %p384 = pneg %p212
        %p385 = pneg %p236
        %p386 = pneg %p233
        %p387 = pneg %p257
        %p388 = pneg %p254
        %p389 = pneg %p283
        %p390 = pneg %p280
        %s391 = sand.u32 %s270, 1
        %s392 = scalar_lea.sflag [#allocation4], %s391
        %s393 = sand.u32 %s270, 1
        %s394 = smul.addr %s393, 1024
        %s395 = scalar_lea.vmem [#allocation5], %s394
        %s396 = smul.u32 64, %s26
        %p397 = scmp.lt.s32.totalorder %s396, 127
        %s398 = scalar_select %p397, %s396, 127
        %s399 = smul.addr %s398, 8
        %s400 = scalar_lea.vmem %s0, %s399
        %s401 = smul.u32 64, %s26
        %s402 = smul.u32 64, %s26
        %v403 = vld [vmem:[%s400] sm:$0xff]
        %v404 = vld [vmem:[%s400 + $0x8] sm:$0xff]
        %v405 = vld [vmem:[%s400 + $0x10] sm:$0xff]
        %v406 = vld [vmem:[%s400 + $0x18] sm:$0xff]
        %v407 = vld [vmem:[%s400 + $0x20] sm:$0xff]
        %v408 = vld [vmem:[%s400 + $0x28] sm:$0xff]
        %v409 = vld [vmem:[%s400 + $0x30] sm:$0xff]
        %v410 = vld [vmem:[%s400 + $0x38] sm:$0xff]
        %v411 = vld [vmem:[%s400 + $0x40] sm:$0xff]
        %v412 = vld [vmem:[%s400 + $0x48] sm:$0xff]
        %v413 = vld [vmem:[%s400 + $0x50] sm:$0xff]
        %v414 = vld [vmem:[%s400 + $0x58] sm:$0xff]
        %v415 = vld [vmem:[%s400 + $0x60] sm:$0xff]
        %v416 = vld [vmem:[%s400 + $0x68] sm:$0xff]
        %v417 = vld [vmem:[%s400 + $0x70] sm:$0xff]
        %v418 = vld [vmem:[%s400 + $0x78] sm:$0xff]
        %v419 = vld [vmem:[%s400 + $0x80] sm:$0xff]
        %v420 = vld [vmem:[%s400 + $0x88] sm:$0xff]
        %v421 = vld [vmem:[%s400 + $0x90] sm:$0xff]
        %v422 = vld [vmem:[%s400 + $0x98] sm:$0xff]
        %v423 = vld [vmem:[%s400 + $0xa0] sm:$0xff]
        %v424 = vld [vmem:[%s400 + $0xa8] sm:$0xff]
        %v425 = vld [vmem:[%s400 + $0xb0] sm:$0xff]
        %v426 = vld [vmem:[%s400 + $0xb8] sm:$0xff]
        %v427 = vld [vmem:[%s400 + $0xc0] sm:$0xff]
        %v428 = vld [vmem:[%s400 + $0xc8] sm:$0xff]
        %v429 = vld [vmem:[%s400 + $0xd0] sm:$0xff]
        %v430 = vld [vmem:[%s400 + $0xd8] sm:$0xff]
        %v431 = vld [vmem:[%s400 + $0xe0] sm:$0xff]
        %v432 = vld [vmem:[%s400 + $0xe8] sm:$0xff]
        %v433 = vld [vmem:[%s400 + $0xf0] sm:$0xff]
        %v434 = vld [vmem:[%s400 + $0xf8] sm:$0xff]
        %v435 = vld [vmem:[%s400 + $0x100] sm:$0xff]
        %v436 = vld [vmem:[%s400 + $0x108] sm:$0xff]
        %v437 = vld [vmem:[%s400 + $0x110] sm:$0xff]
        %v438 = vld [vmem:[%s400 + $0x118] sm:$0xff]
        %v439 = vld [vmem:[%s400 + $0x120] sm:$0xff]
        %v440 = vld [vmem:[%s400 + $0x128] sm:$0xff]
        %v441 = vld [vmem:[%s400 + $0x130] sm:$0xff]
        %v442 = vld [vmem:[%s400 + $0x138] sm:$0xff]
        %v443 = vld [vmem:[%s400 + $0x140] sm:$0xff]
        %v444 = vld [vmem:[%s400 + $0x148] sm:$0xff]
        %v445 = vld [vmem:[%s400 + $0x150] sm:$0xff]
        %v446 = vld [vmem:[%s400 + $0x158] sm:$0xff]
        %v447 = vld [vmem:[%s400 + $0x160] sm:$0xff]
        %v448 = vld [vmem:[%s400 + $0x168] sm:$0xff]
        %v449 = vld [vmem:[%s400 + $0x170] sm:$0xff]
        %v450 = vld [vmem:[%s400 + $0x178] sm:$0xff]
        %v451 = vld [vmem:[%s400 + $0x180] sm:$0xff]
        %v452 = vld [vmem:[%s400 + $0x188] sm:$0xff]
        %v453 = vld [vmem:[%s400 + $0x190] sm:$0xff]
        %v454 = vld [vmem:[%s400 + $0x198] sm:$0xff]
        %v455 = vld [vmem:[%s400 + $0x1a0] sm:$0xff]
        %v456 = vld [vmem:[%s400 + $0x1a8] sm:$0xff]
        %v457 = vld [vmem:[%s400 + $0x1b0] sm:$0xff]
        %v458 = vld [vmem:[%s400 + $0x1b8] sm:$0xff]
        %v459 = vld [vmem:[%s400 + $0x1c0] sm:$0xff]
        %v460 = vld [vmem:[%s400 + $0x1c8] sm:$0xff]
        %v461 = vld [vmem:[%s400 + $0x1d0] sm:$0xff]
        %v462 = vld [vmem:[%s400 + $0x1d8] sm:$0xff]
        %v463 = vld [vmem:[%s400 + $0x1e0] sm:$0xff]
        %v464 = vld [vmem:[%s400 + $0x1e8] sm:$0xff]
        %v465 = vld [vmem:[%s400 + $0x1f0] sm:$0xff]
        %v466 = vld [vmem:[%s400 + $0x1f8] sm:$0xff]
        %v467 = vlaneseq
        %v468 = vand.u32 %v467, 127
        %v469 = vadd.s32 %v468, 128
        %470 = vset.pattern.permute.xlu0 0
        %471 = vperm.xlu0 %470, %v403
        %v472 = vpop.permute.xlu0 %471
        %473 = vset.pattern.permute.xlu0 0
        %474 = vperm.xlu0 %473, %v404
        %v475 = vpop.permute.xlu0 %474
        %476 = vset.pattern.permute.xlu0 0
        %477 = vperm.xlu0 %476, %v405
        %v478 = vpop.permute.xlu0 %477
        %479 = vset.pattern.permute.xlu0 0
        %480 = vperm.xlu0 %479, %v406
        %v481 = vpop.permute.xlu0 %480
        %482 = vset.pattern.permute.xlu0 0
        %483 = vperm.xlu0 %482, %v407
        %v484 = vpop.permute.xlu0 %483
        %485 = vset.pattern.permute.xlu0 0
        %486 = vperm.xlu0 %485, %v408
        %v487 = vpop.permute.xlu0 %486
        %488 = vset.pattern.permute.xlu0 0
        %489 = vperm.xlu0 %488, %v409
        %v490 = vpop.permute.xlu0 %489
        %491 = vset.pattern.permute.xlu0 0
        %492 = vperm.xlu0 %491, %v410
        %v493 = vpop.permute.xlu0 %492
        %494 = vset.pattern.permute.xlu0 0
        %495 = vperm.xlu0 %494, %v411
        %v496 = vpop.permute.xlu0 %495
        %497 = vset.pattern.permute.xlu0 0
        %498 = vperm.xlu0 %497, %v412
        %v499 = vpop.permute.xlu0 %498
        %500 = vset.pattern.permute.xlu0 0
        %501 = vperm.xlu0 %500, %v413
        %v502 = vpop.permute.xlu0 %501
        %503 = vset.pattern.permute.xlu0 0
        %504 = vperm.xlu0 %503, %v414
        %v505 = vpop.permute.xlu0 %504
        %506 = vset.pattern.permute.xlu0 0
        %507 = vperm.xlu0 %506, %v415
        %v508 = vpop.permute.xlu0 %507
        %509 = vset.pattern.permute.xlu0 0
        %510 = vperm.xlu0 %509, %v416
        %v511 = vpop.permute.xlu0 %510
        %512 = vset.pattern.permute.xlu0 0
        %513 = vperm.xlu0 %512, %v417
        %v514 = vpop.permute.xlu0 %513
        %515 = vset.pattern.permute.xlu0 0
        %516 = vperm.xlu0 %515, %v418
        %v517 = vpop.permute.xlu0 %516
        %518 = vset.pattern.permute.xlu0 0
        %519 = vperm.xlu0 %518, %v419
        %v520 = vpop.permute.xlu0 %519
        %521 = vset.pattern.permute.xlu0 0
        %522 = vperm.xlu0 %521, %v420
        %v523 = vpop.permute.xlu0 %522
        %524 = vset.pattern.permute.xlu0 0
        %525 = vperm.xlu0 %524, %v421
        %v526 = vpop.permute.xlu0 %525
        %527 = vset.pattern.permute.xlu0 0
        %528 = vperm.xlu0 %527, %v422
        %v529 = vpop.permute.xlu0 %528
        %530 = vset.pattern.permute.xlu0 0
        %531 = vperm.xlu0 %530, %v423
        %v532 = vpop.permute.xlu0 %531
        %533 = vset.pattern.permute.xlu0 0
        %534 = vperm.xlu0 %533, %v424
        %v535 = vpop.permute.xlu0 %534
        %536 = vset.pattern.permute.xlu0 0
        %537 = vperm.xlu0 %536, %v425
        %v538 = vpop.permute.xlu0 %537
        %539 = vset.pattern.permute.xlu0 0
        %540 = vperm.xlu0 %539, %v426
        %v541 = vpop.permute.xlu0 %540
        %542 = vset.pattern.permute.xlu0 0
        %543 = vperm.xlu0 %542, %v427
        %v544 = vpop.permute.xlu0 %543
        %545 = vset.pattern.permute.xlu0 0
        %546 = vperm.xlu0 %545, %v428
        %v547 = vpop.permute.xlu0 %546
        %548 = vset.pattern.permute.xlu0 0
        %549 = vperm.xlu0 %548, %v429
        %v550 = vpop.permute.xlu0 %549
        %551 = vset.pattern.permute.xlu0 0
        %552 = vperm.xlu0 %551, %v430
        %v553 = vpop.permute.xlu0 %552
        %554 = vset.pattern.permute.xlu0 0
        %555 = vperm.xlu0 %554, %v431
        %v556 = vpop.permute.xlu0 %555
        %557 = vset.pattern.permute.xlu0 0
        %558 = vperm.xlu0 %557, %v432
        %v559 = vpop.permute.xlu0 %558
        %560 = vset.pattern.permute.xlu0 0
        %561 = vperm.xlu0 %560, %v433
        %v562 = vpop.permute.xlu0 %561
        %563 = vset.pattern.permute.xlu0 0
        %564 = vperm.xlu0 %563, %v434
        %v565 = vpop.permute.xlu0 %564
        %566 = vset.pattern.permute.xlu0 0
        %567 = vperm.xlu0 %566, %v435
        %v568 = vpop.permute.xlu0 %567
        %569 = vset.pattern.permute.xlu0 0
        %570 = vperm.xlu0 %569, %v436
        %v571 = vpop.permute.xlu0 %570
        %572 = vset.pattern.permute.xlu0 0
        %573 = vperm.xlu0 %572, %v437
        %v574 = vpop.permute.xlu0 %573
        %575 = vset.pattern.permute.xlu0 0
        %576 = vperm.xlu0 %575, %v438
        %v577 = vpop.permute.xlu0 %576
        %578 = vset.pattern.permute.xlu0 0
        %579 = vperm.xlu0 %578, %v439
        %v580 = vpop.permute.xlu0 %579
        %581 = vset.pattern.permute.xlu0 0
        %582 = vperm.xlu0 %581, %v440
        %v583 = vpop.permute.xlu0 %582
        %584 = vset.pattern.permute.xlu0 0
        %585 = vperm.xlu0 %584, %v441
        %v586 = vpop.permute.xlu0 %585
        %587 = vset.pattern.permute.xlu0 0
        %588 = vperm.xlu0 %587, %v442
        %v589 = vpop.permute.xlu0 %588
        %590 = vset.pattern.permute.xlu0 0
        %591 = vperm.xlu0 %590, %v443
        %v592 = vpop.permute.xlu0 %591
        %593 = vset.pattern.permute.xlu0 0
        %594 = vperm.xlu0 %593, %v444
        %v595 = vpop.permute.xlu0 %594
        %596 = vset.pattern.permute.xlu0 0
        %597 = vperm.xlu0 %596, %v445
        %v598 = vpop.permute.xlu0 %597
        %599 = vset.pattern.permute.xlu0 0
        %600 = vperm.xlu0 %599, %v446
        %v601 = vpop.permute.xlu0 %600
        %602 = vset.pattern.permute.xlu0 0
        %603 = vperm.xlu0 %602, %v447
        %v604 = vpop.permute.xlu0 %603
        %605 = vset.pattern.permute.xlu0 0
        %606 = vperm.xlu0 %605, %v448
        %v607 = vpop.permute.xlu0 %606
        %608 = vset.pattern.permute.xlu0 0
        %609 = vperm.xlu0 %608, %v449
        %v610 = vpop.permute.xlu0 %609
        %611 = vset.pattern.permute.xlu0 0
        %612 = vperm.xlu0 %611, %v450
        %v613 = vpop.permute.xlu0 %612
        %614 = vset.pattern.permute.xlu0 0
        %615 = vperm.xlu0 %614, %v451
        %v616 = vpop.permute.xlu0 %615
        %617 = vset.pattern.permute.xlu0 0
        %618 = vperm.xlu0 %617, %v452
        %v619 = vpop.permute.xlu0 %618
        %620 = vset.pattern.permute.xlu0 0
        %621 = vperm.xlu0 %620, %v453
        %v622 = vpop.permute.xlu0 %621
        %623 = vset.pattern.permute.xlu0 0
        %624 = vperm.xlu0 %623, %v454
        %v625 = vpop.permute.xlu0 %624
        %626 = vset.pattern.permute.xlu0 0
        %627 = vperm.xlu0 %626, %v455
        %v628 = vpop.permute.xlu0 %627
        %629 = vset.pattern.permute.xlu0 0
        %630 = vperm.xlu0 %629, %v456
        %v631 = vpop.permute.xlu0 %630
        %632 = vset.pattern.permute.xlu0 0
        %633 = vperm.xlu0 %632, %v457
        %v634 = vpop.permute.xlu0 %633
        %635 = vset.pattern.permute.xlu0 0
        %636 = vperm.xlu0 %635, %v458
        %v637 = vpop.permute.xlu0 %636
        %638 = vset.pattern.permute.xlu0 0
        %639 = vperm.xlu0 %638, %v459
        %v640 = vpop.permute.xlu0 %639
        %641 = vset.pattern.permute.xlu0 0
        %642 = vperm.xlu0 %641, %v460
        %v643 = vpop.permute.xlu0 %642
        %644 = vset.pattern.permute.xlu0 0
        %645 = vperm.xlu0 %644, %v461
        %v646 = vpop.permute.xlu0 %645
        %647 = vset.pattern.permute.xlu0 0
        %648 = vperm.xlu0 %647, %v462
        %v649 = vpop.permute.xlu0 %648
        %650 = vset.pattern.permute.xlu0 0
        %651 = vperm.xlu0 %650, %v463
        %v652 = vpop.permute.xlu0 %651
        %653 = vset.pattern.permute.xlu0 0
        %654 = vperm.xlu0 %653, %v464
        %v655 = vpop.permute.xlu0 %654
        %656 = vset.pattern.permute.xlu0 0
        %657 = vperm.xlu0 %656, %v465
        %v658 = vpop.permute.xlu0 %657
        %659 = vset.pattern.permute.xlu0 0
        %660 = vperm.xlu0 %659, %v466
        %v661 = vpop.permute.xlu0 %660
        %vm662 = vcmp.eq.s32.totalorder %v468, %v472
        %vm663 = vcmp.eq.s32.totalorder %v469, %v472
        %vm664 = vcmp.eq.s32.totalorder %v468, %v475
        %vm665 = vcmp.eq.s32.totalorder %v469, %v475
        %vm666 = vcmp.eq.s32.totalorder %v468, %v478
        %vm667 = vcmp.eq.s32.totalorder %v469, %v478
        %vm668 = vcmp.eq.s32.totalorder %v468, %v481
        %vm669 = vcmp.eq.s32.totalorder %v469, %v481
        %vm670 = vcmp.eq.s32.totalorder %v468, %v484
        %vm671 = vcmp.eq.s32.totalorder %v469, %v484
        %vm672 = vcmp.eq.s32.totalorder %v468, %v487
        %vm673 = vcmp.eq.s32.totalorder %v469, %v487
        %vm674 = vcmp.eq.s32.totalorder %v468, %v490
        %vm675 = vcmp.eq.s32.totalorder %v469, %v490
        %vm676 = vcmp.eq.s32.totalorder %v468, %v493
        %vm677 = vcmp.eq.s32.totalorder %v469, %v493
        %vm678 = vcmp.eq.s32.totalorder %v468, %v496
        %vm679 = vcmp.eq.s32.totalorder %v469, %v496
        %vm680 = vcmp.eq.s32.totalorder %v468, %v499
        %vm681 = vcmp.eq.s32.totalorder %v469, %v499
        %vm682 = vcmp.eq.s32.totalorder %v468, %v502
        %vm683 = vcmp.eq.s32.totalorder %v469, %v502
        %vm684 = vcmp.eq.s32.totalorder %v468, %v505
        %vm685 = vcmp.eq.s32.totalorder %v469, %v505
        %vm686 = vcmp.eq.s32.totalorder %v468, %v508
        %vm687 = vcmp.eq.s32.totalorder %v469, %v508
        %vm688 = vcmp.eq.s32.totalorder %v468, %v511
        %vm689 = vcmp.eq.s32.totalorder %v469, %v511
        %vm690 = vcmp.eq.s32.totalorder %v468, %v514
        %vm691 = vcmp.eq.s32.totalorder %v469, %v514
        %vm692 = vcmp.eq.s32.totalorder %v468, %v517
        %vm693 = vcmp.eq.s32.totalorder %v469, %v517
        %vm694 = vcmp.eq.s32.totalorder %v468, %v520
        %vm695 = vcmp.eq.s32.totalorder %v469, %v520
        %vm696 = vcmp.eq.s32.totalorder %v468, %v523
        %vm697 = vcmp.eq.s32.totalorder %v469, %v523
        %vm698 = vcmp.eq.s32.totalorder %v468, %v526
        %vm699 = vcmp.eq.s32.totalorder %v469, %v526
        %vm700 = vcmp.eq.s32.totalorder %v468, %v529
        %vm701 = vcmp.eq.s32.totalorder %v469, %v529
        %vm702 = vcmp.eq.s32.totalorder %v468, %v532
        %vm703 = vcmp.eq.s32.totalorder %v469, %v532
        %vm704 = vcmp.eq.s32.totalorder %v468, %v535
        %vm705 = vcmp.eq.s32.totalorder %v469, %v535
        %vm706 = vcmp.eq.s32.totalorder %v468, %v538
        %vm707 = vcmp.eq.s32.totalorder %v469, %v538
        %vm708 = vcmp.eq.s32.totalorder %v468, %v541
        %vm709 = vcmp.eq.s32.totalorder %v469, %v541
        %vm710 = vcmp.eq.s32.totalorder %v468, %v544
        %vm711 = vcmp.eq.s32.totalorder %v469, %v544
        %vm712 = vcmp.eq.s32.totalorder %v468, %v547
        %vm713 = vcmp.eq.s32.totalorder %v469, %v547
        %vm714 = vcmp.eq.s32.totalorder %v468, %v550
        %vm715 = vcmp.eq.s32.totalorder %v469, %v550
        %vm716 = vcmp.eq.s32.totalorder %v468, %v553
        %vm717 = vcmp.eq.s32.totalorder %v469, %v553
        %vm718 = vcmp.eq.s32.totalorder %v468, %v556
        %vm719 = vcmp.eq.s32.totalorder %v469, %v556
        %vm720 = vcmp.eq.s32.totalorder %v468, %v559
        %vm721 = vcmp.eq.s32.totalorder %v469, %v559
        %vm722 = vcmp.eq.s32.totalorder %v468, %v562
        %vm723 = vcmp.eq.s32.totalorder %v469, %v562
        %vm724 = vcmp.eq.s32.totalorder %v468, %v565
        %vm725 = vcmp.eq.s32.totalorder %v469, %v565
        %vm726 = vcmp.eq.s32.totalorder %v468, %v568
        %vm727 = vcmp.eq.s32.totalorder %v469, %v568
        %vm728 = vcmp.eq.s32.totalorder %v468, %v571
        %vm729 = vcmp.eq.s32.totalorder %v469, %v571
        %vm730 = vcmp.eq.s32.totalorder %v468, %v574
        %vm731 = vcmp.eq.s32.totalorder %v469, %v574
        %vm732 = vcmp.eq.s32.totalorder %v468, %v577
        %vm733 = vcmp.eq.s32.totalorder %v469, %v577
        %vm734 = vcmp.eq.s32.totalorder %v468, %v580
        %vm735 = vcmp.eq.s32.totalorder %v469, %v580
        %vm736 = vcmp.eq.s32.totalorder %v468, %v583
        %vm737 = vcmp.eq.s32.totalorder %v469, %v583
        %vm738 = vcmp.eq.s32.totalorder %v468, %v586
        %vm739 = vcmp.eq.s32.totalorder %v469, %v586
        %vm740 = vcmp.eq.s32.totalorder %v468, %v589
        %vm741 = vcmp.eq.s32.totalorder %v469, %v589
        %vm742 = vcmp.eq.s32.totalorder %v468, %v592
        %vm743 = vcmp.eq.s32.totalorder %v469, %v592
        %vm744 = vcmp.eq.s32.totalorder %v468, %v595
        %vm745 = vcmp.eq.s32.totalorder %v469, %v595
        %vm746 = vcmp.eq.s32.totalorder %v468, %v598
        %vm747 = vcmp.eq.s32.totalorder %v469, %v598
        %vm748 = vcmp.eq.s32.totalorder %v468, %v601
        %vm749 = vcmp.eq.s32.totalorder %v469, %v601
        %vm750 = vcmp.eq.s32.totalorder %v468, %v604
        %vm751 = vcmp.eq.s32.totalorder %v469, %v604
        %vm752 = vcmp.eq.s32.totalorder %v468, %v607
        %vm753 = vcmp.eq.s32.totalorder %v469, %v607
        %vm754 = vcmp.eq.s32.totalorder %v468, %v610
        %vm755 = vcmp.eq.s32.totalorder %v469, %v610
        %vm756 = vcmp.eq.s32.totalorder %v468, %v613
        %vm757 = vcmp.eq.s32.totalorder %v469, %v613
        %vm758 = vcmp.eq.s32.totalorder %v468, %v616
        %vm759 = vcmp.eq.s32.totalorder %v469, %v616
        %vm760 = vcmp.eq.s32.totalorder %v468, %v619
        %vm761 = vcmp.eq.s32.totalorder %v469, %v619
        %vm762 = vcmp.eq.s32.totalorder %v468, %v622
        %vm763 = vcmp.eq.s32.totalorder %v469, %v622
        %vm764 = vcmp.eq.s32.totalorder %v468, %v625
        %vm765 = vcmp.eq.s32.totalorder %v469, %v625
        %vm766 = vcmp.eq.s32.totalorder %v468, %v628
        %vm767 = vcmp.eq.s32.totalorder %v469, %v628
        %vm768 = vcmp.eq.s32.totalorder %v468, %v631
        %vm769 = vcmp.eq.s32.totalorder %v469, %v631
        %vm770 = vcmp.eq.s32.totalorder %v468, %v634
        %vm771 = vcmp.eq.s32.totalorder %v469, %v634
        %vm772 = vcmp.eq.s32.totalorder %v468, %v637
        %vm773 = vcmp.eq.s32.totalorder %v469, %v637
        %vm774 = vcmp.eq.s32.totalorder %v468, %v640
        %vm775 = vcmp.eq.s32.totalorder %v469, %v640
        %vm776 = vcmp.eq.s32.totalorder %v468, %v643
        %vm777 = vcmp.eq.s32.totalorder %v469, %v643
        %vm778 = vcmp.eq.s32.totalorder %v468, %v646
        %vm779 = vcmp.eq.s32.totalorder %v469, %v646
        %vm780 = vcmp.eq.s32.totalorder %v468, %v649
        %vm781 = vcmp.eq.s32.totalorder %v469, %v649
        %vm782 = vcmp.eq.s32.totalorder %v468, %v652
        %vm783 = vcmp.eq.s32.totalorder %v469, %v652
        %vm784 = vcmp.eq.s32.totalorder %v468, %v655
        %vm785 = vcmp.eq.s32.totalorder %v469, %v655
        %vm786 = vcmp.eq.s32.totalorder %v468, %v658
        %vm787 = vcmp.eq.s32.totalorder %v469, %v658
        %vm788 = vcmp.eq.s32.totalorder %v468, %v661
        %vm789 = vcmp.eq.s32.totalorder %v469, %v661
        %v790 = vadd.s32 %v403, 128
        %v791 = vadd.s32 %v404, 128
        %v792 = vadd.s32 %v405, 128
        %v793 = vadd.s32 %v406, 128
        %v794 = vadd.s32 %v407, 128
        %v795 = vadd.s32 %v408, 128
        %v796 = vadd.s32 %v409, 128
        %v797 = vadd.s32 %v410, 128
        %v798 = vadd.s32 %v411, 128
        %v799 = vadd.s32 %v412, 128
        %v800 = vadd.s32 %v413, 128
        %v801 = vadd.s32 %v414, 128
        %v802 = vadd.s32 %v415, 128
        %v803 = vadd.s32 %v416, 128
        %v804 = vadd.s32 %v417, 128
        %v805 = vadd.s32 %v418, 128
        %v806 = vadd.s32 %v419, 128
        %v807 = vadd.s32 %v420, 128
        %v808 = vadd.s32 %v421, 128
        %v809 = vadd.s32 %v422, 128
        %v810 = vadd.s32 %v423, 128
        %v811 = vadd.s32 %v424, 128
        %v812 = vadd.s32 %v425, 128
        %v813 = vadd.s32 %v426, 128
        %v814 = vadd.s32 %v427, 128
        %v815 = vadd.s32 %v428, 128
        %v816 = vadd.s32 %v429, 128
        %v817 = vadd.s32 %v430, 128
        %v818 = vadd.s32 %v431, 128
        %v819 = vadd.s32 %v432, 128
        %v820 = vadd.s32 %v433, 128
        %v821 = vadd.s32 %v434, 128
        %v822 = vadd.s32 %v435, 128
        %v823 = vadd.s32 %v436, 128
        %v824 = vadd.s32 %v437, 128
        %v825 = vadd.s32 %v438, 128
        %v826 = vadd.s32 %v439, 128
        %v827 = vadd.s32 %v440, 128
        %v828 = vadd.s32 %v441, 128
        %v829 = vadd.s32 %v442, 128
        %v830 = vadd.s32 %v443, 128
        %v831 = vadd.s32 %v444, 128
        %v832 = vadd.s32 %v445, 128
        %v833 = vadd.s32 %v446, 128
        %v834 = vadd.s32 %v447, 128
        %v835 = vadd.s32 %v448, 128
        %v836 = vadd.s32 %v449, 128
        %v837 = vadd.s32 %v450, 128
        %v838 = vadd.s32 %v451, 128
        %v839 = vadd.s32 %v452, 128
        %v840 = vadd.s32 %v453, 128
        %v841 = vadd.s32 %v454, 128
        %v842 = vadd.s32 %v455, 128
        %v843 = vadd.s32 %v456, 128
        %v844 = vadd.s32 %v457, 128
        %v845 = vadd.s32 %v458, 128
        %v846 = vadd.s32 %v459, 128
        %v847 = vadd.s32 %v460, 128
        %v848 = vadd.s32 %v461, 128
        %v849 = vadd.s32 %v462, 128
        %v850 = vadd.s32 %v463, 128
        %v851 = vadd.s32 %v464, 128
        %v852 = vadd.s32 %v465, 128
        %v853 = vadd.s32 %v466, 128
        %854 = vset.pattern.permute.xlu0 1
        %855 = vperm.xlu0 %854, %v790
        %v856 = vpop.permute.xlu0 %855
        %857 = vset.pattern.permute.xlu0 1
        %858 = vperm.xlu0 %857, %v791
        %v859 = vpop.permute.xlu0 %858
        %860 = vset.pattern.permute.xlu0 1
        %861 = vperm.xlu0 %860, %v792
        %v862 = vpop.permute.xlu0 %861
        %863 = vset.pattern.permute.xlu0 1
        %864 = vperm.xlu0 %863, %v793
        %v865 = vpop.permute.xlu0 %864
        %866 = vset.pattern.permute.xlu0 1
        %867 = vperm.xlu0 %866, %v794
        %v868 = vpop.permute.xlu0 %867
        %869 = vset.pattern.permute.xlu0 1
        %870 = vperm.xlu0 %869, %v795
        %v871 = vpop.permute.xlu0 %870
        %872 = vset.pattern.permute.xlu0 1
        %873 = vperm.xlu0 %872, %v796
        %v874 = vpop.permute.xlu0 %873
        %875 = vset.pattern.permute.xlu0 1
        %876 = vperm.xlu0 %875, %v797
        %v877 = vpop.permute.xlu0 %876
        %878 = vset.pattern.permute.xlu0 1
        %879 = vperm.xlu0 %878, %v798
        %v880 = vpop.permute.xlu0 %879
        %881 = vset.pattern.permute.xlu0 1
        %882 = vperm.xlu0 %881, %v799
        %v883 = vpop.permute.xlu0 %882
        %884 = vset.pattern.permute.xlu0 1
        %885 = vperm.xlu0 %884, %v800
        %v886 = vpop.permute.xlu0 %885
        %887 = vset.pattern.permute.xlu0 1
        %888 = vperm.xlu0 %887, %v801
        %v889 = vpop.permute.xlu0 %888
        %890 = vset.pattern.permute.xlu0 1
        %891 = vperm.xlu0 %890, %v802
        %v892 = vpop.permute.xlu0 %891
        %893 = vset.pattern.permute.xlu0 1
        %894 = vperm.xlu0 %893, %v803
        %v895 = vpop.permute.xlu0 %894
        %896 = vset.pattern.permute.xlu0 1
        %897 = vperm.xlu0 %896, %v804
        %v898 = vpop.permute.xlu0 %897
        %899 = vset.pattern.permute.xlu0 1
        %900 = vperm.xlu0 %899, %v805
        %v901 = vpop.permute.xlu0 %900
        %902 = vset.pattern.permute.xlu0 1
        %903 = vperm.xlu0 %902, %v806
        %v904 = vpop.permute.xlu0 %903
        %905 = vset.pattern.permute.xlu0 1
        %906 = vperm.xlu0 %905, %v807
        %v907 = vpop.permute.xlu0 %906
        %908 = vset.pattern.permute.xlu0 1
        %909 = vperm.xlu0 %908, %v808
        %v910 = vpop.permute.xlu0 %909
        %911 = vset.pattern.permute.xlu0 1
        %912 = vperm.xlu0 %911, %v809
        %v913 = vpop.permute.xlu0 %912
        %914 = vset.pattern.permute.xlu0 1
        %915 = vperm.xlu0 %914, %v810
        %v916 = vpop.permute.xlu0 %915
        %917 = vset.pattern.permute.xlu0 1
        %918 = vperm.xlu0 %917, %v811
        %v919 = vpop.permute.xlu0 %918
        %920 = vset.pattern.permute.xlu0 1
        %921 = vperm.xlu0 %920, %v812
        %v922 = vpop.permute.xlu0 %921
        %923 = vset.pattern.permute.xlu0 1
        %924 = vperm.xlu0 %923, %v813
        %v925 = vpop.permute.xlu0 %924
        %926 = vset.pattern.permute.xlu0 1
        %927 = vperm.xlu0 %926, %v814
        %v928 = vpop.permute.xlu0 %927
        %929 = vset.pattern.permute.xlu0 1
        %930 = vperm.xlu0 %929, %v815
        %v931 = vpop.permute.xlu0 %930
        %932 = vset.pattern.permute.xlu0 1
        %933 = vperm.xlu0 %932, %v816
        %v934 = vpop.permute.xlu0 %933
        %935 = vset.pattern.permute.xlu0 1
        %936 = vperm.xlu0 %935, %v817
        %v937 = vpop.permute.xlu0 %936
        %938 = vset.pattern.permute.xlu0 1
        %939 = vperm.xlu0 %938, %v818
        %v940 = vpop.permute.xlu0 %939
        %941 = vset.pattern.permute.xlu0 1
        %942 = vperm.xlu0 %941, %v819
        %v943 = vpop.permute.xlu0 %942
        %944 = vset.pattern.permute.xlu0 1
        %945 = vperm.xlu0 %944, %v820
        %v946 = vpop.permute.xlu0 %945
        %947 = vset.pattern.permute.xlu0 1
        %948 = vperm.xlu0 %947, %v821
        %v949 = vpop.permute.xlu0 %948
        %950 = vset.pattern.permute.xlu0 1
        %951 = vperm.xlu0 %950, %v822
        %v952 = vpop.permute.xlu0 %951
        %953 = vset.pattern.permute.xlu0 1
        %954 = vperm.xlu0 %953, %v823
        %v955 = vpop.permute.xlu0 %954
        %956 = vset.pattern.permute.xlu0 1
        %957 = vperm.xlu0 %956, %v824
        %v958 = vpop.permute.xlu0 %957
        %959 = vset.pattern.permute.xlu0 1
        %960 = vperm.xlu0 %959, %v825
        %v961 = vpop.permute.xlu0 %960
        %962 = vset.pattern.permute.xlu0 1
        %963 = vperm.xlu0 %962, %v826
        %v964 = vpop.permute.xlu0 %963
        %965 = vset.pattern.permute.xlu0 1
        %966 = vperm.xlu0 %965, %v827
        %v967 = vpop.permute.xlu0 %966
        %968 = vset.pattern.permute.xlu0 1
        %969 = vperm.xlu0 %968, %v828
        %v970 = vpop.permute.xlu0 %969
        %971 = vset.pattern.permute.xlu0 1
        %972 = vperm.xlu0 %971, %v829
        %v973 = vpop.permute.xlu0 %972
        %974 = vset.pattern.permute.xlu0 1
        %975 = vperm.xlu0 %974, %v830
        %v976 = vpop.permute.xlu0 %975
        %977 = vset.pattern.permute.xlu0 1
        %978 = vperm.xlu0 %977, %v831
        %v979 = vpop.permute.xlu0 %978
        %980 = vset.pattern.permute.xlu0 1
        %981 = vperm.xlu0 %980, %v832
        %v982 = vpop.permute.xlu0 %981
        %983 = vset.pattern.permute.xlu0 1
        %984 = vperm.xlu0 %983, %v833
        %v985 = vpop.permute.xlu0 %984
        %986 = vset.pattern.permute.xlu0 1
        %987 = vperm.xlu0 %986, %v834
        %v988 = vpop.permute.xlu0 %987
        %989 = vset.pattern.permute.xlu0 1
        %990 = vperm.xlu0 %989, %v835
        %v991 = vpop.permute.xlu0 %990
        %992 = vset.pattern.permute.xlu0 1
        %993 = vperm.xlu0 %992, %v836
        %v994 = vpop.permute.xlu0 %993
        %995 = vset.pattern.permute.xlu0 1
        %996 = vperm.xlu0 %995, %v837
        %v997 = vpop.permute.xlu0 %996
        %998 = vset.pattern.permute.xlu0 1
        %999 = vperm.xlu0 %998, %v838
        %v1000 = vpop.permute.xlu0 %999
        %1001 = vset.pattern.permute.xlu0 1
        %1002 = vperm.xlu0 %1001, %v839
        %v1003 = vpop.permute.xlu0 %1002
        %1004 = vset.pattern.permute.xlu0 1
        %1005 = vperm.xlu0 %1004, %v840
        %v1006 = vpop.permute.xlu0 %1005
        %1007 = vset.pattern.permute.xlu0 1
        %1008 = vperm.xlu0 %1007, %v841
        %v1009 = vpop.permute.xlu0 %1008
        %1010 = vset.pattern.permute.xlu0 1
        %1011 = vperm.xlu0 %1010, %v842
        %v1012 = vpop.permute.xlu0 %1011
        %1013 = vset.pattern.permute.xlu0 1
        %1014 = vperm.xlu0 %1013, %v843
        %v1015 = vpop.permute.xlu0 %1014
        %1016 = vset.pattern.permute.xlu0 1
        %1017 = vperm.xlu0 %1016, %v844
        %v1018 = vpop.permute.xlu0 %1017
        %1019 = vset.pattern.permute.xlu0 1
        %1020 = vperm.xlu0 %1019, %v845
        %v1021 = vpop.permute.xlu0 %1020
        %1022 = vset.pattern.permute.xlu0 1
        %1023 = vperm.xlu0 %1022, %v846
        %v1024 = vpop.permute.xlu0 %1023
        %1025 = vset.pattern.permute.xlu0 1
        %1026 = vperm.xlu0 %1025, %v847
        %v1027 = vpop.permute.xlu0 %1026
        %1028 = vset.pattern.permute.xlu0 1
        %1029 = vperm.xlu0 %1028, %v848
        %v1030 = vpop.permute.xlu0 %1029
        %1031 = vset.pattern.permute.xlu0 1
        %1032 = vperm.xlu0 %1031, %v849
        %v1033 = vpop.permute.xlu0 %1032
        %1034 = vset.pattern.permute.xlu0 1
        %1035 = vperm.xlu0 %1034, %v850
        %v1036 = vpop.permute.xlu0 %1035
        %1037 = vset.pattern.permute.xlu0 1
        %1038 = vperm.xlu0 %1037, %v851
        %v1039 = vpop.permute.xlu0 %1038
        %1040 = vset.pattern.permute.xlu0 1
        %1041 = vperm.xlu0 %1040, %v852
        %v1042 = vpop.permute.xlu0 %1041
        %1043 = vset.pattern.permute.xlu0 1
        %1044 = vperm.xlu0 %1043, %v853
        %v1045 = vpop.permute.xlu0 %1044
        %vm1046 = vcmp.eq.s32.totalorder %v468, %v856
        %vm1047 = vcmp.eq.s32.totalorder %v469, %v856
        %vm1048 = vcmp.eq.s32.totalorder %v468, %v859
        %vm1049 = vcmp.eq.s32.totalorder %v469, %v859
        %vm1050 = vcmp.eq.s32.totalorder %v468, %v862
        %vm1051 = vcmp.eq.s32.totalorder %v469, %v862
        %vm1052 = vcmp.eq.s32.totalorder %v468, %v865
        %vm1053 = vcmp.eq.s32.totalorder %v469, %v865
        %vm1054 = vcmp.eq.s32.totalorder %v468, %v868
        %vm1055 = vcmp.eq.s32.totalorder %v469, %v868
        %vm1056 = vcmp.eq.s32.totalorder %v468, %v871
        %vm1057 = vcmp.eq.s32.totalorder %v469, %v871
        %vm1058 = vcmp.eq.s32.totalorder %v468, %v874
        %vm1059 = vcmp.eq.s32.totalorder %v469, %v874
        %vm1060 = vcmp.eq.s32.totalorder %v468, %v877
        %vm1061 = vcmp.eq.s32.totalorder %v469, %v877
        %vm1062 = vcmp.eq.s32.totalorder %v468, %v880
        %vm1063 = vcmp.eq.s32.totalorder %v469, %v880
        %vm1064 = vcmp.eq.s32.totalorder %v468, %v883
        %vm1065 = vcmp.eq.s32.totalorder %v469, %v883
        %vm1066 = vcmp.eq.s32.totalorder %v468, %v886
        %vm1067 = vcmp.eq.s32.totalorder %v469, %v886
        %vm1068 = vcmp.eq.s32.totalorder %v468, %v889
        %vm1069 = vcmp.eq.s32.totalorder %v469, %v889
        %vm1070 = vcmp.eq.s32.totalorder %v468, %v892
        %vm1071 = vcmp.eq.s32.totalorder %v469, %v892
        %vm1072 = vcmp.eq.s32.totalorder %v468, %v895
        %vm1073 = vcmp.eq.s32.totalorder %v469, %v895
        %vm1074 = vcmp.eq.s32.totalorder %v468, %v898
        %vm1075 = vcmp.eq.s32.totalorder %v469, %v898
        %vm1076 = vcmp.eq.s32.totalorder %v468, %v901
        %vm1077 = vcmp.eq.s32.totalorder %v469, %v901
        %vm1078 = vcmp.eq.s32.totalorder %v468, %v904
        %vm1079 = vcmp.eq.s32.totalorder %v469, %v904
        %vm1080 = vcmp.eq.s32.totalorder %v468, %v907
        %vm1081 = vcmp.eq.s32.totalorder %v469, %v907
        %vm1082 = vcmp.eq.s32.totalorder %v468, %v910
        %vm1083 = vcmp.eq.s32.totalorder %v469, %v910
        %vm1084 = vcmp.eq.s32.totalorder %v468, %v913
        %vm1085 = vcmp.eq.s32.totalorder %v469, %v913
        %vm1086 = vcmp.eq.s32.totalorder %v468, %v916
        %vm1087 = vcmp.eq.s32.totalorder %v469, %v916
        %vm1088 = vcmp.eq.s32.totalorder %v468, %v919
        %vm1089 = vcmp.eq.s32.totalorder %v469, %v919
        %vm1090 = vcmp.eq.s32.totalorder %v468, %v922
        %vm1091 = vcmp.eq.s32.totalorder %v469, %v922
        %vm1092 = vcmp.eq.s32.totalorder %v468, %v925
        %vm1093 = vcmp.eq.s32.totalorder %v469, %v925
        %vm1094 = vcmp.eq.s32.totalorder %v468, %v928
        %vm1095 = vcmp.eq.s32.totalorder %v469, %v928
        %vm1096 = vcmp.eq.s32.totalorder %v468, %v931
        %vm1097 = vcmp.eq.s32.totalorder %v469, %v931
        %vm1098 = vcmp.eq.s32.totalorder %v468, %v934
        %vm1099 = vcmp.eq.s32.totalorder %v469, %v934
        %vm1100 = vcmp.eq.s32.totalorder %v468, %v937
        %vm1101 = vcmp.eq.s32.totalorder %v469, %v937
        %vm1102 = vcmp.eq.s32.totalorder %v468, %v940
        %vm1103 = vcmp.eq.s32.totalorder %v469, %v940
        %vm1104 = vcmp.eq.s32.totalorder %v468, %v943
        %vm1105 = vcmp.eq.s32.totalorder %v469, %v943
        %vm1106 = vcmp.eq.s32.totalorder %v468, %v946
        %vm1107 = vcmp.eq.s32.totalorder %v469, %v946
        %vm1108 = vcmp.eq.s32.totalorder %v468, %v949
        %vm1109 = vcmp.eq.s32.totalorder %v469, %v949
        %vm1110 = vcmp.eq.s32.totalorder %v468, %v952
        %vm1111 = vcmp.eq.s32.totalorder %v469, %v952
        %vm1112 = vcmp.eq.s32.totalorder %v468, %v955
        %vm1113 = vcmp.eq.s32.totalorder %v469, %v955
        %vm1114 = vcmp.eq.s32.totalorder %v468, %v958
        %vm1115 = vcmp.eq.s32.totalorder %v469, %v958
        %vm1116 = vcmp.eq.s32.totalorder %v468, %v961
        %vm1117 = vcmp.eq.s32.totalorder %v469, %v961
        %vm1118 = vcmp.eq.s32.totalorder %v468, %v964
        %vm1119 = vcmp.eq.s32.totalorder %v469, %v964
        %vm1120 = vcmp.eq.s32.totalorder %v468, %v967
        %vm1121 = vcmp.eq.s32.totalorder %v469, %v967
        %vm1122 = vcmp.eq.s32.totalorder %v468, %v970
        %vm1123 = vcmp.eq.s32.totalorder %v469, %v970
        %vm1124 = vcmp.eq.s32.totalorder %v468, %v973
        %vm1125 = vcmp.eq.s32.totalorder %v469, %v973
        %vm1126 = vcmp.eq.s32.totalorder %v468, %v976
        %vm1127 = vcmp.eq.s32.totalorder %v469, %v976
        %vm1128 = vcmp.eq.s32.totalorder %v468, %v979
        %vm1129 = vcmp.eq.s32.totalorder %v469, %v979
        %vm1130 = vcmp.eq.s32.totalorder %v468, %v982
        %vm1131 = vcmp.eq.s32.totalorder %v469, %v982
        %vm1132 = vcmp.eq.s32.totalorder %v468, %v985
        %vm1133 = vcmp.eq.s32.totalorder %v469, %v985
        %vm1134 = vcmp.eq.s32.totalorder %v468, %v988
        %vm1135 = vcmp.eq.s32.totalorder %v469, %v988
        %vm1136 = vcmp.eq.s32.totalorder %v468, %v991
        %vm1137 = vcmp.eq.s32.totalorder %v469, %v991
        %vm1138 = vcmp.eq.s32.totalorder %v468, %v994
        %vm1139 = vcmp.eq.s32.totalorder %v469, %v994
        %vm1140 = vcmp.eq.s32.totalorder %v468, %v997
        %vm1141 = vcmp.eq.s32.totalorder %v469, %v997
        %vm1142 = vcmp.eq.s32.totalorder %v468, %v1000
        %vm1143 = vcmp.eq.s32.totalorder %v469, %v1000
        %vm1144 = vcmp.eq.s32.totalorder %v468, %v1003
        %vm1145 = vcmp.eq.s32.totalorder %v469, %v1003
        %vm1146 = vcmp.eq.s32.totalorder %v468, %v1006
        %vm1147 = vcmp.eq.s32.totalorder %v469, %v1006
        %vm1148 = vcmp.eq.s32.totalorder %v468, %v1009
        %vm1149 = vcmp.eq.s32.totalorder %v469, %v1009
        %vm1150 = vcmp.eq.s32.totalorder %v468, %v1012
        %vm1151 = vcmp.eq.s32.totalorder %v469, %v1012
        %vm1152 = vcmp.eq.s32.totalorder %v468, %v1015
        %vm1153 = vcmp.eq.s32.totalorder %v469, %v1015
        %vm1154 = vcmp.eq.s32.totalorder %v468, %v1018
        %vm1155 = vcmp.eq.s32.totalorder %v469, %v1018
        %vm1156 = vcmp.eq.s32.totalorder %v468, %v1021
        %vm1157 = vcmp.eq.s32.totalorder %v469, %v1021
        %vm1158 = vcmp.eq.s32.totalorder %v468, %v1024
        %vm1159 = vcmp.eq.s32.totalorder %v469, %v1024
        %vm1160 = vcmp.eq.s32.totalorder %v468, %v1027
        %vm1161 = vcmp.eq.s32.totalorder %v469, %v1027
        %vm1162 = vcmp.eq.s32.totalorder %v468, %v1030
        %vm1163 = vcmp.eq.s32.totalorder %v469, %v1030
        %vm1164 = vcmp.eq.s32.totalorder %v468, %v1033
        %vm1165 = vcmp.eq.s32.totalorder %v469, %v1033
        %vm1166 = vcmp.eq.s32.totalorder %v468, %v1036
        %vm1167 = vcmp.eq.s32.totalorder %v469, %v1036
        %vm1168 = vcmp.eq.s32.totalorder %v468, %v1039
        %vm1169 = vcmp.eq.s32.totalorder %v469, %v1039
        %vm1170 = vcmp.eq.s32.totalorder %v468, %v1042
        %vm1171 = vcmp.eq.s32.totalorder %v469, %v1042
        %vm1172 = vcmp.eq.s32.totalorder %v468, %v1045
        %vm1173 = vcmp.eq.s32.totalorder %v469, %v1045
        %vm1174 = vmor %vm662, %vm1046
        %vm1175 = vmor %vm663, %vm1047
        %vm1176 = vmor %vm664, %vm1048
        %vm1177 = vmor %vm665, %vm1049
        %vm1178 = vmor %vm666, %vm1050
        %vm1179 = vmor %vm667, %vm1051
        %vm1180 = vmor %vm668, %vm1052
        %vm1181 = vmor %vm669, %vm1053
        %vm1182 = vmor %vm670, %vm1054
        %vm1183 = vmor %vm671, %vm1055
        %vm1184 = vmor %vm672, %vm1056
        %vm1185 = vmor %vm673, %vm1057
        %vm1186 = vmor %vm674, %vm1058
        %vm1187 = vmor %vm675, %vm1059
        %vm1188 = vmor %vm676, %vm1060
        %vm1189 = vmor %vm677, %vm1061
        %vm1190 = vmor %vm678, %vm1062
        %vm1191 = vmor %vm679, %vm1063
        %vm1192 = vmor %vm680, %vm1064
        %vm1193 = vmor %vm681, %vm1065
        %vm1194 = vmor %vm682, %vm1066
        %vm1195 = vmor %vm683, %vm1067
        %vm1196 = vmor %vm684, %vm1068
        %vm1197 = vmor %vm685, %vm1069
        %vm1198 = vmor %vm686, %vm1070
        %vm1199 = vmor %vm687, %vm1071
        %vm1200 = vmor %vm688, %vm1072
        %vm1201 = vmor %vm689, %vm1073
        %vm1202 = vmor %vm690, %vm1074
        %vm1203 = vmor %vm691, %vm1075
        %vm1204 = vmor %vm692, %vm1076
        %vm1205 = vmor %vm693, %vm1077
        %vm1206 = vmor %vm694, %vm1078
        %vm1207 = vmor %vm695, %vm1079
        %vm1208 = vmor %vm696, %vm1080
        %vm1209 = vmor %vm697, %vm1081
        %vm1210 = vmor %vm698, %vm1082
        %vm1211 = vmor %vm699, %vm1083
        %vm1212 = vmor %vm700, %vm1084
        %vm1213 = vmor %vm701, %vm1085
        %vm1214 = vmor %vm702, %vm1086
        %vm1215 = vmor %vm703, %vm1087
        %vm1216 = vmor %vm704, %vm1088
        %vm1217 = vmor %vm705, %vm1089
        %vm1218 = vmor %vm706, %vm1090
        %vm1219 = vmor %vm707, %vm1091
        %vm1220 = vmor %vm708, %vm1092
        %vm1221 = vmor %vm709, %vm1093
        %vm1222 = vmor %vm710, %vm1094
        %vm1223 = vmor %vm711, %vm1095
        %vm1224 = vmor %vm712, %vm1096
        %vm1225 = vmor %vm713, %vm1097
        %vm1226 = vmor %vm714, %vm1098
        %vm1227 = vmor %vm715, %vm1099
        %vm1228 = vmor %vm716, %vm1100
        %vm1229 = vmor %vm717, %vm1101
        %vm1230 = vmor %vm718, %vm1102
        %vm1231 = vmor %vm719, %vm1103
        %vm1232 = vmor %vm720, %vm1104
        %vm1233 = vmor %vm721, %vm1105
        %vm1234 = vmor %vm722, %vm1106
        %vm1235 = vmor %vm723, %vm1107
        %vm1236 = vmor %vm724, %vm1108
        %vm1237 = vmor %vm725, %vm1109
        %vm1238 = vmor %vm726, %vm1110
        %vm1239 = vmor %vm727, %vm1111
        %vm1240 = vmor %vm728, %vm1112
        %vm1241 = vmor %vm729, %vm1113
        %vm1242 = vmor %vm730, %vm1114
        %vm1243 = vmor %vm731, %vm1115
        %vm1244 = vmor %vm732, %vm1116
        %vm1245 = vmor %vm733, %vm1117
        %vm1246 = vmor %vm734, %vm1118
        %vm1247 = vmor %vm735, %vm1119
        %vm1248 = vmor %vm736, %vm1120
        %vm1249 = vmor %vm737, %vm1121
        %vm1250 = vmor %vm738, %vm1122
        %vm1251 = vmor %vm739, %vm1123
        %vm1252 = vmor %vm740, %vm1124
        %vm1253 = vmor %vm741, %vm1125
        %vm1254 = vmor %vm742, %vm1126
        %vm1255 = vmor %vm743, %vm1127
        %vm1256 = vmor %vm744, %vm1128
        %vm1257 = vmor %vm745, %vm1129
        %vm1258 = vmor %vm746, %vm1130
        %vm1259 = vmor %vm747, %vm1131
        %vm1260 = vmor %vm748, %vm1132
        %vm1261 = vmor %vm749, %vm1133
        %vm1262 = vmor %vm750, %vm1134
        %vm1263 = vmor %vm751, %vm1135
        %vm1264 = vmor %vm752, %vm1136
        %vm1265 = vmor %vm753, %vm1137
        %vm1266 = vmor %vm754, %vm1138
        %vm1267 = vmor %vm755, %vm1139
        %vm1268 = vmor %vm756, %vm1140
        %vm1269 = vmor %vm757, %vm1141
        %vm1270 = vmor %vm758, %vm1142
        %vm1271 = vmor %vm759, %vm1143
        %vm1272 = vmor %vm760, %vm1144
        %vm1273 = vmor %vm761, %vm1145
        %vm1274 = vmor %vm762, %vm1146
        %vm1275 = vmor %vm763, %vm1147
        %vm1276 = vmor %vm764, %vm1148
        %vm1277 = vmor %vm765, %vm1149
        %vm1278 = vmor %vm766, %vm1150
        %vm1279 = vmor %vm767, %vm1151
        %vm1280 = vmor %vm768, %vm1152
        %vm1281 = vmor %vm769, %vm1153
        %vm1282 = vmor %vm770, %vm1154
        %vm1283 = vmor %vm771, %vm1155
        %vm1284 = vmor %vm772, %vm1156
        %vm1285 = vmor %vm773, %vm1157
        %vm1286 = vmor %vm774, %vm1158
        %vm1287 = vmor %vm775, %vm1159
        %vm1288 = vmor %vm776, %vm1160
        %vm1289 = vmor %vm777, %vm1161
        %vm1290 = vmor %vm778, %vm1162
        %vm1291 = vmor %vm779, %vm1163
        %vm1292 = vmor %vm780, %vm1164
        %vm1293 = vmor %vm781, %vm1165
        %vm1294 = vmor %vm782, %vm1166
        %vm1295 = vmor %vm783, %vm1167
        %vm1296 = vmor %vm784, %vm1168
        %vm1297 = vmor %vm785, %vm1169
        %vm1298 = vmor %vm786, %vm1170
        %vm1299 = vmor %vm787, %vm1171
        %vm1300 = vmor %vm788, %vm1172
        %vm1301 = vmor %vm789, %vm1173
        %v1302 = vsel %vm1174, 1, 0
        %v1303 = vsel %vm1175, 1, 0
        %v1304 = vsel %vm1176, 1, 0
        %v1305 = vsel %vm1177, 1, 0
        %v1306 = vsel %vm1178, 1, 0
        %v1307 = vsel %vm1179, 1, 0
        %v1308 = vsel %vm1180, 1, 0
        %v1309 = vsel %vm1181, 1, 0
        %v1310 = vsel %vm1182, 1, 0
        %v1311 = vsel %vm1183, 1, 0
        %v1312 = vsel %vm1184, 1, 0
        %v1313 = vsel %vm1185, 1, 0
        %v1314 = vsel %vm1186, 1, 0
        %v1315 = vsel %vm1187, 1, 0
        %v1316 = vsel %vm1188, 1, 0
        %v1317 = vsel %vm1189, 1, 0
        %v1318 = vsel %vm1190, 1, 0
        %v1319 = vsel %vm1191, 1, 0
        %v1320 = vsel %vm1192, 1, 0
        %v1321 = vsel %vm1193, 1, 0
        %v1322 = vsel %vm1194, 1, 0
        %v1323 = vsel %vm1195, 1, 0
        %v1324 = vsel %vm1196, 1, 0
        %v1325 = vsel %vm1197, 1, 0
        %v1326 = vsel %vm1198, 1, 0
        %v1327 = vsel %vm1199, 1, 0
        %v1328 = vsel %vm1200, 1, 0
        %v1329 = vsel %vm1201, 1, 0
        %v1330 = vsel %vm1202, 1, 0
        %v1331 = vsel %vm1203, 1, 0
        %v1332 = vsel %vm1204, 1, 0
        %v1333 = vsel %vm1205, 1, 0
        %v1334 = vsel %vm1206, 1, 0
        %v1335 = vsel %vm1207, 1, 0
        %v1336 = vsel %vm1208, 1, 0
        %v1337 = vsel %vm1209, 1, 0
        %v1338 = vsel %vm1210, 1, 0
        %v1339 = vsel %vm1211, 1, 0
        %v1340 = vsel %vm1212, 1, 0
        %v1341 = vsel %vm1213, 1, 0
        %v1342 = vsel %vm1214, 1, 0
        %v1343 = vsel %vm1215, 1, 0
        %v1344 = vsel %vm1216, 1, 0
        %v1345 = vsel %vm1217, 1, 0
        %v1346 = vsel %vm1218, 1, 0
        %v1347 = vsel %vm1219, 1, 0
        %v1348 = vsel %vm1220, 1, 0
        %v1349 = vsel %vm1221, 1, 0
        %v1350 = vsel %vm1222, 1, 0
        %v1351 = vsel %vm1223, 1, 0
        %v1352 = vsel %vm1224, 1, 0
        %v1353 = vsel %vm1225, 1, 0
        %v1354 = vsel %vm1226, 1, 0
        %v1355 = vsel %vm1227, 1, 0
        %v1356 = vsel %vm1228, 1, 0
        %v1357 = vsel %vm1229, 1, 0
        %v1358 = vsel %vm1230, 1, 0
        %v1359 = vsel %vm1231, 1, 0
        %v1360 = vsel %vm1232, 1, 0
        %v1361 = vsel %vm1233, 1, 0
        %v1362 = vsel %vm1234, 1, 0
        %v1363 = vsel %vm1235, 1, 0
        %v1364 = vsel %vm1236, 1, 0
        %v1365 = vsel %vm1237, 1, 0
        %v1366 = vsel %vm1238, 1, 0
        %v1367 = vsel %vm1239, 1, 0
        %v1368 = vsel %vm1240, 1, 0
        %v1369 = vsel %vm1241, 1, 0
        %v1370 = vsel %vm1242, 1, 0
        %v1371 = vsel %vm1243, 1, 0
        %v1372 = vsel %vm1244, 1, 0
        %v1373 = vsel %vm1245, 1, 0
        %v1374 = vsel %vm1246, 1, 0
        %v1375 = vsel %vm1247, 1, 0
        %v1376 = vsel %vm1248, 1, 0
        %v1377 = vsel %vm1249, 1, 0
        %v1378 = vsel %vm1250, 1, 0
        %v1379 = vsel %vm1251, 1, 0
        %v1380 = vsel %vm1252, 1, 0
        %v1381 = vsel %vm1253, 1, 0
        %v1382 = vsel %vm1254, 1, 0
        %v1383 = vsel %vm1255, 1, 0
        %v1384 = vsel %vm1256, 1, 0
        %v1385 = vsel %vm1257, 1, 0
        %v1386 = vsel %vm1258, 1, 0
        %v1387 = vsel %vm1259, 1, 0
        %v1388 = vsel %vm1260, 1, 0
        %v1389 = vsel %vm1261, 1, 0
        %v1390 = vsel %vm1262, 1, 0
        %v1391 = vsel %vm1263, 1, 0
        %v1392 = vsel %vm1264, 1, 0
        %v1393 = vsel %vm1265, 1, 0
        %v1394 = vsel %vm1266, 1, 0
        %v1395 = vsel %vm1267, 1, 0
        %v1396 = vsel %vm1268, 1, 0
        %v1397 = vsel %vm1269, 1, 0
        %v1398 = vsel %vm1270, 1, 0
        %v1399 = vsel %vm1271, 1, 0
        %v1400 = vsel %vm1272, 1, 0
        %v1401 = vsel %vm1273, 1, 0
        %v1402 = vsel %vm1274, 1, 0
        %v1403 = vsel %vm1275, 1, 0
        %v1404 = vsel %vm1276, 1, 0
        %v1405 = vsel %vm1277, 1, 0
        %v1406 = vsel %vm1278, 1, 0
        %v1407 = vsel %vm1279, 1, 0
        %v1408 = vsel %vm1280, 1, 0
        %v1409 = vsel %vm1281, 1, 0
        %v1410 = vsel %vm1282, 1, 0
        %v1411 = vsel %vm1283, 1, 0
        %v1412 = vsel %vm1284, 1, 0
        %v1413 = vsel %vm1285, 1, 0
        %v1414 = vsel %vm1286, 1, 0
        %v1415 = vsel %vm1287, 1, 0
        %v1416 = vsel %vm1288, 1, 0
        %v1417 = vsel %vm1289, 1, 0
        %v1418 = vsel %vm1290, 1, 0
        %v1419 = vsel %vm1291, 1, 0
        %v1420 = vsel %vm1292, 1, 0
        %v1421 = vsel %vm1293, 1, 0
        %v1422 = vsel %vm1294, 1, 0
        %v1423 = vsel %vm1295, 1, 0
        %v1424 = vsel %vm1296, 1, 0
        %v1425 = vsel %vm1297, 1, 0
        %v1426 = vsel %vm1298, 1, 0
        %v1427 = vsel %vm1299, 1, 0
        %v1428 = vsel %vm1300, 1, 0
        %v1429 = vsel %vm1301, 1, 0
        %v1430 = vcvt.s32.f32 %v1302
        %v1431 = vcvt.s32.f32 %v1303
        %v1432 = vcvt.s32.f32 %v1304
        %v1433 = vcvt.s32.f32 %v1305
        %v1434 = vcvt.s32.f32 %v1306
        %v1435 = vcvt.s32.f32 %v1307
        %v1436 = vcvt.s32.f32 %v1308
        %v1437 = vcvt.s32.f32 %v1309
        %v1438 = vcvt.s32.f32 %v1310
        %v1439 = vcvt.s32.f32 %v1311
        %v1440 = vcvt.s32.f32 %v1312
        %v1441 = vcvt.s32.f32 %v1313
        %v1442 = vcvt.s32.f32 %v1314
        %v1443 = vcvt.s32.f32 %v1315
        %v1444 = vcvt.s32.f32 %v1316
        %v1445 = vcvt.s32.f32 %v1317
        %v1446 = vcvt.s32.f32 %v1318
        %v1447 = vcvt.s32.f32 %v1319
        %v1448 = vcvt.s32.f32 %v1320
        %v1449 = vcvt.s32.f32 %v1321
        %v1450 = vcvt.s32.f32 %v1322
        %v1451 = vcvt.s32.f32 %v1323
        %v1452 = vcvt.s32.f32 %v1324
        %v1453 = vcvt.s32.f32 %v1325
        %v1454 = vcvt.s32.f32 %v1326
        %v1455 = vcvt.s32.f32 %v1327
        %v1456 = vcvt.s32.f32 %v1328
        %v1457 = vcvt.s32.f32 %v1329
        %v1458 = vcvt.s32.f32 %v1330
        %v1459 = vcvt.s32.f32 %v1331
        %v1460 = vcvt.s32.f32 %v1332
        %v1461 = vcvt.s32.f32 %v1333
        %v1462 = vcvt.s32.f32 %v1334
        %v1463 = vcvt.s32.f32 %v1335
        %v1464 = vcvt.s32.f32 %v1336
        %v1465 = vcvt.s32.f32 %v1337
        %v1466 = vcvt.s32.f32 %v1338
        %v1467 = vcvt.s32.f32 %v1339
        %v1468 = vcvt.s32.f32 %v1340
        %v1469 = vcvt.s32.f32 %v1341
        %v1470 = vcvt.s32.f32 %v1342
        %v1471 = vcvt.s32.f32 %v1343
        %v1472 = vcvt.s32.f32 %v1344
        %v1473 = vcvt.s32.f32 %v1345
        %v1474 = vcvt.s32.f32 %v1346
        %v1475 = vcvt.s32.f32 %v1347
        %v1476 = vcvt.s32.f32 %v1348
        %v1477 = vcvt.s32.f32 %v1349
        %v1478 = vcvt.s32.f32 %v1350
        %v1479 = vcvt.s32.f32 %v1351
        %v1480 = vcvt.s32.f32 %v1352
        %v1481 = vcvt.s32.f32 %v1353
        %v1482 = vcvt.s32.f32 %v1354
        %v1483 = vcvt.s32.f32 %v1355
        %v1484 = vcvt.s32.f32 %v1356
        %v1485 = vcvt.s32.f32 %v1357
        %v1486 = vcvt.s32.f32 %v1358
        %v1487 = vcvt.s32.f32 %v1359
        %v1488 = vcvt.s32.f32 %v1360
        %v1489 = vcvt.s32.f32 %v1361
        %v1490 = vcvt.s32.f32 %v1362
        %v1491 = vcvt.s32.f32 %v1363
        %v1492 = vcvt.s32.f32 %v1364
        %v1493 = vcvt.s32.f32 %v1365
        %v1494 = vcvt.s32.f32 %v1366
        %v1495 = vcvt.s32.f32 %v1367
        %v1496 = vcvt.s32.f32 %v1368
        %v1497 = vcvt.s32.f32 %v1369
        %v1498 = vcvt.s32.f32 %v1370
        %v1499 = vcvt.s32.f32 %v1371
        %v1500 = vcvt.s32.f32 %v1372
        %v1501 = vcvt.s32.f32 %v1373
        %v1502 = vcvt.s32.f32 %v1374
        %v1503 = vcvt.s32.f32 %v1375
        %v1504 = vcvt.s32.f32 %v1376
        %v1505 = vcvt.s32.f32 %v1377
        %v1506 = vcvt.s32.f32 %v1378
        %v1507 = vcvt.s32.f32 %v1379
        %v1508 = vcvt.s32.f32 %v1380
        %v1509 = vcvt.s32.f32 %v1381
        %v1510 = vcvt.s32.f32 %v1382
        %v1511 = vcvt.s32.f32 %v1383
        %v1512 = vcvt.s32.f32 %v1384
        %v1513 = vcvt.s32.f32 %v1385
        %v1514 = vcvt.s32.f32 %v1386
        %v1515 = vcvt.s32.f32 %v1387
        %v1516 = vcvt.s32.f32 %v1388
        %v1517 = vcvt.s32.f32 %v1389
        %v1518 = vcvt.s32.f32 %v1390
        %v1519 = vcvt.s32.f32 %v1391
        %v1520 = vcvt.s32.f32 %v1392
        %v1521 = vcvt.s32.f32 %v1393
        %v1522 = vcvt.s32.f32 %v1394
        %v1523 = vcvt.s32.f32 %v1395
        %v1524 = vcvt.s32.f32 %v1396
        %v1525 = vcvt.s32.f32 %v1397
        %v1526 = vcvt.s32.f32 %v1398
        %v1527 = vcvt.s32.f32 %v1399
        %v1528 = vcvt.s32.f32 %v1400
        %v1529 = vcvt.s32.f32 %v1401
        %v1530 = vcvt.s32.f32 %v1402
        %v1531 = vcvt.s32.f32 %v1403
        %v1532 = vcvt.s32.f32 %v1404
        %v1533 = vcvt.s32.f32 %v1405
        %v1534 = vcvt.s32.f32 %v1406
        %v1535 = vcvt.s32.f32 %v1407
        %v1536 = vcvt.s32.f32 %v1408
        %v1537 = vcvt.s32.f32 %v1409
        %v1538 = vcvt.s32.f32 %v1410
        %v1539 = vcvt.s32.f32 %v1411
        %v1540 = vcvt.s32.f32 %v1412
        %v1541 = vcvt.s32.f32 %v1413
        %v1542 = vcvt.s32.f32 %v1414
        %v1543 = vcvt.s32.f32 %v1415
        %v1544 = vcvt.s32.f32 %v1416
        %v1545 = vcvt.s32.f32 %v1417
        %v1546 = vcvt.s32.f32 %v1418
        %v1547 = vcvt.s32.f32 %v1419
        %v1548 = vcvt.s32.f32 %v1420
        %v1549 = vcvt.s32.f32 %v1421
        %v1550 = vcvt.s32.f32 %v1422
        %v1551 = vcvt.s32.f32 %v1423
        %v1552 = vcvt.s32.f32 %v1424
        %v1553 = vcvt.s32.f32 %v1425
        %v1554 = vcvt.s32.f32 %v1426
        %v1555 = vcvt.s32.f32 %v1427
        %v1556 = vcvt.s32.f32 %v1428
        %v1557 = vcvt.s32.f32 %v1429
        %v1558 = vpack.c.bf16 %v1432, %v1430
        %v1559 = vpack.c.bf16 %v1433, %v1431
        %v1560 = vpack.c.bf16 %v1436, %v1434
        %v1561 = vpack.c.bf16 %v1437, %v1435
        %v1562 = vpack.c.bf16 %v1440, %v1438
        %v1563 = vpack.c.bf16 %v1441, %v1439
        %v1564 = vpack.c.bf16 %v1444, %v1442
        %v1565 = vpack.c.bf16 %v1445, %v1443
        %v1566 = vpack.c.bf16 %v1448, %v1446
        %v1567 = vpack.c.bf16 %v1449, %v1447
        %v1568 = vpack.c.bf16 %v1452, %v1450
        %v1569 = vpack.c.bf16 %v1453, %v1451
        %v1570 = vpack.c.bf16 %v1456, %v1454
        %v1571 = vpack.c.bf16 %v1457, %v1455
        %v1572 = vpack.c.bf16 %v1460, %v1458
        %v1573 = vpack.c.bf16 %v1461, %v1459
        %v1574 = vpack.c.bf16 %v1464, %v1462
        %v1575 = vpack.c.bf16 %v1465, %v1463
        %v1576 = vpack.c.bf16 %v1468, %v1466
        %v1577 = vpack.c.bf16 %v1469, %v1467
        %v1578 = vpack.c.bf16 %v1472, %v1470
        %v1579 = vpack.c.bf16 %v1473, %v1471
        %v1580 = vpack.c.bf16 %v1476, %v1474
        %v1581 = vpack.c.bf16 %v1477, %v1475
        %v1582 = vpack.c.bf16 %v1480, %v1478
        %v1583 = vpack.c.bf16 %v1481, %v1479
        %v1584 = vpack.c.bf16 %v1484, %v1482
        %v1585 = vpack.c.bf16 %v1485, %v1483
        %v1586 = vpack.c.bf16 %v1488, %v1486
        %v1587 = vpack.c.bf16 %v1489, %v1487
        %v1588 = vpack.c.bf16 %v1492, %v1490
        %v1589 = vpack.c.bf16 %v1493, %v1491
        %v1590 = vpack.c.bf16 %v1496, %v1494
        %v1591 = vpack.c.bf16 %v1497, %v1495
        %v1592 = vpack.c.bf16 %v1500, %v1498
        %v1593 = vpack.c.bf16 %v1501, %v1499
        %v1594 = vpack.c.bf16 %v1504, %v1502
        %v1595 = vpack.c.bf16 %v1505, %v1503
        %v1596 = vpack.c.bf16 %v1508, %v1506
        %v1597 = vpack.c.bf16 %v1509, %v1507
        %v1598 = vpack.c.bf16 %v1512, %v1510
        %v1599 = vpack.c.bf16 %v1513, %v1511
        %v1600 = vpack.c.bf16 %v1516, %v1514
        %v1601 = vpack.c.bf16 %v1517, %v1515
        %v1602 = vpack.c.bf16 %v1520, %v1518
        %v1603 = vpack.c.bf16 %v1521, %v1519
        %v1604 = vpack.c.bf16 %v1524, %v1522
        %v1605 = vpack.c.bf16 %v1525, %v1523
        %v1606 = vpack.c.bf16 %v1528, %v1526
        %v1607 = vpack.c.bf16 %v1529, %v1527
        %v1608 = vpack.c.bf16 %v1532, %v1530
        %v1609 = vpack.c.bf16 %v1533, %v1531
        %v1610 = vpack.c.bf16 %v1536, %v1534
        %v1611 = vpack.c.bf16 %v1537, %v1535
        %v1612 = vpack.c.bf16 %v1540, %v1538
        %v1613 = vpack.c.bf16 %v1541, %v1539
        %v1614 = vpack.c.bf16 %v1544, %v1542
        %v1615 = vpack.c.bf16 %v1545, %v1543
        %v1616 = vpack.c.bf16 %v1548, %v1546
        %v1617 = vpack.c.bf16 %v1549, %v1547
        %v1618 = vpack.c.bf16 %v1552, %v1550
        %v1619 = vpack.c.bf16 %v1553, %v1551
        %v1620 = vpack.c.bf16 %v1556, %v1554
        %v1621 = vpack.c.bf16 %v1557, %v1555
        %v1622 = vld [vmem:[%s1] sm:$0xff]
        %v1623 = vld [vmem:[%s1 + $0x8] sm:$0xff]
        %v1624 = vld [vmem:[%s1 + $0x10] sm:$0xff]
        %v1625 = vld [vmem:[%s1 + $0x18] sm:$0xff]
        %v1626 = vld [vmem:[%s1 + $0x20] sm:$0xff]
        %v1627 = vld [vmem:[%s1 + $0x28] sm:$0xff]
        %v1628 = vld [vmem:[%s1 + $0x30] sm:$0xff]
        %v1629 = vld [vmem:[%s1 + $0x38] sm:$0xff]
        %v1630 = vld [vmem:[%s1 + $0x40] sm:$0xff]
        %v1631 = vld [vmem:[%s1 + $0x48] sm:$0xff]
        %v1632 = vld [vmem:[%s1 + $0x50] sm:$0xff]
        %v1633 = vld [vmem:[%s1 + $0x58] sm:$0xff]
        %v1634 = vld [vmem:[%s1 + $0x60] sm:$0xff]
        %v1635 = vld [vmem:[%s1 + $0x68] sm:$0xff]
        %v1636 = vld [vmem:[%s1 + $0x70] sm:$0xff]
        %v1637 = vld [vmem:[%s1 + $0x78] sm:$0xff]
        %v1638 = vld [vmem:[%s1 + $0x80] sm:$0xff]
        %v1639 = vld [vmem:[%s1 + $0x88] sm:$0xff]
        %v1640 = vld [vmem:[%s1 + $0x90] sm:$0xff]
        %v1641 = vld [vmem:[%s1 + $0x98] sm:$0xff]
        %v1642 = vld [vmem:[%s1 + $0xa0] sm:$0xff]
        %v1643 = vld [vmem:[%s1 + $0xa8] sm:$0xff]
        %v1644 = vld [vmem:[%s1 + $0xb0] sm:$0xff]
        %v1645 = vld [vmem:[%s1 + $0xb8] sm:$0xff]
        %v1646 = vld [vmem:[%s1 + $0xc0] sm:$0xff]
        %v1647 = vld [vmem:[%s1 + $0xc8] sm:$0xff]
        %v1648 = vld [vmem:[%s1 + $0xd0] sm:$0xff]
        %v1649 = vld [vmem:[%s1 + $0xd8] sm:$0xff]
        %v1650 = vld [vmem:[%s1 + $0xe0] sm:$0xff]
        %v1651 = vld [vmem:[%s1 + $0xe8] sm:$0xff]
        %v1652 = vld [vmem:[%s1 + $0xf0] sm:$0xff]
        %v1653 = vld [vmem:[%s1 + $0xf8] sm:$0xff]
        %v1654 = vld [vmem:[%s2] sm:$0x3]
        %v1656 = vlaneseq
        %v1657 = vshrl.u32 %v1656, 7
        %v1658 = vsub.s32 0, %v1657
        %v1659 = vrot.slane %v1654, %v1658
        %v1660 = vlaneseq
        %v1661 = vshrl.u32 %v1660, 7
        %v1662 = vsub.s32 1, %v1661
        %v1663 = vrot.slane %v1654, %v1662
        %v1698 = vunpack.c.l.b16 %v1622
        %v1699 = vunpack.c.h.b16 %v1622
        %v1700 = vunpack.c.l.b16 %v1623
        %v1701 = vunpack.c.h.b16 %v1623
        %v1702 = vunpack.c.l.b16 %v1624
        %v1703 = vunpack.c.h.b16 %v1624
        %v1704 = vunpack.c.l.b16 %v1625
        %v1705 = vunpack.c.h.b16 %v1625
        %v1706 = vunpack.c.l.b16 %v1626
        %v1707 = vunpack.c.h.b16 %v1626
        %v1708 = vunpack.c.l.b16 %v1627
        %v1709 = vunpack.c.h.b16 %v1627
        %v1710 = vunpack.c.l.b16 %v1628
        %v1711 = vunpack.c.h.b16 %v1628
        %v1712 = vunpack.c.l.b16 %v1629
        %v1713 = vunpack.c.h.b16 %v1629
        %v1714 = vunpack.c.l.b16 %v1630
        %v1715 = vunpack.c.h.b16 %v1630
        %v1716 = vunpack.c.l.b16 %v1631
        %v1717 = vunpack.c.h.b16 %v1631
        %v1718 = vunpack.c.l.b16 %v1632
        %v1719 = vunpack.c.h.b16 %v1632
        %v1720 = vunpack.c.l.b16 %v1633
        %v1721 = vunpack.c.h.b16 %v1633
        %v1722 = vunpack.c.l.b16 %v1634
        %v1723 = vunpack.c.h.b16 %v1634
        %v1724 = vunpack.c.l.b16 %v1635
        %v1725 = vunpack.c.h.b16 %v1635
        %v1726 = vunpack.c.l.b16 %v1636
        %v1727 = vunpack.c.h.b16 %v1636
        %v1728 = vunpack.c.l.b16 %v1637
        %v1729 = vunpack.c.h.b16 %v1637
        %v1730 = vunpack.c.l.b16 %v1638
        %v1731 = vunpack.c.h.b16 %v1638
        %v1732 = vunpack.c.l.b16 %v1639
        %v1733 = vunpack.c.h.b16 %v1639
        %v1734 = vunpack.c.l.b16 %v1640
        %v1735 = vunpack.c.h.b16 %v1640
        %v1736 = vunpack.c.l.b16 %v1641
        %v1737 = vunpack.c.h.b16 %v1641
        %v1738 = vunpack.c.l.b16 %v1642
        %v1739 = vunpack.c.h.b16 %v1642
        %v1740 = vunpack.c.l.b16 %v1643
        %v1741 = vunpack.c.h.b16 %v1643
        %v1742 = vunpack.c.l.b16 %v1644
        %v1743 = vunpack.c.h.b16 %v1644
        %v1744 = vunpack.c.l.b16 %v1645
        %v1745 = vunpack.c.h.b16 %v1645
        %v1746 = vunpack.c.l.b16 %v1646
        %v1747 = vunpack.c.h.b16 %v1646
        %v1748 = vunpack.c.l.b16 %v1647
        %v1749 = vunpack.c.h.b16 %v1647
        %v1750 = vunpack.c.l.b16 %v1648
        %v1751 = vunpack.c.h.b16 %v1648
        %v1752 = vunpack.c.l.b16 %v1649
        %v1753 = vunpack.c.h.b16 %v1649
        %v1754 = vunpack.c.l.b16 %v1650
        %v1755 = vunpack.c.h.b16 %v1650
        %v1756 = vunpack.c.l.b16 %v1651
        %v1757 = vunpack.c.h.b16 %v1651
        %v1758 = vunpack.c.l.b16 %v1652
        %v1759 = vunpack.c.h.b16 %v1652
        %v1760 = vunpack.c.l.b16 %v1653
        %v1761 = vunpack.c.h.b16 %v1653
        %v1762 = vpack.c.b16 %v1700, %v1698
        %v1763 = vpack.c.b16 %v1701, %v1699
        %v1764 = vpack.c.b16 %v1704, %v1702
        %v1765 = vpack.c.b16 %v1705, %v1703
        %v1766 = vpack.c.b16 %v1708, %v1706
        %v1767 = vpack.c.b16 %v1709, %v1707
        %v1768 = vpack.c.b16 %v1712, %v1710
        %v1769 = vpack.c.b16 %v1713, %v1711
        %v1770 = vpack.c.b16 %v1716, %v1714
        %v1771 = vpack.c.b16 %v1717, %v1715
        %v1772 = vpack.c.b16 %v1720, %v1718
        %v1773 = vpack.c.b16 %v1721, %v1719
        %v1774 = vpack.c.b16 %v1724, %v1722
        %v1775 = vpack.c.b16 %v1725, %v1723
        %v1776 = vpack.c.b16 %v1728, %v1726
        %v1777 = vpack.c.b16 %v1729, %v1727
        %v1778 = vpack.c.b16 %v1732, %v1730
        %v1779 = vpack.c.b16 %v1733, %v1731
        %v1780 = vpack.c.b16 %v1736, %v1734
        %v1781 = vpack.c.b16 %v1737, %v1735
        %v1782 = vpack.c.b16 %v1740, %v1738
        %v1783 = vpack.c.b16 %v1741, %v1739
        %v1784 = vpack.c.b16 %v1744, %v1742
        %v1785 = vpack.c.b16 %v1745, %v1743
        %v1786 = vpack.c.b16 %v1748, %v1746
        %v1787 = vpack.c.b16 %v1749, %v1747
        %v1788 = vpack.c.b16 %v1752, %v1750
        %v1789 = vpack.c.b16 %v1753, %v1751
        %v1790 = vpack.c.b16 %v1756, %v1754
        %v1791 = vpack.c.b16 %v1757, %v1755
        %v1792 = vpack.c.b16 %v1760, %v1758
        %v1793 = vpack.c.b16 %v1761, %v1759
        %1826 = vmatprep.subr.bf16.mxu0 %v1763
        %1827 = vmatpush1.bf16.msra.mxu0 %v1762
        %1828 = vmatprep.subr.bf16.mxu0 %v1765
        %1829 = vmatpush1.bf16.msra.mxu0 %v1764
        %1830 = vmatprep.subr.bf16.mxu0 %v1767
        %1831 = vmatpush1.bf16.msra.mxu0 %v1766
        %1832 = vmatprep.subr.bf16.mxu0 %v1769
        %1833 = vmatpush1.bf16.msra.mxu0 %v1768
        %1834 = vmatprep.subr.bf16.mxu0 %v1771
        %1835 = vmatpush1.bf16.msra.mxu0 %v1770
        %1836 = vmatprep.subr.bf16.mxu0 %v1773
        %1837 = vmatpush1.bf16.msra.mxu0 %v1772
        %1838 = vmatprep.subr.bf16.mxu0 %v1775
        %1839 = vmatpush1.bf16.msra.mxu0 %v1774
        %1840 = vmatprep.subr.bf16.mxu0 %v1777
        %1841 = vmatpush1.bf16.msra.mxu0 %v1776
        %1842 = vmatprep.subr.bf16.mxu0 %v1779
        %1843 = vmatpush1.bf16.msra.mxu0 %v1778
        %1844 = vmatprep.subr.bf16.mxu0 %v1781
        %1845 = vmatpush1.bf16.msra.mxu0 %v1780
        %1846 = vmatprep.subr.bf16.mxu0 %v1783
        %1847 = vmatpush1.bf16.msra.mxu0 %v1782
        %1848 = vmatprep.subr.bf16.mxu0 %v1785
        %1849 = vmatpush1.bf16.msra.mxu0 %v1784
        %1850 = vmatprep.subr.bf16.mxu0 %v1787
        %1851 = vmatpush1.bf16.msra.mxu0 %v1786
        %1852 = vmatprep.subr.bf16.mxu0 %v1789
        %1853 = vmatpush1.bf16.msra.mxu0 %v1788
        %1854 = vmatprep.subr.bf16.mxu0 %v1791
        %1855 = vmatpush1.bf16.msra.mxu0 %v1790
        %1856 = vmatprep.subr.bf16.mxu0 %v1793
        %1857 = vmatpush1.bf16.msra.mxu0 %v1792
        %1858 = vmatprep.mubr.bf16.mxu0 %v1559
        %1859 = vmatmul.mubr.bf16.gmra.mrb[0].mxu0 %v1558
        %v1860 = vpop.f32.mrb[0].mxu0
        %v1861 = vadd.f32 %v1659, %v1860
        %v1862 = vpop.f32.mrb[0].mxu0
        %v1863 = vadd.f32 %v1663, %v1862
        %v1864 = vpop.f32.mrb[0].mxu0
        %v1865 = vadd.f32 %v1659, %v1864
        %v1866 = vpop.f32.mrb[0].mxu0
        %v1867 = vadd.f32 %v1663, %v1866
        %1868 = vmatprep.mubr.bf16.mxu0 %v1561
        %1869 = vmatmul.mubr.bf16.gmra.mrb[0].mxu0 %v1560
        %v1870 = vpop.f32.mrb[0].mxu0
        %v1871 = vadd.f32 %v1659, %v1870
        %v1872 = vpop.f32.mrb[0].mxu0
        %v1873 = vadd.f32 %v1663, %v1872
        %v1874 = vpop.f32.mrb[0].mxu0
        %v1875 = vadd.f32 %v1659, %v1874
        %v1876 = vpop.f32.mrb[0].mxu0
        %v1877 = vadd.f32 %v1663, %v1876
        %1878 = vmatprep.mubr.bf16.mxu0 %v1563
        %1879 = vmatmul.mubr.bf16.gmra.mrb[0].mxu0 %v1562
        %v1880 = vpop.f32.mrb[0].mxu0
        %v1881 = vadd.f32 %v1659, %v1880
        %v1882 = vpop.f32.mrb[0].mxu0
        %v1883 = vadd.f32 %v1663, %v1882
        %v1884 = vpop.f32.mrb[0].mxu0
        %v1885 = vadd.f32 %v1659, %v1884
        %v1886 = vpop.f32.mrb[0].mxu0
        %v1887 = vadd.f32 %v1663, %v1886
        %1888 = vmatprep.mubr.bf16.mxu0 %v1565
        %1889 = vmatmul.mubr.bf16.gmra.mrb[0].mxu0 %v1564
        %v1890 = vpop.f32.mrb[0].mxu0
        %v1891 = vadd.f32 %v1659, %v1890
        %v1892 = vpop.f32.mrb[0].mxu0
        %v1893 = vadd.f32 %v1663, %v1892
        %v1894 = vpop.f32.mrb[0].mxu0
        %v1895 = vadd.f32 %v1659, %v1894
        %v1896 = vpop.f32.mrb[0].mxu0
        %v1897 = vadd.f32 %v1663, %v1896
        %1898 = vmatprep.mubr.bf16.mxu0 %v1567
        %1899 = vmatmul.mubr.bf16.gmra.mrb[0].mxu0 %v1566
        %v1900 = vpop.f32.mrb[0].mxu0
        %v1901 = vadd.f32 %v1659, %v1900
        %v1902 = vpop.f32.mrb[0].mxu0
        %v1903 = vadd.f32 %v1663, %v1902
        %v1904 = vpop.f32.mrb[0].mxu0
        %v1905 = vadd.f32 %v1659, %v1904
        %v1906 = vpop.f32.mrb[0].mxu0
        %v1907 = vadd.f32 %v1663, %v1906
        %1908 = vmatprep.mubr.bf16.mxu0 %v1569
        %1909 = vmatmul.mubr.bf16.gmra.mrb[0].mxu0 %v1568
        %v1910 = vpop.f32.mrb[0].mxu0
        %v1911 = vadd.f32 %v1659, %v1910
        %v1912 = vpop.f32.mrb[0].mxu0
        %v1913 = vadd.f32 %v1663, %v1912
        %v1914 = vpop.f32.mrb[0].mxu0
        %v1915 = vadd.f32 %v1659, %v1914
        %v1916 = vpop.f32.mrb[0].mxu0
        %v1917 = vadd.f32 %v1663, %v1916
        %1918 = vmatprep.mubr.bf16.mxu0 %v1571
        %1919 = vmatmul.mubr.bf16.gmra.mrb[0].mxu0 %v1570
        %v1920 = vpop.f32.mrb[0].mxu0
        %v1921 = vadd.f32 %v1659, %v1920
        %v1922 = vpop.f32.mrb[0].mxu0
        %v1923 = vadd.f32 %v1663, %v1922
        %v1924 = vpop.f32.mrb[0].mxu0
        %v1925 = vadd.f32 %v1659, %v1924
        %v1926 = vpop.f32.mrb[0].mxu0
        %v1927 = vadd.f32 %v1663, %v1926
        %1928 = vmatprep.mubr.bf16.mxu0 %v1573
        %1929 = vmatmul.mubr.bf16.gmra.mrb[0].mxu0 %v1572
        %v1930 = vpop.f32.mrb[0].mxu0
        %v1931 = vadd.f32 %v1659, %v1930
        %v1932 = vpop.f32.mrb[0].mxu0
        %v1933 = vadd.f32 %v1663, %v1932
        %v1934 = vpop.f32.mrb[0].mxu0
        %v1935 = vadd.f32 %v1659, %v1934
        %v1936 = vpop.f32.mrb[0].mxu0
        %v1937 = vadd.f32 %v1663, %v1936
        %1938 = vmatprep.mubr.bf16.mxu0 %v1575
        %1939 = vmatmul.mubr.bf16.gmra.mrb[0].mxu0 %v1574
        %v1940 = vpop.f32.mrb[0].mxu0
        %v1941 = vadd.f32 %v1659, %v1940
        %v1942 = vpop.f32.mrb[0].mxu0
        %v1943 = vadd.f32 %v1663, %v1942
        %v1944 = vpop.f32.mrb[0].mxu0
        %v1945 = vadd.f32 %v1659, %v1944
        %v1946 = vpop.f32.mrb[0].mxu0
        %v1947 = vadd.f32 %v1663, %v1946
        %1948 = vmatprep.mubr.bf16.mxu0 %v1577
        %1949 = vmatmul.mubr.bf16.gmra.mrb[0].mxu0 %v1576
        %v1950 = vpop.f32.mrb[0].mxu0
        %v1951 = vadd.f32 %v1659, %v1950
        %v1952 = vpop.f32.mrb[0].mxu0
        %v1953 = vadd.f32 %v1663, %v1952
        %v1954 = vpop.f32.mrb[0].mxu0
        %v1955 = vadd.f32 %v1659, %v1954
        %v1956 = vpop.f32.mrb[0].mxu0
        %v1957 = vadd.f32 %v1663, %v1956
        %1958 = vmatprep.mubr.bf16.mxu0 %v1579
        %1959 = vmatmul.mubr.bf16.gmra.mrb[0].mxu0 %v1578
        %v1960 = vpop.f32.mrb[0].mxu0
        %v1961 = vadd.f32 %v1659, %v1960
        %v1962 = vpop.f32.mrb[0].mxu0
        %v1963 = vadd.f32 %v1663, %v1962
        %v1964 = vpop.f32.mrb[0].mxu0
        %v1965 = vadd.f32 %v1659, %v1964
        %v1966 = vpop.f32.mrb[0].mxu0
        %v1967 = vadd.f32 %v1663, %v1966
        %1968 = vmatprep.mubr.bf16.mxu0 %v1581
        %1969 = vmatmul.mubr.bf16.gmra.mrb[0].mxu0 %v1580
        %v1970 = vpop.f32.mrb[0].mxu0
        %v1971 = vadd.f32 %v1659, %v1970
        %v1972 = vpop.f32.mrb[0].mxu0
        %v1973 = vadd.f32 %v1663, %v1972
        %v1974 = vpop.f32.mrb[0].mxu0
        %v1975 = vadd.f32 %v1659, %v1974
        %v1976 = vpop.f32.mrb[0].mxu0
        %v1977 = vadd.f32 %v1663, %v1976
        %1978 = vmatprep.mubr.bf16.mxu0 %v1583
        %1979 = vmatmul.mubr.bf16.gmra.mrb[0].mxu0 %v1582
        %v1980 = vpop.f32.mrb[0].mxu0
        %v1981 = vadd.f32 %v1659, %v1980
        %v1982 = vpop.f32.mrb[0].mxu0
        %v1983 = vadd.f32 %v1663, %v1982
        %v1984 = vpop.f32.mrb[0].mxu0
        %v1985 = vadd.f32 %v1659, %v1984
        %v1986 = vpop.f32.mrb[0].mxu0
        %v1987 = vadd.f32 %v1663, %v1986
        %1988 = vmatprep.mubr.bf16.mxu0 %v1585
        %1989 = vmatmul.mubr.bf16.gmra.mrb[0].mxu0 %v1584
        %v1990 = vpop.f32.mrb[0].mxu0
        %v1991 = vadd.f32 %v1659, %v1990
        %v1992 = vpop.f32.mrb[0].mxu0
        %v1993 = vadd.f32 %v1663, %v1992
        %v1994 = vpop.f32.mrb[0].mxu0
        %v1995 = vadd.f32 %v1659, %v1994
        %v1996 = vpop.f32.mrb[0].mxu0
        %v1997 = vadd.f32 %v1663, %v1996
        %1998 = vmatprep.mubr.bf16.mxu0 %v1587
        %1999 = vmatmul.mubr.bf16.gmra.mrb[0].mxu0 %v1586
        %v2000 = vpop.f32.mrb[0].mxu0
        %v2001 = vadd.f32 %v1659, %v2000
        %v2002 = vpop.f32.mrb[0].mxu0
        %v2003 = vadd.f32 %v1663, %v2002
        %v2004 = vpop.f32.mrb[0].mxu0
        %v2005 = vadd.f32 %v1659, %v2004
        %v2006 = vpop.f32.mrb[0].mxu0
        %v2007 = vadd.f32 %v1663, %v2006
        %2008 = vmatprep.mubr.bf16.mxu0 %v1589
        %2009 = vmatmul.mubr.bf16.gmra.mrb[0].mxu0 %v1588
        %v2010 = vpop.f32.mrb[0].mxu0
        %v2011 = vadd.f32 %v1659, %v2010
        %v2012 = vpop.f32.mrb[0].mxu0
        %v2013 = vadd.f32 %v1663, %v2012
        %v2014 = vpop.f32.mrb[0].mxu0
        %v2015 = vadd.f32 %v1659, %v2014
        %v2016 = vpop.f32.mrb[0].mxu0
        %v2017 = vadd.f32 %v1663, %v2016
        %2018 = vmatprep.mubr.bf16.mxu0 %v1591
        %2019 = vmatmul.mubr.bf16.gmra.mrb[0].mxu0 %v1590
        %v2020 = vpop.f32.mrb[0].mxu0
        %v2021 = vadd.f32 %v1659, %v2020
        %v2022 = vpop.f32.mrb[0].mxu0
        %v2023 = vadd.f32 %v1663, %v2022
        %v2024 = vpop.f32.mrb[0].mxu0
        %v2025 = vadd.f32 %v1659, %v2024
        %v2026 = vpop.f32.mrb[0].mxu0
        %v2027 = vadd.f32 %v1663, %v2026
        %2028 = vmatprep.mubr.bf16.mxu0 %v1593
        %2029 = vmatmul.mubr.bf16.gmra.mrb[0].mxu0 %v1592
        %v2030 = vpop.f32.mrb[0].mxu0
        %v2031 = vadd.f32 %v1659, %v2030
        %v2032 = vpop.f32.mrb[0].mxu0
        %v2033 = vadd.f32 %v1663, %v2032
        %v2034 = vpop.f32.mrb[0].mxu0
        %v2035 = vadd.f32 %v1659, %v2034
        %v2036 = vpop.f32.mrb[0].mxu0
        %v2037 = vadd.f32 %v1663, %v2036
        %2038 = vmatprep.mubr.bf16.mxu0 %v1595
        %2039 = vmatmul.mubr.bf16.gmra.mrb[0].mxu0 %v1594
        %v2040 = vpop.f32.mrb[0].mxu0
        %v2041 = vadd.f32 %v1659, %v2040
        %v2042 = vpop.f32.mrb[0].mxu0
        %v2043 = vadd.f32 %v1663, %v2042
        %v2044 = vpop.f32.mrb[0].mxu0
        %v2045 = vadd.f32 %v1659, %v2044
        %v2046 = vpop.f32.mrb[0].mxu0
        %v2047 = vadd.f32 %v1663, %v2046
        %2048 = vmatprep.mubr.bf16.mxu0 %v1597
        %2049 = vmatmul.mubr.bf16.gmra.mrb[0].mxu0 %v1596
        %v2050 = vpop.f32.mrb[0].mxu0
        %v2051 = vadd.f32 %v1659, %v2050
        %v2052 = vpop.f32.mrb[0].mxu0
        %v2053 = vadd.f32 %v1663, %v2052
        %v2054 = vpop.f32.mrb[0].mxu0
        %v2055 = vadd.f32 %v1659, %v2054
        %v2056 = vpop.f32.mrb[0].mxu0
        %v2057 = vadd.f32 %v1663, %v2056
        %2058 = vmatprep.mubr.bf16.mxu0 %v1599
        %2059 = vmatmul.mubr.bf16.gmra.mrb[0].mxu0 %v1598
        %v2060 = vpop.f32.mrb[0].mxu0
        %v2061 = vadd.f32 %v1659, %v2060
        %v2062 = vpop.f32.mrb[0].mxu0
        %v2063 = vadd.f32 %v1663, %v2062
        %v2064 = vpop.f32.mrb[0].mxu0
        %v2065 = vadd.f32 %v1659, %v2064
        %v2066 = vpop.f32.mrb[0].mxu0
        %v2067 = vadd.f32 %v1663, %v2066
        %2068 = vmatprep.mubr.bf16.mxu0 %v1601
        %2069 = vmatmul.mubr.bf16.gmra.mrb[0].mxu0 %v1600
        %v2070 = vpop.f32.mrb[0].mxu0
        %v2071 = vadd.f32 %v1659, %v2070
        %v2072 = vpop.f32.mrb[0].mxu0
        %v2073 = vadd.f32 %v1663, %v2072
        %v2074 = vpop.f32.mrb[0].mxu0
        %v2075 = vadd.f32 %v1659, %v2074
        %v2076 = vpop.f32.mrb[0].mxu0
        %v2077 = vadd.f32 %v1663, %v2076
        %2078 = vmatprep.mubr.bf16.mxu0 %v1603
        %2079 = vmatmul.mubr.bf16.gmra.mrb[0].mxu0 %v1602
        %v2080 = vpop.f32.mrb[0].mxu0
        %v2081 = vadd.f32 %v1659, %v2080
        %v2082 = vpop.f32.mrb[0].mxu0
        %v2083 = vadd.f32 %v1663, %v2082
        %v2084 = vpop.f32.mrb[0].mxu0
        %v2085 = vadd.f32 %v1659, %v2084
        %v2086 = vpop.f32.mrb[0].mxu0
        %v2087 = vadd.f32 %v1663, %v2086
        %2088 = vmatprep.mubr.bf16.mxu0 %v1605
        %2089 = vmatmul.mubr.bf16.gmra.mrb[0].mxu0 %v1604
        %v2090 = vpop.f32.mrb[0].mxu0
        %v2091 = vadd.f32 %v1659, %v2090
        %v2092 = vpop.f32.mrb[0].mxu0
        %v2093 = vadd.f32 %v1663, %v2092
        %v2094 = vpop.f32.mrb[0].mxu0
        %v2095 = vadd.f32 %v1659, %v2094
        %v2096 = vpop.f32.mrb[0].mxu0
        %v2097 = vadd.f32 %v1663, %v2096
        %2098 = vmatprep.mubr.bf16.mxu0 %v1607
        %2099 = vmatmul.mubr.bf16.gmra.mrb[0].mxu0 %v1606
        %v2100 = vpop.f32.mrb[0].mxu0
        %v2101 = vadd.f32 %v1659, %v2100
        %v2102 = vpop.f32.mrb[0].mxu0
        %v2103 = vadd.f32 %v1663, %v2102
        %v2104 = vpop.f32.mrb[0].mxu0
        %v2105 = vadd.f32 %v1659, %v2104
        %v2106 = vpop.f32.mrb[0].mxu0
        %v2107 = vadd.f32 %v1663, %v2106
        %2108 = vmatprep.mubr.bf16.mxu0 %v1609
        %2109 = vmatmul.mubr.bf16.gmra.mrb[0].mxu0 %v1608
        %v2110 = vpop.f32.mrb[0].mxu0
        %v2111 = vadd.f32 %v1659, %v2110
        %v2112 = vpop.f32.mrb[0].mxu0
        %v2113 = vadd.f32 %v1663, %v2112
        %v2114 = vpop.f32.mrb[0].mxu0
        %v2115 = vadd.f32 %v1659, %v2114
        %v2116 = vpop.f32.mrb[0].mxu0
        %v2117 = vadd.f32 %v1663, %v2116
        %2118 = vmatprep.mubr.bf16.mxu0 %v1611
        %2119 = vmatmul.mubr.bf16.gmra.mrb[0].mxu0 %v1610
        %v2120 = vpop.f32.mrb[0].mxu0
        %v2121 = vadd.f32 %v1659, %v2120
        %v2122 = vpop.f32.mrb[0].mxu0
        %v2123 = vadd.f32 %v1663, %v2122
        %v2124 = vpop.f32.mrb[0].mxu0
        %v2125 = vadd.f32 %v1659, %v2124
        %v2126 = vpop.f32.mrb[0].mxu0
        %v2127 = vadd.f32 %v1663, %v2126
        %2128 = vmatprep.mubr.bf16.mxu0 %v1613
        %2129 = vmatmul.mubr.bf16.gmra.mrb[0].mxu0 %v1612
        %v2130 = vpop.f32.mrb[0].mxu0
        %v2131 = vadd.f32 %v1659, %v2130
        %v2132 = vpop.f32.mrb[0].mxu0
        %v2133 = vadd.f32 %v1663, %v2132
        %v2134 = vpop.f32.mrb[0].mxu0
        %v2135 = vadd.f32 %v1659, %v2134
        %v2136 = vpop.f32.mrb[0].mxu0
        %v2137 = vadd.f32 %v1663, %v2136
        %2138 = vmatprep.mubr.bf16.mxu0 %v1615
        %2139 = vmatmul.mubr.bf16.gmra.mrb[0].mxu0 %v1614
        %v2140 = vpop.f32.mrb[0].mxu0
        %v2141 = vadd.f32 %v1659, %v2140
        %v2142 = vpop.f32.mrb[0].mxu0
        %v2143 = vadd.f32 %v1663, %v2142
        %v2144 = vpop.f32.mrb[0].mxu0
        %v2145 = vadd.f32 %v1659, %v2144
        %v2146 = vpop.f32.mrb[0].mxu0
        %v2147 = vadd.f32 %v1663, %v2146
        %2148 = vmatprep.mubr.bf16.mxu0 %v1617
        %2149 = vmatmul.mubr.bf16.gmra.mrb[0].mxu0 %v1616
        %v2150 = vpop.f32.mrb[0].mxu0
        %v2151 = vadd.f32 %v1659, %v2150
        %v2152 = vpop.f32.mrb[0].mxu0
        %v2153 = vadd.f32 %v1663, %v2152
        %v2154 = vpop.f32.mrb[0].mxu0
        %v2155 = vadd.f32 %v1659, %v2154
        %v2156 = vpop.f32.mrb[0].mxu0
        %v2157 = vadd.f32 %v1663, %v2156
        %2158 = vmatprep.mubr.bf16.mxu0 %v1619
        %2159 = vmatmul.mubr.bf16.gmra.mrb[0].mxu0 %v1618
        %v2160 = vpop.f32.mrb[0].mxu0
        %v2161 = vadd.f32 %v1659, %v2160
        %v2162 = vpop.f32.mrb[0].mxu0
        %v2163 = vadd.f32 %v1663, %v2162
        %v2164 = vpop.f32.mrb[0].mxu0
        %v2165 = vadd.f32 %v1659, %v2164
        %v2166 = vpop.f32.mrb[0].mxu0
        %v2167 = vadd.f32 %v1663, %v2166
        %2168 = vmatprep.mubr.bf16.mxu0 %v1621
        %2169 = vmatmul.mubr.bf16.gmra.mrb[0].mxu0 %v1620
        %v2170 = vpop.f32.mrb[0].mxu0
        %v2171 = vadd.f32 %v1659, %v2170
        %v2172 = vpop.f32.mrb[0].mxu0
        %v2173 = vadd.f32 %v1663, %v2172
        %v2174 = vpop.f32.mrb[0].mxu0
        %v2175 = vadd.f32 %v1659, %v2174
        %v2176 = vpop.f32.mrb[0].mxu0
        %v2177 = vadd.f32 %v1663, %v2176
        %2178 = vdwg.mxu0
        %v2179 = vmax.f32 %v1861, 0.0
        %v2180 = vmax.f32 %v1863, 0.0
        %v2181 = vmax.f32 %v1865, 0.0
        %v2182 = vmax.f32 %v1867, 0.0
        %v2183 = vmax.f32 %v1871, 0.0
        %v2184 = vmax.f32 %v1873, 0.0
        %v2185 = vmax.f32 %v1875, 0.0
        %v2186 = vmax.f32 %v1877, 0.0
        %v2187 = vmax.f32 %v1881, 0.0
        %v2188 = vmax.f32 %v1883, 0.0
        %v2189 = vmax.f32 %v1885, 0.0
        %v2190 = vmax.f32 %v1887, 0.0
        %v2191 = vmax.f32 %v1891, 0.0
        %v2192 = vmax.f32 %v1893, 0.0
        %v2193 = vmax.f32 %v1895, 0.0
        %v2194 = vmax.f32 %v1897, 0.0
        %v2195 = vmax.f32 %v1901, 0.0
        %v2196 = vmax.f32 %v1903, 0.0
        %v2197 = vmax.f32 %v1905, 0.0
        %v2198 = vmax.f32 %v1907, 0.0
        %v2199 = vmax.f32 %v1911, 0.0
        %v2200 = vmax.f32 %v1913, 0.0
        %v2201 = vmax.f32 %v1915, 0.0
        %v2202 = vmax.f32 %v1917, 0.0
        %v2203 = vmax.f32 %v1921, 0.0
        %v2204 = vmax.f32 %v1923, 0.0
        %v2205 = vmax.f32 %v1925, 0.0
        %v2206 = vmax.f32 %v1927, 0.0
        %v2207 = vmax.f32 %v1931, 0.0
        %v2208 = vmax.f32 %v1933, 0.0
        %v2209 = vmax.f32 %v1935, 0.0
        %v2210 = vmax.f32 %v1937, 0.0
        %v2211 = vmax.f32 %v1941, 0.0
        %v2212 = vmax.f32 %v1943, 0.0
        %v2213 = vmax.f32 %v1945, 0.0
        %v2214 = vmax.f32 %v1947, 0.0
        %v2215 = vmax.f32 %v1951, 0.0
        %v2216 = vmax.f32 %v1953, 0.0
        %v2217 = vmax.f32 %v1955, 0.0
        %v2218 = vmax.f32 %v1957, 0.0
        %v2219 = vmax.f32 %v1961, 0.0
        %v2220 = vmax.f32 %v1963, 0.0
        %v2221 = vmax.f32 %v1965, 0.0
        %v2222 = vmax.f32 %v1967, 0.0
        %v2223 = vmax.f32 %v1971, 0.0
        %v2224 = vmax.f32 %v1973, 0.0
        %v2225 = vmax.f32 %v1975, 0.0
        %v2226 = vmax.f32 %v1977, 0.0
        %v2227 = vmax.f32 %v1981, 0.0
        %v2228 = vmax.f32 %v1983, 0.0
        %v2229 = vmax.f32 %v1985, 0.0
        %v2230 = vmax.f32 %v1987, 0.0
        %v2231 = vmax.f32 %v1991, 0.0
        %v2232 = vmax.f32 %v1993, 0.0
        %v2233 = vmax.f32 %v1995, 0.0
        %v2234 = vmax.f32 %v1997, 0.0
        %v2235 = vmax.f32 %v2001, 0.0
        %v2236 = vmax.f32 %v2003, 0.0
        %v2237 = vmax.f32 %v2005, 0.0
        %v2238 = vmax.f32 %v2007, 0.0
        %v2239 = vmax.f32 %v2011, 0.0
        %v2240 = vmax.f32 %v2013, 0.0
        %v2241 = vmax.f32 %v2015, 0.0
        %v2242 = vmax.f32 %v2017, 0.0
        %v2243 = vmax.f32 %v2021, 0.0
        %v2244 = vmax.f32 %v2023, 0.0
        %v2245 = vmax.f32 %v2025, 0.0
        %v2246 = vmax.f32 %v2027, 0.0
        %v2247 = vmax.f32 %v2031, 0.0
        %v2248 = vmax.f32 %v2033, 0.0
        %v2249 = vmax.f32 %v2035, 0.0
        %v2250 = vmax.f32 %v2037, 0.0
        %v2251 = vmax.f32 %v2041, 0.0
        %v2252 = vmax.f32 %v2043, 0.0
        %v2253 = vmax.f32 %v2045, 0.0
        %v2254 = vmax.f32 %v2047, 0.0
        %v2255 = vmax.f32 %v2051, 0.0
        %v2256 = vmax.f32 %v2053, 0.0
        %v2257 = vmax.f32 %v2055, 0.0
        %v2258 = vmax.f32 %v2057, 0.0
        %v2259 = vmax.f32 %v2061, 0.0
        %v2260 = vmax.f32 %v2063, 0.0
        %v2261 = vmax.f32 %v2065, 0.0
        %v2262 = vmax.f32 %v2067, 0.0
        %v2263 = vmax.f32 %v2071, 0.0
        %v2264 = vmax.f32 %v2073, 0.0
        %v2265 = vmax.f32 %v2075, 0.0
        %v2266 = vmax.f32 %v2077, 0.0
        %v2267 = vmax.f32 %v2081, 0.0
        %v2268 = vmax.f32 %v2083, 0.0
        %v2269 = vmax.f32 %v2085, 0.0
        %v2270 = vmax.f32 %v2087, 0.0
        %v2271 = vmax.f32 %v2091, 0.0
        %v2272 = vmax.f32 %v2093, 0.0
        %v2273 = vmax.f32 %v2095, 0.0
        %v2274 = vmax.f32 %v2097, 0.0
        %v2275 = vmax.f32 %v2101, 0.0
        %v2276 = vmax.f32 %v2103, 0.0
        %v2277 = vmax.f32 %v2105, 0.0
        %v2278 = vmax.f32 %v2107, 0.0
        %v2279 = vmax.f32 %v2111, 0.0
        %v2280 = vmax.f32 %v2113, 0.0
        %v2281 = vmax.f32 %v2115, 0.0
        %v2282 = vmax.f32 %v2117, 0.0
        %v2283 = vmax.f32 %v2121, 0.0
        %v2284 = vmax.f32 %v2123, 0.0
        %v2285 = vmax.f32 %v2125, 0.0
        %v2286 = vmax.f32 %v2127, 0.0
        %v2287 = vmax.f32 %v2131, 0.0
        %v2288 = vmax.f32 %v2133, 0.0
        %v2289 = vmax.f32 %v2135, 0.0
        %v2290 = vmax.f32 %v2137, 0.0
        %v2291 = vmax.f32 %v2141, 0.0
        %v2292 = vmax.f32 %v2143, 0.0
        %v2293 = vmax.f32 %v2145, 0.0
        %v2294 = vmax.f32 %v2147, 0.0
        %v2295 = vmax.f32 %v2151, 0.0
        %v2296 = vmax.f32 %v2153, 0.0
        %v2297 = vmax.f32 %v2155, 0.0
        %v2298 = vmax.f32 %v2157, 0.0
        %v2299 = vmax.f32 %v2161, 0.0
        %v2300 = vmax.f32 %v2163, 0.0
        %v2301 = vmax.f32 %v2165, 0.0
        %v2302 = vmax.f32 %v2167, 0.0
        %v2303 = vmax.f32 %v2171, 0.0
        %v2304 = vmax.f32 %v2173, 0.0
        %v2305 = vmax.f32 %v2175, 0.0
        %v2306 = vmax.f32 %v2177, 0.0
        %v2307 = vpack.c.bf16 %v2181, %v2179
        %v2308 = vpack.c.bf16 %v2182, %v2180
        %v2309 = vpack.c.bf16 %v2185, %v2183
        %v2310 = vpack.c.bf16 %v2186, %v2184
        %v2311 = vpack.c.bf16 %v2189, %v2187
        %v2312 = vpack.c.bf16 %v2190, %v2188
        %v2313 = vpack.c.bf16 %v2193, %v2191
        %v2314 = vpack.c.bf16 %v2194, %v2192
        %v2315 = vpack.c.bf16 %v2197, %v2195
        %v2316 = vpack.c.bf16 %v2198, %v2196
        %v2317 = vpack.c.bf16 %v2201, %v2199
        %v2318 = vpack.c.bf16 %v2202, %v2200
        %v2319 = vpack.c.bf16 %v2205, %v2203
        %v2320 = vpack.c.bf16 %v2206, %v2204
        %v2321 = vpack.c.bf16 %v2209, %v2207
        %v2322 = vpack.c.bf16 %v2210, %v2208
        %v2323 = vpack.c.bf16 %v2213, %v2211
        %v2324 = vpack.c.bf16 %v2214, %v2212
        %v2325 = vpack.c.bf16 %v2217, %v2215
        %v2326 = vpack.c.bf16 %v2218, %v2216
        %v2327 = vpack.c.bf16 %v2221, %v2219
        %v2328 = vpack.c.bf16 %v2222, %v2220
        %v2329 = vpack.c.bf16 %v2225, %v2223
        %v2330 = vpack.c.bf16 %v2226, %v2224
        %v2331 = vpack.c.bf16 %v2229, %v2227
        %v2332 = vpack.c.bf16 %v2230, %v2228
        %v2333 = vpack.c.bf16 %v2233, %v2231
        %v2334 = vpack.c.bf16 %v2234, %v2232
        %v2335 = vpack.c.bf16 %v2237, %v2235
        %v2336 = vpack.c.bf16 %v2238, %v2236
        %v2337 = vpack.c.bf16 %v2241, %v2239
        %v2338 = vpack.c.bf16 %v2242, %v2240
        %v2339 = vpack.c.bf16 %v2245, %v2243
        %v2340 = vpack.c.bf16 %v2246, %v2244
        %v2341 = vpack.c.bf16 %v2249, %v2247
        %v2342 = vpack.c.bf16 %v2250, %v2248
        %v2343 = vpack.c.bf16 %v2253, %v2251
        %v2344 = vpack.c.bf16 %v2254, %v2252
        %v2345 = vpack.c.bf16 %v2257, %v2255
        %v2346 = vpack.c.bf16 %v2258, %v2256
        %v2347 = vpack.c.bf16 %v2261, %v2259
        %v2348 = vpack.c.bf16 %v2262, %v2260
        %v2349 = vpack.c.bf16 %v2265, %v2263
        %v2350 = vpack.c.bf16 %v2266, %v2264
        %v2351 = vpack.c.bf16 %v2269, %v2267
        %v2352 = vpack.c.bf16 %v2270, %v2268
        %v2353 = vpack.c.bf16 %v2273, %v2271
        %v2354 = vpack.c.bf16 %v2274, %v2272
        %v2355 = vpack.c.bf16 %v2277, %v2275
        %v2356 = vpack.c.bf16 %v2278, %v2276
        %v2357 = vpack.c.bf16 %v2281, %v2279
        %v2358 = vpack.c.bf16 %v2282, %v2280
        %v2359 = vpack.c.bf16 %v2285, %v2283
        %v2360 = vpack.c.bf16 %v2286, %v2284
        %v2361 = vpack.c.bf16 %v2289, %v2287
        %v2362 = vpack.c.bf16 %v2290, %v2288
        %v2363 = vpack.c.bf16 %v2293, %v2291
        %v2364 = vpack.c.bf16 %v2294, %v2292
        %v2365 = vpack.c.bf16 %v2297, %v2295
        %v2366 = vpack.c.bf16 %v2298, %v2296
        %v2367 = vpack.c.bf16 %v2301, %v2299
        %v2368 = vpack.c.bf16 %v2302, %v2300
        %v2369 = vpack.c.bf16 %v2305, %v2303
        %v2370 = vpack.c.bf16 %v2306, %v2304
        %v2371 = vld [vmem:[%s3] sm:$0xff]
        %v2372 = vld [vmem:[%s3 + $0x8] sm:$0xff]
        %v2373 = vld [vmem:[%s3 + $0x10] sm:$0xff]
        %v2374 = vld [vmem:[%s3 + $0x18] sm:$0xff]
        %v2375 = vld [vmem:[%s3 + $0x20] sm:$0xff]
        %v2376 = vld [vmem:[%s3 + $0x28] sm:$0xff]
        %v2377 = vld [vmem:[%s3 + $0x30] sm:$0xff]
        %v2378 = vld [vmem:[%s3 + $0x38] sm:$0xff]
        %v2379 = vld [vmem:[%s3 + $0x40] sm:$0xff]
        %v2380 = vld [vmem:[%s3 + $0x48] sm:$0xff]
        %v2381 = vld [vmem:[%s3 + $0x50] sm:$0xff]
        %v2382 = vld [vmem:[%s3 + $0x58] sm:$0xff]
        %v2383 = vld [vmem:[%s3 + $0x60] sm:$0xff]
        %v2384 = vld [vmem:[%s3 + $0x68] sm:$0xff]
        %v2385 = vld [vmem:[%s3 + $0x70] sm:$0xff]
        %v2386 = vld [vmem:[%s3 + $0x78] sm:$0xff]
        %v2387 = vld [vmem:[%s3 + $0x80] sm:$0xff]
        %v2388 = vld [vmem:[%s3 + $0x88] sm:$0xff]
        %v2389 = vld [vmem:[%s3 + $0x90] sm:$0xff]
        %v2390 = vld [vmem:[%s3 + $0x98] sm:$0xff]
        %v2391 = vld [vmem:[%s3 + $0xa0] sm:$0xff]
        %v2392 = vld [vmem:[%s3 + $0xa8] sm:$0xff]
        %v2393 = vld [vmem:[%s3 + $0xb0] sm:$0xff]
        %v2394 = vld [vmem:[%s3 + $0xb8] sm:$0xff]
        %v2395 = vld [vmem:[%s3 + $0xc0] sm:$0xff]
        %v2396 = vld [vmem:[%s3 + $0xc8] sm:$0xff]
        %v2397 = vld [vmem:[%s3 + $0xd0] sm:$0xff]
        %v2398 = vld [vmem:[%s3 + $0xd8] sm:$0xff]
        %v2399 = vld [vmem:[%s3 + $0xe0] sm:$0xff]
        %v2400 = vld [vmem:[%s3 + $0xe8] sm:$0xff]
        %v2401 = vld [vmem:[%s3 + $0xf0] sm:$0xff]
        %v2402 = vld [vmem:[%s3 + $0xf8] sm:$0xff]
        %v2403 = vld [vmem:[%s4] sm:$0x3]
        %v2405 = vlaneseq
        %v2406 = vshrl.u32 %v2405, 7
        %v2407 = vsub.s32 0, %v2406
        %v2408 = vrot.slane %v2403, %v2407
        %v2409 = vlaneseq
        %v2410 = vshrl.u32 %v2409, 7
        %v2411 = vsub.s32 1, %v2410
        %v2412 = vrot.slane %v2403, %v2411
        %v2447 = vunpack.c.l.b16 %v2371
        %v2448 = vunpack.c.h.b16 %v2371
        %v2449 = vunpack.c.l.b16 %v2372
        %v2450 = vunpack.c.h.b16 %v2372
        %v2451 = vunpack.c.l.b16 %v2373
        %v2452 = vunpack.c.h.b16 %v2373
        %v2453 = vunpack.c.l.b16 %v2374
        %v2454 = vunpack.c.h.b16 %v2374
        %v2455 = vunpack.c.l.b16 %v2375
        %v2456 = vunpack.c.h.b16 %v2375
        %v2457 = vunpack.c.l.b16 %v2376
        %v2458 = vunpack.c.h.b16 %v2376
        %v2459 = vunpack.c.l.b16 %v2377
        %v2460 = vunpack.c.h.b16 %v2377
        %v2461 = vunpack.c.l.b16 %v2378
        %v2462 = vunpack.c.h.b16 %v2378
        %v2463 = vunpack.c.l.b16 %v2379
        %v2464 = vunpack.c.h.b16 %v2379
        %v2465 = vunpack.c.l.b16 %v2380
        %v2466 = vunpack.c.h.b16 %v2380
        %v2467 = vunpack.c.l.b16 %v2381
        %v2468 = vunpack.c.h.b16 %v2381
        %v2469 = vunpack.c.l.b16 %v2382
        %v2470 = vunpack.c.h.b16 %v2382
        %v2471 = vunpack.c.l.b16 %v2383
        %v2472 = vunpack.c.h.b16 %v2383
        %v2473 = vunpack.c.l.b16 %v2384
        %v2474 = vunpack.c.h.b16 %v2384
        %v2475 = vunpack.c.l.b16 %v2385
        %v2476 = vunpack.c.h.b16 %v2385
        %v2477 = vunpack.c.l.b16 %v2386
        %v2478 = vunpack.c.h.b16 %v2386
        %v2479 = vunpack.c.l.b16 %v2387
        %v2480 = vunpack.c.h.b16 %v2387
        %v2481 = vunpack.c.l.b16 %v2388
        %v2482 = vunpack.c.h.b16 %v2388
        %v2483 = vunpack.c.l.b16 %v2389
        %v2484 = vunpack.c.h.b16 %v2389
        %v2485 = vunpack.c.l.b16 %v2390
        %v2486 = vunpack.c.h.b16 %v2390
        %v2487 = vunpack.c.l.b16 %v2391
        %v2488 = vunpack.c.h.b16 %v2391
        %v2489 = vunpack.c.l.b16 %v2392
        %v2490 = vunpack.c.h.b16 %v2392
        %v2491 = vunpack.c.l.b16 %v2393
        %v2492 = vunpack.c.h.b16 %v2393
        %v2493 = vunpack.c.l.b16 %v2394
        %v2494 = vunpack.c.h.b16 %v2394
        %v2495 = vunpack.c.l.b16 %v2395
        %v2496 = vunpack.c.h.b16 %v2395
        %v2497 = vunpack.c.l.b16 %v2396
        %v2498 = vunpack.c.h.b16 %v2396
        %v2499 = vunpack.c.l.b16 %v2397
        %v2500 = vunpack.c.h.b16 %v2397
        %v2501 = vunpack.c.l.b16 %v2398
        %v2502 = vunpack.c.h.b16 %v2398
        %v2503 = vunpack.c.l.b16 %v2399
        %v2504 = vunpack.c.h.b16 %v2399
        %v2505 = vunpack.c.l.b16 %v2400
        %v2506 = vunpack.c.h.b16 %v2400
        %v2507 = vunpack.c.l.b16 %v2401
        %v2508 = vunpack.c.h.b16 %v2401
        %v2509 = vunpack.c.l.b16 %v2402
        %v2510 = vunpack.c.h.b16 %v2402
        %v2511 = vpack.c.b16 %v2449, %v2447
        %v2512 = vpack.c.b16 %v2450, %v2448
        %v2513 = vpack.c.b16 %v2453, %v2451
        %v2514 = vpack.c.b16 %v2454, %v2452
        %v2515 = vpack.c.b16 %v2457, %v2455
        %v2516 = vpack.c.b16 %v2458, %v2456
        %v2517 = vpack.c.b16 %v2461, %v2459
        %v2518 = vpack.c.b16 %v2462, %v2460
        %v2519 = vpack.c.b16 %v2465, %v2463
        %v2520 = vpack.c.b16 %v2466, %v2464
        %v2521 = vpack.c.b16 %v2469, %v2467
        %v2522 = vpack.c.b16 %v2470, %v2468
        %v2523 = vpack.c.b16 %v2473, %v2471
        %v2524 = vpack.c.b16 %v2474, %v2472
        %v2525 = vpack.c.b16 %v2477, %v2475
        %v2526 = vpack.c.b16 %v2478, %v2476
        %v2527 = vpack.c.b16 %v2481, %v2479
        %v2528 = vpack.c.b16 %v2482, %v2480
        %v2529 = vpack.c.b16 %v2485, %v2483
        %v2530 = vpack.c.b16 %v2486, %v2484
        %v2531 = vpack.c.b16 %v2489, %v2487
        %v2532 = vpack.c.b16 %v2490, %v2488
        %v2533 = vpack.c.b16 %v2493, %v2491
        %v2534 = vpack.c.b16 %v2494, %v2492
        %v2535 = vpack.c.b16 %v2497, %v2495
        %v2536 = vpack.c.b16 %v2498, %v2496
        %v2537 = vpack.c.b16 %v2501, %v2499
        %v2538 = vpack.c.b16 %v2502, %v2500
        %v2539 = vpack.c.b16 %v2505, %v2503
        %v2540 = vpack.c.b16 %v2506, %v2504
        %v2541 = vpack.c.b16 %v2509, %v2507
        %v2542 = vpack.c.b16 %v2510, %v2508
        %2575 = vmatprep.subr.bf16.mxu0 %v2512
        %2576 = vmatpush1.bf16.msra.mxu0 %v2511
        %2577 = vmatprep.subr.bf16.mxu0 %v2514
        %2578 = vmatpush1.bf16.msra.mxu0 %v2513
        %2579 = vmatprep.subr.bf16.mxu0 %v2516
        %2580 = vmatpush1.bf16.msra.mxu0 %v2515
        %2581 = vmatprep.subr.bf16.mxu0 %v2518
        %2582 = vmatpush1.bf16.msra.mxu0 %v2517
        %2583 = vmatprep.subr.bf16.mxu0 %v2520
        %2584 = vmatpush1.bf16.msra.mxu0 %v2519
        %2585 = vmatprep.subr.bf16.mxu0 %v2522
        %2586 = vmatpush1.bf16.msra.mxu0 %v2521
        %2587 = vmatprep.subr.bf16.mxu0 %v2524
        %2588 = vmatpush1.bf16.msra.mxu0 %v2523
        %2589 = vmatprep.subr.bf16.mxu0 %v2526
        %2590 = vmatpush1.bf16.msra.mxu0 %v2525
        %2591 = vmatprep.subr.bf16.mxu0 %v2528
        %2592 = vmatpush1.bf16.msra.mxu0 %v2527
        %2593 = vmatprep.subr.bf16.mxu0 %v2530
        %2594 = vmatpush1.bf16.msra.mxu0 %v2529
        %2595 = vmatprep.subr.bf16.mxu0 %v2532
        %2596 = vmatpush1.bf16.msra.mxu0 %v2531
        %2597 = vmatprep.subr.bf16.mxu0 %v2534
        %2598 = vmatpush1.bf16.msra.mxu0 %v2533
        %2599 = vmatprep.subr.bf16.mxu0 %v2536
        %2600 = vmatpush1.bf16.msra.mxu0 %v2535
        %2601 = vmatprep.subr.bf16.mxu0 %v2538
        %2602 = vmatpush1.bf16.msra.mxu0 %v2537
        %2603 = vmatprep.subr.bf16.mxu0 %v2540
        %2604 = vmatpush1.bf16.msra.mxu0 %v2539
        %2605 = vmatprep.subr.bf16.mxu0 %v2542
        %2606 = vmatpush1.bf16.msra.mxu0 %v2541
        %2607 = vmatprep.mubr.bf16.mxu0 %v2308
        %2608 = vmatmul.mubr.bf16.gmra.mrb[0].mxu0 %v2307
        %v2609 = vpop.f32.mrb[0].mxu0
        %v2610 = vadd.f32 %v2408, %v2609
        %v2611 = vpop.f32.mrb[0].mxu0
        %v2612 = vadd.f32 %v2412, %v2611
        %v2613 = vpop.f32.mrb[0].mxu0
        %v2614 = vadd.f32 %v2408, %v2613
        %v2615 = vpop.f32.mrb[0].mxu0
        %v2616 = vadd.f32 %v2412, %v2615
        %2617 = vmatprep.mubr.bf16.mxu0 %v2310
        %2618 = vmatmul.mubr.bf16.gmra.mrb[0].mxu0 %v2309
        %v2619 = vpop.f32.mrb[0].mxu0
        %v2620 = vadd.f32 %v2408, %v2619
        %v2621 = vpop.f32.mrb[0].mxu0
        %v2622 = vadd.f32 %v2412, %v2621
        %v2623 = vpop.f32.mrb[0].mxu0
        %v2624 = vadd.f32 %v2408, %v2623
        %v2625 = vpop.f32.mrb[0].mxu0
        %v2626 = vadd.f32 %v2412, %v2625
        %2627 = vmatprep.mubr.bf16.mxu0 %v2312
        %2628 = vmatmul.mubr.bf16.gmra.mrb[0].mxu0 %v2311
        %v2629 = vpop.f32.mrb[0].mxu0
        %v2630 = vadd.f32 %v2408, %v2629
        %v2631 = vpop.f32.mrb[0].mxu0
        %v2632 = vadd.f32 %v2412, %v2631
        %v2633 = vpop.f32.mrb[0].mxu0
        %v2634 = vadd.f32 %v2408, %v2633
        %v2635 = vpop.f32.mrb[0].mxu0
        %v2636 = vadd.f32 %v2412, %v2635
        %2637 = vmatprep.mubr.bf16.mxu0 %v2314
        %2638 = vmatmul.mubr.bf16.gmra.mrb[0].mxu0 %v2313
        %v2639 = vpop.f32.mrb[0].mxu0
        %v2640 = vadd.f32 %v2408, %v2639
        %v2641 = vpop.f32.mrb[0].mxu0
        %v2642 = vadd.f32 %v2412, %v2641
        %v2643 = vpop.f32.mrb[0].mxu0
        %v2644 = vadd.f32 %v2408, %v2643
        %v2645 = vpop.f32.mrb[0].mxu0
        %v2646 = vadd.f32 %v2412, %v2645
        %2647 = vmatprep.mubr.bf16.mxu0 %v2316
        %2648 = vmatmul.mubr.bf16.gmra.mrb[0].mxu0 %v2315
        %v2649 = vpop.f32.mrb[0].mxu0
        %v2650 = vadd.f32 %v2408, %v2649
        %v2651 = vpop.f32.mrb[0].mxu0
        %v2652 = vadd.f32 %v2412, %v2651
        %v2653 = vpop.f32.mrb[0].mxu0
        %v2654 = vadd.f32 %v2408, %v2653
        %v2655 = vpop.f32.mrb[0].mxu0
        %v2656 = vadd.f32 %v2412, %v2655
        %2657 = vmatprep.mubr.bf16.mxu0 %v2318
        %2658 = vmatmul.mubr.bf16.gmra.mrb[0].mxu0 %v2317
        %v2659 = vpop.f32.mrb[0].mxu0
        %v2660 = vadd.f32 %v2408, %v2659
        %v2661 = vpop.f32.mrb[0].mxu0
        %v2662 = vadd.f32 %v2412, %v2661
        %v2663 = vpop.f32.mrb[0].mxu0
        %v2664 = vadd.f32 %v2408, %v2663
        %v2665 = vpop.f32.mrb[0].mxu0
        %v2666 = vadd.f32 %v2412, %v2665
        %2667 = vmatprep.mubr.bf16.mxu0 %v2320
        %2668 = vmatmul.mubr.bf16.gmra.mrb[0].mxu0 %v2319
        %v2669 = vpop.f32.mrb[0].mxu0
        %v2670 = vadd.f32 %v2408, %v2669
        %v2671 = vpop.f32.mrb[0].mxu0
        %v2672 = vadd.f32 %v2412, %v2671
        %v2673 = vpop.f32.mrb[0].mxu0
        %v2674 = vadd.f32 %v2408, %v2673
        %v2675 = vpop.f32.mrb[0].mxu0
        %v2676 = vadd.f32 %v2412, %v2675
        %2677 = vmatprep.mubr.bf16.mxu0 %v2322
        %2678 = vmatmul.mubr.bf16.gmra.mrb[0].mxu0 %v2321
        %v2679 = vpop.f32.mrb[0].mxu0
        %v2680 = vadd.f32 %v2408, %v2679
        %v2681 = vpop.f32.mrb[0].mxu0
        %v2682 = vadd.f32 %v2412, %v2681
        %v2683 = vpop.f32.mrb[0].mxu0
        %v2684 = vadd.f32 %v2408, %v2683
        %v2685 = vpop.f32.mrb[0].mxu0
        %v2686 = vadd.f32 %v2412, %v2685
        %2687 = vmatprep.mubr.bf16.mxu0 %v2324
        %2688 = vmatmul.mubr.bf16.gmra.mrb[0].mxu0 %v2323
        %v2689 = vpop.f32.mrb[0].mxu0
        %v2690 = vadd.f32 %v2408, %v2689
        %v2691 = vpop.f32.mrb[0].mxu0
        %v2692 = vadd.f32 %v2412, %v2691
        %v2693 = vpop.f32.mrb[0].mxu0
        %v2694 = vadd.f32 %v2408, %v2693
        %v2695 = vpop.f32.mrb[0].mxu0
        %v2696 = vadd.f32 %v2412, %v2695
        %2697 = vmatprep.mubr.bf16.mxu0 %v2326
        %2698 = vmatmul.mubr.bf16.gmra.mrb[0].mxu0 %v2325
        %v2699 = vpop.f32.mrb[0].mxu0
        %v2700 = vadd.f32 %v2408, %v2699
        %v2701 = vpop.f32.mrb[0].mxu0
        %v2702 = vadd.f32 %v2412, %v2701
        %v2703 = vpop.f32.mrb[0].mxu0
        %v2704 = vadd.f32 %v2408, %v2703
        %v2705 = vpop.f32.mrb[0].mxu0
        %v2706 = vadd.f32 %v2412, %v2705
        %2707 = vmatprep.mubr.bf16.mxu0 %v2328
        %2708 = vmatmul.mubr.bf16.gmra.mrb[0].mxu0 %v2327
        %v2709 = vpop.f32.mrb[0].mxu0
        %v2710 = vadd.f32 %v2408, %v2709
        %v2711 = vpop.f32.mrb[0].mxu0
        %v2712 = vadd.f32 %v2412, %v2711
        %v2713 = vpop.f32.mrb[0].mxu0
        %v2714 = vadd.f32 %v2408, %v2713
        %v2715 = vpop.f32.mrb[0].mxu0
        %v2716 = vadd.f32 %v2412, %v2715
        %2717 = vmatprep.mubr.bf16.mxu0 %v2330
        %2718 = vmatmul.mubr.bf16.gmra.mrb[0].mxu0 %v2329
        %v2719 = vpop.f32.mrb[0].mxu0
        %v2720 = vadd.f32 %v2408, %v2719
        %v2721 = vpop.f32.mrb[0].mxu0
        %v2722 = vadd.f32 %v2412, %v2721
        %v2723 = vpop.f32.mrb[0].mxu0
        %v2724 = vadd.f32 %v2408, %v2723
        %v2725 = vpop.f32.mrb[0].mxu0
        %v2726 = vadd.f32 %v2412, %v2725
        %2727 = vmatprep.mubr.bf16.mxu0 %v2332
        %2728 = vmatmul.mubr.bf16.gmra.mrb[0].mxu0 %v2331
        %v2729 = vpop.f32.mrb[0].mxu0
        %v2730 = vadd.f32 %v2408, %v2729
        %v2731 = vpop.f32.mrb[0].mxu0
        %v2732 = vadd.f32 %v2412, %v2731
        %v2733 = vpop.f32.mrb[0].mxu0
        %v2734 = vadd.f32 %v2408, %v2733
        %v2735 = vpop.f32.mrb[0].mxu0
        %v2736 = vadd.f32 %v2412, %v2735
        %2737 = vmatprep.mubr.bf16.mxu0 %v2334
        %2738 = vmatmul.mubr.bf16.gmra.mrb[0].mxu0 %v2333
        %v2739 = vpop.f32.mrb[0].mxu0
        %v2740 = vadd.f32 %v2408, %v2739
        %v2741 = vpop.f32.mrb[0].mxu0
        %v2742 = vadd.f32 %v2412, %v2741
        %v2743 = vpop.f32.mrb[0].mxu0
        %v2744 = vadd.f32 %v2408, %v2743
        %v2745 = vpop.f32.mrb[0].mxu0
        %v2746 = vadd.f32 %v2412, %v2745
        %2747 = vmatprep.mubr.bf16.mxu0 %v2336
        %2748 = vmatmul.mubr.bf16.gmra.mrb[0].mxu0 %v2335
        %v2749 = vpop.f32.mrb[0].mxu0
        %v2750 = vadd.f32 %v2408, %v2749
        %v2751 = vpop.f32.mrb[0].mxu0
        %v2752 = vadd.f32 %v2412, %v2751
        %v2753 = vpop.f32.mrb[0].mxu0
        %v2754 = vadd.f32 %v2408, %v2753
        %v2755 = vpop.f32.mrb[0].mxu0
        %v2756 = vadd.f32 %v2412, %v2755
        %2757 = vmatprep.mubr.bf16.mxu0 %v2338
        %2758 = vmatmul.mubr.bf16.gmra.mrb[0].mxu0 %v2337
        %v2759 = vpop.f32.mrb[0].mxu0
        %v2760 = vadd.f32 %v2408, %v2759
        %v2761 = vpop.f32.mrb[0].mxu0
        %v2762 = vadd.f32 %v2412, %v2761
        %v2763 = vpop.f32.mrb[0].mxu0
        %v2764 = vadd.f32 %v2408, %v2763
        %v2765 = vpop.f32.mrb[0].mxu0
        %v2766 = vadd.f32 %v2412, %v2765
        %2767 = vmatprep.mubr.bf16.mxu0 %v2340
        %2768 = vmatmul.mubr.bf16.gmra.mrb[0].mxu0 %v2339
        %v2769 = vpop.f32.mrb[0].mxu0
        %v2770 = vadd.f32 %v2408, %v2769
        %v2771 = vpop.f32.mrb[0].mxu0
        %v2772 = vadd.f32 %v2412, %v2771
        %v2773 = vpop.f32.mrb[0].mxu0
        %v2774 = vadd.f32 %v2408, %v2773
        %v2775 = vpop.f32.mrb[0].mxu0
        %v2776 = vadd.f32 %v2412, %v2775
        %2777 = vmatprep.mubr.bf16.mxu0 %v2342
        %2778 = vmatmul.mubr.bf16.gmra.mrb[0].mxu0 %v2341
        %v2779 = vpop.f32.mrb[0].mxu0
        %v2780 = vadd.f32 %v2408, %v2779
        %v2781 = vpop.f32.mrb[0].mxu0
        %v2782 = vadd.f32 %v2412, %v2781
        %v2783 = vpop.f32.mrb[0].mxu0
        %v2784 = vadd.f32 %v2408, %v2783
        %v2785 = vpop.f32.mrb[0].mxu0
        %v2786 = vadd.f32 %v2412, %v2785
        %2787 = vmatprep.mubr.bf16.mxu0 %v2344
        %2788 = vmatmul.mubr.bf16.gmra.mrb[0].mxu0 %v2343
        %v2789 = vpop.f32.mrb[0].mxu0
        %v2790 = vadd.f32 %v2408, %v2789
        %v2791 = vpop.f32.mrb[0].mxu0
        %v2792 = vadd.f32 %v2412, %v2791
        %v2793 = vpop.f32.mrb[0].mxu0
        %v2794 = vadd.f32 %v2408, %v2793
        %v2795 = vpop.f32.mrb[0].mxu0
        %v2796 = vadd.f32 %v2412, %v2795
        %2797 = vmatprep.mubr.bf16.mxu0 %v2346
        %2798 = vmatmul.mubr.bf16.gmra.mrb[0].mxu0 %v2345
        %v2799 = vpop.f32.mrb[0].mxu0
        %v2800 = vadd.f32 %v2408, %v2799
        %v2801 = vpop.f32.mrb[0].mxu0
        %v2802 = vadd.f32 %v2412, %v2801
        %v2803 = vpop.f32.mrb[0].mxu0
        %v2804 = vadd.f32 %v2408, %v2803
        %v2805 = vpop.f32.mrb[0].mxu0
        %v2806 = vadd.f32 %v2412, %v2805
        %2807 = vmatprep.mubr.bf16.mxu0 %v2348
        %2808 = vmatmul.mubr.bf16.gmra.mrb[0].mxu0 %v2347
        %v2809 = vpop.f32.mrb[0].mxu0
        %v2810 = vadd.f32 %v2408, %v2809
        %v2811 = vpop.f32.mrb[0].mxu0
        %v2812 = vadd.f32 %v2412, %v2811
        %v2813 = vpop.f32.mrb[0].mxu0
        %v2814 = vadd.f32 %v2408, %v2813
        %v2815 = vpop.f32.mrb[0].mxu0
        %v2816 = vadd.f32 %v2412, %v2815
        %2817 = vmatprep.mubr.bf16.mxu0 %v2350
        %2818 = vmatmul.mubr.bf16.gmra.mrb[0].mxu0 %v2349
        %v2819 = vpop.f32.mrb[0].mxu0
        %v2820 = vadd.f32 %v2408, %v2819
        %v2821 = vpop.f32.mrb[0].mxu0
        %v2822 = vadd.f32 %v2412, %v2821
        %v2823 = vpop.f32.mrb[0].mxu0
        %v2824 = vadd.f32 %v2408, %v2823
        %v2825 = vpop.f32.mrb[0].mxu0
        %v2826 = vadd.f32 %v2412, %v2825
        %2827 = vmatprep.mubr.bf16.mxu0 %v2352
        %2828 = vmatmul.mubr.bf16.gmra.mrb[0].mxu0 %v2351
        %v2829 = vpop.f32.mrb[0].mxu0
        %v2830 = vadd.f32 %v2408, %v2829
        %v2831 = vpop.f32.mrb[0].mxu0
        %v2832 = vadd.f32 %v2412, %v2831
        %v2833 = vpop.f32.mrb[0].mxu0
        %v2834 = vadd.f32 %v2408, %v2833
        %v2835 = vpop.f32.mrb[0].mxu0
        %v2836 = vadd.f32 %v2412, %v2835
        %2837 = vmatprep.mubr.bf16.mxu0 %v2354
        %2838 = vmatmul.mubr.bf16.gmra.mrb[0].mxu0 %v2353
        %v2839 = vpop.f32.mrb[0].mxu0
        %v2840 = vadd.f32 %v2408, %v2839
        %v2841 = vpop.f32.mrb[0].mxu0
        %v2842 = vadd.f32 %v2412, %v2841
        %v2843 = vpop.f32.mrb[0].mxu0
        %v2844 = vadd.f32 %v2408, %v2843
        %v2845 = vpop.f32.mrb[0].mxu0
        %v2846 = vadd.f32 %v2412, %v2845
        %2847 = vmatprep.mubr.bf16.mxu0 %v2356
        %2848 = vmatmul.mubr.bf16.gmra.mrb[0].mxu0 %v2355
        %v2849 = vpop.f32.mrb[0].mxu0
        %v2850 = vadd.f32 %v2408, %v2849
        %v2851 = vpop.f32.mrb[0].mxu0
        %v2852 = vadd.f32 %v2412, %v2851
        %v2853 = vpop.f32.mrb[0].mxu0
        %v2854 = vadd.f32 %v2408, %v2853
        %v2855 = vpop.f32.mrb[0].mxu0
        %v2856 = vadd.f32 %v2412, %v2855
        %2857 = vmatprep.mubr.bf16.mxu0 %v2358
        %2858 = vmatmul.mubr.bf16.gmra.mrb[0].mxu0 %v2357
        %v2859 = vpop.f32.mrb[0].mxu0
        %v2860 = vadd.f32 %v2408, %v2859
        %v2861 = vpop.f32.mrb[0].mxu0
        %v2862 = vadd.f32 %v2412, %v2861
        %v2863 = vpop.f32.mrb[0].mxu0
        %v2864 = vadd.f32 %v2408, %v2863
        %v2865 = vpop.f32.mrb[0].mxu0
        %v2866 = vadd.f32 %v2412, %v2865
        %2867 = vmatprep.mubr.bf16.mxu0 %v2360
        %2868 = vmatmul.mubr.bf16.gmra.mrb[0].mxu0 %v2359
        %v2869 = vpop.f32.mrb[0].mxu0
        %v2870 = vadd.f32 %v2408, %v2869
        %v2871 = vpop.f32.mrb[0].mxu0
        %v2872 = vadd.f32 %v2412, %v2871
        %v2873 = vpop.f32.mrb[0].mxu0
        %v2874 = vadd.f32 %v2408, %v2873
        %v2875 = vpop.f32.mrb[0].mxu0
        %v2876 = vadd.f32 %v2412, %v2875
        %2877 = vmatprep.mubr.bf16.mxu0 %v2362
        %2878 = vmatmul.mubr.bf16.gmra.mrb[0].mxu0 %v2361
        %v2879 = vpop.f32.mrb[0].mxu0
        %v2880 = vadd.f32 %v2408, %v2879
        %v2881 = vpop.f32.mrb[0].mxu0
        %v2882 = vadd.f32 %v2412, %v2881
        %v2883 = vpop.f32.mrb[0].mxu0
        %v2884 = vadd.f32 %v2408, %v2883
        %v2885 = vpop.f32.mrb[0].mxu0
        %v2886 = vadd.f32 %v2412, %v2885
        %2887 = vmatprep.mubr.bf16.mxu0 %v2364
        %2888 = vmatmul.mubr.bf16.gmra.mrb[0].mxu0 %v2363
        %v2889 = vpop.f32.mrb[0].mxu0
        %v2890 = vadd.f32 %v2408, %v2889
        %v2891 = vpop.f32.mrb[0].mxu0
        %v2892 = vadd.f32 %v2412, %v2891
        %v2893 = vpop.f32.mrb[0].mxu0
        %v2894 = vadd.f32 %v2408, %v2893
        %v2895 = vpop.f32.mrb[0].mxu0
        %v2896 = vadd.f32 %v2412, %v2895
        %2897 = vmatprep.mubr.bf16.mxu0 %v2366
        %2898 = vmatmul.mubr.bf16.gmra.mrb[0].mxu0 %v2365
        %v2899 = vpop.f32.mrb[0].mxu0
        %v2900 = vadd.f32 %v2408, %v2899
        %v2901 = vpop.f32.mrb[0].mxu0
        %v2902 = vadd.f32 %v2412, %v2901
        %v2903 = vpop.f32.mrb[0].mxu0
        %v2904 = vadd.f32 %v2408, %v2903
        %v2905 = vpop.f32.mrb[0].mxu0
        %v2906 = vadd.f32 %v2412, %v2905
        %2907 = vmatprep.mubr.bf16.mxu0 %v2368
        %2908 = vmatmul.mubr.bf16.gmra.mrb[0].mxu0 %v2367
        %v2909 = vpop.f32.mrb[0].mxu0
        %v2910 = vadd.f32 %v2408, %v2909
        %v2911 = vpop.f32.mrb[0].mxu0
        %v2912 = vadd.f32 %v2412, %v2911
        %v2913 = vpop.f32.mrb[0].mxu0
        %v2914 = vadd.f32 %v2408, %v2913
        %v2915 = vpop.f32.mrb[0].mxu0
        %v2916 = vadd.f32 %v2412, %v2915
        %2917 = vmatprep.mubr.bf16.mxu0 %v2370
        %2918 = vmatmul.mubr.bf16.gmra.mrb[0].mxu0 %v2369
        %v2919 = vpop.f32.mrb[0].mxu0
        %v2920 = vadd.f32 %v2408, %v2919
        %v2921 = vpop.f32.mrb[0].mxu0
        %v2922 = vadd.f32 %v2412, %v2921
        %v2923 = vpop.f32.mrb[0].mxu0
        %v2924 = vadd.f32 %v2408, %v2923
        %v2925 = vpop.f32.mrb[0].mxu0
        %v2926 = vadd.f32 %v2412, %v2925
        %2927 = vdwg.mxu0
        %v2928 = vmax.f32 %v2610, 0.0
        %v2929 = vmax.f32 %v2612, 0.0
        %v2930 = vmax.f32 %v2614, 0.0
        %v2931 = vmax.f32 %v2616, 0.0
        %v2932 = vmax.f32 %v2620, 0.0
        %v2933 = vmax.f32 %v2622, 0.0
        %v2934 = vmax.f32 %v2624, 0.0
        %v2935 = vmax.f32 %v2626, 0.0
        %v2936 = vmax.f32 %v2630, 0.0
        %v2937 = vmax.f32 %v2632, 0.0
        %v2938 = vmax.f32 %v2634, 0.0
        %v2939 = vmax.f32 %v2636, 0.0
        %v2940 = vmax.f32 %v2640, 0.0
        %v2941 = vmax.f32 %v2642, 0.0
        %v2942 = vmax.f32 %v2644, 0.0
        %v2943 = vmax.f32 %v2646, 0.0
        %v2944 = vmax.f32 %v2650, 0.0
        %v2945 = vmax.f32 %v2652, 0.0
        %v2946 = vmax.f32 %v2654, 0.0
        %v2947 = vmax.f32 %v2656, 0.0
        %v2948 = vmax.f32 %v2660, 0.0
        %v2949 = vmax.f32 %v2662, 0.0
        %v2950 = vmax.f32 %v2664, 0.0
        %v2951 = vmax.f32 %v2666, 0.0
        %v2952 = vmax.f32 %v2670, 0.0
        %v2953 = vmax.f32 %v2672, 0.0
        %v2954 = vmax.f32 %v2674, 0.0
        %v2955 = vmax.f32 %v2676, 0.0
        %v2956 = vmax.f32 %v2680, 0.0
        %v2957 = vmax.f32 %v2682, 0.0
        %v2958 = vmax.f32 %v2684, 0.0
        %v2959 = vmax.f32 %v2686, 0.0
        %v2960 = vmax.f32 %v2690, 0.0
        %v2961 = vmax.f32 %v2692, 0.0
        %v2962 = vmax.f32 %v2694, 0.0
        %v2963 = vmax.f32 %v2696, 0.0
        %v2964 = vmax.f32 %v2700, 0.0
        %v2965 = vmax.f32 %v2702, 0.0
        %v2966 = vmax.f32 %v2704, 0.0
        %v2967 = vmax.f32 %v2706, 0.0
        %v2968 = vmax.f32 %v2710, 0.0
        %v2969 = vmax.f32 %v2712, 0.0
        %v2970 = vmax.f32 %v2714, 0.0
        %v2971 = vmax.f32 %v2716, 0.0
        %v2972 = vmax.f32 %v2720, 0.0
        %v2973 = vmax.f32 %v2722, 0.0
        %v2974 = vmax.f32 %v2724, 0.0
        %v2975 = vmax.f32 %v2726, 0.0
        %v2976 = vmax.f32 %v2730, 0.0
        %v2977 = vmax.f32 %v2732, 0.0
        %v2978 = vmax.f32 %v2734, 0.0
        %v2979 = vmax.f32 %v2736, 0.0
        %v2980 = vmax.f32 %v2740, 0.0
        %v2981 = vmax.f32 %v2742, 0.0
        %v2982 = vmax.f32 %v2744, 0.0
        %v2983 = vmax.f32 %v2746, 0.0
        %v2984 = vmax.f32 %v2750, 0.0
        %v2985 = vmax.f32 %v2752, 0.0
        %v2986 = vmax.f32 %v2754, 0.0
        %v2987 = vmax.f32 %v2756, 0.0
        %v2988 = vmax.f32 %v2760, 0.0
        %v2989 = vmax.f32 %v2762, 0.0
        %v2990 = vmax.f32 %v2764, 0.0
        %v2991 = vmax.f32 %v2766, 0.0
        %v2992 = vmax.f32 %v2770, 0.0
        %v2993 = vmax.f32 %v2772, 0.0
        %v2994 = vmax.f32 %v2774, 0.0
        %v2995 = vmax.f32 %v2776, 0.0
        %v2996 = vmax.f32 %v2780, 0.0
        %v2997 = vmax.f32 %v2782, 0.0
        %v2998 = vmax.f32 %v2784, 0.0
        %v2999 = vmax.f32 %v2786, 0.0
        %v3000 = vmax.f32 %v2790, 0.0
        %v3001 = vmax.f32 %v2792, 0.0
        %v3002 = vmax.f32 %v2794, 0.0
        %v3003 = vmax.f32 %v2796, 0.0
        %v3004 = vmax.f32 %v2800, 0.0
        %v3005 = vmax.f32 %v2802, 0.0
        %v3006 = vmax.f32 %v2804, 0.0
        %v3007 = vmax.f32 %v2806, 0.0
        %v3008 = vmax.f32 %v2810, 0.0
        %v3009 = vmax.f32 %v2812, 0.0
        %v3010 = vmax.f32 %v2814, 0.0
        %v3011 = vmax.f32 %v2816, 0.0
        %v3012 = vmax.f32 %v2820, 0.0
        %v3013 = vmax.f32 %v2822, 0.0
        %v3014 = vmax.f32 %v2824, 0.0
        %v3015 = vmax.f32 %v2826, 0.0
        %v3016 = vmax.f32 %v2830, 0.0
        %v3017 = vmax.f32 %v2832, 0.0
        %v3018 = vmax.f32 %v2834, 0.0
        %v3019 = vmax.f32 %v2836, 0.0
        %v3020 = vmax.f32 %v2840, 0.0
        %v3021 = vmax.f32 %v2842, 0.0
        %v3022 = vmax.f32 %v2844, 0.0
        %v3023 = vmax.f32 %v2846, 0.0
        %v3024 = vmax.f32 %v2850, 0.0
        %v3025 = vmax.f32 %v2852, 0.0
        %v3026 = vmax.f32 %v2854, 0.0
        %v3027 = vmax.f32 %v2856, 0.0
        %v3028 = vmax.f32 %v2860, 0.0
        %v3029 = vmax.f32 %v2862, 0.0
        %v3030 = vmax.f32 %v2864, 0.0
        %v3031 = vmax.f32 %v2866, 0.0
        %v3032 = vmax.f32 %v2870, 0.0
        %v3033 = vmax.f32 %v2872, 0.0
        %v3034 = vmax.f32 %v2874, 0.0
        %v3035 = vmax.f32 %v2876, 0.0
        %v3036 = vmax.f32 %v2880, 0.0
        %v3037 = vmax.f32 %v2882, 0.0
        %v3038 = vmax.f32 %v2884, 0.0
        %v3039 = vmax.f32 %v2886, 0.0
        %v3040 = vmax.f32 %v2890, 0.0
        %v3041 = vmax.f32 %v2892, 0.0
        %v3042 = vmax.f32 %v2894, 0.0
        %v3043 = vmax.f32 %v2896, 0.0
        %v3044 = vmax.f32 %v2900, 0.0
        %v3045 = vmax.f32 %v2902, 0.0
        %v3046 = vmax.f32 %v2904, 0.0
        %v3047 = vmax.f32 %v2906, 0.0
        %v3048 = vmax.f32 %v2910, 0.0
        %v3049 = vmax.f32 %v2912, 0.0
        %v3050 = vmax.f32 %v2914, 0.0
        %v3051 = vmax.f32 %v2916, 0.0
        %v3052 = vmax.f32 %v2920, 0.0
        %v3053 = vmax.f32 %v2922, 0.0
        %v3054 = vmax.f32 %v2924, 0.0
        %v3055 = vmax.f32 %v2926, 0.0
        %v3056 = vpack.c.bf16 %v2930, %v2928
        %v3057 = vpack.c.bf16 %v2931, %v2929
        %v3058 = vpack.c.bf16 %v2934, %v2932
        %v3059 = vpack.c.bf16 %v2935, %v2933
        %v3060 = vpack.c.bf16 %v2938, %v2936
        %v3061 = vpack.c.bf16 %v2939, %v2937
        %v3062 = vpack.c.bf16 %v2942, %v2940
        %v3063 = vpack.c.bf16 %v2943, %v2941
        %v3064 = vpack.c.bf16 %v2946, %v2944
        %v3065 = vpack.c.bf16 %v2947, %v2945
        %v3066 = vpack.c.bf16 %v2950, %v2948
        %v3067 = vpack.c.bf16 %v2951, %v2949
        %v3068 = vpack.c.bf16 %v2954, %v2952
        %v3069 = vpack.c.bf16 %v2955, %v2953
        %v3070 = vpack.c.bf16 %v2958, %v2956
        %v3071 = vpack.c.bf16 %v2959, %v2957
        %v3072 = vpack.c.bf16 %v2962, %v2960
        %v3073 = vpack.c.bf16 %v2963, %v2961
        %v3074 = vpack.c.bf16 %v2966, %v2964
        %v3075 = vpack.c.bf16 %v2967, %v2965
        %v3076 = vpack.c.bf16 %v2970, %v2968
        %v3077 = vpack.c.bf16 %v2971, %v2969
        %v3078 = vpack.c.bf16 %v2974, %v2972
        %v3079 = vpack.c.bf16 %v2975, %v2973
        %v3080 = vpack.c.bf16 %v2978, %v2976
        %v3081 = vpack.c.bf16 %v2979, %v2977
        %v3082 = vpack.c.bf16 %v2982, %v2980
        %v3083 = vpack.c.bf16 %v2983, %v2981
        %v3084 = vpack.c.bf16 %v2986, %v2984
        %v3085 = vpack.c.bf16 %v2987, %v2985
        %v3086 = vpack.c.bf16 %v2990, %v2988
        %v3087 = vpack.c.bf16 %v2991, %v2989
        %v3088 = vpack.c.bf16 %v2994, %v2992
        %v3089 = vpack.c.bf16 %v2995, %v2993
        %v3090 = vpack.c.bf16 %v2998, %v2996
        %v3091 = vpack.c.bf16 %v2999, %v2997
        %v3092 = vpack.c.bf16 %v3002, %v3000
        %v3093 = vpack.c.bf16 %v3003, %v3001
        %v3094 = vpack.c.bf16 %v3006, %v3004
        %v3095 = vpack.c.bf16 %v3007, %v3005
        %v3096 = vpack.c.bf16 %v3010, %v3008
        %v3097 = vpack.c.bf16 %v3011, %v3009
        %v3098 = vpack.c.bf16 %v3014, %v3012
        %v3099 = vpack.c.bf16 %v3015, %v3013
        %v3100 = vpack.c.bf16 %v3018, %v3016
        %v3101 = vpack.c.bf16 %v3019, %v3017
        %v3102 = vpack.c.bf16 %v3022, %v3020
        %v3103 = vpack.c.bf16 %v3023, %v3021
        %v3104 = vpack.c.bf16 %v3026, %v3024
        %v3105 = vpack.c.bf16 %v3027, %v3025
        %v3106 = vpack.c.bf16 %v3030, %v3028
        %v3107 = vpack.c.bf16 %v3031, %v3029
        %v3108 = vpack.c.bf16 %v3034, %v3032
        %v3109 = vpack.c.bf16 %v3035, %v3033
        %v3110 = vpack.c.bf16 %v3038, %v3036
        %v3111 = vpack.c.bf16 %v3039, %v3037
        %v3112 = vpack.c.bf16 %v3042, %v3040
        %v3113 = vpack.c.bf16 %v3043, %v3041
        %v3114 = vpack.c.bf16 %v3046, %v3044
        %v3115 = vpack.c.bf16 %v3047, %v3045
        %v3116 = vpack.c.bf16 %v3050, %v3048
        %v3117 = vpack.c.bf16 %v3051, %v3049
        %v3118 = vpack.c.bf16 %v3054, %v3052
        %v3119 = vpack.c.bf16 %v3055, %v3053
        %v3120 = vld [vmem:[%s5] sm:$0xff]
        %v3121 = vld [vmem:[%s5 + $0x8] sm:$0xff]
        %v3122 = vld [vmem:[%s5 + $0x10] sm:$0xff]
        %v3123 = vld [vmem:[%s5 + $0x18] sm:$0xff]
        %v3124 = vld [vmem:[%s5 + $0x20] sm:$0xff]
        %v3125 = vld [vmem:[%s5 + $0x28] sm:$0xff]
        %v3126 = vld [vmem:[%s5 + $0x30] sm:$0xff]
        %v3127 = vld [vmem:[%s5 + $0x38] sm:$0xff]
        %v3128 = vld [vmem:[%s5 + $0x40] sm:$0xff]
        %v3129 = vld [vmem:[%s5 + $0x48] sm:$0xff]
        %v3130 = vld [vmem:[%s5 + $0x50] sm:$0xff]
        %v3131 = vld [vmem:[%s5 + $0x58] sm:$0xff]
        %v3132 = vld [vmem:[%s5 + $0x60] sm:$0xff]
        %v3133 = vld [vmem:[%s5 + $0x68] sm:$0xff]
        %v3134 = vld [vmem:[%s5 + $0x70] sm:$0xff]
        %v3135 = vld [vmem:[%s5 + $0x78] sm:$0xff]
        %v3136 = vld [vmem:[%s5 + $0x80] sm:$0xff]
        %v3137 = vld [vmem:[%s5 + $0x88] sm:$0xff]
        %v3138 = vld [vmem:[%s5 + $0x90] sm:$0xff]
        %v3139 = vld [vmem:[%s5 + $0x98] sm:$0xff]
        %v3140 = vld [vmem:[%s5 + $0xa0] sm:$0xff]
        %v3141 = vld [vmem:[%s5 + $0xa8] sm:$0xff]
        %v3142 = vld [vmem:[%s5 + $0xb0] sm:$0xff]
        %v3143 = vld [vmem:[%s5 + $0xb8] sm:$0xff]
        %v3144 = vld [vmem:[%s5 + $0xc0] sm:$0xff]
        %v3145 = vld [vmem:[%s5 + $0xc8] sm:$0xff]
        %v3146 = vld [vmem:[%s5 + $0xd0] sm:$0xff]
        %v3147 = vld [vmem:[%s5 + $0xd8] sm:$0xff]
        %v3148 = vld [vmem:[%s5 + $0xe0] sm:$0xff]
        %v3149 = vld [vmem:[%s5 + $0xe8] sm:$0xff]
        %v3150 = vld [vmem:[%s5 + $0xf0] sm:$0xff]
        %v3151 = vld [vmem:[%s5 + $0xf8] sm:$0xff]
        %v3152 = vld [vmem:[%s6] sm:$0x3]
        %v3154 = vlaneseq
        %v3155 = vshrl.u32 %v3154, 7
        %v3156 = vsub.s32 0, %v3155
        %v3157 = vrot.slane %v3152, %v3156
        %v3158 = vlaneseq
        %v3159 = vshrl.u32 %v3158, 7
        %v3160 = vsub.s32 1, %v3159
        %v3161 = vrot.slane %v3152, %v3160
        %v3196 = vunpack.c.l.b16 %v3120
        %v3197 = vunpack.c.h.b16 %v3120
        %v3198 = vunpack.c.l.b16 %v3121
        %v3199 = vunpack.c.h.b16 %v3121
        %v3200 = vunpack.c.l.b16 %v3122
        %v3201 = vunpack.c.h.b16 %v3122
        %v3202 = vunpack.c.l.b16 %v3123
        %v3203 = vunpack.c.h.b16 %v3123
        %v3204 = vunpack.c.l.b16 %v3124
        %v3205 = vunpack.c.h.b16 %v3124
        %v3206 = vunpack.c.l.b16 %v3125
        %v3207 = vunpack.c.h.b16 %v3125
        %v3208 = vunpack.c.l.b16 %v3126
        %v3209 = vunpack.c.h.b16 %v3126
        %v3210 = vunpack.c.l.b16 %v3127
        %v3211 = vunpack.c.h.b16 %v3127
        %v3212 = vunpack.c.l.b16 %v3128
        %v3213 = vunpack.c.h.b16 %v3128
        %v3214 = vunpack.c.l.b16 %v3129
        %v3215 = vunpack.c.h.b16 %v3129
        %v3216 = vunpack.c.l.b16 %v3130
        %v3217 = vunpack.c.h.b16 %v3130
        %v3218 = vunpack.c.l.b16 %v3131
        %v3219 = vunpack.c.h.b16 %v3131
        %v3220 = vunpack.c.l.b16 %v3132
        %v3221 = vunpack.c.h.b16 %v3132
        %v3222 = vunpack.c.l.b16 %v3133
        %v3223 = vunpack.c.h.b16 %v3133
        %v3224 = vunpack.c.l.b16 %v3134
        %v3225 = vunpack.c.h.b16 %v3134
        %v3226 = vunpack.c.l.b16 %v3135
        %v3227 = vunpack.c.h.b16 %v3135
        %v3228 = vunpack.c.l.b16 %v3136
        %v3229 = vunpack.c.h.b16 %v3136
        %v3230 = vunpack.c.l.b16 %v3137
        %v3231 = vunpack.c.h.b16 %v3137
        %v3232 = vunpack.c.l.b16 %v3138
        %v3233 = vunpack.c.h.b16 %v3138
        %v3234 = vunpack.c.l.b16 %v3139
        %v3235 = vunpack.c.h.b16 %v3139
        %v3236 = vunpack.c.l.b16 %v3140
        %v3237 = vunpack.c.h.b16 %v3140
        %v3238 = vunpack.c.l.b16 %v3141
        %v3239 = vunpack.c.h.b16 %v3141
        %v3240 = vunpack.c.l.b16 %v3142
        %v3241 = vunpack.c.h.b16 %v3142
        %v3242 = vunpack.c.l.b16 %v3143
        %v3243 = vunpack.c.h.b16 %v3143
        %v3244 = vunpack.c.l.b16 %v3144
        %v3245 = vunpack.c.h.b16 %v3144
        %v3246 = vunpack.c.l.b16 %v3145
        %v3247 = vunpack.c.h.b16 %v3145
        %v3248 = vunpack.c.l.b16 %v3146
        %v3249 = vunpack.c.h.b16 %v3146
        %v3250 = vunpack.c.l.b16 %v3147
        %v3251 = vunpack.c.h.b16 %v3147
        %v3252 = vunpack.c.l.b16 %v3148
        %v3253 = vunpack.c.h.b16 %v3148
        %v3254 = vunpack.c.l.b16 %v3149
        %v3255 = vunpack.c.h.b16 %v3149
        %v3256 = vunpack.c.l.b16 %v3150
        %v3257 = vunpack.c.h.b16 %v3150
        %v3258 = vunpack.c.l.b16 %v3151
        %v3259 = vunpack.c.h.b16 %v3151
        %v3260 = vpack.c.b16 %v3198, %v3196
        %v3261 = vpack.c.b16 %v3199, %v3197
        %v3262 = vpack.c.b16 %v3202, %v3200
        %v3263 = vpack.c.b16 %v3203, %v3201
        %v3264 = vpack.c.b16 %v3206, %v3204
        %v3265 = vpack.c.b16 %v3207, %v3205
        %v3266 = vpack.c.b16 %v3210, %v3208
        %v3267 = vpack.c.b16 %v3211, %v3209
        %v3268 = vpack.c.b16 %v3214, %v3212
        %v3269 = vpack.c.b16 %v3215, %v3213
        %v3270 = vpack.c.b16 %v3218, %v3216
        %v3271 = vpack.c.b16 %v3219, %v3217
        %v3272 = vpack.c.b16 %v3222, %v3220
        %v3273 = vpack.c.b16 %v3223, %v3221
        %v3274 = vpack.c.b16 %v3226, %v3224
        %v3275 = vpack.c.b16 %v3227, %v3225
        %v3276 = vpack.c.b16 %v3230, %v3228
        %v3277 = vpack.c.b16 %v3231, %v3229
        %v3278 = vpack.c.b16 %v3234, %v3232
        %v3279 = vpack.c.b16 %v3235, %v3233
        %v3280 = vpack.c.b16 %v3238, %v3236
        %v3281 = vpack.c.b16 %v3239, %v3237
        %v3282 = vpack.c.b16 %v3242, %v3240
        %v3283 = vpack.c.b16 %v3243, %v3241
        %v3284 = vpack.c.b16 %v3246, %v3244
        %v3285 = vpack.c.b16 %v3247, %v3245
        %v3286 = vpack.c.b16 %v3250, %v3248
        %v3287 = vpack.c.b16 %v3251, %v3249
        %v3288 = vpack.c.b16 %v3254, %v3252
        %v3289 = vpack.c.b16 %v3255, %v3253
        %v3290 = vpack.c.b16 %v3258, %v3256
        %v3291 = vpack.c.b16 %v3259, %v3257
        %3324 = vmatprep.subr.bf16.mxu0 %v3261
        %3325 = vmatpush1.bf16.msra.mxu0 %v3260
        %3326 = vmatprep.subr.bf16.mxu0 %v3263
        %3327 = vmatpush1.bf16.msra.mxu0 %v3262
        %3328 = vmatprep.subr.bf16.mxu0 %v3265
        %3329 = vmatpush1.bf16.msra.mxu0 %v3264
        %3330 = vmatprep.subr.bf16.mxu0 %v3267
        %3331 = vmatpush1.bf16.msra.mxu0 %v3266
        %3332 = vmatprep.subr.bf16.mxu0 %v3269
        %3333 = vmatpush1.bf16.msra.mxu0 %v3268
        %3334 = vmatprep.subr.bf16.mxu0 %v3271
        %3335 = vmatpush1.bf16.msra.mxu0 %v3270
        %3336 = vmatprep.subr.bf16.mxu0 %v3273
        %3337 = vmatpush1.bf16.msra.mxu0 %v3272
        %3338 = vmatprep.subr.bf16.mxu0 %v3275
        %3339 = vmatpush1.bf16.msra.mxu0 %v3274
        %3340 = vmatprep.subr.bf16.mxu0 %v3277
        %3341 = vmatpush1.bf16.msra.mxu0 %v3276
        %3342 = vmatprep.subr.bf16.mxu0 %v3279
        %3343 = vmatpush1.bf16.msra.mxu0 %v3278
        %3344 = vmatprep.subr.bf16.mxu0 %v3281
        %3345 = vmatpush1.bf16.msra.mxu0 %v3280
        %3346 = vmatprep.subr.bf16.mxu0 %v3283
        %3347 = vmatpush1.bf16.msra.mxu0 %v3282
        %3348 = vmatprep.subr.bf16.mxu0 %v3285
        %3349 = vmatpush1.bf16.msra.mxu0 %v3284
        %3350 = vmatprep.subr.bf16.mxu0 %v3287
        %3351 = vmatpush1.bf16.msra.mxu0 %v3286
        %3352 = vmatprep.subr.bf16.mxu0 %v3289
        %3353 = vmatpush1.bf16.msra.mxu0 %v3288
        %3354 = vmatprep.subr.bf16.mxu0 %v3291
        %3355 = vmatpush1.bf16.msra.mxu0 %v3290
        %3356 = vmatprep.mubr.bf16.mxu0 %v3057
        %3357 = vmatmul.mubr.bf16.gmra.mrb[0].mxu0 %v3056
        %v3358 = vpop.f32.mrb[0].mxu0
        %v3359 = vadd.f32 %v3157, %v3358
        %v3360 = vpop.f32.mrb[0].mxu0
        %v3361 = vadd.f32 %v3161, %v3360
        %v3362 = vpop.f32.mrb[0].mxu0
        %v3363 = vadd.f32 %v3157, %v3362
        %v3364 = vpop.f32.mrb[0].mxu0
        %v3365 = vadd.f32 %v3161, %v3364
        %3366 = vmatprep.mubr.bf16.mxu0 %v3059
        %3367 = vmatmul.mubr.bf16.gmra.mrb[0].mxu0 %v3058
        %v3368 = vpop.f32.mrb[0].mxu0
        %v3369 = vadd.f32 %v3157, %v3368
        %v3370 = vpop.f32.mrb[0].mxu0
        %v3371 = vadd.f32 %v3161, %v3370
        %v3372 = vpop.f32.mrb[0].mxu0
        %v3373 = vadd.f32 %v3157, %v3372
        %v3374 = vpop.f32.mrb[0].mxu0
        %v3375 = vadd.f32 %v3161, %v3374
        %3376 = vmatprep.mubr.bf16.mxu0 %v3061
        %3377 = vmatmul.mubr.bf16.gmra.mrb[0].mxu0 %v3060
        %v3378 = vpop.f32.mrb[0].mxu0
        %v3379 = vadd.f32 %v3157, %v3378
        %v3380 = vpop.f32.mrb[0].mxu0
        %v3381 = vadd.f32 %v3161, %v3380
        %v3382 = vpop.f32.mrb[0].mxu0
        %v3383 = vadd.f32 %v3157, %v3382
        %v3384 = vpop.f32.mrb[0].mxu0
        %v3385 = vadd.f32 %v3161, %v3384
        %3386 = vmatprep.mubr.bf16.mxu0 %v3063
        %3387 = vmatmul.mubr.bf16.gmra.mrb[0].mxu0 %v3062
        %v3388 = vpop.f32.mrb[0].mxu0
        %v3389 = vadd.f32 %v3157, %v3388
        %v3390 = vpop.f32.mrb[0].mxu0
        %v3391 = vadd.f32 %v3161, %v3390
        %v3392 = vpop.f32.mrb[0].mxu0
        %v3393 = vadd.f32 %v3157, %v3392
        %v3394 = vpop.f32.mrb[0].mxu0
        %v3395 = vadd.f32 %v3161, %v3394
        %3396 = vmatprep.mubr.bf16.mxu0 %v3065
        %3397 = vmatmul.mubr.bf16.gmra.mrb[0].mxu0 %v3064
        %v3398 = vpop.f32.mrb[0].mxu0
        %v3399 = vadd.f32 %v3157, %v3398
        %v3400 = vpop.f32.mrb[0].mxu0
        %v3401 = vadd.f32 %v3161, %v3400
        %v3402 = vpop.f32.mrb[0].mxu0
        %v3403 = vadd.f32 %v3157, %v3402
        %v3404 = vpop.f32.mrb[0].mxu0
        %v3405 = vadd.f32 %v3161, %v3404
        %3406 = vmatprep.mubr.bf16.mxu0 %v3067
        %3407 = vmatmul.mubr.bf16.gmra.mrb[0].mxu0 %v3066
        %v3408 = vpop.f32.mrb[0].mxu0
        %v3409 = vadd.f32 %v3157, %v3408
        %v3410 = vpop.f32.mrb[0].mxu0
        %v3411 = vadd.f32 %v3161, %v3410
        %v3412 = vpop.f32.mrb[0].mxu0
        %v3413 = vadd.f32 %v3157, %v3412
        %v3414 = vpop.f32.mrb[0].mxu0
        %v3415 = vadd.f32 %v3161, %v3414
        %3416 = vmatprep.mubr.bf16.mxu0 %v3069
        %3417 = vmatmul.mubr.bf16.gmra.mrb[0].mxu0 %v3068
        %v3418 = vpop.f32.mrb[0].mxu0
        %v3419 = vadd.f32 %v3157, %v3418
        %v3420 = vpop.f32.mrb[0].mxu0
        %v3421 = vadd.f32 %v3161, %v3420
        %v3422 = vpop.f32.mrb[0].mxu0
        %v3423 = vadd.f32 %v3157, %v3422
        %v3424 = vpop.f32.mrb[0].mxu0
        %v3425 = vadd.f32 %v3161, %v3424
        %3426 = vmatprep.mubr.bf16.mxu0 %v3071
        %3427 = vmatmul.mubr.bf16.gmra.mrb[0].mxu0 %v3070
        %v3428 = vpop.f32.mrb[0].mxu0
        %v3429 = vadd.f32 %v3157, %v3428
        %v3430 = vpop.f32.mrb[0].mxu0
        %v3431 = vadd.f32 %v3161, %v3430
        %v3432 = vpop.f32.mrb[0].mxu0
        %v3433 = vadd.f32 %v3157, %v3432
        %v3434 = vpop.f32.mrb[0].mxu0
        %v3435 = vadd.f32 %v3161, %v3434
        %3436 = vmatprep.mubr.bf16.mxu0 %v3073
        %3437 = vmatmul.mubr.bf16.gmra.mrb[0].mxu0 %v3072
        %v3438 = vpop.f32.mrb[0].mxu0
        %v3439 = vadd.f32 %v3157, %v3438
        %v3440 = vpop.f32.mrb[0].mxu0
        %v3441 = vadd.f32 %v3161, %v3440
        %v3442 = vpop.f32.mrb[0].mxu0
        %v3443 = vadd.f32 %v3157, %v3442
        %v3444 = vpop.f32.mrb[0].mxu0
        %v3445 = vadd.f32 %v3161, %v3444
        %3446 = vmatprep.mubr.bf16.mxu0 %v3075
        %3447 = vmatmul.mubr.bf16.gmra.mrb[0].mxu0 %v3074
        %v3448 = vpop.f32.mrb[0].mxu0
        %v3449 = vadd.f32 %v3157, %v3448
        %v3450 = vpop.f32.mrb[0].mxu0
        %v3451 = vadd.f32 %v3161, %v3450
        %v3452 = vpop.f32.mrb[0].mxu0
        %v3453 = vadd.f32 %v3157, %v3452
        %v3454 = vpop.f32.mrb[0].mxu0
        %v3455 = vadd.f32 %v3161, %v3454
        %3456 = vmatprep.mubr.bf16.mxu0 %v3077
        %3457 = vmatmul.mubr.bf16.gmra.mrb[0].mxu0 %v3076
        %v3458 = vpop.f32.mrb[0].mxu0
        %v3459 = vadd.f32 %v3157, %v3458
        %v3460 = vpop.f32.mrb[0].mxu0
        %v3461 = vadd.f32 %v3161, %v3460
        %v3462 = vpop.f32.mrb[0].mxu0
        %v3463 = vadd.f32 %v3157, %v3462
        %v3464 = vpop.f32.mrb[0].mxu0
        %v3465 = vadd.f32 %v3161, %v3464
        %3466 = vmatprep.mubr.bf16.mxu0 %v3079
        %3467 = vmatmul.mubr.bf16.gmra.mrb[0].mxu0 %v3078
        %v3468 = vpop.f32.mrb[0].mxu0
        %v3469 = vadd.f32 %v3157, %v3468
        %v3470 = vpop.f32.mrb[0].mxu0
        %v3471 = vadd.f32 %v3161, %v3470
        %v3472 = vpop.f32.mrb[0].mxu0
        %v3473 = vadd.f32 %v3157, %v3472
        %v3474 = vpop.f32.mrb[0].mxu0
        %v3475 = vadd.f32 %v3161, %v3474
        %3476 = vmatprep.mubr.bf16.mxu0 %v3081
        %3477 = vmatmul.mubr.bf16.gmra.mrb[0].mxu0 %v3080
        %v3478 = vpop.f32.mrb[0].mxu0
        %v3479 = vadd.f32 %v3157, %v3478
        %v3480 = vpop.f32.mrb[0].mxu0
        %v3481 = vadd.f32 %v3161, %v3480
        %v3482 = vpop.f32.mrb[0].mxu0
        %v3483 = vadd.f32 %v3157, %v3482
        %v3484 = vpop.f32.mrb[0].mxu0
        %v3485 = vadd.f32 %v3161, %v3484
        %3486 = vmatprep.mubr.bf16.mxu0 %v3083
        %3487 = vmatmul.mubr.bf16.gmra.mrb[0].mxu0 %v3082
        %v3488 = vpop.f32.mrb[0].mxu0
        %v3489 = vadd.f32 %v3157, %v3488
        %v3490 = vpop.f32.mrb[0].mxu0
        %v3491 = vadd.f32 %v3161, %v3490
        %v3492 = vpop.f32.mrb[0].mxu0
        %v3493 = vadd.f32 %v3157, %v3492
        %v3494 = vpop.f32.mrb[0].mxu0
        %v3495 = vadd.f32 %v3161, %v3494
        %3496 = vmatprep.mubr.bf16.mxu0 %v3085
        %3497 = vmatmul.mubr.bf16.gmra.mrb[0].mxu0 %v3084
        %v3498 = vpop.f32.mrb[0].mxu0
        %v3499 = vadd.f32 %v3157, %v3498
        %v3500 = vpop.f32.mrb[0].mxu0
        %v3501 = vadd.f32 %v3161, %v3500
        %v3502 = vpop.f32.mrb[0].mxu0
        %v3503 = vadd.f32 %v3157, %v3502
        %v3504 = vpop.f32.mrb[0].mxu0
        %v3505 = vadd.f32 %v3161, %v3504
        %3506 = vmatprep.mubr.bf16.mxu0 %v3087
        %3507 = vmatmul.mubr.bf16.gmra.mrb[0].mxu0 %v3086
        %v3508 = vpop.f32.mrb[0].mxu0
        %v3509 = vadd.f32 %v3157, %v3508
        %v3510 = vpop.f32.mrb[0].mxu0
        %v3511 = vadd.f32 %v3161, %v3510
        %v3512 = vpop.f32.mrb[0].mxu0
        %v3513 = vadd.f32 %v3157, %v3512
        %v3514 = vpop.f32.mrb[0].mxu0
        %v3515 = vadd.f32 %v3161, %v3514
        %3516 = vmatprep.mubr.bf16.mxu0 %v3089
        %3517 = vmatmul.mubr.bf16.gmra.mrb[0].mxu0 %v3088
        %v3518 = vpop.f32.mrb[0].mxu0
        %v3519 = vadd.f32 %v3157, %v3518
        %v3520 = vpop.f32.mrb[0].mxu0
        %v3521 = vadd.f32 %v3161, %v3520
        %v3522 = vpop.f32.mrb[0].mxu0
        %v3523 = vadd.f32 %v3157, %v3522
        %v3524 = vpop.f32.mrb[0].mxu0
        %v3525 = vadd.f32 %v3161, %v3524
        %3526 = vmatprep.mubr.bf16.mxu0 %v3091
        %3527 = vmatmul.mubr.bf16.gmra.mrb[0].mxu0 %v3090
        %v3528 = vpop.f32.mrb[0].mxu0
        %v3529 = vadd.f32 %v3157, %v3528
        %v3530 = vpop.f32.mrb[0].mxu0
        %v3531 = vadd.f32 %v3161, %v3530
        %v3532 = vpop.f32.mrb[0].mxu0
        %v3533 = vadd.f32 %v3157, %v3532
        %v3534 = vpop.f32.mrb[0].mxu0
        %v3535 = vadd.f32 %v3161, %v3534
        %3536 = vmatprep.mubr.bf16.mxu0 %v3093
        %3537 = vmatmul.mubr.bf16.gmra.mrb[0].mxu0 %v3092
        %v3538 = vpop.f32.mrb[0].mxu0
        %v3539 = vadd.f32 %v3157, %v3538
        %v3540 = vpop.f32.mrb[0].mxu0
        %v3541 = vadd.f32 %v3161, %v3540
        %v3542 = vpop.f32.mrb[0].mxu0
        %v3543 = vadd.f32 %v3157, %v3542
        %v3544 = vpop.f32.mrb[0].mxu0
        %v3545 = vadd.f32 %v3161, %v3544
        %3546 = vmatprep.mubr.bf16.mxu0 %v3095
        %3547 = vmatmul.mubr.bf16.gmra.mrb[0].mxu0 %v3094
        %v3548 = vpop.f32.mrb[0].mxu0
        %v3549 = vadd.f32 %v3157, %v3548
        %v3550 = vpop.f32.mrb[0].mxu0
        %v3551 = vadd.f32 %v3161, %v3550
        %v3552 = vpop.f32.mrb[0].mxu0
        %v3553 = vadd.f32 %v3157, %v3552
        %v3554 = vpop.f32.mrb[0].mxu0
        %v3555 = vadd.f32 %v3161, %v3554
        %3556 = vmatprep.mubr.bf16.mxu0 %v3097
        %3557 = vmatmul.mubr.bf16.gmra.mrb[0].mxu0 %v3096
        %v3558 = vpop.f32.mrb[0].mxu0
        %v3559 = vadd.f32 %v3157, %v3558
        %v3560 = vpop.f32.mrb[0].mxu0
        %v3561 = vadd.f32 %v3161, %v3560
        %v3562 = vpop.f32.mrb[0].mxu0
        %v3563 = vadd.f32 %v3157, %v3562
        %v3564 = vpop.f32.mrb[0].mxu0
        %v3565 = vadd.f32 %v3161, %v3564
        %3566 = vmatprep.mubr.bf16.mxu0 %v3099
        %3567 = vmatmul.mubr.bf16.gmra.mrb[0].mxu0 %v3098
        %v3568 = vpop.f32.mrb[0].mxu0
        %v3569 = vadd.f32 %v3157, %v3568
        %v3570 = vpop.f32.mrb[0].mxu0
        %v3571 = vadd.f32 %v3161, %v3570
        %v3572 = vpop.f32.mrb[0].mxu0
        %v3573 = vadd.f32 %v3157, %v3572
        %v3574 = vpop.f32.mrb[0].mxu0
        %v3575 = vadd.f32 %v3161, %v3574
        %3576 = vmatprep.mubr.bf16.mxu0 %v3101
        %3577 = vmatmul.mubr.bf16.gmra.mrb[0].mxu0 %v3100
        %v3578 = vpop.f32.mrb[0].mxu0
        %v3579 = vadd.f32 %v3157, %v3578
        %v3580 = vpop.f32.mrb[0].mxu0
        %v3581 = vadd.f32 %v3161, %v3580
        %v3582 = vpop.f32.mrb[0].mxu0
        %v3583 = vadd.f32 %v3157, %v3582
        %v3584 = vpop.f32.mrb[0].mxu0
        %v3585 = vadd.f32 %v3161, %v3584
        %3586 = vmatprep.mubr.bf16.mxu0 %v3103
        %3587 = vmatmul.mubr.bf16.gmra.mrb[0].mxu0 %v3102
        %v3588 = vpop.f32.mrb[0].mxu0
        %v3589 = vadd.f32 %v3157, %v3588
        %v3590 = vpop.f32.mrb[0].mxu0
        %v3591 = vadd.f32 %v3161, %v3590
        %v3592 = vpop.f32.mrb[0].mxu0
        %v3593 = vadd.f32 %v3157, %v3592
        %v3594 = vpop.f32.mrb[0].mxu0
        %v3595 = vadd.f32 %v3161, %v3594
        %3596 = vmatprep.mubr.bf16.mxu0 %v3105
        %3597 = vmatmul.mubr.bf16.gmra.mrb[0].mxu0 %v3104
        %v3598 = vpop.f32.mrb[0].mxu0
        %v3599 = vadd.f32 %v3157, %v3598
        %v3600 = vpop.f32.mrb[0].mxu0
        %v3601 = vadd.f32 %v3161, %v3600
        %v3602 = vpop.f32.mrb[0].mxu0
        %v3603 = vadd.f32 %v3157, %v3602
        %v3604 = vpop.f32.mrb[0].mxu0
        %v3605 = vadd.f32 %v3161, %v3604
        %3606 = vmatprep.mubr.bf16.mxu0 %v3107
        %3607 = vmatmul.mubr.bf16.gmra.mrb[0].mxu0 %v3106
        %v3608 = vpop.f32.mrb[0].mxu0
        %v3609 = vadd.f32 %v3157, %v3608
        %v3610 = vpop.f32.mrb[0].mxu0
        %v3611 = vadd.f32 %v3161, %v3610
        %v3612 = vpop.f32.mrb[0].mxu0
        %v3613 = vadd.f32 %v3157, %v3612
        %v3614 = vpop.f32.mrb[0].mxu0
        %v3615 = vadd.f32 %v3161, %v3614
        %3616 = vmatprep.mubr.bf16.mxu0 %v3109
        %3617 = vmatmul.mubr.bf16.gmra.mrb[0].mxu0 %v3108
        %v3618 = vpop.f32.mrb[0].mxu0
        %v3619 = vadd.f32 %v3157, %v3618
        %v3620 = vpop.f32.mrb[0].mxu0
        %v3621 = vadd.f32 %v3161, %v3620
        %v3622 = vpop.f32.mrb[0].mxu0
        %v3623 = vadd.f32 %v3157, %v3622
        %v3624 = vpop.f32.mrb[0].mxu0
        %v3625 = vadd.f32 %v3161, %v3624
        %3626 = vmatprep.mubr.bf16.mxu0 %v3111
        %3627 = vmatmul.mubr.bf16.gmra.mrb[0].mxu0 %v3110
        %v3628 = vpop.f32.mrb[0].mxu0
        %v3629 = vadd.f32 %v3157, %v3628
        %v3630 = vpop.f32.mrb[0].mxu0
        %v3631 = vadd.f32 %v3161, %v3630
        %v3632 = vpop.f32.mrb[0].mxu0
        %v3633 = vadd.f32 %v3157, %v3632
        %v3634 = vpop.f32.mrb[0].mxu0
        %v3635 = vadd.f32 %v3161, %v3634
        %3636 = vmatprep.mubr.bf16.mxu0 %v3113
        %3637 = vmatmul.mubr.bf16.gmra.mrb[0].mxu0 %v3112
        %v3638 = vpop.f32.mrb[0].mxu0
        %v3639 = vadd.f32 %v3157, %v3638
        %v3640 = vpop.f32.mrb[0].mxu0
        %v3641 = vadd.f32 %v3161, %v3640
        %v3642 = vpop.f32.mrb[0].mxu0
        %v3643 = vadd.f32 %v3157, %v3642
        %v3644 = vpop.f32.mrb[0].mxu0
        %v3645 = vadd.f32 %v3161, %v3644
        %3646 = vmatprep.mubr.bf16.mxu0 %v3115
        %3647 = vmatmul.mubr.bf16.gmra.mrb[0].mxu0 %v3114
        %v3648 = vpop.f32.mrb[0].mxu0
        %v3649 = vadd.f32 %v3157, %v3648
        %v3650 = vpop.f32.mrb[0].mxu0
        %v3651 = vadd.f32 %v3161, %v3650
        %v3652 = vpop.f32.mrb[0].mxu0
        %v3653 = vadd.f32 %v3157, %v3652
        %v3654 = vpop.f32.mrb[0].mxu0
        %v3655 = vadd.f32 %v3161, %v3654
        %3656 = vmatprep.mubr.bf16.mxu0 %v3117
        %3657 = vmatmul.mubr.bf16.gmra.mrb[0].mxu0 %v3116
        %v3658 = vpop.f32.mrb[0].mxu0
        %v3659 = vadd.f32 %v3157, %v3658
        %v3660 = vpop.f32.mrb[0].mxu0
        %v3661 = vadd.f32 %v3161, %v3660
        %v3662 = vpop.f32.mrb[0].mxu0
        %v3663 = vadd.f32 %v3157, %v3662
        %v3664 = vpop.f32.mrb[0].mxu0
        %v3665 = vadd.f32 %v3161, %v3664
        %3666 = vmatprep.mubr.bf16.mxu0 %v3119
        %3667 = vmatmul.mubr.bf16.gmra.mrb[0].mxu0 %v3118
        %v3668 = vpop.f32.mrb[0].mxu0
        %v3669 = vadd.f32 %v3157, %v3668
        %v3670 = vpop.f32.mrb[0].mxu0
        %v3671 = vadd.f32 %v3161, %v3670
        %v3672 = vpop.f32.mrb[0].mxu0
        %v3673 = vadd.f32 %v3157, %v3672
        %v3674 = vpop.f32.mrb[0].mxu0
        %v3675 = vadd.f32 %v3161, %v3674
        %3676 = vdwg.mxu0
        %v3677 = vmax.f32 %v3359, 0.0
        %v3678 = vmax.f32 %v3361, 0.0
        %v3679 = vmax.f32 %v3363, 0.0
        %v3680 = vmax.f32 %v3365, 0.0
        %v3681 = vmax.f32 %v3369, 0.0
        %v3682 = vmax.f32 %v3371, 0.0
        %v3683 = vmax.f32 %v3373, 0.0
        %v3684 = vmax.f32 %v3375, 0.0
        %v3685 = vmax.f32 %v3379, 0.0
        %v3686 = vmax.f32 %v3381, 0.0
        %v3687 = vmax.f32 %v3383, 0.0
        %v3688 = vmax.f32 %v3385, 0.0
        %v3689 = vmax.f32 %v3389, 0.0
        %v3690 = vmax.f32 %v3391, 0.0
        %v3691 = vmax.f32 %v3393, 0.0
        %v3692 = vmax.f32 %v3395, 0.0
        %v3693 = vmax.f32 %v3399, 0.0
        %v3694 = vmax.f32 %v3401, 0.0
        %v3695 = vmax.f32 %v3403, 0.0
        %v3696 = vmax.f32 %v3405, 0.0
        %v3697 = vmax.f32 %v3409, 0.0
        %v3698 = vmax.f32 %v3411, 0.0
        %v3699 = vmax.f32 %v3413, 0.0
        %v3700 = vmax.f32 %v3415, 0.0
        %v3701 = vmax.f32 %v3419, 0.0
        %v3702 = vmax.f32 %v3421, 0.0
        %v3703 = vmax.f32 %v3423, 0.0
        %v3704 = vmax.f32 %v3425, 0.0
        %v3705 = vmax.f32 %v3429, 0.0
        %v3706 = vmax.f32 %v3431, 0.0
        %v3707 = vmax.f32 %v3433, 0.0
        %v3708 = vmax.f32 %v3435, 0.0
        %v3709 = vmax.f32 %v3439, 0.0
        %v3710 = vmax.f32 %v3441, 0.0
        %v3711 = vmax.f32 %v3443, 0.0
        %v3712 = vmax.f32 %v3445, 0.0
        %v3713 = vmax.f32 %v3449, 0.0
        %v3714 = vmax.f32 %v3451, 0.0
        %v3715 = vmax.f32 %v3453, 0.0
        %v3716 = vmax.f32 %v3455, 0.0
        %v3717 = vmax.f32 %v3459, 0.0
        %v3718 = vmax.f32 %v3461, 0.0
        %v3719 = vmax.f32 %v3463, 0.0
        %v3720 = vmax.f32 %v3465, 0.0
        %v3721 = vmax.f32 %v3469, 0.0
        %v3722 = vmax.f32 %v3471, 0.0
        %v3723 = vmax.f32 %v3473, 0.0
        %v3724 = vmax.f32 %v3475, 0.0
        %v3725 = vmax.f32 %v3479, 0.0
        %v3726 = vmax.f32 %v3481, 0.0
        %v3727 = vmax.f32 %v3483, 0.0
        %v3728 = vmax.f32 %v3485, 0.0
        %v3729 = vmax.f32 %v3489, 0.0
        %v3730 = vmax.f32 %v3491, 0.0
        %v3731 = vmax.f32 %v3493, 0.0
        %v3732 = vmax.f32 %v3495, 0.0
        %v3733 = vmax.f32 %v3499, 0.0
        %v3734 = vmax.f32 %v3501, 0.0
        %v3735 = vmax.f32 %v3503, 0.0
        %v3736 = vmax.f32 %v3505, 0.0
        %v3737 = vmax.f32 %v3509, 0.0
        %v3738 = vmax.f32 %v3511, 0.0
        %v3739 = vmax.f32 %v3513, 0.0
        %v3740 = vmax.f32 %v3515, 0.0
        %v3741 = vmax.f32 %v3519, 0.0
        %v3742 = vmax.f32 %v3521, 0.0
        %v3743 = vmax.f32 %v3523, 0.0
        %v3744 = vmax.f32 %v3525, 0.0
        %v3745 = vmax.f32 %v3529, 0.0
        %v3746 = vmax.f32 %v3531, 0.0
        %v3747 = vmax.f32 %v3533, 0.0
        %v3748 = vmax.f32 %v3535, 0.0
        %v3749 = vmax.f32 %v3539, 0.0
        %v3750 = vmax.f32 %v3541, 0.0
        %v3751 = vmax.f32 %v3543, 0.0
        %v3752 = vmax.f32 %v3545, 0.0
        %v3753 = vmax.f32 %v3549, 0.0
        %v3754 = vmax.f32 %v3551, 0.0
        %v3755 = vmax.f32 %v3553, 0.0
        %v3756 = vmax.f32 %v3555, 0.0
        %v3757 = vmax.f32 %v3559, 0.0
        %v3758 = vmax.f32 %v3561, 0.0
        %v3759 = vmax.f32 %v3563, 0.0
        %v3760 = vmax.f32 %v3565, 0.0
        %v3761 = vmax.f32 %v3569, 0.0
        %v3762 = vmax.f32 %v3571, 0.0
        %v3763 = vmax.f32 %v3573, 0.0
        %v3764 = vmax.f32 %v3575, 0.0
        %v3765 = vmax.f32 %v3579, 0.0
        %v3766 = vmax.f32 %v3581, 0.0
        %v3767 = vmax.f32 %v3583, 0.0
        %v3768 = vmax.f32 %v3585, 0.0
        %v3769 = vmax.f32 %v3589, 0.0
        %v3770 = vmax.f32 %v3591, 0.0
        %v3771 = vmax.f32 %v3593, 0.0
        %v3772 = vmax.f32 %v3595, 0.0
        %v3773 = vmax.f32 %v3599, 0.0
        %v3774 = vmax.f32 %v3601, 0.0
        %v3775 = vmax.f32 %v3603, 0.0
        %v3776 = vmax.f32 %v3605, 0.0
        %v3777 = vmax.f32 %v3609, 0.0
        %v3778 = vmax.f32 %v3611, 0.0
        %v3779 = vmax.f32 %v3613, 0.0
        %v3780 = vmax.f32 %v3615, 0.0
        %v3781 = vmax.f32 %v3619, 0.0
        %v3782 = vmax.f32 %v3621, 0.0
        %v3783 = vmax.f32 %v3623, 0.0
        %v3784 = vmax.f32 %v3625, 0.0
        %v3785 = vmax.f32 %v3629, 0.0
        %v3786 = vmax.f32 %v3631, 0.0
        %v3787 = vmax.f32 %v3633, 0.0
        %v3788 = vmax.f32 %v3635, 0.0
        %v3789 = vmax.f32 %v3639, 0.0
        %v3790 = vmax.f32 %v3641, 0.0
        %v3791 = vmax.f32 %v3643, 0.0
        %v3792 = vmax.f32 %v3645, 0.0
        %v3793 = vmax.f32 %v3649, 0.0
        %v3794 = vmax.f32 %v3651, 0.0
        %v3795 = vmax.f32 %v3653, 0.0
        %v3796 = vmax.f32 %v3655, 0.0
        %v3797 = vmax.f32 %v3659, 0.0
        %v3798 = vmax.f32 %v3661, 0.0
        %v3799 = vmax.f32 %v3663, 0.0
        %v3800 = vmax.f32 %v3665, 0.0
        %v3801 = vmax.f32 %v3669, 0.0
        %v3802 = vmax.f32 %v3671, 0.0
        %v3803 = vmax.f32 %v3673, 0.0
        %v3804 = vmax.f32 %v3675, 0.0
        %v3805 = vpack.c.bf16 %v3679, %v3677
        %v3806 = vpack.c.bf16 %v3680, %v3678
        %v3807 = vpack.c.bf16 %v3683, %v3681
        %v3808 = vpack.c.bf16 %v3684, %v3682
        %v3809 = vpack.c.bf16 %v3687, %v3685
        %v3810 = vpack.c.bf16 %v3688, %v3686
        %v3811 = vpack.c.bf16 %v3691, %v3689
        %v3812 = vpack.c.bf16 %v3692, %v3690
        %v3813 = vpack.c.bf16 %v3695, %v3693
        %v3814 = vpack.c.bf16 %v3696, %v3694
        %v3815 = vpack.c.bf16 %v3699, %v3697
        %v3816 = vpack.c.bf16 %v3700, %v3698
        %v3817 = vpack.c.bf16 %v3703, %v3701
        %v3818 = vpack.c.bf16 %v3704, %v3702
        %v3819 = vpack.c.bf16 %v3707, %v3705
        %v3820 = vpack.c.bf16 %v3708, %v3706
        %v3821 = vpack.c.bf16 %v3711, %v3709
        %v3822 = vpack.c.bf16 %v3712, %v3710
        %v3823 = vpack.c.bf16 %v3715, %v3713
        %v3824 = vpack.c.bf16 %v3716, %v3714
        %v3825 = vpack.c.bf16 %v3719, %v3717
        %v3826 = vpack.c.bf16 %v3720, %v3718
        %v3827 = vpack.c.bf16 %v3723, %v3721
        %v3828 = vpack.c.bf16 %v3724, %v3722
        %v3829 = vpack.c.bf16 %v3727, %v3725
        %v3830 = vpack.c.bf16 %v3728, %v3726
        %v3831 = vpack.c.bf16 %v3731, %v3729
        %v3832 = vpack.c.bf16 %v3732, %v3730
        %v3833 = vpack.c.bf16 %v3735, %v3733
        %v3834 = vpack.c.bf16 %v3736, %v3734
        %v3835 = vpack.c.bf16 %v3739, %v3737
        %v3836 = vpack.c.bf16 %v3740, %v3738
        %v3837 = vpack.c.bf16 %v3743, %v3741
        %v3838 = vpack.c.bf16 %v3744, %v3742
        %v3839 = vpack.c.bf16 %v3747, %v3745
        %v3840 = vpack.c.bf16 %v3748, %v3746
        %v3841 = vpack.c.bf16 %v3751, %v3749
        %v3842 = vpack.c.bf16 %v3752, %v3750
        %v3843 = vpack.c.bf16 %v3755, %v3753
        %v3844 = vpack.c.bf16 %v3756, %v3754
        %v3845 = vpack.c.bf16 %v3759, %v3757
        %v3846 = vpack.c.bf16 %v3760, %v3758
        %v3847 = vpack.c.bf16 %v3763, %v3761
        %v3848 = vpack.c.bf16 %v3764, %v3762
        %v3849 = vpack.c.bf16 %v3767, %v3765
        %v3850 = vpack.c.bf16 %v3768, %v3766
        %v3851 = vpack.c.bf16 %v3771, %v3769
        %v3852 = vpack.c.bf16 %v3772, %v3770
        %v3853 = vpack.c.bf16 %v3775, %v3773
        %v3854 = vpack.c.bf16 %v3776, %v3774
        %v3855 = vpack.c.bf16 %v3779, %v3777
        %v3856 = vpack.c.bf16 %v3780, %v3778
        %v3857 = vpack.c.bf16 %v3783, %v3781
        %v3858 = vpack.c.bf16 %v3784, %v3782
        %v3859 = vpack.c.bf16 %v3787, %v3785
        %v3860 = vpack.c.bf16 %v3788, %v3786
        %v3861 = vpack.c.bf16 %v3791, %v3789
        %v3862 = vpack.c.bf16 %v3792, %v3790
        %v3863 = vpack.c.bf16 %v3795, %v3793
        %v3864 = vpack.c.bf16 %v3796, %v3794
        %v3865 = vpack.c.bf16 %v3799, %v3797
        %v3866 = vpack.c.bf16 %v3800, %v3798
        %v3867 = vpack.c.bf16 %v3803, %v3801
        %v3868 = vpack.c.bf16 %v3804, %v3802
        %v3869 = vld [vmem:[%s7] sm:$0xff]
        %v3870 = vld [vmem:[%s7 + $0x8] sm:$0xff]
        %v3871 = vld [vmem:[%s7 + $0x10] sm:$0xff]
        %v3872 = vld [vmem:[%s7 + $0x18] sm:$0xff]
        %v3873 = vld [vmem:[%s7 + $0x20] sm:$0xff]
        %v3874 = vld [vmem:[%s7 + $0x28] sm:$0xff]
        %v3875 = vld [vmem:[%s7 + $0x30] sm:$0xff]
        %v3876 = vld [vmem:[%s7 + $0x38] sm:$0xff]
        %v3877 = vld [vmem:[%s7 + $0x40] sm:$0xff]
        %v3878 = vld [vmem:[%s7 + $0x48] sm:$0xff]
        %v3879 = vld [vmem:[%s7 + $0x50] sm:$0xff]
        %v3880 = vld [vmem:[%s7 + $0x58] sm:$0xff]
        %v3881 = vld [vmem:[%s7 + $0x60] sm:$0xff]
        %v3882 = vld [vmem:[%s7 + $0x68] sm:$0xff]
        %v3883 = vld [vmem:[%s7 + $0x70] sm:$0xff]
        %v3884 = vld [vmem:[%s7 + $0x78] sm:$0xff]
        %v3885 = vld [vmem:[%s7 + $0x80] sm:$0xff]
        %v3886 = vld [vmem:[%s7 + $0x88] sm:$0xff]
        %v3887 = vld [vmem:[%s7 + $0x90] sm:$0xff]
        %v3888 = vld [vmem:[%s7 + $0x98] sm:$0xff]
        %v3889 = vld [vmem:[%s7 + $0xa0] sm:$0xff]
        %v3890 = vld [vmem:[%s7 + $0xa8] sm:$0xff]
        %v3891 = vld [vmem:[%s7 + $0xb0] sm:$0xff]
        %v3892 = vld [vmem:[%s7 + $0xb8] sm:$0xff]
        %v3893 = vld [vmem:[%s7 + $0xc0] sm:$0xff]
        %v3894 = vld [vmem:[%s7 + $0xc8] sm:$0xff]
        %v3895 = vld [vmem:[%s7 + $0xd0] sm:$0xff]
        %v3896 = vld [vmem:[%s7 + $0xd8] sm:$0xff]
        %v3897 = vld [vmem:[%s7 + $0xe0] sm:$0xff]
        %v3898 = vld [vmem:[%s7 + $0xe8] sm:$0xff]
        %v3899 = vld [vmem:[%s7 + $0xf0] sm:$0xff]
        %v3900 = vld [vmem:[%s7 + $0xf8] sm:$0xff]
        %v3901 = vld [vmem:[%s8] sm:$0x3]
        %v3903 = vlaneseq
        %v3904 = vshrl.u32 %v3903, 7
        %v3905 = vsub.s32 0, %v3904
        %v3906 = vrot.slane %v3901, %v3905
        %v3907 = vlaneseq
        %v3908 = vshrl.u32 %v3907, 7
        %v3909 = vsub.s32 1, %v3908
        %v3910 = vrot.slane %v3901, %v3909
        %v3945 = vunpack.c.l.b16 %v3869
        %v3946 = vunpack.c.h.b16 %v3869
        %v3947 = vunpack.c.l.b16 %v3870
        %v3948 = vunpack.c.h.b16 %v3870
        %v3949 = vunpack.c.l.b16 %v3871
        %v3950 = vunpack.c.h.b16 %v3871
        %v3951 = vunpack.c.l.b16 %v3872
        %v3952 = vunpack.c.h.b16 %v3872
        %v3953 = vunpack.c.l.b16 %v3873
        %v3954 = vunpack.c.h.b16 %v3873
        %v3955 = vunpack.c.l.b16 %v3874
        %v3956 = vunpack.c.h.b16 %v3874
        %v3957 = vunpack.c.l.b16 %v3875
        %v3958 = vunpack.c.h.b16 %v3875
        %v3959 = vunpack.c.l.b16 %v3876
        %v3960 = vunpack.c.h.b16 %v3876
        %v3961 = vunpack.c.l.b16 %v3877
        %v3962 = vunpack.c.h.b16 %v3877
        %v3963 = vunpack.c.l.b16 %v3878
        %v3964 = vunpack.c.h.b16 %v3878
        %v3965 = vunpack.c.l.b16 %v3879
        %v3966 = vunpack.c.h.b16 %v3879
        %v3967 = vunpack.c.l.b16 %v3880
        %v3968 = vunpack.c.h.b16 %v3880
        %v3969 = vunpack.c.l.b16 %v3881
        %v3970 = vunpack.c.h.b16 %v3881
        %v3971 = vunpack.c.l.b16 %v3882
        %v3972 = vunpack.c.h.b16 %v3882
        %v3973 = vunpack.c.l.b16 %v3883
        %v3974 = vunpack.c.h.b16 %v3883
        %v3975 = vunpack.c.l.b16 %v3884
        %v3976 = vunpack.c.h.b16 %v3884
        %v3977 = vunpack.c.l.b16 %v3885
        %v3978 = vunpack.c.h.b16 %v3885
        %v3979 = vunpack.c.l.b16 %v3886
        %v3980 = vunpack.c.h.b16 %v3886
        %v3981 = vunpack.c.l.b16 %v3887
        %v3982 = vunpack.c.h.b16 %v3887
        %v3983 = vunpack.c.l.b16 %v3888
        %v3984 = vunpack.c.h.b16 %v3888
        %v3985 = vunpack.c.l.b16 %v3889
        %v3986 = vunpack.c.h.b16 %v3889
        %v3987 = vunpack.c.l.b16 %v3890
        %v3988 = vunpack.c.h.b16 %v3890
        %v3989 = vunpack.c.l.b16 %v3891
        %v3990 = vunpack.c.h.b16 %v3891
        %v3991 = vunpack.c.l.b16 %v3892
        %v3992 = vunpack.c.h.b16 %v3892
        %v3993 = vunpack.c.l.b16 %v3893
        %v3994 = vunpack.c.h.b16 %v3893
        %v3995 = vunpack.c.l.b16 %v3894
        %v3996 = vunpack.c.h.b16 %v3894
        %v3997 = vunpack.c.l.b16 %v3895
        %v3998 = vunpack.c.h.b16 %v3895
        %v3999 = vunpack.c.l.b16 %v3896
        %v4000 = vunpack.c.h.b16 %v3896
        %v4001 = vunpack.c.l.b16 %v3897
        %v4002 = vunpack.c.h.b16 %v3897
        %v4003 = vunpack.c.l.b16 %v3898
        %v4004 = vunpack.c.h.b16 %v3898
        %v4005 = vunpack.c.l.b16 %v3899
        %v4006 = vunpack.c.h.b16 %v3899
        %v4007 = vunpack.c.l.b16 %v3900
        %v4008 = vunpack.c.h.b16 %v3900
        %v4009 = vpack.c.b16 %v3947, %v3945
        %v4010 = vpack.c.b16 %v3948, %v3946
        %v4011 = vpack.c.b16 %v3951, %v3949
        %v4012 = vpack.c.b16 %v3952, %v3950
        %v4013 = vpack.c.b16 %v3955, %v3953
        %v4014 = vpack.c.b16 %v3956, %v3954
        %v4015 = vpack.c.b16 %v3959, %v3957
        %v4016 = vpack.c.b16 %v3960, %v3958
        %v4017 = vpack.c.b16 %v3963, %v3961
        %v4018 = vpack.c.b16 %v3964, %v3962
        %v4019 = vpack.c.b16 %v3967, %v3965
        %v4020 = vpack.c.b16 %v3968, %v3966
        %v4021 = vpack.c.b16 %v3971, %v3969
        %v4022 = vpack.c.b16 %v3972, %v3970
        %v4023 = vpack.c.b16 %v3975, %v3973
        %v4024 = vpack.c.b16 %v3976, %v3974
        %v4025 = vpack.c.b16 %v3979, %v3977
        %v4026 = vpack.c.b16 %v3980, %v3978
        %v4027 = vpack.c.b16 %v3983, %v3981
        %v4028 = vpack.c.b16 %v3984, %v3982
        %v4029 = vpack.c.b16 %v3987, %v3985
        %v4030 = vpack.c.b16 %v3988, %v3986
        %v4031 = vpack.c.b16 %v3991, %v3989
        %v4032 = vpack.c.b16 %v3992, %v3990
        %v4033 = vpack.c.b16 %v3995, %v3993
        %v4034 = vpack.c.b16 %v3996, %v3994
        %v4035 = vpack.c.b16 %v3999, %v3997
        %v4036 = vpack.c.b16 %v4000, %v3998
        %v4037 = vpack.c.b16 %v4003, %v4001
        %v4038 = vpack.c.b16 %v4004, %v4002
        %v4039 = vpack.c.b16 %v4007, %v4005
        %v4040 = vpack.c.b16 %v4008, %v4006
        %4073 = vmatprep.subr.bf16.mxu0 %v4010
        %4074 = vmatpush1.bf16.msra.mxu0 %v4009
        %4075 = vmatprep.subr.bf16.mxu0 %v4012
        %4076 = vmatpush1.bf16.msra.mxu0 %v4011
        %4077 = vmatprep.subr.bf16.mxu0 %v4014
        %4078 = vmatpush1.bf16.msra.mxu0 %v4013
        %4079 = vmatprep.subr.bf16.mxu0 %v4016
        %4080 = vmatpush1.bf16.msra.mxu0 %v4015
        %4081 = vmatprep.subr.bf16.mxu0 %v4018
        %4082 = vmatpush1.bf16.msra.mxu0 %v4017
        %4083 = vmatprep.subr.bf16.mxu0 %v4020
        %4084 = vmatpush1.bf16.msra.mxu0 %v4019
        %4085 = vmatprep.subr.bf16.mxu0 %v4022
        %4086 = vmatpush1.bf16.msra.mxu0 %v4021
        %4087 = vmatprep.subr.bf16.mxu0 %v4024
        %4088 = vmatpush1.bf16.msra.mxu0 %v4023
        %4089 = vmatprep.subr.bf16.mxu0 %v4026
        %4090 = vmatpush1.bf16.msra.mxu0 %v4025
        %4091 = vmatprep.subr.bf16.mxu0 %v4028
        %4092 = vmatpush1.bf16.msra.mxu0 %v4027
        %4093 = vmatprep.subr.bf16.mxu0 %v4030
        %4094 = vmatpush1.bf16.msra.mxu0 %v4029
        %4095 = vmatprep.subr.bf16.mxu0 %v4032
        %4096 = vmatpush1.bf16.msra.mxu0 %v4031
        %4097 = vmatprep.subr.bf16.mxu0 %v4034
        %4098 = vmatpush1.bf16.msra.mxu0 %v4033
        %4099 = vmatprep.subr.bf16.mxu0 %v4036
        %4100 = vmatpush1.bf16.msra.mxu0 %v4035
        %4101 = vmatprep.subr.bf16.mxu0 %v4038
        %4102 = vmatpush1.bf16.msra.mxu0 %v4037
        %4103 = vmatprep.subr.bf16.mxu0 %v4040
        %4104 = vmatpush1.bf16.msra.mxu0 %v4039
        %4105 = vmatprep.mubr.bf16.mxu0 %v3806
        %4106 = vmatmul.mubr.bf16.gmra.mrb[0].mxu0 %v3805
        %v4107 = vpop.f32.mrb[0].mxu0
        %v4108 = vadd.f32 %v3906, %v4107
        %v4109 = vpop.f32.mrb[0].mxu0
        %v4110 = vadd.f32 %v3910, %v4109
        %v4111 = vpop.f32.mrb[0].mxu0
        %v4112 = vadd.f32 %v3906, %v4111
        %v4113 = vpop.f32.mrb[0].mxu0
        %v4114 = vadd.f32 %v3910, %v4113
        %4115 = vmatprep.mubr.bf16.mxu0 %v3808
        %4116 = vmatmul.mubr.bf16.gmra.mrb[0].mxu0 %v3807
        %v4117 = vpop.f32.mrb[0].mxu0
        %v4118 = vadd.f32 %v3906, %v4117
        %v4119 = vpop.f32.mrb[0].mxu0
        %v4120 = vadd.f32 %v3910, %v4119
        %v4121 = vpop.f32.mrb[0].mxu0
        %v4122 = vadd.f32 %v3906, %v4121
        %v4123 = vpop.f32.mrb[0].mxu0
        %v4124 = vadd.f32 %v3910, %v4123
        %4125 = vmatprep.mubr.bf16.mxu0 %v3810
        %4126 = vmatmul.mubr.bf16.gmra.mrb[0].mxu0 %v3809
        %v4127 = vpop.f32.mrb[0].mxu0
        %v4128 = vadd.f32 %v3906, %v4127
        %v4129 = vpop.f32.mrb[0].mxu0
        %v4130 = vadd.f32 %v3910, %v4129
        %v4131 = vpop.f32.mrb[0].mxu0
        %v4132 = vadd.f32 %v3906, %v4131
        %v4133 = vpop.f32.mrb[0].mxu0
        %v4134 = vadd.f32 %v3910, %v4133
        %4135 = vmatprep.mubr.bf16.mxu0 %v3812
        %4136 = vmatmul.mubr.bf16.gmra.mrb[0].mxu0 %v3811
        %v4137 = vpop.f32.mrb[0].mxu0
        %v4138 = vadd.f32 %v3906, %v4137
        %v4139 = vpop.f32.mrb[0].mxu0
        %v4140 = vadd.f32 %v3910, %v4139
        %v4141 = vpop.f32.mrb[0].mxu0
        %v4142 = vadd.f32 %v3906, %v4141
        %v4143 = vpop.f32.mrb[0].mxu0
        %v4144 = vadd.f32 %v3910, %v4143
        %4145 = vmatprep.mubr.bf16.mxu0 %v3814
        %4146 = vmatmul.mubr.bf16.gmra.mrb[0].mxu0 %v3813
        %v4147 = vpop.f32.mrb[0].mxu0
        %v4148 = vadd.f32 %v3906, %v4147
        %v4149 = vpop.f32.mrb[0].mxu0
        %v4150 = vadd.f32 %v3910, %v4149
        %v4151 = vpop.f32.mrb[0].mxu0
        %v4152 = vadd.f32 %v3906, %v4151
        %v4153 = vpop.f32.mrb[0].mxu0
        %v4154 = vadd.f32 %v3910, %v4153
        %4155 = vmatprep.mubr.bf16.mxu0 %v3816
        %4156 = vmatmul.mubr.bf16.gmra.mrb[0].mxu0 %v3815
        %v4157 = vpop.f32.mrb[0].mxu0
        %v4158 = vadd.f32 %v3906, %v4157
        %v4159 = vpop.f32.mrb[0].mxu0
        %v4160 = vadd.f32 %v3910, %v4159
        %v4161 = vpop.f32.mrb[0].mxu0
        %v4162 = vadd.f32 %v3906, %v4161
        %v4163 = vpop.f32.mrb[0].mxu0
        %v4164 = vadd.f32 %v3910, %v4163
        %4165 = vmatprep.mubr.bf16.mxu0 %v3818
        %4166 = vmatmul.mubr.bf16.gmra.mrb[0].mxu0 %v3817
        %v4167 = vpop.f32.mrb[0].mxu0
        %v4168 = vadd.f32 %v3906, %v4167
        %v4169 = vpop.f32.mrb[0].mxu0
        %v4170 = vadd.f32 %v3910, %v4169
        %v4171 = vpop.f32.mrb[0].mxu0
        %v4172 = vadd.f32 %v3906, %v4171
        %v4173 = vpop.f32.mrb[0].mxu0
        %v4174 = vadd.f32 %v3910, %v4173
        %4175 = vmatprep.mubr.bf16.mxu0 %v3820
        %4176 = vmatmul.mubr.bf16.gmra.mrb[0].mxu0 %v3819
        %v4177 = vpop.f32.mrb[0].mxu0
        %v4178 = vadd.f32 %v3906, %v4177
        %v4179 = vpop.f32.mrb[0].mxu0
        %v4180 = vadd.f32 %v3910, %v4179
        %v4181 = vpop.f32.mrb[0].mxu0
        %v4182 = vadd.f32 %v3906, %v4181
        %v4183 = vpop.f32.mrb[0].mxu0
        %v4184 = vadd.f32 %v3910, %v4183
        %4185 = vmatprep.mubr.bf16.mxu0 %v3822
        %4186 = vmatmul.mubr.bf16.gmra.mrb[0].mxu0 %v3821
        %v4187 = vpop.f32.mrb[0].mxu0
        %v4188 = vadd.f32 %v3906, %v4187
        %v4189 = vpop.f32.mrb[0].mxu0
        %v4190 = vadd.f32 %v3910, %v4189
        %v4191 = vpop.f32.mrb[0].mxu0
        %v4192 = vadd.f32 %v3906, %v4191
        %v4193 = vpop.f32.mrb[0].mxu0
        %v4194 = vadd.f32 %v3910, %v4193
        %4195 = vmatprep.mubr.bf16.mxu0 %v3824
        %4196 = vmatmul.mubr.bf16.gmra.mrb[0].mxu0 %v3823
        %v4197 = vpop.f32.mrb[0].mxu0
        %v4198 = vadd.f32 %v3906, %v4197
        %v4199 = vpop.f32.mrb[0].mxu0
        %v4200 = vadd.f32 %v3910, %v4199
        %v4201 = vpop.f32.mrb[0].mxu0
        %v4202 = vadd.f32 %v3906, %v4201
        %v4203 = vpop.f32.mrb[0].mxu0
        %v4204 = vadd.f32 %v3910, %v4203
        %4205 = vmatprep.mubr.bf16.mxu0 %v3826
        %4206 = vmatmul.mubr.bf16.gmra.mrb[0].mxu0 %v3825
        %v4207 = vpop.f32.mrb[0].mxu0
        %v4208 = vadd.f32 %v3906, %v4207
        %v4209 = vpop.f32.mrb[0].mxu0
        %v4210 = vadd.f32 %v3910, %v4209
        %v4211 = vpop.f32.mrb[0].mxu0
        %v4212 = vadd.f32 %v3906, %v4211
        %v4213 = vpop.f32.mrb[0].mxu0
        %v4214 = vadd.f32 %v3910, %v4213
        %4215 = vmatprep.mubr.bf16.mxu0 %v3828
        %4216 = vmatmul.mubr.bf16.gmra.mrb[0].mxu0 %v3827
        %v4217 = vpop.f32.mrb[0].mxu0
        %v4218 = vadd.f32 %v3906, %v4217
        %v4219 = vpop.f32.mrb[0].mxu0
        %v4220 = vadd.f32 %v3910, %v4219
        %v4221 = vpop.f32.mrb[0].mxu0
        %v4222 = vadd.f32 %v3906, %v4221
        %v4223 = vpop.f32.mrb[0].mxu0
        %v4224 = vadd.f32 %v3910, %v4223
        %4225 = vmatprep.mubr.bf16.mxu0 %v3830
        %4226 = vmatmul.mubr.bf16.gmra.mrb[0].mxu0 %v3829
        %v4227 = vpop.f32.mrb[0].mxu0
        %v4228 = vadd.f32 %v3906, %v4227
        %v4229 = vpop.f32.mrb[0].mxu0
        %v4230 = vadd.f32 %v3910, %v4229
        %v4231 = vpop.f32.mrb[0].mxu0
        %v4232 = vadd.f32 %v3906, %v4231
        %v4233 = vpop.f32.mrb[0].mxu0
        %v4234 = vadd.f32 %v3910, %v4233
        %4235 = vmatprep.mubr.bf16.mxu0 %v3832
        %4236 = vmatmul.mubr.bf16.gmra.mrb[0].mxu0 %v3831
        %v4237 = vpop.f32.mrb[0].mxu0
        %v4238 = vadd.f32 %v3906, %v4237
        %v4239 = vpop.f32.mrb[0].mxu0
        %v4240 = vadd.f32 %v3910, %v4239
        %v4241 = vpop.f32.mrb[0].mxu0
        %v4242 = vadd.f32 %v3906, %v4241
        %v4243 = vpop.f32.mrb[0].mxu0
        %v4244 = vadd.f32 %v3910, %v4243
        %4245 = vmatprep.mubr.bf16.mxu0 %v3834
        %4246 = vmatmul.mubr.bf16.gmra.mrb[0].mxu0 %v3833
        %v4247 = vpop.f32.mrb[0].mxu0
        %v4248 = vadd.f32 %v3906, %v4247
        %v4249 = vpop.f32.mrb[0].mxu0
        %v4250 = vadd.f32 %v3910, %v4249
        %v4251 = vpop.f32.mrb[0].mxu0
        %v4252 = vadd.f32 %v3906, %v4251
        %v4253 = vpop.f32.mrb[0].mxu0
        %v4254 = vadd.f32 %v3910, %v4253
        %4255 = vmatprep.mubr.bf16.mxu0 %v3836
        %4256 = vmatmul.mubr.bf16.gmra.mrb[0].mxu0 %v3835
        %v4257 = vpop.f32.mrb[0].mxu0
        %v4258 = vadd.f32 %v3906, %v4257
        %v4259 = vpop.f32.mrb[0].mxu0
        %v4260 = vadd.f32 %v3910, %v4259
        %v4261 = vpop.f32.mrb[0].mxu0
        %v4262 = vadd.f32 %v3906, %v4261
        %v4263 = vpop.f32.mrb[0].mxu0
        %v4264 = vadd.f32 %v3910, %v4263
        %4265 = vmatprep.mubr.bf16.mxu0 %v3838
        %4266 = vmatmul.mubr.bf16.gmra.mrb[0].mxu0 %v3837
        %v4267 = vpop.f32.mrb[0].mxu0
        %v4268 = vadd.f32 %v3906, %v4267
        %v4269 = vpop.f32.mrb[0].mxu0
        %v4270 = vadd.f32 %v3910, %v4269
        %v4271 = vpop.f32.mrb[0].mxu0
        %v4272 = vadd.f32 %v3906, %v4271
        %v4273 = vpop.f32.mrb[0].mxu0
        %v4274 = vadd.f32 %v3910, %v4273
        %4275 = vmatprep.mubr.bf16.mxu0 %v3840
        %4276 = vmatmul.mubr.bf16.gmra.mrb[0].mxu0 %v3839
        %v4277 = vpop.f32.mrb[0].mxu0
        %v4278 = vadd.f32 %v3906, %v4277
        %v4279 = vpop.f32.mrb[0].mxu0
        %v4280 = vadd.f32 %v3910, %v4279
        %v4281 = vpop.f32.mrb[0].mxu0
        %v4282 = vadd.f32 %v3906, %v4281
        %v4283 = vpop.f32.mrb[0].mxu0
        %v4284 = vadd.f32 %v3910, %v4283
        %4285 = vmatprep.mubr.bf16.mxu0 %v3842
        %4286 = vmatmul.mubr.bf16.gmra.mrb[0].mxu0 %v3841
        %v4287 = vpop.f32.mrb[0].mxu0
        %v4288 = vadd.f32 %v3906, %v4287
        %v4289 = vpop.f32.mrb[0].mxu0
        %v4290 = vadd.f32 %v3910, %v4289
        %v4291 = vpop.f32.mrb[0].mxu0
        %v4292 = vadd.f32 %v3906, %v4291
        %v4293 = vpop.f32.mrb[0].mxu0
        %v4294 = vadd.f32 %v3910, %v4293
        %4295 = vmatprep.mubr.bf16.mxu0 %v3844
        %4296 = vmatmul.mubr.bf16.gmra.mrb[0].mxu0 %v3843
        %v4297 = vpop.f32.mrb[0].mxu0
        %v4298 = vadd.f32 %v3906, %v4297
        %v4299 = vpop.f32.mrb[0].mxu0
        %v4300 = vadd.f32 %v3910, %v4299
        %v4301 = vpop.f32.mrb[0].mxu0
        %v4302 = vadd.f32 %v3906, %v4301
        %v4303 = vpop.f32.mrb[0].mxu0
        %v4304 = vadd.f32 %v3910, %v4303
        %4305 = vmatprep.mubr.bf16.mxu0 %v3846
        %4306 = vmatmul.mubr.bf16.gmra.mrb[0].mxu0 %v3845
        %v4307 = vpop.f32.mrb[0].mxu0
        %v4308 = vadd.f32 %v3906, %v4307
        %v4309 = vpop.f32.mrb[0].mxu0
        %v4310 = vadd.f32 %v3910, %v4309
        %v4311 = vpop.f32.mrb[0].mxu0
        %v4312 = vadd.f32 %v3906, %v4311
        %v4313 = vpop.f32.mrb[0].mxu0
        %v4314 = vadd.f32 %v3910, %v4313
        %4315 = vmatprep.mubr.bf16.mxu0 %v3848
        %4316 = vmatmul.mubr.bf16.gmra.mrb[0].mxu0 %v3847
        %v4317 = vpop.f32.mrb[0].mxu0
        %v4318 = vadd.f32 %v3906, %v4317
        %v4319 = vpop.f32.mrb[0].mxu0
        %v4320 = vadd.f32 %v3910, %v4319
        %v4321 = vpop.f32.mrb[0].mxu0
        %v4322 = vadd.f32 %v3906, %v4321
        %v4323 = vpop.f32.mrb[0].mxu0
        %v4324 = vadd.f32 %v3910, %v4323
        %4325 = vmatprep.mubr.bf16.mxu0 %v3850
        %4326 = vmatmul.mubr.bf16.gmra.mrb[0].mxu0 %v3849
        %v4327 = vpop.f32.mrb[0].mxu0
        %v4328 = vadd.f32 %v3906, %v4327
        %v4329 = vpop.f32.mrb[0].mxu0
        %v4330 = vadd.f32 %v3910, %v4329
        %v4331 = vpop.f32.mrb[0].mxu0
        %v4332 = vadd.f32 %v3906, %v4331
        %v4333 = vpop.f32.mrb[0].mxu0
        %v4334 = vadd.f32 %v3910, %v4333
        %4335 = vmatprep.mubr.bf16.mxu0 %v3852
        %4336 = vmatmul.mubr.bf16.gmra.mrb[0].mxu0 %v3851
        %v4337 = vpop.f32.mrb[0].mxu0
        %v4338 = vadd.f32 %v3906, %v4337
        %v4339 = vpop.f32.mrb[0].mxu0
        %v4340 = vadd.f32 %v3910, %v4339
        %v4341 = vpop.f32.mrb[0].mxu0
        %v4342 = vadd.f32 %v3906, %v4341
        %v4343 = vpop.f32.mrb[0].mxu0
        %v4344 = vadd.f32 %v3910, %v4343
        %4345 = vmatprep.mubr.bf16.mxu0 %v3854
        %4346 = vmatmul.mubr.bf16.gmra.mrb[0].mxu0 %v3853
        %v4347 = vpop.f32.mrb[0].mxu0
        %v4348 = vadd.f32 %v3906, %v4347
        %v4349 = vpop.f32.mrb[0].mxu0
        %v4350 = vadd.f32 %v3910, %v4349
        %v4351 = vpop.f32.mrb[0].mxu0
        %v4352 = vadd.f32 %v3906, %v4351
        %v4353 = vpop.f32.mrb[0].mxu0
        %v4354 = vadd.f32 %v3910, %v4353
        %4355 = vmatprep.mubr.bf16.mxu0 %v3856
        %4356 = vmatmul.mubr.bf16.gmra.mrb[0].mxu0 %v3855
        %v4357 = vpop.f32.mrb[0].mxu0
        %v4358 = vadd.f32 %v3906, %v4357
        %v4359 = vpop.f32.mrb[0].mxu0
        %v4360 = vadd.f32 %v3910, %v4359
        %v4361 = vpop.f32.mrb[0].mxu0
        %v4362 = vadd.f32 %v3906, %v4361
        %v4363 = vpop.f32.mrb[0].mxu0
        %v4364 = vadd.f32 %v3910, %v4363
        %4365 = vmatprep.mubr.bf16.mxu0 %v3858
        %4366 = vmatmul.mubr.bf16.gmra.mrb[0].mxu0 %v3857
        %v4367 = vpop.f32.mrb[0].mxu0
        %v4368 = vadd.f32 %v3906, %v4367
        %v4369 = vpop.f32.mrb[0].mxu0
        %v4370 = vadd.f32 %v3910, %v4369
        %v4371 = vpop.f32.mrb[0].mxu0
        %v4372 = vadd.f32 %v3906, %v4371
        %v4373 = vpop.f32.mrb[0].mxu0
        %v4374 = vadd.f32 %v3910, %v4373
        %4375 = vmatprep.mubr.bf16.mxu0 %v3860
        %4376 = vmatmul.mubr.bf16.gmra.mrb[0].mxu0 %v3859
        %v4377 = vpop.f32.mrb[0].mxu0
        %v4378 = vadd.f32 %v3906, %v4377
        %v4379 = vpop.f32.mrb[0].mxu0
        %v4380 = vadd.f32 %v3910, %v4379
        %v4381 = vpop.f32.mrb[0].mxu0
        %v4382 = vadd.f32 %v3906, %v4381
        %v4383 = vpop.f32.mrb[0].mxu0
        %v4384 = vadd.f32 %v3910, %v4383
        %4385 = vmatprep.mubr.bf16.mxu0 %v3862
        %4386 = vmatmul.mubr.bf16.gmra.mrb[0].mxu0 %v3861
        %v4387 = vpop.f32.mrb[0].mxu0
        %v4388 = vadd.f32 %v3906, %v4387
        %v4389 = vpop.f32.mrb[0].mxu0
        %v4390 = vadd.f32 %v3910, %v4389
        %v4391 = vpop.f32.mrb[0].mxu0
        %v4392 = vadd.f32 %v3906, %v4391
        %v4393 = vpop.f32.mrb[0].mxu0
        %v4394 = vadd.f32 %v3910, %v4393
        %4395 = vmatprep.mubr.bf16.mxu0 %v3864
        %4396 = vmatmul.mubr.bf16.gmra.mrb[0].mxu0 %v3863
        %v4397 = vpop.f32.mrb[0].mxu0
        %v4398 = vadd.f32 %v3906, %v4397
        %v4399 = vpop.f32.mrb[0].mxu0
        %v4400 = vadd.f32 %v3910, %v4399
        %v4401 = vpop.f32.mrb[0].mxu0
        %v4402 = vadd.f32 %v3906, %v4401
        %v4403 = vpop.f32.mrb[0].mxu0
        %v4404 = vadd.f32 %v3910, %v4403
        %4405 = vmatprep.mubr.bf16.mxu0 %v3866
        %4406 = vmatmul.mubr.bf16.gmra.mrb[0].mxu0 %v3865
        %v4407 = vpop.f32.mrb[0].mxu0
        %v4408 = vadd.f32 %v3906, %v4407
        %v4409 = vpop.f32.mrb[0].mxu0
        %v4410 = vadd.f32 %v3910, %v4409
        %v4411 = vpop.f32.mrb[0].mxu0
        %v4412 = vadd.f32 %v3906, %v4411
        %v4413 = vpop.f32.mrb[0].mxu0
        %v4414 = vadd.f32 %v3910, %v4413
        %4415 = vmatprep.mubr.bf16.mxu0 %v3868
        %4416 = vmatmul.mubr.bf16.gmra.mrb[0].mxu0 %v3867
        %v4417 = vpop.f32.mrb[0].mxu0
        %v4418 = vadd.f32 %v3906, %v4417
        %v4419 = vpop.f32.mrb[0].mxu0
        %v4420 = vadd.f32 %v3910, %v4419
        %v4421 = vpop.f32.mrb[0].mxu0
        %v4422 = vadd.f32 %v3906, %v4421
        %v4423 = vpop.f32.mrb[0].mxu0
        %v4424 = vadd.f32 %v3910, %v4423
        %4425 = vdwg.mxu0
        %v4426 = vmax.f32 %v4108, 0.0
        %v4427 = vmax.f32 %v4110, 0.0
        %v4428 = vmax.f32 %v4112, 0.0
        %v4429 = vmax.f32 %v4114, 0.0
        %v4430 = vmax.f32 %v4118, 0.0
        %v4431 = vmax.f32 %v4120, 0.0
        %v4432 = vmax.f32 %v4122, 0.0
        %v4433 = vmax.f32 %v4124, 0.0
        %v4434 = vmax.f32 %v4128, 0.0
        %v4435 = vmax.f32 %v4130, 0.0
        %v4436 = vmax.f32 %v4132, 0.0
        %v4437 = vmax.f32 %v4134, 0.0
        %v4438 = vmax.f32 %v4138, 0.0
        %v4439 = vmax.f32 %v4140, 0.0
        %v4440 = vmax.f32 %v4142, 0.0
        %v4441 = vmax.f32 %v4144, 0.0
        %v4442 = vmax.f32 %v4148, 0.0
        %v4443 = vmax.f32 %v4150, 0.0
        %v4444 = vmax.f32 %v4152, 0.0
        %v4445 = vmax.f32 %v4154, 0.0
        %v4446 = vmax.f32 %v4158, 0.0
        %v4447 = vmax.f32 %v4160, 0.0
        %v4448 = vmax.f32 %v4162, 0.0
        %v4449 = vmax.f32 %v4164, 0.0
        %v4450 = vmax.f32 %v4168, 0.0
        %v4451 = vmax.f32 %v4170, 0.0
        %v4452 = vmax.f32 %v4172, 0.0
        %v4453 = vmax.f32 %v4174, 0.0
        %v4454 = vmax.f32 %v4178, 0.0
        %v4455 = vmax.f32 %v4180, 0.0
        %v4456 = vmax.f32 %v4182, 0.0
        %v4457 = vmax.f32 %v4184, 0.0
        %v4458 = vmax.f32 %v4188, 0.0
        %v4459 = vmax.f32 %v4190, 0.0
        %v4460 = vmax.f32 %v4192, 0.0
        %v4461 = vmax.f32 %v4194, 0.0
        %v4462 = vmax.f32 %v4198, 0.0
        %v4463 = vmax.f32 %v4200, 0.0
        %v4464 = vmax.f32 %v4202, 0.0
        %v4465 = vmax.f32 %v4204, 0.0
        %v4466 = vmax.f32 %v4208, 0.0
        %v4467 = vmax.f32 %v4210, 0.0
        %v4468 = vmax.f32 %v4212, 0.0
        %v4469 = vmax.f32 %v4214, 0.0
        %v4470 = vmax.f32 %v4218, 0.0
        %v4471 = vmax.f32 %v4220, 0.0
        %v4472 = vmax.f32 %v4222, 0.0
        %v4473 = vmax.f32 %v4224, 0.0
        %v4474 = vmax.f32 %v4228, 0.0
        %v4475 = vmax.f32 %v4230, 0.0
        %v4476 = vmax.f32 %v4232, 0.0
        %v4477 = vmax.f32 %v4234, 0.0
        %v4478 = vmax.f32 %v4238, 0.0
        %v4479 = vmax.f32 %v4240, 0.0
        %v4480 = vmax.f32 %v4242, 0.0
        %v4481 = vmax.f32 %v4244, 0.0
        %v4482 = vmax.f32 %v4248, 0.0
        %v4483 = vmax.f32 %v4250, 0.0
        %v4484 = vmax.f32 %v4252, 0.0
        %v4485 = vmax.f32 %v4254, 0.0
        %v4486 = vmax.f32 %v4258, 0.0
        %v4487 = vmax.f32 %v4260, 0.0
        %v4488 = vmax.f32 %v4262, 0.0
        %v4489 = vmax.f32 %v4264, 0.0
        %v4490 = vmax.f32 %v4268, 0.0
        %v4491 = vmax.f32 %v4270, 0.0
        %v4492 = vmax.f32 %v4272, 0.0
        %v4493 = vmax.f32 %v4274, 0.0
        %v4494 = vmax.f32 %v4278, 0.0
        %v4495 = vmax.f32 %v4280, 0.0
        %v4496 = vmax.f32 %v4282, 0.0
        %v4497 = vmax.f32 %v4284, 0.0
        %v4498 = vmax.f32 %v4288, 0.0
        %v4499 = vmax.f32 %v4290, 0.0
        %v4500 = vmax.f32 %v4292, 0.0
        %v4501 = vmax.f32 %v4294, 0.0
        %v4502 = vmax.f32 %v4298, 0.0
        %v4503 = vmax.f32 %v4300, 0.0
        %v4504 = vmax.f32 %v4302, 0.0
        %v4505 = vmax.f32 %v4304, 0.0
        %v4506 = vmax.f32 %v4308, 0.0
        %v4507 = vmax.f32 %v4310, 0.0
        %v4508 = vmax.f32 %v4312, 0.0
        %v4509 = vmax.f32 %v4314, 0.0
        %v4510 = vmax.f32 %v4318, 0.0
        %v4511 = vmax.f32 %v4320, 0.0
        %v4512 = vmax.f32 %v4322, 0.0
        %v4513 = vmax.f32 %v4324, 0.0
        %v4514 = vmax.f32 %v4328, 0.0
        %v4515 = vmax.f32 %v4330, 0.0
        %v4516 = vmax.f32 %v4332, 0.0
        %v4517 = vmax.f32 %v4334, 0.0
        %v4518 = vmax.f32 %v4338, 0.0
        %v4519 = vmax.f32 %v4340, 0.0
        %v4520 = vmax.f32 %v4342, 0.0
        %v4521 = vmax.f32 %v4344, 0.0
        %v4522 = vmax.f32 %v4348, 0.0
        %v4523 = vmax.f32 %v4350, 0.0
        %v4524 = vmax.f32 %v4352, 0.0
        %v4525 = vmax.f32 %v4354, 0.0
        %v4526 = vmax.f32 %v4358, 0.0
        %v4527 = vmax.f32 %v4360, 0.0
        %v4528 = vmax.f32 %v4362, 0.0
        %v4529 = vmax.f32 %v4364, 0.0
        %v4530 = vmax.f32 %v4368, 0.0
        %v4531 = vmax.f32 %v4370, 0.0
        %v4532 = vmax.f32 %v4372, 0.0
        %v4533 = vmax.f32 %v4374, 0.0
        %v4534 = vmax.f32 %v4378, 0.0
        %v4535 = vmax.f32 %v4380, 0.0
        %v4536 = vmax.f32 %v4382, 0.0
        %v4537 = vmax.f32 %v4384, 0.0
        %v4538 = vmax.f32 %v4388, 0.0
        %v4539 = vmax.f32 %v4390, 0.0
        %v4540 = vmax.f32 %v4392, 0.0
        %v4541 = vmax.f32 %v4394, 0.0
        %v4542 = vmax.f32 %v4398, 0.0
        %v4543 = vmax.f32 %v4400, 0.0
        %v4544 = vmax.f32 %v4402, 0.0
        %v4545 = vmax.f32 %v4404, 0.0
        %v4546 = vmax.f32 %v4408, 0.0
        %v4547 = vmax.f32 %v4410, 0.0
        %v4548 = vmax.f32 %v4412, 0.0
        %v4549 = vmax.f32 %v4414, 0.0
        %v4550 = vmax.f32 %v4418, 0.0
        %v4551 = vmax.f32 %v4420, 0.0
        %v4552 = vmax.f32 %v4422, 0.0
        %v4553 = vmax.f32 %v4424, 0.0
        %v4554 = vpack.c.bf16 %v4428, %v4426
        %v4555 = vpack.c.bf16 %v4429, %v4427
        %v4556 = vpack.c.bf16 %v4432, %v4430
        %v4557 = vpack.c.bf16 %v4433, %v4431
        %v4558 = vpack.c.bf16 %v4436, %v4434
        %v4559 = vpack.c.bf16 %v4437, %v4435
        %v4560 = vpack.c.bf16 %v4440, %v4438
        %v4561 = vpack.c.bf16 %v4441, %v4439
        %v4562 = vpack.c.bf16 %v4444, %v4442
        %v4563 = vpack.c.bf16 %v4445, %v4443
        %v4564 = vpack.c.bf16 %v4448, %v4446
        %v4565 = vpack.c.bf16 %v4449, %v4447
        %v4566 = vpack.c.bf16 %v4452, %v4450
        %v4567 = vpack.c.bf16 %v4453, %v4451
        %v4568 = vpack.c.bf16 %v4456, %v4454
        %v4569 = vpack.c.bf16 %v4457, %v4455
        %v4570 = vpack.c.bf16 %v4460, %v4458
        %v4571 = vpack.c.bf16 %v4461, %v4459
        %v4572 = vpack.c.bf16 %v4464, %v4462
        %v4573 = vpack.c.bf16 %v4465, %v4463
        %v4574 = vpack.c.bf16 %v4468, %v4466
        %v4575 = vpack.c.bf16 %v4469, %v4467
        %v4576 = vpack.c.bf16 %v4472, %v4470
        %v4577 = vpack.c.bf16 %v4473, %v4471
        %v4578 = vpack.c.bf16 %v4476, %v4474
        %v4579 = vpack.c.bf16 %v4477, %v4475
        %v4580 = vpack.c.bf16 %v4480, %v4478
        %v4581 = vpack.c.bf16 %v4481, %v4479
        %v4582 = vpack.c.bf16 %v4484, %v4482
        %v4583 = vpack.c.bf16 %v4485, %v4483
        %v4584 = vpack.c.bf16 %v4488, %v4486
        %v4585 = vpack.c.bf16 %v4489, %v4487
        %v4586 = vpack.c.bf16 %v4492, %v4490
        %v4587 = vpack.c.bf16 %v4493, %v4491
        %v4588 = vpack.c.bf16 %v4496, %v4494
        %v4589 = vpack.c.bf16 %v4497, %v4495
        %v4590 = vpack.c.bf16 %v4500, %v4498
        %v4591 = vpack.c.bf16 %v4501, %v4499
        %v4592 = vpack.c.bf16 %v4504, %v4502
        %v4593 = vpack.c.bf16 %v4505, %v4503
        %v4594 = vpack.c.bf16 %v4508, %v4506
        %v4595 = vpack.c.bf16 %v4509, %v4507
        %v4596 = vpack.c.bf16 %v4512, %v4510
        %v4597 = vpack.c.bf16 %v4513, %v4511
        %v4598 = vpack.c.bf16 %v4516, %v4514
        %v4599 = vpack.c.bf16 %v4517, %v4515
        %v4600 = vpack.c.bf16 %v4520, %v4518
        %v4601 = vpack.c.bf16 %v4521, %v4519
        %v4602 = vpack.c.bf16 %v4524, %v4522
        %v4603 = vpack.c.bf16 %v4525, %v4523
        %v4604 = vpack.c.bf16 %v4528, %v4526
        %v4605 = vpack.c.bf16 %v4529, %v4527
        %v4606 = vpack.c.bf16 %v4532, %v4530
        %v4607 = vpack.c.bf16 %v4533, %v4531
        %v4608 = vpack.c.bf16 %v4536, %v4534
        %v4609 = vpack.c.bf16 %v4537, %v4535
        %v4610 = vpack.c.bf16 %v4540, %v4538
        %v4611 = vpack.c.bf16 %v4541, %v4539
        %v4612 = vpack.c.bf16 %v4544, %v4542
        %v4613 = vpack.c.bf16 %v4545, %v4543
        %v4614 = vpack.c.bf16 %v4548, %v4546
        %v4615 = vpack.c.bf16 %v4549, %v4547
        %v4616 = vpack.c.bf16 %v4552, %v4550
        %v4617 = vpack.c.bf16 %v4553, %v4551
        %v4618 = vld [vmem:[#allocation2] sm:$0xff]
        %v4619 = vld [vmem:[#allocation2 + $0x8] sm:$0xff]
        %v4620 = vld [vmem:[#allocation2 + $0x10] sm:$0xff]
        %v4621 = vld [vmem:[#allocation2 + $0x18] sm:$0xff]
        %v4622 = vld [vmem:[#allocation2 + $0x20] sm:$0xff]
        %v4623 = vld [vmem:[#allocation2 + $0x28] sm:$0xff]
        %v4624 = vld [vmem:[#allocation2 + $0x30] sm:$0xff]
        %v4625 = vld [vmem:[#allocation2 + $0x38] sm:$0xff]
        %v4626 = vld [vmem:[#allocation2 + $0x40] sm:$0xff]
        %v4627 = vld [vmem:[#allocation2 + $0x48] sm:$0xff]
        %v4628 = vld [vmem:[#allocation2 + $0x50] sm:$0xff]
        %v4629 = vld [vmem:[#allocation2 + $0x58] sm:$0xff]
        %v4630 = vld [vmem:[#allocation2 + $0x60] sm:$0xff]
        %v4631 = vld [vmem:[#allocation2 + $0x68] sm:$0xff]
        %v4632 = vld [vmem:[#allocation2 + $0x70] sm:$0xff]
        %v4633 = vld [vmem:[#allocation2 + $0x78] sm:$0xff]
        %v4634 = vld [vmem:[#allocation2 + $0x80] sm:$0xff]
        %v4635 = vld [vmem:[#allocation2 + $0x88] sm:$0xff]
        %v4636 = vld [vmem:[#allocation2 + $0x90] sm:$0xff]
        %v4637 = vld [vmem:[#allocation2 + $0x98] sm:$0xff]
        %v4638 = vld [vmem:[#allocation2 + $0xa0] sm:$0xff]
        %v4639 = vld [vmem:[#allocation2 + $0xa8] sm:$0xff]
        %v4640 = vld [vmem:[#allocation2 + $0xb0] sm:$0xff]
        %v4641 = vld [vmem:[#allocation2 + $0xb8] sm:$0xff]
        %v4642 = vld [vmem:[#allocation2 + $0xc0] sm:$0xff]
        %v4643 = vld [vmem:[#allocation2 + $0xc8] sm:$0xff]
        %v4644 = vld [vmem:[#allocation2 + $0xd0] sm:$0xff]
        %v4645 = vld [vmem:[#allocation2 + $0xd8] sm:$0xff]
        %v4646 = vld [vmem:[#allocation2 + $0xe0] sm:$0xff]
        %v4647 = vld [vmem:[#allocation2 + $0xe8] sm:$0xff]
        %v4648 = vld [vmem:[#allocation2 + $0xf0] sm:$0xff]
        %v4649 = vld [vmem:[#allocation2 + $0xf8] sm:$0xff]
        %v4650 = vld [vmem:[%s10] sm:$0x3]
        %v4652 = vlaneseq
        %v4653 = vshrl.u32 %v4652, 7
        %v4654 = vsub.s32 0, %v4653
        %v4655 = vrot.slane %v4650, %v4654
        %v4656 = vlaneseq
        %v4657 = vshrl.u32 %v4656, 7
        %v4658 = vsub.s32 1, %v4657
        %v4659 = vrot.slane %v4650, %v4658
        %v4694 = vunpack.c.l.b16 %v4618
        %v4695 = vunpack.c.h.b16 %v4618
        %v4696 = vunpack.c.l.b16 %v4619
        %v4697 = vunpack.c.h.b16 %v4619
        %v4698 = vunpack.c.l.b16 %v4620
        %v4699 = vunpack.c.h.b16 %v4620
        %v4700 = vunpack.c.l.b16 %v4621
        %v4701 = vunpack.c.h.b16 %v4621
        %v4702 = vunpack.c.l.b16 %v4622
        %v4703 = vunpack.c.h.b16 %v4622
        %v4704 = vunpack.c.l.b16 %v4623
        %v4705 = vunpack.c.h.b16 %v4623
        %v4706 = vunpack.c.l.b16 %v4624
        %v4707 = vunpack.c.h.b16 %v4624
        %v4708 = vunpack.c.l.b16 %v4625
        %v4709 = vunpack.c.h.b16 %v4625
        %v4710 = vunpack.c.l.b16 %v4626
        %v4711 = vunpack.c.h.b16 %v4626
        %v4712 = vunpack.c.l.b16 %v4627
        %v4713 = vunpack.c.h.b16 %v4627
        %v4714 = vunpack.c.l.b16 %v4628
        %v4715 = vunpack.c.h.b16 %v4628
        %v4716 = vunpack.c.l.b16 %v4629
        %v4717 = vunpack.c.h.b16 %v4629
        %v4718 = vunpack.c.l.b16 %v4630
        %v4719 = vunpack.c.h.b16 %v4630
        %v4720 = vunpack.c.l.b16 %v4631
        %v4721 = vunpack.c.h.b16 %v4631
        %v4722 = vunpack.c.l.b16 %v4632
        %v4723 = vunpack.c.h.b16 %v4632
        %v4724 = vunpack.c.l.b16 %v4633
        %v4725 = vunpack.c.h.b16 %v4633
        %v4726 = vunpack.c.l.b16 %v4634
        %v4727 = vunpack.c.h.b16 %v4634
        %v4728 = vunpack.c.l.b16 %v4635
        %v4729 = vunpack.c.h.b16 %v4635
        %v4730 = vunpack.c.l.b16 %v4636
        %v4731 = vunpack.c.h.b16 %v4636
        %v4732 = vunpack.c.l.b16 %v4637
        %v4733 = vunpack.c.h.b16 %v4637
        %v4734 = vunpack.c.l.b16 %v4638
        %v4735 = vunpack.c.h.b16 %v4638
        %v4736 = vunpack.c.l.b16 %v4639
        %v4737 = vunpack.c.h.b16 %v4639
        %v4738 = vunpack.c.l.b16 %v4640
        %v4739 = vunpack.c.h.b16 %v4640
        %v4740 = vunpack.c.l.b16 %v4641
        %v4741 = vunpack.c.h.b16 %v4641
        %v4742 = vunpack.c.l.b16 %v4642
        %v4743 = vunpack.c.h.b16 %v4642
        %v4744 = vunpack.c.l.b16 %v4643
        %v4745 = vunpack.c.h.b16 %v4643
        %v4746 = vunpack.c.l.b16 %v4644
        %v4747 = vunpack.c.h.b16 %v4644
        %v4748 = vunpack.c.l.b16 %v4645
        %v4749 = vunpack.c.h.b16 %v4645
        %v4750 = vunpack.c.l.b16 %v4646
        %v4751 = vunpack.c.h.b16 %v4646
        %v4752 = vunpack.c.l.b16 %v4647
        %v4753 = vunpack.c.h.b16 %v4647
        %v4754 = vunpack.c.l.b16 %v4648
        %v4755 = vunpack.c.h.b16 %v4648
        %v4756 = vunpack.c.l.b16 %v4649
        %v4757 = vunpack.c.h.b16 %v4649
        %v4758 = vpack.c.b16 %v4696, %v4694
        %v4759 = vpack.c.b16 %v4697, %v4695
        %v4760 = vpack.c.b16 %v4700, %v4698
        %v4761 = vpack.c.b16 %v4701, %v4699
        %v4762 = vpack.c.b16 %v4704, %v4702
        %v4763 = vpack.c.b16 %v4705, %v4703
        %v4764 = vpack.c.b16 %v4708, %v4706
        %v4765 = vpack.c.b16 %v4709, %v4707
        %v4766 = vpack.c.b16 %v4712, %v4710
        %v4767 = vpack.c.b16 %v4713, %v4711
        %v4768 = vpack.c.b16 %v4716, %v4714
        %v4769 = vpack.c.b16 %v4717, %v4715
        %v4770 = vpack.c.b16 %v4720, %v4718
        %v4771 = vpack.c.b16 %v4721, %v4719
        %v4772 = vpack.c.b16 %v4724, %v4722
        %v4773 = vpack.c.b16 %v4725, %v4723
        %v4774 = vpack.c.b16 %v4728, %v4726
        %v4775 = vpack.c.b16 %v4729, %v4727
        %v4776 = vpack.c.b16 %v4732, %v4730
        %v4777 = vpack.c.b16 %v4733, %v4731
        %v4778 = vpack.c.b16 %v4736, %v4734
        %v4779 = vpack.c.b16 %v4737, %v4735
        %v4780 = vpack.c.b16 %v4740, %v4738
        %v4781 = vpack.c.b16 %v4741, %v4739
        %v4782 = vpack.c.b16 %v4744, %v4742
        %v4783 = vpack.c.b16 %v4745, %v4743
        %v4784 = vpack.c.b16 %v4748, %v4746
        %v4785 = vpack.c.b16 %v4749, %v4747
        %v4786 = vpack.c.b16 %v4752, %v4750
        %v4787 = vpack.c.b16 %v4753, %v4751
        %v4788 = vpack.c.b16 %v4756, %v4754
        %v4789 = vpack.c.b16 %v4757, %v4755
        %4822 = vmatprep.subr.bf16.mxu0 %v4759
        %4823 = vmatpush1.bf16.msra.mxu0 %v4758
        %4824 = vmatprep.subr.bf16.mxu0 %v4761
        %4825 = vmatpush1.bf16.msra.mxu0 %v4760
        %4826 = vmatprep.subr.bf16.mxu0 %v4763
        %4827 = vmatpush1.bf16.msra.mxu0 %v4762
        %4828 = vmatprep.subr.bf16.mxu0 %v4765
        %4829 = vmatpush1.bf16.msra.mxu0 %v4764
        %4830 = vmatprep.subr.bf16.mxu0 %v4767
        %4831 = vmatpush1.bf16.msra.mxu0 %v4766
        %4832 = vmatprep.subr.bf16.mxu0 %v4769
        %4833 = vmatpush1.bf16.msra.mxu0 %v4768
        %4834 = vmatprep.subr.bf16.mxu0 %v4771
        %4835 = vmatpush1.bf16.msra.mxu0 %v4770
        %4836 = vmatprep.subr.bf16.mxu0 %v4773
        %4837 = vmatpush1.bf16.msra.mxu0 %v4772
        %4838 = vmatprep.subr.bf16.mxu0 %v4775
        %4839 = vmatpush1.bf16.msra.mxu0 %v4774
        %4840 = vmatprep.subr.bf16.mxu0 %v4777
        %4841 = vmatpush1.bf16.msra.mxu0 %v4776
        %4842 = vmatprep.subr.bf16.mxu0 %v4779
        %4843 = vmatpush1.bf16.msra.mxu0 %v4778
        %4844 = vmatprep.subr.bf16.mxu0 %v4781
        %4845 = vmatpush1.bf16.msra.mxu0 %v4780
        %4846 = vmatprep.subr.bf16.mxu0 %v4783
        %4847 = vmatpush1.bf16.msra.mxu0 %v4782
        %4848 = vmatprep.subr.bf16.mxu0 %v4785
        %4849 = vmatpush1.bf16.msra.mxu0 %v4784
        %4850 = vmatprep.subr.bf16.mxu0 %v4787
        %4851 = vmatpush1.bf16.msra.mxu0 %v4786
        %4852 = vmatprep.subr.bf16.mxu0 %v4789
        %4853 = vmatpush1.bf16.msra.mxu0 %v4788
        %4854 = vmatprep.mubr.bf16.mxu0 %v4555
        %4855 = vmatmul.mubr.bf16.gmra.mrb[0].mxu0 %v4554
        %v4856 = vpop.f32.mrb[0].mxu0
        %v4857 = vadd.f32 %v4655, %v4856
        %v4858 = vpop.f32.mrb[0].mxu0
        %v4859 = vadd.f32 %v4659, %v4858
        %v4860 = vpop.f32.mrb[0].mxu0
        %v4861 = vadd.f32 %v4655, %v4860
        %v4862 = vpop.f32.mrb[0].mxu0
        %v4863 = vadd.f32 %v4659, %v4862
        %4864 = vmatprep.mubr.bf16.mxu0 %v4557
        %4865 = vmatmul.mubr.bf16.gmra.mrb[0].mxu0 %v4556
        %v4866 = vpop.f32.mrb[0].mxu0
        %v4867 = vadd.f32 %v4655, %v4866
        %v4868 = vpop.f32.mrb[0].mxu0
        %v4869 = vadd.f32 %v4659, %v4868
        %v4870 = vpop.f32.mrb[0].mxu0
        %v4871 = vadd.f32 %v4655, %v4870
        %v4872 = vpop.f32.mrb[0].mxu0
        %v4873 = vadd.f32 %v4659, %v4872
        %4874 = vmatprep.mubr.bf16.mxu0 %v4559
        %4875 = vmatmul.mubr.bf16.gmra.mrb[0].mxu0 %v4558
        %v4876 = vpop.f32.mrb[0].mxu0
        %v4877 = vadd.f32 %v4655, %v4876
        %v4878 = vpop.f32.mrb[0].mxu0
        %v4879 = vadd.f32 %v4659, %v4878
        %v4880 = vpop.f32.mrb[0].mxu0
        %v4881 = vadd.f32 %v4655, %v4880
        %v4882 = vpop.f32.mrb[0].mxu0
        %v4883 = vadd.f32 %v4659, %v4882
        %4884 = vmatprep.mubr.bf16.mxu0 %v4561
        %4885 = vmatmul.mubr.bf16.gmra.mrb[0].mxu0 %v4560
        %v4886 = vpop.f32.mrb[0].mxu0
        %v4887 = vadd.f32 %v4655, %v4886
        %v4888 = vpop.f32.mrb[0].mxu0
        %v4889 = vadd.f32 %v4659, %v4888
        %v4890 = vpop.f32.mrb[0].mxu0
        %v4891 = vadd.f32 %v4655, %v4890
        %v4892 = vpop.f32.mrb[0].mxu0
        %v4893 = vadd.f32 %v4659, %v4892
        %4894 = vmatprep.mubr.bf16.mxu0 %v4563
        %4895 = vmatmul.mubr.bf16.gmra.mrb[0].mxu0 %v4562
        %v4896 = vpop.f32.mrb[0].mxu0
        %v4897 = vadd.f32 %v4655, %v4896
        %v4898 = vpop.f32.mrb[0].mxu0
        %v4899 = vadd.f32 %v4659, %v4898
        %v4900 = vpop.f32.mrb[0].mxu0
        %v4901 = vadd.f32 %v4655, %v4900
        %v4902 = vpop.f32.mrb[0].mxu0
        %v4903 = vadd.f32 %v4659, %v4902
        %4904 = vmatprep.mubr.bf16.mxu0 %v4565
        %4905 = vmatmul.mubr.bf16.gmra.mrb[0].mxu0 %v4564
        %v4906 = vpop.f32.mrb[0].mxu0
        %v4907 = vadd.f32 %v4655, %v4906
        %v4908 = vpop.f32.mrb[0].mxu0
        %v4909 = vadd.f32 %v4659, %v4908
        %v4910 = vpop.f32.mrb[0].mxu0
        %v4911 = vadd.f32 %v4655, %v4910
        %v4912 = vpop.f32.mrb[0].mxu0
        %v4913 = vadd.f32 %v4659, %v4912
        %4914 = vmatprep.mubr.bf16.mxu0 %v4567
        %4915 = vmatmul.mubr.bf16.gmra.mrb[0].mxu0 %v4566
        %v4916 = vpop.f32.mrb[0].mxu0
        %v4917 = vadd.f32 %v4655, %v4916
        %v4918 = vpop.f32.mrb[0].mxu0
        %v4919 = vadd.f32 %v4659, %v4918
        %v4920 = vpop.f32.mrb[0].mxu0
        %v4921 = vadd.f32 %v4655, %v4920
        %v4922 = vpop.f32.mrb[0].mxu0
        %v4923 = vadd.f32 %v4659, %v4922
        %4924 = vmatprep.mubr.bf16.mxu0 %v4569
        %4925 = vmatmul.mubr.bf16.gmra.mrb[0].mxu0 %v4568
        %v4926 = vpop.f32.mrb[0].mxu0
        %v4927 = vadd.f32 %v4655, %v4926
        %v4928 = vpop.f32.mrb[0].mxu0
        %v4929 = vadd.f32 %v4659, %v4928
        %v4930 = vpop.f32.mrb[0].mxu0
        %v4931 = vadd.f32 %v4655, %v4930
        %v4932 = vpop.f32.mrb[0].mxu0
        %v4933 = vadd.f32 %v4659, %v4932
        %4934 = vmatprep.mubr.bf16.mxu0 %v4571
        %4935 = vmatmul.mubr.bf16.gmra.mrb[0].mxu0 %v4570
        %v4936 = vpop.f32.mrb[0].mxu0
        %v4937 = vadd.f32 %v4655, %v4936
        %v4938 = vpop.f32.mrb[0].mxu0
        %v4939 = vadd.f32 %v4659, %v4938
        %v4940 = vpop.f32.mrb[0].mxu0
        %v4941 = vadd.f32 %v4655, %v4940
        %v4942 = vpop.f32.mrb[0].mxu0
        %v4943 = vadd.f32 %v4659, %v4942
        %4944 = vmatprep.mubr.bf16.mxu0 %v4573
        %4945 = vmatmul.mubr.bf16.gmra.mrb[0].mxu0 %v4572
        %v4946 = vpop.f32.mrb[0].mxu0
        %v4947 = vadd.f32 %v4655, %v4946
        %v4948 = vpop.f32.mrb[0].mxu0
        %v4949 = vadd.f32 %v4659, %v4948
        %v4950 = vpop.f32.mrb[0].mxu0
        %v4951 = vadd.f32 %v4655, %v4950
        %v4952 = vpop.f32.mrb[0].mxu0
        %v4953 = vadd.f32 %v4659, %v4952
        %4954 = vmatprep.mubr.bf16.mxu0 %v4575
        %4955 = vmatmul.mubr.bf16.gmra.mrb[0].mxu0 %v4574
        %v4956 = vpop.f32.mrb[0].mxu0
        %v4957 = vadd.f32 %v4655, %v4956
        %v4958 = vpop.f32.mrb[0].mxu0
        %v4959 = vadd.f32 %v4659, %v4958
        %v4960 = vpop.f32.mrb[0].mxu0
        %v4961 = vadd.f32 %v4655, %v4960
        %v4962 = vpop.f32.mrb[0].mxu0
        %v4963 = vadd.f32 %v4659, %v4962
        %4964 = vmatprep.mubr.bf16.mxu0 %v4577
        %4965 = vmatmul.mubr.bf16.gmra.mrb[0].mxu0 %v4576
        %v4966 = vpop.f32.mrb[0].mxu0
        %v4967 = vadd.f32 %v4655, %v4966
        %v4968 = vpop.f32.mrb[0].mxu0
        %v4969 = vadd.f32 %v4659, %v4968
        %v4970 = vpop.f32.mrb[0].mxu0
        %v4971 = vadd.f32 %v4655, %v4970
        %v4972 = vpop.f32.mrb[0].mxu0
        %v4973 = vadd.f32 %v4659, %v4972
        %4974 = vmatprep.mubr.bf16.mxu0 %v4579
        %4975 = vmatmul.mubr.bf16.gmra.mrb[0].mxu0 %v4578
        %v4976 = vpop.f32.mrb[0].mxu0
        %v4977 = vadd.f32 %v4655, %v4976
        %v4978 = vpop.f32.mrb[0].mxu0
        %v4979 = vadd.f32 %v4659, %v4978
        %v4980 = vpop.f32.mrb[0].mxu0
        %v4981 = vadd.f32 %v4655, %v4980
        %v4982 = vpop.f32.mrb[0].mxu0
        %v4983 = vadd.f32 %v4659, %v4982
        %4984 = vmatprep.mubr.bf16.mxu0 %v4581
        %4985 = vmatmul.mubr.bf16.gmra.mrb[0].mxu0 %v4580
        %v4986 = vpop.f32.mrb[0].mxu0
        %v4987 = vadd.f32 %v4655, %v4986
        %v4988 = vpop.f32.mrb[0].mxu0
        %v4989 = vadd.f32 %v4659, %v4988
        %v4990 = vpop.f32.mrb[0].mxu0
        %v4991 = vadd.f32 %v4655, %v4990
        %v4992 = vpop.f32.mrb[0].mxu0
        %v4993 = vadd.f32 %v4659, %v4992
        %4994 = vmatprep.mubr.bf16.mxu0 %v4583
        %4995 = vmatmul.mubr.bf16.gmra.mrb[0].mxu0 %v4582
        %v4996 = vpop.f32.mrb[0].mxu0
        %v4997 = vadd.f32 %v4655, %v4996
        %v4998 = vpop.f32.mrb[0].mxu0
        %v4999 = vadd.f32 %v4659, %v4998
        %v5000 = vpop.f32.mrb[0].mxu0
        %v5001 = vadd.f32 %v4655, %v5000
        %v5002 = vpop.f32.mrb[0].mxu0
        %v5003 = vadd.f32 %v4659, %v5002
        %5004 = vmatprep.mubr.bf16.mxu0 %v4585
        %5005 = vmatmul.mubr.bf16.gmra.mrb[0].mxu0 %v4584
        %v5006 = vpop.f32.mrb[0].mxu0
        %v5007 = vadd.f32 %v4655, %v5006
        %v5008 = vpop.f32.mrb[0].mxu0
        %v5009 = vadd.f32 %v4659, %v5008
        %v5010 = vpop.f32.mrb[0].mxu0
        %v5011 = vadd.f32 %v4655, %v5010
        %v5012 = vpop.f32.mrb[0].mxu0
        %v5013 = vadd.f32 %v4659, %v5012
        %5014 = vmatprep.mubr.bf16.mxu0 %v4587
        %5015 = vmatmul.mubr.bf16.gmra.mrb[0].mxu0 %v4586
        %v5016 = vpop.f32.mrb[0].mxu0
        %v5017 = vadd.f32 %v4655, %v5016
        %v5018 = vpop.f32.mrb[0].mxu0
        %v5019 = vadd.f32 %v4659, %v5018
        %v5020 = vpop.f32.mrb[0].mxu0
        %v5021 = vadd.f32 %v4655, %v5020
        %v5022 = vpop.f32.mrb[0].mxu0
        %v5023 = vadd.f32 %v4659, %v5022
        %5024 = vmatprep.mubr.bf16.mxu0 %v4589
        %5025 = vmatmul.mubr.bf16.gmra.mrb[0].mxu0 %v4588
        %v5026 = vpop.f32.mrb[0].mxu0
        %v5027 = vadd.f32 %v4655, %v5026
        %v5028 = vpop.f32.mrb[0].mxu0
        %v5029 = vadd.f32 %v4659, %v5028
        %v5030 = vpop.f32.mrb[0].mxu0
        %v5031 = vadd.f32 %v4655, %v5030
        %v5032 = vpop.f32.mrb[0].mxu0
        %v5033 = vadd.f32 %v4659, %v5032
        %5034 = vmatprep.mubr.bf16.mxu0 %v4591
        %5035 = vmatmul.mubr.bf16.gmra.mrb[0].mxu0 %v4590
        %v5036 = vpop.f32.mrb[0].mxu0
        %v5037 = vadd.f32 %v4655, %v5036
        %v5038 = vpop.f32.mrb[0].mxu0
        %v5039 = vadd.f32 %v4659, %v5038
        %v5040 = vpop.f32.mrb[0].mxu0
        %v5041 = vadd.f32 %v4655, %v5040
        %v5042 = vpop.f32.mrb[0].mxu0
        %v5043 = vadd.f32 %v4659, %v5042
        %5044 = vmatprep.mubr.bf16.mxu0 %v4593
        %5045 = vmatmul.mubr.bf16.gmra.mrb[0].mxu0 %v4592
        %v5046 = vpop.f32.mrb[0].mxu0
        %v5047 = vadd.f32 %v4655, %v5046
        %v5048 = vpop.f32.mrb[0].mxu0
        %v5049 = vadd.f32 %v4659, %v5048
        %v5050 = vpop.f32.mrb[0].mxu0
        %v5051 = vadd.f32 %v4655, %v5050
        %v5052 = vpop.f32.mrb[0].mxu0
        %v5053 = vadd.f32 %v4659, %v5052
        %5054 = vmatprep.mubr.bf16.mxu0 %v4595
        %5055 = vmatmul.mubr.bf16.gmra.mrb[0].mxu0 %v4594
        %v5056 = vpop.f32.mrb[0].mxu0
        %v5057 = vadd.f32 %v4655, %v5056
        %v5058 = vpop.f32.mrb[0].mxu0
        %v5059 = vadd.f32 %v4659, %v5058
        %v5060 = vpop.f32.mrb[0].mxu0
        %v5061 = vadd.f32 %v4655, %v5060
        %v5062 = vpop.f32.mrb[0].mxu0
        %v5063 = vadd.f32 %v4659, %v5062
        %5064 = vmatprep.mubr.bf16.mxu0 %v4597
        %5065 = vmatmul.mubr.bf16.gmra.mrb[0].mxu0 %v4596
        %v5066 = vpop.f32.mrb[0].mxu0
        %v5067 = vadd.f32 %v4655, %v5066
        %v5068 = vpop.f32.mrb[0].mxu0
        %v5069 = vadd.f32 %v4659, %v5068
        %v5070 = vpop.f32.mrb[0].mxu0
        %v5071 = vadd.f32 %v4655, %v5070
        %v5072 = vpop.f32.mrb[0].mxu0
        %v5073 = vadd.f32 %v4659, %v5072
        %5074 = vmatprep.mubr.bf16.mxu0 %v4599
        %5075 = vmatmul.mubr.bf16.gmra.mrb[0].mxu0 %v4598
        %v5076 = vpop.f32.mrb[0].mxu0
        %v5077 = vadd.f32 %v4655, %v5076
        %v5078 = vpop.f32.mrb[0].mxu0
        %v5079 = vadd.f32 %v4659, %v5078
        %v5080 = vpop.f32.mrb[0].mxu0
        %v5081 = vadd.f32 %v4655, %v5080
        %v5082 = vpop.f32.mrb[0].mxu0
        %v5083 = vadd.f32 %v4659, %v5082
        %5084 = vmatprep.mubr.bf16.mxu0 %v4601
        %5085 = vmatmul.mubr.bf16.gmra.mrb[0].mxu0 %v4600
        %v5086 = vpop.f32.mrb[0].mxu0
        %v5087 = vadd.f32 %v4655, %v5086
        %v5088 = vpop.f32.mrb[0].mxu0
        %v5089 = vadd.f32 %v4659, %v5088
        %v5090 = vpop.f32.mrb[0].mxu0
        %v5091 = vadd.f32 %v4655, %v5090
        %v5092 = vpop.f32.mrb[0].mxu0
        %v5093 = vadd.f32 %v4659, %v5092
        %5094 = vmatprep.mubr.bf16.mxu0 %v4603
        %5095 = vmatmul.mubr.bf16.gmra.mrb[0].mxu0 %v4602
        %v5096 = vpop.f32.mrb[0].mxu0
        %v5097 = vadd.f32 %v4655, %v5096
        %v5098 = vpop.f32.mrb[0].mxu0
        %v5099 = vadd.f32 %v4659, %v5098
        %v5100 = vpop.f32.mrb[0].mxu0
        %v5101 = vadd.f32 %v4655, %v5100
        %v5102 = vpop.f32.mrb[0].mxu0
        %v5103 = vadd.f32 %v4659, %v5102
        %5104 = vmatprep.mubr.bf16.mxu0 %v4605
        %5105 = vmatmul.mubr.bf16.gmra.mrb[0].mxu0 %v4604
        %v5106 = vpop.f32.mrb[0].mxu0
        %v5107 = vadd.f32 %v4655, %v5106
        %v5108 = vpop.f32.mrb[0].mxu0
        %v5109 = vadd.f32 %v4659, %v5108
        %v5110 = vpop.f32.mrb[0].mxu0
        %v5111 = vadd.f32 %v4655, %v5110
        %v5112 = vpop.f32.mrb[0].mxu0
        %v5113 = vadd.f32 %v4659, %v5112
        %5114 = vmatprep.mubr.bf16.mxu0 %v4607
        %5115 = vmatmul.mubr.bf16.gmra.mrb[0].mxu0 %v4606
        %v5116 = vpop.f32.mrb[0].mxu0
        %v5117 = vadd.f32 %v4655, %v5116
        %v5118 = vpop.f32.mrb[0].mxu0
        %v5119 = vadd.f32 %v4659, %v5118
        %v5120 = vpop.f32.mrb[0].mxu0
        %v5121 = vadd.f32 %v4655, %v5120
        %v5122 = vpop.f32.mrb[0].mxu0
        %v5123 = vadd.f32 %v4659, %v5122
        %5124 = vmatprep.mubr.bf16.mxu0 %v4609
        %5125 = vmatmul.mubr.bf16.gmra.mrb[0].mxu0 %v4608
        %v5126 = vpop.f32.mrb[0].mxu0
        %v5127 = vadd.f32 %v4655, %v5126
        %v5128 = vpop.f32.mrb[0].mxu0
        %v5129 = vadd.f32 %v4659, %v5128
        %v5130 = vpop.f32.mrb[0].mxu0
        %v5131 = vadd.f32 %v4655, %v5130
        %v5132 = vpop.f32.mrb[0].mxu0
        %v5133 = vadd.f32 %v4659, %v5132
        %5134 = vmatprep.mubr.bf16.mxu0 %v4611
        %5135 = vmatmul.mubr.bf16.gmra.mrb[0].mxu0 %v4610
        %v5136 = vpop.f32.mrb[0].mxu0
        %v5137 = vadd.f32 %v4655, %v5136
        %v5138 = vpop.f32.mrb[0].mxu0
        %v5139 = vadd.f32 %v4659, %v5138
        %v5140 = vpop.f32.mrb[0].mxu0
        %v5141 = vadd.f32 %v4655, %v5140
        %v5142 = vpop.f32.mrb[0].mxu0
        %v5143 = vadd.f32 %v4659, %v5142
        %5144 = vmatprep.mubr.bf16.mxu0 %v4613
        %5145 = vmatmul.mubr.bf16.gmra.mrb[0].mxu0 %v4612
        %v5146 = vpop.f32.mrb[0].mxu0
        %v5147 = vadd.f32 %v4655, %v5146
        %v5148 = vpop.f32.mrb[0].mxu0
        %v5149 = vadd.f32 %v4659, %v5148
        %v5150 = vpop.f32.mrb[0].mxu0
        %v5151 = vadd.f32 %v4655, %v5150
        %v5152 = vpop.f32.mrb[0].mxu0
        %v5153 = vadd.f32 %v4659, %v5152
        %5154 = vmatprep.mubr.bf16.mxu0 %v4615
        %5155 = vmatmul.mubr.bf16.gmra.mrb[0].mxu0 %v4614
        %v5156 = vpop.f32.mrb[0].mxu0
        %v5157 = vadd.f32 %v4655, %v5156
        %v5158 = vpop.f32.mrb[0].mxu0
        %v5159 = vadd.f32 %v4659, %v5158
        %v5160 = vpop.f32.mrb[0].mxu0
        %v5161 = vadd.f32 %v4655, %v5160
        %v5162 = vpop.f32.mrb[0].mxu0
        %v5163 = vadd.f32 %v4659, %v5162
        %5164 = vmatprep.mubr.bf16.mxu0 %v4617
        %5165 = vmatmul.mubr.bf16.gmra.mrb[0].mxu0 %v4616
        %v5166 = vpop.f32.mrb[0].mxu0
        %v5167 = vadd.f32 %v4655, %v5166
        %v5168 = vpop.f32.mrb[0].mxu0
        %v5169 = vadd.f32 %v4659, %v5168
        %v5170 = vpop.f32.mrb[0].mxu0
        %v5171 = vadd.f32 %v4655, %v5170
        %v5172 = vpop.f32.mrb[0].mxu0
        %v5173 = vadd.f32 %v4659, %v5172
        %5174 = vdwg.mxu0
        %5175 = vmax.xlane.f32.xlu0 %v4857
        %v5176 = vpop.xlane.xlu0 %5175
        %5177 = vmax.xlane.f32.xlu0 %v4861
        %v5178 = vpop.xlane.xlu0 %5177
        %5179 = vmax.xlane.f32.xlu0 %v4867
        %v5180 = vpop.xlane.xlu0 %5179
        %5181 = vmax.xlane.f32.xlu0 %v4871
        %v5182 = vpop.xlane.xlu0 %5181
        %5183 = vmax.xlane.f32.xlu0 %v4877
        %v5184 = vpop.xlane.xlu0 %5183
        %5185 = vmax.xlane.f32.xlu0 %v4881
        %v5186 = vpop.xlane.xlu0 %5185
        %5187 = vmax.xlane.f32.xlu0 %v4887
        %v5188 = vpop.xlane.xlu0 %5187
        %5189 = vmax.xlane.f32.xlu0 %v4891
        %v5190 = vpop.xlane.xlu0 %5189
        %5191 = vmax.xlane.f32.xlu0 %v4897
        %v5192 = vpop.xlane.xlu0 %5191
        %5193 = vmax.xlane.f32.xlu0 %v4901
        %v5194 = vpop.xlane.xlu0 %5193
        %5195 = vmax.xlane.f32.xlu0 %v4907
        %v5196 = vpop.xlane.xlu0 %5195
        %5197 = vmax.xlane.f32.xlu0 %v4911
        %v5198 = vpop.xlane.xlu0 %5197
        %5199 = vmax.xlane.f32.xlu0 %v4917
        %v5200 = vpop.xlane.xlu0 %5199
        %5201 = vmax.xlane.f32.xlu0 %v4921
        %v5202 = vpop.xlane.xlu0 %5201
        %5203 = vmax.xlane.f32.xlu0 %v4927
        %v5204 = vpop.xlane.xlu0 %5203
        %5205 = vmax.xlane.f32.xlu0 %v4931
        %v5206 = vpop.xlane.xlu0 %5205
        %5207 = vmax.xlane.f32.xlu0 %v4937
        %v5208 = vpop.xlane.xlu0 %5207
        %5209 = vmax.xlane.f32.xlu0 %v4941
        %v5210 = vpop.xlane.xlu0 %5209
        %5211 = vmax.xlane.f32.xlu0 %v4947
        %v5212 = vpop.xlane.xlu0 %5211
        %5213 = vmax.xlane.f32.xlu0 %v4951
        %v5214 = vpop.xlane.xlu0 %5213
        %5215 = vmax.xlane.f32.xlu0 %v4957
        %v5216 = vpop.xlane.xlu0 %5215
        %5217 = vmax.xlane.f32.xlu0 %v4961
        %v5218 = vpop.xlane.xlu0 %5217
        %5219 = vmax.xlane.f32.xlu0 %v4967
        %v5220 = vpop.xlane.xlu0 %5219
        %5221 = vmax.xlane.f32.xlu0 %v4971
        %v5222 = vpop.xlane.xlu0 %5221
        %5223 = vmax.xlane.f32.xlu0 %v4977
        %v5224 = vpop.xlane.xlu0 %5223
        %5225 = vmax.xlane.f32.xlu0 %v4981
        %v5226 = vpop.xlane.xlu0 %5225
        %5227 = vmax.xlane.f32.xlu0 %v4987
        %v5228 = vpop.xlane.xlu0 %5227
        %5229 = vmax.xlane.f32.xlu0 %v4991
        %v5230 = vpop.xlane.xlu0 %5229
        %5231 = vmax.xlane.f32.xlu0 %v4997
        %v5232 = vpop.xlane.xlu0 %5231
        %5233 = vmax.xlane.f32.xlu0 %v5001
        %v5234 = vpop.xlane.xlu0 %5233
        %5235 = vmax.xlane.f32.xlu0 %v5007
        %v5236 = vpop.xlane.xlu0 %5235
        %5237 = vmax.xlane.f32.xlu0 %v5011
        %v5238 = vpop.xlane.xlu0 %5237
        %5239 = vmax.xlane.f32.xlu0 %v5017
        %v5240 = vpop.xlane.xlu0 %5239
        %5241 = vmax.xlane.f32.xlu0 %v5021
        %v5242 = vpop.xlane.xlu0 %5241
        %5243 = vmax.xlane.f32.xlu0 %v5027
        %v5244 = vpop.xlane.xlu0 %5243
        %5245 = vmax.xlane.f32.xlu0 %v5031
        %v5246 = vpop.xlane.xlu0 %5245
        %5247 = vmax.xlane.f32.xlu0 %v5037
        %v5248 = vpop.xlane.xlu0 %5247
        %5249 = vmax.xlane.f32.xlu0 %v5041
        %v5250 = vpop.xlane.xlu0 %5249
        %5251 = vmax.xlane.f32.xlu0 %v5047
        %v5252 = vpop.xlane.xlu0 %5251
        %5253 = vmax.xlane.f32.xlu0 %v5051
        %v5254 = vpop.xlane.xlu0 %5253
        %5255 = vmax.xlane.f32.xlu0 %v5057
        %v5256 = vpop.xlane.xlu0 %5255
        %5257 = vmax.xlane.f32.xlu0 %v5061
        %v5258 = vpop.xlane.xlu0 %5257
        %5259 = vmax.xlane.f32.xlu0 %v5067
        %v5260 = vpop.xlane.xlu0 %5259
        %5261 = vmax.xlane.f32.xlu0 %v5071
        %v5262 = vpop.xlane.xlu0 %5261
        %5263 = vmax.xlane.f32.xlu0 %v5077
        %v5264 = vpop.xlane.xlu0 %5263
        %5265 = vmax.xlane.f32.xlu0 %v5081
        %v5266 = vpop.xlane.xlu0 %5265
        %5267 = vmax.xlane.f32.xlu0 %v5087
        %v5268 = vpop.xlane.xlu0 %5267
        %5269 = vmax.xlane.f32.xlu0 %v5091
        %v5270 = vpop.xlane.xlu0 %5269
        %5271 = vmax.xlane.f32.xlu0 %v5097
        %v5272 = vpop.xlane.xlu0 %5271
        %5273 = vmax.xlane.f32.xlu0 %v5101
        %v5274 = vpop.xlane.xlu0 %5273
        %5275 = vmax.xlane.f32.xlu0 %v5107
        %v5276 = vpop.xlane.xlu0 %5275
        %5277 = vmax.xlane.f32.xlu0 %v5111
        %v5278 = vpop.xlane.xlu0 %5277
        %5279 = vmax.xlane.f32.xlu0 %v5117
        %v5280 = vpop.xlane.xlu0 %5279
        %5281 = vmax.xlane.f32.xlu0 %v5121
        %v5282 = vpop.xlane.xlu0 %5281
        %5283 = vmax.xlane.f32.xlu0 %v5127
        %v5284 = vpop.xlane.xlu0 %5283
        %5285 = vmax.xlane.f32.xlu0 %v5131
        %v5286 = vpop.xlane.xlu0 %5285
        %5287 = vmax.xlane.f32.xlu0 %v5137
        %v5288 = vpop.xlane.xlu0 %5287
        %5289 = vmax.xlane.f32.xlu0 %v5141
        %v5290 = vpop.xlane.xlu0 %5289
        %5291 = vmax.xlane.f32.xlu0 %v5147
        %v5292 = vpop.xlane.xlu0 %5291
        %5293 = vmax.xlane.f32.xlu0 %v5151
        %v5294 = vpop.xlane.xlu0 %5293
        %5295 = vmax.xlane.f32.xlu0 %v5157
        %v5296 = vpop.xlane.xlu0 %5295
        %5297 = vmax.xlane.f32.xlu0 %v5161
        %v5298 = vpop.xlane.xlu0 %5297
        %5299 = vmax.xlane.f32.xlu0 %v5167
        %v5300 = vpop.xlane.xlu0 %5299
        %5301 = vmax.xlane.f32.xlu0 %v5171
        %v5302 = vpop.xlane.xlu0 %5301
        %v5303 = vsub.f32 %v4857, %v5176
        %v5304 = vsub.f32 %v4861, %v5178
        %v5305 = vsub.f32 %v4867, %v5180
        %v5306 = vsub.f32 %v4871, %v5182
        %v5307 = vsub.f32 %v4877, %v5184
        %v5308 = vsub.f32 %v4881, %v5186
        %v5309 = vsub.f32 %v4887, %v5188
        %v5310 = vsub.f32 %v4891, %v5190
        %v5311 = vsub.f32 %v4897, %v5192
        %v5312 = vsub.f32 %v4901, %v5194
        %v5313 = vsub.f32 %v4907, %v5196
        %v5314 = vsub.f32 %v4911, %v5198
        %v5315 = vsub.f32 %v4917, %v5200
        %v5316 = vsub.f32 %v4921, %v5202
        %v5317 = vsub.f32 %v4927, %v5204
        %v5318 = vsub.f32 %v4931, %v5206
        %v5319 = vsub.f32 %v4937, %v5208
        %v5320 = vsub.f32 %v4941, %v5210
        %v5321 = vsub.f32 %v4947, %v5212
        %v5322 = vsub.f32 %v4951, %v5214
        %v5323 = vsub.f32 %v4957, %v5216
        %v5324 = vsub.f32 %v4961, %v5218
        %v5325 = vsub.f32 %v4967, %v5220
        %v5326 = vsub.f32 %v4971, %v5222
        %v5327 = vsub.f32 %v4977, %v5224
        %v5328 = vsub.f32 %v4981, %v5226
        %v5329 = vsub.f32 %v4987, %v5228
        %v5330 = vsub.f32 %v4991, %v5230
        %v5331 = vsub.f32 %v4997, %v5232
        %v5332 = vsub.f32 %v5001, %v5234
        %v5333 = vsub.f32 %v5007, %v5236
        %v5334 = vsub.f32 %v5011, %v5238
        %v5335 = vsub.f32 %v5017, %v5240
        %v5336 = vsub.f32 %v5021, %v5242
        %v5337 = vsub.f32 %v5027, %v5244
        %v5338 = vsub.f32 %v5031, %v5246
        %v5339 = vsub.f32 %v5037, %v5248
        %v5340 = vsub.f32 %v5041, %v5250
        %v5341 = vsub.f32 %v5047, %v5252
        %v5342 = vsub.f32 %v5051, %v5254
        %v5343 = vsub.f32 %v5057, %v5256
        %v5344 = vsub.f32 %v5061, %v5258
        %v5345 = vsub.f32 %v5067, %v5260
        %v5346 = vsub.f32 %v5071, %v5262
        %v5347 = vsub.f32 %v5077, %v5264
        %v5348 = vsub.f32 %v5081, %v5266
        %v5349 = vsub.f32 %v5087, %v5268
        %v5350 = vsub.f32 %v5091, %v5270
        %v5351 = vsub.f32 %v5097, %v5272
        %v5352 = vsub.f32 %v5101, %v5274
        %v5353 = vsub.f32 %v5107, %v5276
        %v5354 = vsub.f32 %v5111, %v5278
        %v5355 = vsub.f32 %v5117, %v5280
        %v5356 = vsub.f32 %v5121, %v5282
        %v5357 = vsub.f32 %v5127, %v5284
        %v5358 = vsub.f32 %v5131, %v5286
        %v5359 = vsub.f32 %v5137, %v5288
        %v5360 = vsub.f32 %v5141, %v5290
        %v5361 = vsub.f32 %v5147, %v5292
        %v5362 = vsub.f32 %v5151, %v5294
        %v5363 = vsub.f32 %v5157, %v5296
        %v5364 = vsub.f32 %v5161, %v5298
        %v5365 = vsub.f32 %v5167, %v5300
        %v5366 = vsub.f32 %v5171, %v5302
        %v5367 = vmul.f32 %v5303, 1.442695
        %v5368 = vpow.pop %v5367
        %v5369 = vmul.f32 %v5304, 1.442695
        %v5370 = vpow.pop %v5369
        %v5371 = vmul.f32 %v5305, 1.442695
        %v5372 = vpow.pop %v5371
        %v5373 = vmul.f32 %v5306, 1.442695
        %v5374 = vpow.pop %v5373
        %v5375 = vmul.f32 %v5307, 1.442695
        %v5376 = vpow.pop %v5375
        %v5377 = vmul.f32 %v5308, 1.442695
        %v5378 = vpow.pop %v5377
        %v5379 = vmul.f32 %v5309, 1.442695
        %v5380 = vpow.pop %v5379
        %v5381 = vmul.f32 %v5310, 1.442695
        %v5382 = vpow.pop %v5381
        %v5383 = vmul.f32 %v5311, 1.442695
        %v5384 = vpow.pop %v5383
        %v5385 = vmul.f32 %v5312, 1.442695
        %v5386 = vpow.pop %v5385
        %v5387 = vmul.f32 %v5313, 1.442695
        %v5388 = vpow.pop %v5387
        %v5389 = vmul.f32 %v5314, 1.442695
        %v5390 = vpow.pop %v5389
        %v5391 = vmul.f32 %v5315, 1.442695
        %v5392 = vpow.pop %v5391
        %v5393 = vmul.f32 %v5316, 1.442695
        %v5394 = vpow.pop %v5393
        %v5395 = vmul.f32 %v5317, 1.442695
        %v5396 = vpow.pop %v5395
        %v5397 = vmul.f32 %v5318, 1.442695
        %v5398 = vpow.pop %v5397
        %v5399 = vmul.f32 %v5319, 1.442695
        %v5400 = vpow.pop %v5399
        %v5401 = vmul.f32 %v5320, 1.442695
        %v5402 = vpow.pop %v5401
        %v5403 = vmul.f32 %v5321, 1.442695
        %v5404 = vpow.pop %v5403
        %v5405 = vmul.f32 %v5322, 1.442695
        %v5406 = vpow.pop %v5405
        %v5407 = vmul.f32 %v5323, 1.442695
        %v5408 = vpow.pop %v5407
        %v5409 = vmul.f32 %v5324, 1.442695
        %v5410 = vpow.pop %v5409
        %v5411 = vmul.f32 %v5325, 1.442695
        %v5412 = vpow.pop %v5411
        %v5413 = vmul.f32 %v5326, 1.442695
        %v5414 = vpow.pop %v5413
        %v5415 = vmul.f32 %v5327, 1.442695
        %v5416 = vpow.pop %v5415
        %v5417 = vmul.f32 %v5328, 1.442695
        %v5418 = vpow.pop %v5417
        %v5419 = vmul.f32 %v5329, 1.442695
        %v5420 = vpow.pop %v5419
        %v5421 = vmul.f32 %v5330, 1.442695
        %v5422 = vpow.pop %v5421
        %v5423 = vmul.f32 %v5331, 1.442695
        %v5424 = vpow.pop %v5423
        %v5425 = vmul.f32 %v5332, 1.442695
        %v5426 = vpow.pop %v5425
        %v5427 = vmul.f32 %v5333, 1.442695
        %v5428 = vpow.pop %v5427
        %v5429 = vmul.f32 %v5334, 1.442695
        %v5430 = vpow.pop %v5429
        %v5431 = vmul.f32 %v5335, 1.442695
        %v5432 = vpow.pop %v5431
        %v5433 = vmul.f32 %v5336, 1.442695
        %v5434 = vpow.pop %v5433
        %v5435 = vmul.f32 %v5337, 1.442695
        %v5436 = vpow.pop %v5435
        %v5437 = vmul.f32 %v5338, 1.442695
        %v5438 = vpow.pop %v5437
        %v5439 = vmul.f32 %v5339, 1.442695
        %v5440 = vpow.pop %v5439
        %v5441 = vmul.f32 %v5340, 1.442695
        %v5442 = vpow.pop %v5441
        %v5443 = vmul.f32 %v5341, 1.442695
        %v5444 = vpow.pop %v5443
        %v5445 = vmul.f32 %v5342, 1.442695
        %v5446 = vpow.pop %v5445
        %v5447 = vmul.f32 %v5343, 1.442695
        %v5448 = vpow.pop %v5447
        %v5449 = vmul.f32 %v5344, 1.442695
        %v5450 = vpow.pop %v5449
        %v5451 = vmul.f32 %v5345, 1.442695
        %v5452 = vpow.pop %v5451
        %v5453 = vmul.f32 %v5346, 1.442695
        %v5454 = vpow.pop %v5453
        %v5455 = vmul.f32 %v5347, 1.442695
        %v5456 = vpow.pop %v5455
        %v5457 = vmul.f32 %v5348, 1.442695
        %v5458 = vpow.pop %v5457
        %v5459 = vmul.f32 %v5349, 1.442695
        %v5460 = vpow.pop %v5459
        %v5461 = vmul.f32 %v5350, 1.442695
        %v5462 = vpow.pop %v5461
        %v5463 = vmul.f32 %v5351, 1.442695
        %v5464 = vpow.pop %v5463
        %v5465 = vmul.f32 %v5352, 1.442695
        %v5466 = vpow.pop %v5465
        %v5467 = vmul.f32 %v5353, 1.442695
        %v5468 = vpow.pop %v5467
        %v5469 = vmul.f32 %v5354, 1.442695
        %v5470 = vpow.pop %v5469
        %v5471 = vmul.f32 %v5355, 1.442695
        %v5472 = vpow.pop %v5471
        %v5473 = vmul.f32 %v5356, 1.442695
        %v5474 = vpow.pop %v5473
        %v5475 = vmul.f32 %v5357, 1.442695
        %v5476 = vpow.pop %v5475
        %v5477 = vmul.f32 %v5358, 1.442695
        %v5478 = vpow.pop %v5477
        %v5479 = vmul.f32 %v5359, 1.442695
        %v5480 = vpow.pop %v5479
        %v5481 = vmul.f32 %v5360, 1.442695
        %v5482 = vpow.pop %v5481
        %v5483 = vmul.f32 %v5361, 1.442695
        %v5484 = vpow.pop %v5483
        %v5485 = vmul.f32 %v5362, 1.442695
        %v5486 = vpow.pop %v5485
        %v5487 = vmul.f32 %v5363, 1.442695
        %v5488 = vpow.pop %v5487
        %v5489 = vmul.f32 %v5364, 1.442695
        %v5490 = vpow.pop %v5489
        %v5491 = vmul.f32 %v5365, 1.442695
        %v5492 = vpow.pop %v5491
        %v5493 = vmul.f32 %v5366, 1.442695
        %v5494 = vpow.pop %v5493
        %5495 = vadd.xlane.f32.xlu0 %v5368
        %v5496 = vpop.xlane.xlu0 %5495
        %5497 = vadd.xlane.f32.xlu0 %v5370
        %v5498 = vpop.xlane.xlu0 %5497
        %5499 = vadd.xlane.f32.xlu0 %v5372
        %v5500 = vpop.xlane.xlu0 %5499
        %5501 = vadd.xlane.f32.xlu0 %v5374
        %v5502 = vpop.xlane.xlu0 %5501
        %5503 = vadd.xlane.f32.xlu0 %v5376
        %v5504 = vpop.xlane.xlu0 %5503
        %5505 = vadd.xlane.f32.xlu0 %v5378
        %v5506 = vpop.xlane.xlu0 %5505
        %5507 = vadd.xlane.f32.xlu0 %v5380
        %v5508 = vpop.xlane.xlu0 %5507
        %5509 = vadd.xlane.f32.xlu0 %v5382
        %v5510 = vpop.xlane.xlu0 %5509
        %5511 = vadd.xlane.f32.xlu0 %v5384
        %v5512 = vpop.xlane.xlu0 %5511
        %5513 = vadd.xlane.f32.xlu0 %v5386
        %v5514 = vpop.xlane.xlu0 %5513
        %5515 = vadd.xlane.f32.xlu0 %v5388
        %v5516 = vpop.xlane.xlu0 %5515
        %5517 = vadd.xlane.f32.xlu0 %v5390
        %v5518 = vpop.xlane.xlu0 %5517
        %5519 = vadd.xlane.f32.xlu0 %v5392
        %v5520 = vpop.xlane.xlu0 %5519
        %5521 = vadd.xlane.f32.xlu0 %v5394
        %v5522 = vpop.xlane.xlu0 %5521
        %5523 = vadd.xlane.f32.xlu0 %v5396
        %v5524 = vpop.xlane.xlu0 %5523
        %5525 = vadd.xlane.f32.xlu0 %v5398
        %v5526 = vpop.xlane.xlu0 %5525
        %5527 = vadd.xlane.f32.xlu0 %v5400
        %v5528 = vpop.xlane.xlu0 %5527
        %5529 = vadd.xlane.f32.xlu0 %v5402
        %v5530 = vpop.xlane.xlu0 %5529
        %5531 = vadd.xlane.f32.xlu0 %v5404
        %v5532 = vpop.xlane.xlu0 %5531
        %5533 = vadd.xlane.f32.xlu0 %v5406
        %v5534 = vpop.xlane.xlu0 %5533
        %5535 = vadd.xlane.f32.xlu0 %v5408
        %v5536 = vpop.xlane.xlu0 %5535
        %5537 = vadd.xlane.f32.xlu0 %v5410
        %v5538 = vpop.xlane.xlu0 %5537
        %5539 = vadd.xlane.f32.xlu0 %v5412
        %v5540 = vpop.xlane.xlu0 %5539
        %5541 = vadd.xlane.f32.xlu0 %v5414
        %v5542 = vpop.xlane.xlu0 %5541
        %5543 = vadd.xlane.f32.xlu0 %v5416
        %v5544 = vpop.xlane.xlu0 %5543
        %5545 = vadd.xlane.f32.xlu0 %v5418
        %v5546 = vpop.xlane.xlu0 %5545
        %5547 = vadd.xlane.f32.xlu0 %v5420
        %v5548 = vpop.xlane.xlu0 %5547
        %5549 = vadd.xlane.f32.xlu0 %v5422
        %v5550 = vpop.xlane.xlu0 %5549
        %5551 = vadd.xlane.f32.xlu0 %v5424
        %v5552 = vpop.xlane.xlu0 %5551
        %5553 = vadd.xlane.f32.xlu0 %v5426
        %v5554 = vpop.xlane.xlu0 %5553
        %5555 = vadd.xlane.f32.xlu0 %v5428
        %v5556 = vpop.xlane.xlu0 %5555
        %5557 = vadd.xlane.f32.xlu0 %v5430
        %v5558 = vpop.xlane.xlu0 %5557
        %5559 = vadd.xlane.f32.xlu0 %v5432
        %v5560 = vpop.xlane.xlu0 %5559
        %5561 = vadd.xlane.f32.xlu0 %v5434
        %v5562 = vpop.xlane.xlu0 %5561
        %5563 = vadd.xlane.f32.xlu0 %v5436
        %v5564 = vpop.xlane.xlu0 %5563
        %5565 = vadd.xlane.f32.xlu0 %v5438
        %v5566 = vpop.xlane.xlu0 %5565
        %5567 = vadd.xlane.f32.xlu0 %v5440
        %v5568 = vpop.xlane.xlu0 %5567
        %5569 = vadd.xlane.f32.xlu0 %v5442
        %v5570 = vpop.xlane.xlu0 %5569
        %5571 = vadd.xlane.f32.xlu0 %v5444
        %v5572 = vpop.xlane.xlu0 %5571
        %5573 = vadd.xlane.f32.xlu0 %v5446
        %v5574 = vpop.xlane.xlu0 %5573
        %5575 = vadd.xlane.f32.xlu0 %v5448
        %v5576 = vpop.xlane.xlu0 %5575
        %5577 = vadd.xlane.f32.xlu0 %v5450
        %v5578 = vpop.xlane.xlu0 %5577
        %5579 = vadd.xlane.f32.xlu0 %v5452
        %v5580 = vpop.xlane.xlu0 %5579
        %5581 = vadd.xlane.f32.xlu0 %v5454
        %v5582 = vpop.xlane.xlu0 %5581
        %5583 = vadd.xlane.f32.xlu0 %v5456
        %v5584 = vpop.xlane.xlu0 %5583
        %5585 = vadd.xlane.f32.xlu0 %v5458
        %v5586 = vpop.xlane.xlu0 %5585
        %5587 = vadd.xlane.f32.xlu0 %v5460
        %v5588 = vpop.xlane.xlu0 %5587
        %5589 = vadd.xlane.f32.xlu0 %v5462
        %v5590 = vpop.xlane.xlu0 %5589
        %5591 = vadd.xlane.f32.xlu0 %v5464
        %v5592 = vpop.xlane.xlu0 %5591
        %5593 = vadd.xlane.f32.xlu0 %v5466
        %v5594 = vpop.xlane.xlu0 %5593
        %5595 = vadd.xlane.f32.xlu0 %v5468
        %v5596 = vpop.xlane.xlu0 %5595
        %5597 = vadd.xlane.f32.xlu0 %v5470
        %v5598 = vpop.xlane.xlu0 %5597
        %5599 = vadd.xlane.f32.xlu0 %v5472
        %v5600 = vpop.xlane.xlu0 %5599
        %5601 = vadd.xlane.f32.xlu0 %v5474
        %v5602 = vpop.xlane.xlu0 %5601
        %5603 = vadd.xlane.f32.xlu0 %v5476
        %v5604 = vpop.xlane.xlu0 %5603
        %5605 = vadd.xlane.f32.xlu0 %v5478
        %v5606 = vpop.xlane.xlu0 %5605
        %5607 = vadd.xlane.f32.xlu0 %v5480
        %v5608 = vpop.xlane.xlu0 %5607
        %5609 = vadd.xlane.f32.xlu0 %v5482
        %v5610 = vpop.xlane.xlu0 %5609
        %5611 = vadd.xlane.f32.xlu0 %v5484
        %v5612 = vpop.xlane.xlu0 %5611
        %5613 = vadd.xlane.f32.xlu0 %v5486
        %v5614 = vpop.xlane.xlu0 %5613
        %5615 = vadd.xlane.f32.xlu0 %v5488
        %v5616 = vpop.xlane.xlu0 %5615
        %5617 = vadd.xlane.f32.xlu0 %v5490
        %v5618 = vpop.xlane.xlu0 %5617
        %5619 = vadd.xlane.f32.xlu0 %v5492
        %v5620 = vpop.xlane.xlu0 %5619
        %5621 = vadd.xlane.f32.xlu0 %v5494
        %v5622 = vpop.xlane.xlu0 %5621
        %v5623 = vlog2.pop %v5496
        %v5624 = vmul.f32 %v5623, 0.6931472
        %v5625 = vlog2.pop %v5498
        %v5626 = vmul.f32 %v5625, 0.6931472
        %v5627 = vlog2.pop %v5500
        %v5628 = vmul.f32 %v5627, 0.6931472
        %v5629 = vlog2.pop %v5502
        %v5630 = vmul.f32 %v5629, 0.6931472
        %v5631 = vlog2.pop %v5504
        %v5632 = vmul.f32 %v5631, 0.6931472
        %v5633 = vlog2.pop %v5506
        %v5634 = vmul.f32 %v5633, 0.6931472
        %v5635 = vlog2.pop %v5508
        %v5636 = vmul.f32 %v5635, 0.6931472
        %v5637 = vlog2.pop %v5510
        %v5638 = vmul.f32 %v5637, 0.6931472
        %v5639 = vlog2.pop %v5512
        %v5640 = vmul.f32 %v5639, 0.6931472
        %v5641 = vlog2.pop %v5514
        %v5642 = vmul.f32 %v5641, 0.6931472
        %v5643 = vlog2.pop %v5516
        %v5644 = vmul.f32 %v5643, 0.6931472
        %v5645 = vlog2.pop %v5518
        %v5646 = vmul.f32 %v5645, 0.6931472
        %v5647 = vlog2.pop %v5520
        %v5648 = vmul.f32 %v5647, 0.6931472
        %v5649 = vlog2.pop %v5522
        %v5650 = vmul.f32 %v5649, 0.6931472
        %v5651 = vlog2.pop %v5524
        %v5652 = vmul.f32 %v5651, 0.6931472
        %v5653 = vlog2.pop %v5526
        %v5654 = vmul.f32 %v5653, 0.6931472
        %v5655 = vlog2.pop %v5528
        %v5656 = vmul.f32 %v5655, 0.6931472
        %v5657 = vlog2.pop %v5530
        %v5658 = vmul.f32 %v5657, 0.6931472
        %v5659 = vlog2.pop %v5532
        %v5660 = vmul.f32 %v5659, 0.6931472
        %v5661 = vlog2.pop %v5534
        %v5662 = vmul.f32 %v5661, 0.6931472
        %v5663 = vlog2.pop %v5536
        %v5664 = vmul.f32 %v5663, 0.6931472
        %v5665 = vlog2.pop %v5538
        %v5666 = vmul.f32 %v5665, 0.6931472
        %v5667 = vlog2.pop %v5540
        %v5668 = vmul.f32 %v5667, 0.6931472
        %v5669 = vlog2.pop %v5542
        %v5670 = vmul.f32 %v5669, 0.6931472
        %v5671 = vlog2.pop %v5544
        %v5672 = vmul.f32 %v5671, 0.6931472
        %v5673 = vlog2.pop %v5546
        %v5674 = vmul.f32 %v5673, 0.6931472
        %v5675 = vlog2.pop %v5548
        %v5676 = vmul.f32 %v5675, 0.6931472
        %v5677 = vlog2.pop %v5550
        %v5678 = vmul.f32 %v5677, 0.6931472
        %v5679 = vlog2.pop %v5552
        %v5680 = vmul.f32 %v5679, 0.6931472
        %v5681 = vlog2.pop %v5554
        %v5682 = vmul.f32 %v5681, 0.6931472
        %v5683 = vlog2.pop %v5556
        %v5684 = vmul.f32 %v5683, 0.6931472
        %v5685 = vlog2.pop %v5558
        %v5686 = vmul.f32 %v5685, 0.6931472
        %v5687 = vlog2.pop %v5560
        %v5688 = vmul.f32 %v5687, 0.6931472
        %v5689 = vlog2.pop %v5562
        %v5690 = vmul.f32 %v5689, 0.6931472
        %v5691 = vlog2.pop %v5564
        %v5692 = vmul.f32 %v5691, 0.6931472
        %v5693 = vlog2.pop %v5566
        %v5694 = vmul.f32 %v5693, 0.6931472
        %v5695 = vlog2.pop %v5568
        %v5696 = vmul.f32 %v5695, 0.6931472
        %v5697 = vlog2.pop %v5570
        %v5698 = vmul.f32 %v5697, 0.6931472
        %v5699 = vlog2.pop %v5572
        %v5700 = vmul.f32 %v5699, 0.6931472
        %v5701 = vlog2.pop %v5574
        %v5702 = vmul.f32 %v5701, 0.6931472
        %v5703 = vlog2.pop %v5576
        %v5704 = vmul.f32 %v5703, 0.6931472
        %v5705 = vlog2.pop %v5578
        %v5706 = vmul.f32 %v5705, 0.6931472
        %v5707 = vlog2.pop %v5580
        %v5708 = vmul.f32 %v5707, 0.6931472
        %v5709 = vlog2.pop %v5582
        %v5710 = vmul.f32 %v5709, 0.6931472
        %v5711 = vlog2.pop %v5584
        %v5712 = vmul.f32 %v5711, 0.6931472
        %v5713 = vlog2.pop %v5586
        %v5714 = vmul.f32 %v5713, 0.6931472
        %v5715 = vlog2.pop %v5588
        %v5716 = vmul.f32 %v5715, 0.6931472
        %v5717 = vlog2.pop %v5590
        %v5718 = vmul.f32 %v5717, 0.6931472
        %v5719 = vlog2.pop %v5592
        %v5720 = vmul.f32 %v5719, 0.6931472
        %v5721 = vlog2.pop %v5594
        %v5722 = vmul.f32 %v5721, 0.6931472
        %v5723 = vlog2.pop %v5596
        %v5724 = vmul.f32 %v5723, 0.6931472
        %v5725 = vlog2.pop %v5598
        %v5726 = vmul.f32 %v5725, 0.6931472
        %v5727 = vlog2.pop %v5600
        %v5728 = vmul.f32 %v5727, 0.6931472
        %v5729 = vlog2.pop %v5602
        %v5730 = vmul.f32 %v5729, 0.6931472
        %v5731 = vlog2.pop %v5604
        %v5732 = vmul.f32 %v5731, 0.6931472
        %v5733 = vlog2.pop %v5606
        %v5734 = vmul.f32 %v5733, 0.6931472
        %v5735 = vlog2.pop %v5608
        %v5736 = vmul.f32 %v5735, 0.6931472
        %v5737 = vlog2.pop %v5610
        %v5738 = vmul.f32 %v5737, 0.6931472
        %v5739 = vlog2.pop %v5612
        %v5740 = vmul.f32 %v5739, 0.6931472
        %v5741 = vlog2.pop %v5614
        %v5742 = vmul.f32 %v5741, 0.6931472
        %v5743 = vlog2.pop %v5616
        %v5744 = vmul.f32 %v5743, 0.6931472
        %v5745 = vlog2.pop %v5618
        %v5746 = vmul.f32 %v5745, 0.6931472
        %v5747 = vlog2.pop %v5620
        %v5748 = vmul.f32 %v5747, 0.6931472
        %v5749 = vlog2.pop %v5622
        %v5750 = vmul.f32 %v5749, 0.6931472
        %v5751 = vsub.f32 %v5303, %v5624
        %v5752 = vsub.f32 %v5304, %v5626
        %v5753 = vsub.f32 %v5305, %v5628
        %v5754 = vsub.f32 %v5306, %v5630
        %v5755 = vsub.f32 %v5307, %v5632
        %v5756 = vsub.f32 %v5308, %v5634
        %v5757 = vsub.f32 %v5309, %v5636
        %v5758 = vsub.f32 %v5310, %v5638
        %v5759 = vsub.f32 %v5311, %v5640
        %v5760 = vsub.f32 %v5312, %v5642
        %v5761 = vsub.f32 %v5313, %v5644
        %v5762 = vsub.f32 %v5314, %v5646
        %v5763 = vsub.f32 %v5315, %v5648
        %v5764 = vsub.f32 %v5316, %v5650
        %v5765 = vsub.f32 %v5317, %v5652
        %v5766 = vsub.f32 %v5318, %v5654
        %v5767 = vsub.f32 %v5319, %v5656
        %v5768 = vsub.f32 %v5320, %v5658
        %v5769 = vsub.f32 %v5321, %v5660
        %v5770 = vsub.f32 %v5322, %v5662
        %v5771 = vsub.f32 %v5323, %v5664
        %v5772 = vsub.f32 %v5324, %v5666
        %v5773 = vsub.f32 %v5325, %v5668
        %v5774 = vsub.f32 %v5326, %v5670
        %v5775 = vsub.f32 %v5327, %v5672
        %v5776 = vsub.f32 %v5328, %v5674
        %v5777 = vsub.f32 %v5329, %v5676
        %v5778 = vsub.f32 %v5330, %v5678
        %v5779 = vsub.f32 %v5331, %v5680
        %v5780 = vsub.f32 %v5332, %v5682
        %v5781 = vsub.f32 %v5333, %v5684
        %v5782 = vsub.f32 %v5334, %v5686
        %v5783 = vsub.f32 %v5335, %v5688
        %v5784 = vsub.f32 %v5336, %v5690
        %v5785 = vsub.f32 %v5337, %v5692
        %v5786 = vsub.f32 %v5338, %v5694
        %v5787 = vsub.f32 %v5339, %v5696
        %v5788 = vsub.f32 %v5340, %v5698
        %v5789 = vsub.f32 %v5341, %v5700
        %v5790 = vsub.f32 %v5342, %v5702
        %v5791 = vsub.f32 %v5343, %v5704
        %v5792 = vsub.f32 %v5344, %v5706
        %v5793 = vsub.f32 %v5345, %v5708
        %v5794 = vsub.f32 %v5346, %v5710
        %v5795 = vsub.f32 %v5347, %v5712
        %v5796 = vsub.f32 %v5348, %v5714
        %v5797 = vsub.f32 %v5349, %v5716
        %v5798 = vsub.f32 %v5350, %v5718
        %v5799 = vsub.f32 %v5351, %v5720
        %v5800 = vsub.f32 %v5352, %v5722
        %v5801 = vsub.f32 %v5353, %v5724
        %v5802 = vsub.f32 %v5354, %v5726
        %v5803 = vsub.f32 %v5355, %v5728
        %v5804 = vsub.f32 %v5356, %v5730
        %v5805 = vsub.f32 %v5357, %v5732
        %v5806 = vsub.f32 %v5358, %v5734
        %v5807 = vsub.f32 %v5359, %v5736
        %v5808 = vsub.f32 %v5360, %v5738
        %v5809 = vsub.f32 %v5361, %v5740
        %v5810 = vsub.f32 %v5362, %v5742
        %v5811 = vsub.f32 %v5363, %v5744
        %v5812 = vsub.f32 %v5364, %v5746
        %v5813 = vsub.f32 %v5365, %v5748
        %v5814 = vsub.f32 %v5366, %v5750
        %5815 = vst [vmem:[%s395] sm:$0xff] %v5751
        %5816 = vst [vmem:[%s395 + $0x10] sm:$0xff] %v5752
        %5817 = vst [vmem:[%s395 + $0x20] sm:$0xff] %v5753
        %5818 = vst [vmem:[%s395 + $0x30] sm:$0xff] %v5754
        %5819 = vst [vmem:[%s395 + $0x40] sm:$0xff] %v5755
        %5820 = vst [vmem:[%s395 + $0x50] sm:$0xff] %v5756
        %5821 = vst [vmem:[%s395 + $0x60] sm:$0xff] %v5757
        %5822 = vst [vmem:[%s395 + $0x70] sm:$0xff] %v5758
        %5823 = vst [vmem:[%s395 + $0x80] sm:$0xff] %v5759
        %5824 = vst [vmem:[%s395 + $0x90] sm:$0xff] %v5760
        %5825 = vst [vmem:[%s395 + $0xa0] sm:$0xff] %v5761
        %5826 = vst [vmem:[%s395 + $0xb0] sm:$0xff] %v5762
        %5827 = vst [vmem:[%s395 + $0xc0] sm:$0xff] %v5763
        %5828 = vst [vmem:[%s395 + $0xd0] sm:$0xff] %v5764
        %5829 = vst [vmem:[%s395 + $0xe0] sm:$0xff] %v5765
        %5830 = vst [vmem:[%s395 + $0xf0] sm:$0xff] %v5766
        %5831 = vst [vmem:[%s395 + $0x100] sm:$0xff] %v5767
        %5832 = vst [vmem:[%s395 + $0x110] sm:$0xff] %v5768
        %5833 = vst [vmem:[%s395 + $0x120] sm:$0xff] %v5769
        %5834 = vst [vmem:[%s395 + $0x130] sm:$0xff] %v5770
        %5835 = vst [vmem:[%s395 + $0x140] sm:$0xff] %v5771
        %5836 = vst [vmem:[%s395 + $0x150] sm:$0xff] %v5772
        %5837 = vst [vmem:[%s395 + $0x160] sm:$0xff] %v5773
        %5838 = vst [vmem:[%s395 + $0x170] sm:$0xff] %v5774
        %5839 = vst [vmem:[%s395 + $0x180] sm:$0xff] %v5775
        %5840 = vst [vmem:[%s395 + $0x190] sm:$0xff] %v5776
        %5841 = vst [vmem:[%s395 + $0x1a0] sm:$0xff] %v5777
        %5842 = vst [vmem:[%s395 + $0x1b0] sm:$0xff] %v5778
        %5843 = vst [vmem:[%s395 + $0x1c0] sm:$0xff] %v5779
        %5844 = vst [vmem:[%s395 + $0x1d0] sm:$0xff] %v5780
        %5845 = vst [vmem:[%s395 + $0x1e0] sm:$0xff] %v5781
        %5846 = vst [vmem:[%s395 + $0x1f0] sm:$0xff] %v5782
        %5847 = vst [vmem:[%s395 + $0x200] sm:$0xff] %v5783
        %5848 = vst [vmem:[%s395 + $0x210] sm:$0xff] %v5784
        %5849 = vst [vmem:[%s395 + $0x220] sm:$0xff] %v5785
        %5850 = vst [vmem:[%s395 + $0x230] sm:$0xff] %v5786
        %5851 = vst [vmem:[%s395 + $0x240] sm:$0xff] %v5787
        %5852 = vst [vmem:[%s395 + $0x250] sm:$0xff] %v5788
        %5853 = vst [vmem:[%s395 + $0x260] sm:$0xff] %v5789
        %5854 = vst [vmem:[%s395 + $0x270] sm:$0xff] %v5790
        %5855 = vst [vmem:[%s395 + $0x280] sm:$0xff] %v5791
        %5856 = vst [vmem:[%s395 + $0x290] sm:$0xff] %v5792
        %5857 = vst [vmem:[%s395 + $0x2a0] sm:$0xff] %v5793
        %5858 = vst [vmem:[%s395 + $0x2b0] sm:$0xff] %v5794
        %5859 = vst [vmem:[%s395 + $0x2c0] sm:$0xff] %v5795
        %5860 = vst [vmem:[%s395 + $0x2d0] sm:$0xff] %v5796
        %5861 = vst [vmem:[%s395 + $0x2e0] sm:$0xff] %v5797
        %5862 = vst [vmem:[%s395 + $0x2f0] sm:$0xff] %v5798
        %5863 = vst [vmem:[%s395 + $0x300] sm:$0xff] %v5799
        %5864 = vst [vmem:[%s395 + $0x310] sm:$0xff] %v5800
        %5865 = vst [vmem:[%s395 + $0x320] sm:$0xff] %v5801
        %5866 = vst [vmem:[%s395 + $0x330] sm:$0xff] %v5802
        %5867 = vst [vmem:[%s395 + $0x340] sm:$0xff] %v5803
        %5868 = vst [vmem:[%s395 + $0x350] sm:$0xff] %v5804
        %5869 = vst [vmem:[%s395 + $0x360] sm:$0xff] %v5805
        %5870 = vst [vmem:[%s395 + $0x370] sm:$0xff] %v5806
        %5871 = vst [vmem:[%s395 + $0x380] sm:$0xff] %v5807
        %5872 = vst [vmem:[%s395 + $0x390] sm:$0xff] %v5808
        %5873 = vst [vmem:[%s395 + $0x3a0] sm:$0xff] %v5809
        %5874 = vst [vmem:[%s395 + $0x3b0] sm:$0xff] %v5810
        %5875 = vst [vmem:[%s395 + $0x3c0] sm:$0xff] %v5811
        %5876 = vst [vmem:[%s395 + $0x3d0] sm:$0xff] %v5812
        %5877 = vst [vmem:[%s395 + $0x3e0] sm:$0xff] %v5813
        %5878 = vst [vmem:[%s395 + $0x3f0] sm:$0xff] %v5814
        %5879 = vmax.xlane.f32.xlu0 %v4859
        %v5880 = vpop.xlane.xlu0 %5879
        %5881 = vmax.xlane.f32.xlu0 %v4863
        %v5882 = vpop.xlane.xlu0 %5881
        %5883 = vmax.xlane.f32.xlu0 %v4869
        %v5884 = vpop.xlane.xlu0 %5883
        %5885 = vmax.xlane.f32.xlu0 %v4873
        %v5886 = vpop.xlane.xlu0 %5885
        %5887 = vmax.xlane.f32.xlu0 %v4879
        %v5888 = vpop.xlane.xlu0 %5887
        %5889 = vmax.xlane.f32.xlu0 %v4883
        %v5890 = vpop.xlane.xlu0 %5889
        %5891 = vmax.xlane.f32.xlu0 %v4889
        %v5892 = vpop.xlane.xlu0 %5891
        %5893 = vmax.xlane.f32.xlu0 %v4893
        %v5894 = vpop.xlane.xlu0 %5893
        %5895 = vmax.xlane.f32.xlu0 %v4899
        %v5896 = vpop.xlane.xlu0 %5895
        %5897 = vmax.xlane.f32.xlu0 %v4903
        %v5898 = vpop.xlane.xlu0 %5897
        %5899 = vmax.xlane.f32.xlu0 %v4909
        %v5900 = vpop.xlane.xlu0 %5899
        %5901 = vmax.xlane.f32.xlu0 %v4913
        %v5902 = vpop.xlane.xlu0 %5901
        %5903 = vmax.xlane.f32.xlu0 %v4919
        %v5904 = vpop.xlane.xlu0 %5903
        %5905 = vmax.xlane.f32.xlu0 %v4923
        %v5906 = vpop.xlane.xlu0 %5905
        %5907 = vmax.xlane.f32.xlu0 %v4929
        %v5908 = vpop.xlane.xlu0 %5907
        %5909 = vmax.xlane.f32.xlu0 %v4933
        %v5910 = vpop.xlane.xlu0 %5909
        %5911 = vmax.xlane.f32.xlu0 %v4939
        %v5912 = vpop.xlane.xlu0 %5911
        %5913 = vmax.xlane.f32.xlu0 %v4943
        %v5914 = vpop.xlane.xlu0 %5913
        %5915 = vmax.xlane.f32.xlu0 %v4949
        %v5916 = vpop.xlane.xlu0 %5915
        %5917 = vmax.xlane.f32.xlu0 %v4953
        %v5918 = vpop.xlane.xlu0 %5917
        %5919 = vmax.xlane.f32.xlu0 %v4959
        %v5920 = vpop.xlane.xlu0 %5919
        %5921 = vmax.xlane.f32.xlu0 %v4963
        %v5922 = vpop.xlane.xlu0 %5921
        %5923 = vmax.xlane.f32.xlu0 %v4969
        %v5924 = vpop.xlane.xlu0 %5923
        %5925 = vmax.xlane.f32.xlu0 %v4973
        %v5926 = vpop.xlane.xlu0 %5925
        %5927 = vmax.xlane.f32.xlu0 %v4979
        %v5928 = vpop.xlane.xlu0 %5927
        %5929 = vmax.xlane.f32.xlu0 %v4983
        %v5930 = vpop.xlane.xlu0 %5929
        %5931 = vmax.xlane.f32.xlu0 %v4989
        %v5932 = vpop.xlane.xlu0 %5931
        %5933 = vmax.xlane.f32.xlu0 %v4993
        %v5934 = vpop.xlane.xlu0 %5933
        %5935 = vmax.xlane.f32.xlu0 %v4999
        %v5936 = vpop.xlane.xlu0 %5935
        %5937 = vmax.xlane.f32.xlu0 %v5003
        %v5938 = vpop.xlane.xlu0 %5937
        %5939 = vmax.xlane.f32.xlu0 %v5009
        %v5940 = vpop.xlane.xlu0 %5939
        %5941 = vmax.xlane.f32.xlu0 %v5013
        %v5942 = vpop.xlane.xlu0 %5941
        %5943 = vmax.xlane.f32.xlu0 %v5019
        %v5944 = vpop.xlane.xlu0 %5943
        %5945 = vmax.xlane.f32.xlu0 %v5023
        %v5946 = vpop.xlane.xlu0 %5945
        %5947 = vmax.xlane.f32.xlu0 %v5029
        %v5948 = vpop.xlane.xlu0 %5947
        %5949 = vmax.xlane.f32.xlu0 %v5033
        %v5950 = vpop.xlane.xlu0 %5949
        %5951 = vmax.xlane.f32.xlu0 %v5039
        %v5952 = vpop.xlane.xlu0 %5951
        %5953 = vmax.xlane.f32.xlu0 %v5043
        %v5954 = vpop.xlane.xlu0 %5953
        %5955 = vmax.xlane.f32.xlu0 %v5049
        %v5956 = vpop.xlane.xlu0 %5955
        %5957 = vmax.xlane.f32.xlu0 %v5053
        %v5958 = vpop.xlane.xlu0 %5957
        %5959 = vmax.xlane.f32.xlu0 %v5059
        %v5960 = vpop.xlane.xlu0 %5959
        %5961 = vmax.xlane.f32.xlu0 %v5063
        %v5962 = vpop.xlane.xlu0 %5961
        %5963 = vmax.xlane.f32.xlu0 %v5069
        %v5964 = vpop.xlane.xlu0 %5963
        %5965 = vmax.xlane.f32.xlu0 %v5073
        %v5966 = vpop.xlane.xlu0 %5965
        %5967 = vmax.xlane.f32.xlu0 %v5079
        %v5968 = vpop.xlane.xlu0 %5967
        %5969 = vmax.xlane.f32.xlu0 %v5083
        %v5970 = vpop.xlane.xlu0 %5969
        %5971 = vmax.xlane.f32.xlu0 %v5089
        %v5972 = vpop.xlane.xlu0 %5971
        %5973 = vmax.xlane.f32.xlu0 %v5093
        %v5974 = vpop.xlane.xlu0 %5973
        %5975 = vmax.xlane.f32.xlu0 %v5099
        %v5976 = vpop.xlane.xlu0 %5975
        %5977 = vmax.xlane.f32.xlu0 %v5103
        %v5978 = vpop.xlane.xlu0 %5977
        %5979 = vmax.xlane.f32.xlu0 %v5109
        %v5980 = vpop.xlane.xlu0 %5979
        %5981 = vmax.xlane.f32.xlu0 %v5113
        %v5982 = vpop.xlane.xlu0 %5981
        %5983 = vmax.xlane.f32.xlu0 %v5119
        %v5984 = vpop.xlane.xlu0 %5983
        %5985 = vmax.xlane.f32.xlu0 %v5123
        %v5986 = vpop.xlane.xlu0 %5985
        %5987 = vmax.xlane.f32.xlu0 %v5129
        %v5988 = vpop.xlane.xlu0 %5987
        %5989 = vmax.xlane.f32.xlu0 %v5133
        %v5990 = vpop.xlane.xlu0 %5989
        %5991 = vmax.xlane.f32.xlu0 %v5139
        %v5992 = vpop.xlane.xlu0 %5991
        %5993 = vmax.xlane.f32.xlu0 %v5143
        %v5994 = vpop.xlane.xlu0 %5993
        %5995 = vmax.xlane.f32.xlu0 %v5149
        %v5996 = vpop.xlane.xlu0 %5995
        %5997 = vmax.xlane.f32.xlu0 %v5153
        %v5998 = vpop.xlane.xlu0 %5997
        %5999 = vmax.xlane.f32.xlu0 %v5159
        %v6000 = vpop.xlane.xlu0 %5999
        %6001 = vmax.xlane.f32.xlu0 %v5163
        %v6002 = vpop.xlane.xlu0 %6001
        %6003 = vmax.xlane.f32.xlu0 %v5169
        %v6004 = vpop.xlane.xlu0 %6003
        %6005 = vmax.xlane.f32.xlu0 %v5173
        %v6006 = vpop.xlane.xlu0 %6005
        %v6007 = vsub.f32 %v4859, %v5880
        %v6008 = vsub.f32 %v4863, %v5882
        %v6009 = vsub.f32 %v4869, %v5884
        %v6010 = vsub.f32 %v4873, %v5886
        %v6011 = vsub.f32 %v4879, %v5888
        %v6012 = vsub.f32 %v4883, %v5890
        %v6013 = vsub.f32 %v4889, %v5892
        %v6014 = vsub.f32 %v4893, %v5894
        %v6015 = vsub.f32 %v4899, %v5896
        %v6016 = vsub.f32 %v4903, %v5898
        %v6017 = vsub.f32 %v4909, %v5900
        %v6018 = vsub.f32 %v4913, %v5902
        %v6019 = vsub.f32 %v4919, %v5904
        %v6020 = vsub.f32 %v4923, %v5906
        %v6021 = vsub.f32 %v4929, %v5908
        %v6022 = vsub.f32 %v4933, %v5910
        %v6023 = vsub.f32 %v4939, %v5912
        %v6024 = vsub.f32 %v4943, %v5914
        %v6025 = vsub.f32 %v4949, %v5916
        %v6026 = vsub.f32 %v4953, %v5918
        %v6027 = vsub.f32 %v4959, %v5920
        %v6028 = vsub.f32 %v4963, %v5922
        %v6029 = vsub.f32 %v4969, %v5924
        %v6030 = vsub.f32 %v4973, %v5926
        %v6031 = vsub.f32 %v4979, %v5928
        %v6032 = vsub.f32 %v4983, %v5930
        %v6033 = vsub.f32 %v4989, %v5932
        %v6034 = vsub.f32 %v4993, %v5934
        %v6035 = vsub.f32 %v4999, %v5936
        %v6036 = vsub.f32 %v5003, %v5938
        %v6037 = vsub.f32 %v5009, %v5940
        %v6038 = vsub.f32 %v5013, %v5942
        %v6039 = vsub.f32 %v5019, %v5944
        %v6040 = vsub.f32 %v5023, %v5946
        %v6041 = vsub.f32 %v5029, %v5948
        %v6042 = vsub.f32 %v5033, %v5950
        %v6043 = vsub.f32 %v5039, %v5952
        %v6044 = vsub.f32 %v5043, %v5954
        %v6045 = vsub.f32 %v5049, %v5956
        %v6046 = vsub.f32 %v5053, %v5958
        %v6047 = vsub.f32 %v5059, %v5960
        %v6048 = vsub.f32 %v5063, %v5962
        %v6049 = vsub.f32 %v5069, %v5964
        %v6050 = vsub.f32 %v5073, %v5966
        %v6051 = vsub.f32 %v5079, %v5968
        %v6052 = vsub.f32 %v5083, %v5970
        %v6053 = vsub.f32 %v5089, %v5972
        %v6054 = vsub.f32 %v5093, %v5974
        %v6055 = vsub.f32 %v5099, %v5976
        %v6056 = vsub.f32 %v5103, %v5978
        %v6057 = vsub.f32 %v5109, %v5980
        %v6058 = vsub.f32 %v5113, %v5982
        %v6059 = vsub.f32 %v5119, %v5984
        %v6060 = vsub.f32 %v5123, %v5986
        %v6061 = vsub.f32 %v5129, %v5988
        %v6062 = vsub.f32 %v5133, %v5990
        %v6063 = vsub.f32 %v5139, %v5992
        %v6064 = vsub.f32 %v5143, %v5994
        %v6065 = vsub.f32 %v5149, %v5996
        %v6066 = vsub.f32 %v5153, %v5998
        %v6067 = vsub.f32 %v5159, %v6000
        %v6068 = vsub.f32 %v5163, %v6002
        %v6069 = vsub.f32 %v5169, %v6004
        %v6070 = vsub.f32 %v5173, %v6006
        %v6071 = vmul.f32 %v6007, 1.442695
        %v6072 = vpow.pop %v6071
        %v6073 = vmul.f32 %v6008, 1.442695
        %v6074 = vpow.pop %v6073
        %v6075 = vmul.f32 %v6009, 1.442695
        %v6076 = vpow.pop %v6075
        %v6077 = vmul.f32 %v6010, 1.442695
        %v6078 = vpow.pop %v6077
        %v6079 = vmul.f32 %v6011, 1.442695
        %v6080 = vpow.pop %v6079
        %v6081 = vmul.f32 %v6012, 1.442695
        %v6082 = vpow.pop %v6081
        %v6083 = vmul.f32 %v6013, 1.442695
        %v6084 = vpow.pop %v6083
        %v6085 = vmul.f32 %v6014, 1.442695
        %v6086 = vpow.pop %v6085
        %v6087 = vmul.f32 %v6015, 1.442695
        %v6088 = vpow.pop %v6087
        %v6089 = vmul.f32 %v6016, 1.442695
        %v6090 = vpow.pop %v6089
        %v6091 = vmul.f32 %v6017, 1.442695
        %v6092 = vpow.pop %v6091
        %v6093 = vmul.f32 %v6018, 1.442695
        %v6094 = vpow.pop %v6093
        %v6095 = vmul.f32 %v6019, 1.442695
        %v6096 = vpow.pop %v6095
        %v6097 = vmul.f32 %v6020, 1.442695
        %v6098 = vpow.pop %v6097
        %v6099 = vmul.f32 %v6021, 1.442695
        %v6100 = vpow.pop %v6099
        %v6101 = vmul.f32 %v6022, 1.442695
        %v6102 = vpow.pop %v6101
        %v6103 = vmul.f32 %v6023, 1.442695
        %v6104 = vpow.pop %v6103
        %v6105 = vmul.f32 %v6024, 1.442695
        %v6106 = vpow.pop %v6105
        %v6107 = vmul.f32 %v6025, 1.442695
        %v6108 = vpow.pop %v6107
        %v6109 = vmul.f32 %v6026, 1.442695
        %v6110 = vpow.pop %v6109
        %v6111 = vmul.f32 %v6027, 1.442695
        %v6112 = vpow.pop %v6111
        %v6113 = vmul.f32 %v6028, 1.442695
        %v6114 = vpow.pop %v6113
        %v6115 = vmul.f32 %v6029, 1.442695
        %v6116 = vpow.pop %v6115
        %v6117 = vmul.f32 %v6030, 1.442695
        %v6118 = vpow.pop %v6117
        %v6119 = vmul.f32 %v6031, 1.442695
        %v6120 = vpow.pop %v6119
        %v6121 = vmul.f32 %v6032, 1.442695
        %v6122 = vpow.pop %v6121
        %v6123 = vmul.f32 %v6033, 1.442695
        %v6124 = vpow.pop %v6123
        %v6125 = vmul.f32 %v6034, 1.442695
        %v6126 = vpow.pop %v6125
        %v6127 = vmul.f32 %v6035, 1.442695
        %v6128 = vpow.pop %v6127
        %v6129 = vmul.f32 %v6036, 1.442695
        %v6130 = vpow.pop %v6129
        %v6131 = vmul.f32 %v6037, 1.442695
        %v6132 = vpow.pop %v6131
        %v6133 = vmul.f32 %v6038, 1.442695
        %v6134 = vpow.pop %v6133
        %v6135 = vmul.f32 %v6039, 1.442695
        %v6136 = vpow.pop %v6135
        %v6137 = vmul.f32 %v6040, 1.442695
        %v6138 = vpow.pop %v6137
        %v6139 = vmul.f32 %v6041, 1.442695
        %v6140 = vpow.pop %v6139
        %v6141 = vmul.f32 %v6042, 1.442695
        %v6142 = vpow.pop %v6141
        %v6143 = vmul.f32 %v6043, 1.442695
        %v6144 = vpow.pop %v6143
        %v6145 = vmul.f32 %v6044, 1.442695
        %v6146 = vpow.pop %v6145
        %v6147 = vmul.f32 %v6045, 1.442695
        %v6148 = vpow.pop %v6147
        %v6149 = vmul.f32 %v6046, 1.442695
        %v6150 = vpow.pop %v6149
        %v6151 = vmul.f32 %v6047, 1.442695
        %v6152 = vpow.pop %v6151
        %v6153 = vmul.f32 %v6048, 1.442695
        %v6154 = vpow.pop %v6153
        %v6155 = vmul.f32 %v6049, 1.442695
        %v6156 = vpow.pop %v6155
        %v6157 = vmul.f32 %v6050, 1.442695
        %v6158 = vpow.pop %v6157
        %v6159 = vmul.f32 %v6051, 1.442695
        %v6160 = vpow.pop %v6159
        %v6161 = vmul.f32 %v6052, 1.442695
        %v6162 = vpow.pop %v6161
        %v6163 = vmul.f32 %v6053, 1.442695
        %v6164 = vpow.pop %v6163
        %v6165 = vmul.f32 %v6054, 1.442695
        %v6166 = vpow.pop %v6165
        %v6167 = vmul.f32 %v6055, 1.442695
        %v6168 = vpow.pop %v6167
        %v6169 = vmul.f32 %v6056, 1.442695
        %v6170 = vpow.pop %v6169
        %v6171 = vmul.f32 %v6057, 1.442695
        %v6172 = vpow.pop %v6171
        %v6173 = vmul.f32 %v6058, 1.442695
        %v6174 = vpow.pop %v6173
        %v6175 = vmul.f32 %v6059, 1.442695
        %v6176 = vpow.pop %v6175
        %v6177 = vmul.f32 %v6060, 1.442695
        %v6178 = vpow.pop %v6177
        %v6179 = vmul.f32 %v6061, 1.442695
        %v6180 = vpow.pop %v6179
        %v6181 = vmul.f32 %v6062, 1.442695
        %v6182 = vpow.pop %v6181
        %v6183 = vmul.f32 %v6063, 1.442695
        %v6184 = vpow.pop %v6183
        %v6185 = vmul.f32 %v6064, 1.442695
        %v6186 = vpow.pop %v6185
        %v6187 = vmul.f32 %v6065, 1.442695
        %v6188 = vpow.pop %v6187
        %v6189 = vmul.f32 %v6066, 1.442695
        %v6190 = vpow.pop %v6189
        %v6191 = vmul.f32 %v6067, 1.442695
        %v6192 = vpow.pop %v6191
        %v6193 = vmul.f32 %v6068, 1.442695
        %v6194 = vpow.pop %v6193
        %v6195 = vmul.f32 %v6069, 1.442695
        %v6196 = vpow.pop %v6195
        %v6197 = vmul.f32 %v6070, 1.442695
        %v6198 = vpow.pop %v6197
        %6199 = vadd.xlane.f32.xlu0 %v6072
        %v6200 = vpop.xlane.xlu0 %6199
        %6201 = vadd.xlane.f32.xlu0 %v6074
        %v6202 = vpop.xlane.xlu0 %6201
        %6203 = vadd.xlane.f32.xlu0 %v6076
        %v6204 = vpop.xlane.xlu0 %6203
        %6205 = vadd.xlane.f32.xlu0 %v6078
        %v6206 = vpop.xlane.xlu0 %6205
        %6207 = vadd.xlane.f32.xlu0 %v6080
        %v6208 = vpop.xlane.xlu0 %6207
        %6209 = vadd.xlane.f32.xlu0 %v6082
        %v6210 = vpop.xlane.xlu0 %6209
        %6211 = vadd.xlane.f32.xlu0 %v6084
        %v6212 = vpop.xlane.xlu0 %6211
        %6213 = vadd.xlane.f32.xlu0 %v6086
        %v6214 = vpop.xlane.xlu0 %6213
        %6215 = vadd.xlane.f32.xlu0 %v6088
        %v6216 = vpop.xlane.xlu0 %6215
        %6217 = vadd.xlane.f32.xlu0 %v6090
        %v6218 = vpop.xlane.xlu0 %6217
        %6219 = vadd.xlane.f32.xlu0 %v6092
        %v6220 = vpop.xlane.xlu0 %6219
        %6221 = vadd.xlane.f32.xlu0 %v6094
        %v6222 = vpop.xlane.xlu0 %6221
        %6223 = vadd.xlane.f32.xlu0 %v6096
        %v6224 = vpop.xlane.xlu0 %6223
        %6225 = vadd.xlane.f32.xlu0 %v6098
        %v6226 = vpop.xlane.xlu0 %6225
        %6227 = vadd.xlane.f32.xlu0 %v6100
        %v6228 = vpop.xlane.xlu0 %6227
        %6229 = vadd.xlane.f32.xlu0 %v6102
        %v6230 = vpop.xlane.xlu0 %6229
        %6231 = vadd.xlane.f32.xlu0 %v6104
        %v6232 = vpop.xlane.xlu0 %6231
        %6233 = vadd.xlane.f32.xlu0 %v6106
        %v6234 = vpop.xlane.xlu0 %6233
        %6235 = vadd.xlane.f32.xlu0 %v6108
        %v6236 = vpop.xlane.xlu0 %6235
        %6237 = vadd.xlane.f32.xlu0 %v6110
        %v6238 = vpop.xlane.xlu0 %6237
        %6239 = vadd.xlane.f32.xlu0 %v6112
        %v6240 = vpop.xlane.xlu0 %6239
        %6241 = vadd.xlane.f32.xlu0 %v6114
        %v6242 = vpop.xlane.xlu0 %6241
        %6243 = vadd.xlane.f32.xlu0 %v6116
        %v6244 = vpop.xlane.xlu0 %6243
        %6245 = vadd.xlane.f32.xlu0 %v6118
        %v6246 = vpop.xlane.xlu0 %6245
        %6247 = vadd.xlane.f32.xlu0 %v6120
        %v6248 = vpop.xlane.xlu0 %6247
        %6249 = vadd.xlane.f32.xlu0 %v6122
        %v6250 = vpop.xlane.xlu0 %6249
        %6251 = vadd.xlane.f32.xlu0 %v6124
        %v6252 = vpop.xlane.xlu0 %6251
        %6253 = vadd.xlane.f32.xlu0 %v6126
        %v6254 = vpop.xlane.xlu0 %6253
        %6255 = vadd.xlane.f32.xlu0 %v6128
        %v6256 = vpop.xlane.xlu0 %6255
        %6257 = vadd.xlane.f32.xlu0 %v6130
        %v6258 = vpop.xlane.xlu0 %6257
        %6259 = vadd.xlane.f32.xlu0 %v6132
        %v6260 = vpop.xlane.xlu0 %6259
        %6261 = vadd.xlane.f32.xlu0 %v6134
        %v6262 = vpop.xlane.xlu0 %6261
        %6263 = vadd.xlane.f32.xlu0 %v6136
        %v6264 = vpop.xlane.xlu0 %6263
        %6265 = vadd.xlane.f32.xlu0 %v6138
        %v6266 = vpop.xlane.xlu0 %6265
        %6267 = vadd.xlane.f32.xlu0 %v6140
        %v6268 = vpop.xlane.xlu0 %6267
        %6269 = vadd.xlane.f32.xlu0 %v6142
        %v6270 = vpop.xlane.xlu0 %6269
        %6271 = vadd.xlane.f32.xlu0 %v6144
        %v6272 = vpop.xlane.xlu0 %6271
        %6273 = vadd.xlane.f32.xlu0 %v6146
        %v6274 = vpop.xlane.xlu0 %6273
        %6275 = vadd.xlane.f32.xlu0 %v6148
        %v6276 = vpop.xlane.xlu0 %6275
        %6277 = vadd.xlane.f32.xlu0 %v6150
        %v6278 = vpop.xlane.xlu0 %6277
        %6279 = vadd.xlane.f32.xlu0 %v6152
        %v6280 = vpop.xlane.xlu0 %6279
        %6281 = vadd.xlane.f32.xlu0 %v6154
        %v6282 = vpop.xlane.xlu0 %6281
        %6283 = vadd.xlane.f32.xlu0 %v6156
        %v6284 = vpop.xlane.xlu0 %6283
        %6285 = vadd.xlane.f32.xlu0 %v6158
        %v6286 = vpop.xlane.xlu0 %6285
        %6287 = vadd.xlane.f32.xlu0 %v6160
        %v6288 = vpop.xlane.xlu0 %6287
        %6289 = vadd.xlane.f32.xlu0 %v6162
        %v6290 = vpop.xlane.xlu0 %6289
        %6291 = vadd.xlane.f32.xlu0 %v6164
        %v6292 = vpop.xlane.xlu0 %6291
        %6293 = vadd.xlane.f32.xlu0 %v6166
        %v6294 = vpop.xlane.xlu0 %6293
        %6295 = vadd.xlane.f32.xlu0 %v6168
        %v6296 = vpop.xlane.xlu0 %6295
        %6297 = vadd.xlane.f32.xlu0 %v6170
        %v6298 = vpop.xlane.xlu0 %6297
        %6299 = vadd.xlane.f32.xlu0 %v6172
        %v6300 = vpop.xlane.xlu0 %6299
        %6301 = vadd.xlane.f32.xlu0 %v6174
        %v6302 = vpop.xlane.xlu0 %6301
        %6303 = vadd.xlane.f32.xlu0 %v6176
        %v6304 = vpop.xlane.xlu0 %6303
        %6305 = vadd.xlane.f32.xlu0 %v6178
        %v6306 = vpop.xlane.xlu0 %6305
        %6307 = vadd.xlane.f32.xlu0 %v6180
        %v6308 = vpop.xlane.xlu0 %6307
        %6309 = vadd.xlane.f32.xlu0 %v6182
        %v6310 = vpop.xlane.xlu0 %6309
        %6311 = vadd.xlane.f32.xlu0 %v6184
        %v6312 = vpop.xlane.xlu0 %6311
        %6313 = vadd.xlane.f32.xlu0 %v6186
        %v6314 = vpop.xlane.xlu0 %6313
        %6315 = vadd.xlane.f32.xlu0 %v6188
        %v6316 = vpop.xlane.xlu0 %6315
        %6317 = vadd.xlane.f32.xlu0 %v6190
        %v6318 = vpop.xlane.xlu0 %6317
        %6319 = vadd.xlane.f32.xlu0 %v6192
        %v6320 = vpop.xlane.xlu0 %6319
        %6321 = vadd.xlane.f32.xlu0 %v6194
        %v6322 = vpop.xlane.xlu0 %6321
        %6323 = vadd.xlane.f32.xlu0 %v6196
        %v6324 = vpop.xlane.xlu0 %6323
        %6325 = vadd.xlane.f32.xlu0 %v6198
        %v6326 = vpop.xlane.xlu0 %6325
        %v6327 = vlog2.pop %v6200
        %v6328 = vmul.f32 %v6327, 0.6931472
        %v6329 = vlog2.pop %v6202
        %v6330 = vmul.f32 %v6329, 0.6931472
        %v6331 = vlog2.pop %v6204
        %v6332 = vmul.f32 %v6331, 0.6931472
        %v6333 = vlog2.pop %v6206
        %v6334 = vmul.f32 %v6333, 0.6931472
        %v6335 = vlog2.pop %v6208
        %v6336 = vmul.f32 %v6335, 0.6931472
        %v6337 = vlog2.pop %v6210
        %v6338 = vmul.f32 %v6337, 0.6931472
        %v6339 = vlog2.pop %v6212
        %v6340 = vmul.f32 %v6339, 0.6931472
        %v6341 = vlog2.pop %v6214
        %v6342 = vmul.f32 %v6341, 0.6931472
        %v6343 = vlog2.pop %v6216
        %v6344 = vmul.f32 %v6343, 0.6931472
        %v6345 = vlog2.pop %v6218
        %v6346 = vmul.f32 %v6345, 0.6931472
        %v6347 = vlog2.pop %v6220
        %v6348 = vmul.f32 %v6347, 0.6931472
        %v6349 = vlog2.pop %v6222
        %v6350 = vmul.f32 %v6349, 0.6931472
        %v6351 = vlog2.pop %v6224
        %v6352 = vmul.f32 %v6351, 0.6931472
        %v6353 = vlog2.pop %v6226
        %v6354 = vmul.f32 %v6353, 0.6931472
        %v6355 = vlog2.pop %v6228
        %v6356 = vmul.f32 %v6355, 0.6931472
        %v6357 = vlog2.pop %v6230
        %v6358 = vmul.f32 %v6357, 0.6931472
        %v6359 = vlog2.pop %v6232
        %v6360 = vmul.f32 %v6359, 0.6931472
        %v6361 = vlog2.pop %v6234
        %v6362 = vmul.f32 %v6361, 0.6931472
        %v6363 = vlog2.pop %v6236
        %v6364 = vmul.f32 %v6363, 0.6931472
        %v6365 = vlog2.pop %v6238
        %v6366 = vmul.f32 %v6365, 0.6931472
        %v6367 = vlog2.pop %v6240
        %v6368 = vmul.f32 %v6367, 0.6931472
        %v6369 = vlog2.pop %v6242
        %v6370 = vmul.f32 %v6369, 0.6931472
        %v6371 = vlog2.pop %v6244
        %v6372 = vmul.f32 %v6371, 0.6931472
        %v6373 = vlog2.pop %v6246
        %v6374 = vmul.f32 %v6373, 0.6931472
        %v6375 = vlog2.pop %v6248
        %v6376 = vmul.f32 %v6375, 0.6931472
        %v6377 = vlog2.pop %v6250
        %v6378 = vmul.f32 %v6377, 0.6931472
        %v6379 = vlog2.pop %v6252
        %v6380 = vmul.f32 %v6379, 0.6931472
        %v6381 = vlog2.pop %v6254
        %v6382 = vmul.f32 %v6381, 0.6931472
        %v6383 = vlog2.pop %v6256
        %v6384 = vmul.f32 %v6383, 0.6931472
        %v6385 = vlog2.pop %v6258
        %v6386 = vmul.f32 %v6385, 0.6931472
        %v6387 = vlog2.pop %v6260
        %v6388 = vmul.f32 %v6387, 0.6931472
        %v6389 = vlog2.pop %v6262
        %v6390 = vmul.f32 %v6389, 0.6931472
        %v6391 = vlog2.pop %v6264
        %v6392 = vmul.f32 %v6391, 0.6931472
        %v6393 = vlog2.pop %v6266
        %v6394 = vmul.f32 %v6393, 0.6931472
        %v6395 = vlog2.pop %v6268
        %v6396 = vmul.f32 %v6395, 0.6931472
        %v6397 = vlog2.pop %v6270
        %v6398 = vmul.f32 %v6397, 0.6931472
        %v6399 = vlog2.pop %v6272
        %v6400 = vmul.f32 %v6399, 0.6931472
        %v6401 = vlog2.pop %v6274
        %v6402 = vmul.f32 %v6401, 0.6931472
        %v6403 = vlog2.pop %v6276
        %v6404 = vmul.f32 %v6403, 0.6931472
        %v6405 = vlog2.pop %v6278
        %v6406 = vmul.f32 %v6405, 0.6931472
        %v6407 = vlog2.pop %v6280
        %v6408 = vmul.f32 %v6407, 0.6931472
        %v6409 = vlog2.pop %v6282
        %v6410 = vmul.f32 %v6409, 0.6931472
        %v6411 = vlog2.pop %v6284
        %v6412 = vmul.f32 %v6411, 0.6931472
        %v6413 = vlog2.pop %v6286
        %v6414 = vmul.f32 %v6413, 0.6931472
        %v6415 = vlog2.pop %v6288
        %v6416 = vmul.f32 %v6415, 0.6931472
        %v6417 = vlog2.pop %v6290
        %v6418 = vmul.f32 %v6417, 0.6931472
        %v6419 = vlog2.pop %v6292
        %v6420 = vmul.f32 %v6419, 0.6931472
        %v6421 = vlog2.pop %v6294
        %v6422 = vmul.f32 %v6421, 0.6931472
        %v6423 = vlog2.pop %v6296
        %v6424 = vmul.f32 %v6423, 0.6931472
        %v6425 = vlog2.pop %v6298
        %v6426 = vmul.f32 %v6425, 0.6931472
        %v6427 = vlog2.pop %v6300
        %v6428 = vmul.f32 %v6427, 0.6931472
        %v6429 = vlog2.pop %v6302
        %v6430 = vmul.f32 %v6429, 0.6931472
        %v6431 = vlog2.pop %v6304
        %v6432 = vmul.f32 %v6431, 0.6931472
        %v6433 = vlog2.pop %v6306
        %v6434 = vmul.f32 %v6433, 0.6931472
        %v6435 = vlog2.pop %v6308
        %v6436 = vmul.f32 %v6435, 0.6931472
        %v6437 = vlog2.pop %v6310
        %v6438 = vmul.f32 %v6437, 0.6931472
        %v6439 = vlog2.pop %v6312
        %v6440 = vmul.f32 %v6439, 0.6931472
        %v6441 = vlog2.pop %v6314
        %v6442 = vmul.f32 %v6441, 0.6931472
        %v6443 = vlog2.pop %v6316
        %v6444 = vmul.f32 %v6443, 0.6931472
        %v6445 = vlog2.pop %v6318
        %v6446 = vmul.f32 %v6445, 0.6931472
        %v6447 = vlog2.pop %v6320
        %v6448 = vmul.f32 %v6447, 0.6931472
        %v6449 = vlog2.pop %v6322
        %v6450 = vmul.f32 %v6449, 0.6931472
        %v6451 = vlog2.pop %v6324
        %v6452 = vmul.f32 %v6451, 0.6931472
        %v6453 = vlog2.pop %v6326
        %v6454 = vmul.f32 %v6453, 0.6931472
        %v6455 = vsub.f32 %v6007, %v6328
        %v6456 = vsub.f32 %v6008, %v6330
        %v6457 = vsub.f32 %v6009, %v6332
        %v6458 = vsub.f32 %v6010, %v6334
        %v6459 = vsub.f32 %v6011, %v6336
        %v6460 = vsub.f32 %v6012, %v6338
        %v6461 = vsub.f32 %v6013, %v6340
        %v6462 = vsub.f32 %v6014, %v6342
        %v6463 = vsub.f32 %v6015, %v6344
        %v6464 = vsub.f32 %v6016, %v6346
        %v6465 = vsub.f32 %v6017, %v6348
        %v6466 = vsub.f32 %v6018, %v6350
        %v6467 = vsub.f32 %v6019, %v6352
        %v6468 = vsub.f32 %v6020, %v6354
        %v6469 = vsub.f32 %v6021, %v6356
        %v6470 = vsub.f32 %v6022, %v6358
        %v6471 = vsub.f32 %v6023, %v6360
        %v6472 = vsub.f32 %v6024, %v6362
        %v6473 = vsub.f32 %v6025, %v6364
        %v6474 = vsub.f32 %v6026, %v6366
        %v6475 = vsub.f32 %v6027, %v6368
        %v6476 = vsub.f32 %v6028, %v6370
        %v6477 = vsub.f32 %v6029, %v6372
        %v6478 = vsub.f32 %v6030, %v6374
        %v6479 = vsub.f32 %v6031, %v6376
        %v6480 = vsub.f32 %v6032, %v6378
        %v6481 = vsub.f32 %v6033, %v6380
        %v6482 = vsub.f32 %v6034, %v6382
        %v6483 = vsub.f32 %v6035, %v6384
        %v6484 = vsub.f32 %v6036, %v6386
        %v6485 = vsub.f32 %v6037, %v6388
        %v6486 = vsub.f32 %v6038, %v6390
        %v6487 = vsub.f32 %v6039, %v6392
        %v6488 = vsub.f32 %v6040, %v6394
        %v6489 = vsub.f32 %v6041, %v6396
        %v6490 = vsub.f32 %v6042, %v6398
        %v6491 = vsub.f32 %v6043, %v6400
        %v6492 = vsub.f32 %v6044, %v6402
        %v6493 = vsub.f32 %v6045, %v6404
        %v6494 = vsub.f32 %v6046, %v6406
        %v6495 = vsub.f32 %v6047, %v6408
        %v6496 = vsub.f32 %v6048, %v6410
        %v6497 = vsub.f32 %v6049, %v6412
        %v6498 = vsub.f32 %v6050, %v6414
        %v6499 = vsub.f32 %v6051, %v6416
        %v6500 = vsub.f32 %v6052, %v6418
        %v6501 = vsub.f32 %v6053, %v6420
        %v6502 = vsub.f32 %v6054, %v6422
        %v6503 = vsub.f32 %v6055, %v6424
        %v6504 = vsub.f32 %v6056, %v6426
        %v6505 = vsub.f32 %v6057, %v6428
        %v6506 = vsub.f32 %v6058, %v6430
        %v6507 = vsub.f32 %v6059, %v6432
        %v6508 = vsub.f32 %v6060, %v6434
        %v6509 = vsub.f32 %v6061, %v6436
        %v6510 = vsub.f32 %v6062, %v6438
        %v6511 = vsub.f32 %v6063, %v6440
        %v6512 = vsub.f32 %v6064, %v6442
        %v6513 = vsub.f32 %v6065, %v6444
        %v6514 = vsub.f32 %v6066, %v6446
        %v6515 = vsub.f32 %v6067, %v6448
        %v6516 = vsub.f32 %v6068, %v6450
        %v6517 = vsub.f32 %v6069, %v6452
        %v6518 = vsub.f32 %v6070, %v6454
        %6519 = vst [vmem:[%s395 + $0x8] sm:$0xff] %v6455
        %6520 = vst [vmem:[%s395 + $0x18] sm:$0xff] %v6456
        %6521 = vst [vmem:[%s395 + $0x28] sm:$0xff] %v6457
        %6522 = vst [vmem:[%s395 + $0x38] sm:$0xff] %v6458
        %6523 = vst [vmem:[%s395 + $0x48] sm:$0xff] %v6459
        %6524 = vst [vmem:[%s395 + $0x58] sm:$0xff] %v6460
        %6525 = vst [vmem:[%s395 + $0x68] sm:$0xff] %v6461
        %6526 = vst [vmem:[%s395 + $0x78] sm:$0xff] %v6462
        %6527 = vst [vmem:[%s395 + $0x88] sm:$0xff] %v6463
        %6528 = vst [vmem:[%s395 + $0x98] sm:$0xff] %v6464
        %6529 = vst [vmem:[%s395 + $0xa8] sm:$0xff] %v6465
        %6530 = vst [vmem:[%s395 + $0xb8] sm:$0xff] %v6466
        %6531 = vst [vmem:[%s395 + $0xc8] sm:$0xff] %v6467
        %6532 = vst [vmem:[%s395 + $0xd8] sm:$0xff] %v6468
        %6533 = vst [vmem:[%s395 + $0xe8] sm:$0xff] %v6469
        %6534 = vst [vmem:[%s395 + $0xf8] sm:$0xff] %v6470
        %6535 = vst [vmem:[%s395 + $0x108] sm:$0xff] %v6471
        %6536 = vst [vmem:[%s395 + $0x118] sm:$0xff] %v6472
        %6537 = vst [vmem:[%s395 + $0x128] sm:$0xff] %v6473
        %6538 = vst [vmem:[%s395 + $0x138] sm:$0xff] %v6474
        %6539 = vst [vmem:[%s395 + $0x148] sm:$0xff] %v6475
        %6540 = vst [vmem:[%s395 + $0x158] sm:$0xff] %v6476
        %6541 = vst [vmem:[%s395 + $0x168] sm:$0xff] %v6477
        %6542 = vst [vmem:[%s395 + $0x178] sm:$0xff] %v6478
        %6543 = vst [vmem:[%s395 + $0x188] sm:$0xff] %v6479
        %6544 = vst [vmem:[%s395 + $0x198] sm:$0xff] %v6480
        %6545 = vst [vmem:[%s395 + $0x1a8] sm:$0xff] %v6481
        %6546 = vst [vmem:[%s395 + $0x1b8] sm:$0xff] %v6482
        %6547 = vst [vmem:[%s395 + $0x1c8] sm:$0xff] %v6483
        %6548 = vst [vmem:[%s395 + $0x1d8] sm:$0xff] %v6484
        %6549 = vst [vmem:[%s395 + $0x1e8] sm:$0xff] %v6485
        %6550 = vst [vmem:[%s395 + $0x1f8] sm:$0xff] %v6486
        %6551 = vst [vmem:[%s395 + $0x208] sm:$0xff] %v6487
        %6552 = vst [vmem:[%s395 + $0x218] sm:$0xff] %v6488
        %6553 = vst [vmem:[%s395 + $0x228] sm:$0xff] %v6489
        %6554 = vst [vmem:[%s395 + $0x238] sm:$0xff] %v6490
        %6555 = vst [vmem:[%s395 + $0x248] sm:$0xff] %v6491
        %6556 = vst [vmem:[%s395 + $0x258] sm:$0xff] %v6492
        %6557 = vst [vmem:[%s395 + $0x268] sm:$0xff] %v6493
        %6558 = vst [vmem:[%s395 + $0x278] sm:$0xff] %v6494
        %6559 = vst [vmem:[%s395 + $0x288] sm:$0xff] %v6495
        %6560 = vst [vmem:[%s395 + $0x298] sm:$0xff] %v6496
        %6561 = vst [vmem:[%s395 + $0x2a8] sm:$0xff] %v6497
        %6562 = vst [vmem:[%s395 + $0x2b8] sm:$0xff] %v6498
        %6563 = vst [vmem:[%s395 + $0x2c8] sm:$0xff] %v6499
        %6564 = vst [vmem:[%s395 + $0x2d8] sm:$0xff] %v6500
        %6565 = vst [vmem:[%s395 + $0x2e8] sm:$0xff] %v6501
        %6566 = vst [vmem:[%s395 + $0x2f8] sm:$0xff] %v6502
        %6567 = vst [vmem:[%s395 + $0x308] sm:$0xff] %v6503
        %6568 = vst [vmem:[%s395 + $0x318] sm:$0xff] %v6504
        %6569 = vst [vmem:[%s395 + $0x328] sm:$0xff] %v6505
        %6570 = vst [vmem:[%s395 + $0x338] sm:$0xff] %v6506
        %6571 = vst [vmem:[%s395 + $0x348] sm:$0xff] %v6507
        %6572 = vst [vmem:[%s395 + $0x358] sm:$0xff] %v6508
        %6573 = vst [vmem:[%s395 + $0x368] sm:$0xff] %v6509
        %6574 = vst [vmem:[%s395 + $0x378] sm:$0xff] %v6510
        %6575 = vst [vmem:[%s395 + $0x388] sm:$0xff] %v6511
        %6576 = vst [vmem:[%s395 + $0x398] sm:$0xff] %v6512
        %6577 = vst [vmem:[%s395 + $0x3a8] sm:$0xff] %v6513
        %6578 = vst [vmem:[%s395 + $0x3b8] sm:$0xff] %v6514
        %6579 = vst [vmem:[%s395 + $0x3c8] sm:$0xff] %v6515
        %6580 = vst [vmem:[%s395 + $0x3d8] sm:$0xff] %v6516
        %6581 = vst [vmem:[%s395 + $0x3e8] sm:$0xff] %v6517
        %6582 = vst [vmem:[%s395 + $0x3f8] sm:$0xff] %v6518
        %s6583 = sand.u32 %s270, 1
        %s6584 = scalar_lea.sflag [#allocation4], %s6583
        %s6585 = sand.u32 %s270, 1
        %s6586 = smul.addr %s6585, 1024
        %s6587 = scalar_lea.vmem [#allocation5], %s6586
        // Predicated region
        $region69: #{tpu_custom_call.1} parent=63 // pred_check
          %p6588 = pneg %p280
        $region70: #{tpu_custom_call.1} parent=63 // pred_check_branch
          %6590 = sbr.rel (%p6588) target = $region72
        $region71: #{tpu_custom_call.1} parent=63 // pred_region
          %s6591 = smul.u32 64, %s26
          %s6593 = ssub.s32 16384, 16384
          %6594 = vsyncadd %s6584, %s6593
          %s6595 = smul.addr %s6591, 2
          %s6596 = smul.addr %s6595, 128
          %s6597 = scalar_lea.hbm %s11, %s6596
          %s6598 = sshll.u32 %s6587, 4
          %s6599 = int_to_ptr.vmem [resolvable:$true] %s6598
          %6604 = dma.vmem_to_hbm [thread:$0]  %s6599, 16384, %s6597, %s6584, 256, 256, 16
        $region72: #{tpu_custom_call.1} parent=63 // pred_fallthru
          _
      $region64: #{tpu_custom_call.1} parent=5 // pred_fallthru
        _
      %p6605 = scmp.le.s32.totalorder 2, %s21
      // Predicated region
      $region73: #{tpu_custom_call.1} parent=5 // pred_check
        %p6606 = pneg %p6605
      $region74: #{tpu_custom_call.1} parent=5 // pred_check_branch
        %6608 = sbr.rel (%p6606) target = $region76
      $region75: #{tpu_custom_call.1} parent=5 // pred_region
        %s6609 = ssub.s32 %s21, 2
        // Predicated region
        $region77: #{tpu_custom_call.1} parent=75 // pred_check
          %p6610 = pneg %p286
        $region78: #{tpu_custom_call.1} parent=75 // pred_check_branch
          %6612 = sbr.rel (%p6610) target = $region80
        $region79: #{tpu_custom_call.1} parent=75 // pred_region
          %s6613 = sand.u32 %s271, 1
          %s6614 = scalar_lea.sflag [#allocation4], %s6613
          %s6615 = sand.u32 %s271, 1
          %s6616 = smul.addr %s6615, 1024
          %s6617 = scalar_lea.vmem [#allocation5], %s6616
          %6618 = dma.done %s6614, 16384
        $region80: #{tpu_custom_call.1} parent=75 // pred_fallthru
          _
      $region76: #{tpu_custom_call.1} parent=5 // pred_fallthru
        _
    $region6: #{tpu_custom_call.1} parent=1 // loop_footer
      %s25 = sadd.s32 1, %s21
    $region7: #{tpu_custom_call.1} parent=1 // loop_footer_branch
      %20 = sbr.rel target = $region3
    $region8: #{tpu_custom_call.1} parent=1 // loop_exit
      _
    %6619 = vsyncpa [#allocation3], 1
    %s6620 = scalar_lea.sflag [#allocation3], 1
    %6621 = vsyncpa %s6620, 1
    %6622 = vsyncpa [#allocation4], 1
    %s6623 = scalar_lea.sflag [#allocation4], 1
    %6624 = vsyncpa %s6623, 1

</llo_original>
